<compile_context>
chip_gen: v6e
topology: v6e:2x2x1
jax: 0.10.0
libtpu: 0.0.40
codegen_flags: <defaults>
</compile_context>

<pallas_src>
import jax
import jax.numpy as jnp
from jax.experimental import pallas as pl
from jax.experimental.pallas import tpu as pltpu

NUM_CLASSES = 10
KSIZE = 5
C1_OUT, C2_OUT = 20, 50          # real conv output channels
C1P, C2P = 128, 128              # lane-padded conv output channels
KP1 = 32                         # conv1 im2col K (25) padded to 32
FC1_OUT, FC1P = 500, 512         # fc1 width (padded)
FC2P = 128                       # fc2 width (padded from 10)
P1_PAD_ROWS = 56                 # >= max conv2 shift offset (4*12+4=52), mult of 8


# ----------------------------------------------------------------------------
# Fused forward kernel
# ----------------------------------------------------------------------------
def _fused_kernel(cols1_ref, w1_ref, b1_ref, w2_ref, b2_ref,
                  w1fc_ref, b1fc_ref, w2fc_ref, b2fc_ref,
                  out_ref, p1_ref, a2_ref, feats_ref):
    f32 = jnp.float32
    n = out_ref.shape[0]                 # batch
    r1 = n * 144                         # rows of the (n, 12, 12) pool1 map
    c2p = a2_ref.shape[1]                # 128 lane-padded conv2 out channels

    # ---- conv1 (+bias+ReLU) for all 4 pool quadrants in ONE GEMM; pool1 is a
    #      max over the 4 contiguous quadrant row blocks ----
    y1 = jnp.dot(cols1_ref[...], w1_ref[...], preferred_element_type=f32)
    y1 = jnp.maximum(y1 + b1_ref[...], 0.0)
    p1 = jnp.maximum(jnp.maximum(y1[0:r1], y1[r1:2 * r1]),
                     jnp.maximum(y1[2 * r1:3 * r1], y1[3 * r1:4 * r1]))
    p1_ref[0:r1, :] = p1.astype(p1_ref.dtype)
    p1_ref[r1:, :] = jnp.zeros((p1_ref.shape[0] - r1, p1_ref.shape[1]),
                               p1_ref.dtype)

    # ---- conv2 as ONE im2col GEMM.  The patch matrix is 25 shifted row-slices
    #      of the (n, y, z)-ordered p1 map, concatenated along 128-aligned lane
    #      blocks; w2 is pre-packed as a single (25*128, 128) matrix.  Rows with
    #      y >= 8 or z >= 8 are garbage and are never read downstream. ----
    lhs = jnp.concatenate(
        [p1_ref[pl.ds(i * 12 + j, r1), :]
         for i in range(KSIZE) for j in range(KSIZE)], axis=-1)     # (r1, 3200)
    a2 = jnp.dot(lhs, w2_ref[...], preferred_element_type=f32)      # (r1, 128)
    a2_ref[...] = jnp.maximum(a2 + b2_ref[...], 0.0)

    # ---- pool2 (2x2 / stride 2) fused with the NCHW flatten: for each of the
    #      16 output spatial positions gather the 4 window rows (stride 144 over
    #      samples), max them, and write the (n, 128) block into its 128-aligned
    #      lane slot of the fc1 feature scratch (so fc1 is one GEMM). ----
    for h4 in range(4):
        for w4 in range(4):
            base = (2 * h4) * 12 + (2 * w4)
            v = jnp.maximum(
                jnp.maximum(a2_ref[pl.ds(base, n, 144), :],
                            a2_ref[pl.ds(base + 1, n, 144), :]),
                jnp.maximum(a2_ref[pl.ds(base + 12, n, 144), :],
                            a2_ref[pl.ds(base + 13, n, 144), :]))
            s = h4 * 4 + w4
            feats_ref[:, s * c2p:(s + 1) * c2p] = v.astype(feats_ref.dtype)

    # ---- fc1 (ONE GEMM) + ReLU ----
    h1 = jnp.dot(feats_ref[...], w1fc_ref[...], preferred_element_type=f32)
    h1 = jnp.maximum(h1 + b1fc_ref[...], 0.0)

    # ---- fc2 + masked, numerically stable log-softmax (all f32) ----
    logits = jnp.dot(h1.astype(w2fc_ref.dtype), w2fc_ref[...],
                     preferred_element_type=f32) + b2fc_ref[...]
    col = jax.lax.broadcasted_iota(jnp.int32, logits.shape, 1)
    logits = jnp.where(col < NUM_CLASSES, logits, -1e30)
    m = jnp.max(logits, axis=-1, keepdims=True)
    sh = logits - m
    lse = jnp.log(jnp.sum(jnp.exp(sh), axis=-1, keepdims=True))
    out_ref[...] = (sh - lse).astype(out_ref.dtype)


def _full_spec(shape):
    zeros = (0,) * len(shape)
    return pl.BlockSpec(shape, lambda i: zeros)


def _fused_forward_call(cols1, prep, n):
    r1 = n * 144
    operands = (cols1, prep["w1"], prep["b1"], prep["w2"], prep["b2"],
                prep["w1fc"], prep["b1fc"], prep["w2fc"], prep["b2fc"])
    return pl.pallas_call(
        _fused_kernel,
        out_shape=jax.ShapeDtypeStruct((n, FC2P), jnp.float32),
        grid=(1,),
        in_specs=[_full_spec(op.shape) for op in operands],
        out_specs=_full_spec((n, FC2P)),
        scratch_shapes=[
            pltpu.VMEM((r1 + P1_PAD_ROWS, C1P), jnp.bfloat16),   # pool1 output map
            pltpu.VMEM((r1, C2P), jnp.float32),                  # conv2 + relu
            pltpu.VMEM((n, 16 * C2P), jnp.bfloat16),             # fc1 features
        ],
        compiler_params=pltpu.CompilerParams(
            dimension_semantics=("arbitrary",),
            vmem_limit_bytes=32 * 1024 * 1024,   # right-sized; covers batch <= 8
        ),
    )(*operands)


# ----------------------------------------------------------------------------
# Input-side glue: one fused patch-extraction op + quadrant slicing
# ----------------------------------------------------------------------------
def _conv1_pool_patches(x_nchw):
    """x: (N, 1, 28, 28) -> (4*N*144, 32) bf16 im2col rows ordered (q, n, y, z)
    where q indexes the 2x2 pool-quadrant offset of conv1's output."""
    n = x_nchw.shape[0]
    x = x_nchw.astype(jnp.float32)
    pat = jax.lax.conv_general_dilated_patches(
        x, filter_shape=(KSIZE, KSIZE), window_strides=(1, 1), padding="VALID")
    # (N, 25, 24, 24); single input channel -> feature index = ki*5 + kj
    pat = jnp.transpose(pat, (0, 2, 3, 1))                       # (N, 24, 24, 25)
    quads = [pat[:, dy::2, dx::2, :] for dy in (0, 1) for dx in (0, 1)]
    cols = jnp.stack(quads, axis=0)                              # (4, N, 12, 12, 25)
    cols = cols.reshape(4 * n * 144, KSIZE * KSIZE)
    cols = jnp.pad(cols, ((0, 0), (0, KP1 - KSIZE * KSIZE)))
    return cols.astype(jnp.bfloat16)


# ----------------------------------------------------------------------------
# One-time parameter packing (batch-size independent)
# ----------------------------------------------------------------------------
def prepare_params(params):
    f32, bf16 = jnp.float32, jnp.bfloat16
    # conv1 (20,1,5,5) -> rows ki*5+kj, cols cout; pad (25,20) -> (32,128)
    w1 = jnp.transpose(params["conv1_w"].astype(f32), (2, 3, 1, 0)).reshape(25, C1_OUT)
    w1p = jnp.zeros((KP1, C1P), f32).at[:25, :C1_OUT].set(w1).astype(bf16)
    b1p = jnp.zeros((1, C1P), f32).at[0, :C1_OUT].set(params["conv1_b"].astype(f32))
    # conv2 (50,20,5,5) -> (i,j,cin,cout) padded -> single (25*128, 128) matrix
    w2 = jnp.transpose(params["conv2_w"].astype(f32), (2, 3, 1, 0))   # (5,5,20,50)
    w2p = jnp.zeros((KSIZE, KSIZE, C1P, C2P), f32).at[:, :, :C1_OUT, :C2_OUT].set(w2)
    w2p = w2p.reshape(KSIZE * KSIZE * C1P, C2P).astype(bf16)          # (3200, 128)
    b2p = jnp.zeros((1, C2P), f32).at[0, :C2_OUT].set(params["conv2_b"].astype(f32))
    # fc1 (500, 800); torch flatten f = c*16 + s  ->  rows ordered s*128 + c
    wf1 = params["fc1_w"].astype(f32).T.reshape(C2_OUT, 16, FC1_OUT).transpose(1, 0, 2)
    w1fc = jnp.zeros((16, C2P, FC1P), f32).at[:, :C2_OUT, :FC1_OUT].set(wf1)
    w1fc = w1fc.reshape(16 * C2P, FC1P).astype(bf16)                  # (2048, 512)
    b1fc = jnp.zeros((1, FC1P), f32).at[0, :FC1_OUT].set(params["fc1_b"].astype(f32))
    # fc2 (10, 500) -> (512, 128)
    w2fc = jnp.zeros((FC1P, FC2P), f32).at[:FC1_OUT, :NUM_CLASSES].set(
        params["fc2_w"].astype(f32).T).astype(bf16)
    b2fc = jnp.zeros((1, FC2P), f32).at[0, :NUM_CLASSES].set(params["fc2_b"].astype(f32))
    return {"w1": w1p, "b1": b1p, "w2": w2p, "b2": b2p,
            "w1fc": w1fc, "b1fc": b1fc, "w2fc": w2fc, "b2fc": b2fc}


# ----------------------------------------------------------------------------
# Forward pass (jittable)
# ----------------------------------------------------------------------------
def net_forward(x_nchw, prep):
    assert x_nchw.shape[1:] == (1, 28, 28), x_nchw.shape
    n = x_nchw.shape[0]
    cols1 = _conv1_pool_patches(x_nchw)            # (4*N*144, 32) bf16
    out = _fused_forward_call(cols1, prep, n)      # (N, 128) f32, lane-dense
    return out[:, :NUM_CLASSES]


# ----------------------------------------------------------------------------
# Pure-XLA reference (correctness check only)
# ----------------------------------------------------------------------------
def net_forward_reference(x_nchw, params):
    hp = jax.lax.Precision.HIGHEST
    x = x_nchw.astype(jnp.float32)
    y = jax.lax.conv_general_dilated(x, params["conv1_w"], (1, 1), "VALID",
                                     dimension_numbers=("NCHW", "OIHW", "NCHW"),
                                     precision=hp)
    y = jnp.maximum(y + params["conv1_b"][None, :, None, None], 0.0)
    y = jax.lax.reduce_window(y, -jnp.inf, jax.lax.max, (1, 1, 2, 2), (1, 1, 2, 2), "VALID")
    y = jax.lax.conv_general_dilated(y, params["conv2_w"], (1, 1), "VALID",
                                     dimension_numbers=("NCHW", "OIHW", "NCHW"),
                                     precision=hp)
    y = jnp.maximum(y + params["conv2_b"][None, :, None, None], 0.0)
    y = jax.lax.reduce_window(y, -jnp.inf, jax.lax.max, (1, 1, 2, 2), (1, 1, 2, 2), "VALID")
    y = y.reshape(y.shape[0], -1)                  # NCHW flatten -> (N, 800)
    y = jnp.maximum(jnp.dot(y, params["fc1_w"].T, precision=hp) + params["fc1_b"], 0.0)
    y = jnp.dot(y, params["fc2_w"].T, precision=hp) + params["fc2_b"]
    return jax.nn.log_softmax(y, axis=-1)


# ----------------------------------------------------------------------------
# Deterministic parameter init (shapes from Net.__init__, PyTorch layouts)
# ----------------------------------------------------------------------------
def init_params(key):
    ks = jax.random.split(key, 8)

    def u(k, shape, fan_in):
        bound = 1.0 / jnp.sqrt(fan_in)
        return jax.random.uniform(k, shape, jnp.float32, -bound, bound)

    return {
        "conv1_w": u(ks[0], (20, 1, 5, 5), 1 * 5 * 5),
        "conv1_b": u(ks[1], (20,), 1 * 5 * 5),
        "conv2_w": u(ks[2], (50, 20, 5, 5), 20 * 5 * 5),
        "conv2_b": u(ks[3], (50,), 20 * 5 * 5),
        "fc1_w": u(ks[4], (500, 800), 800),        # PyTorch Linear: (out, in)
        "fc1_b": u(ks[5], (500,), 800),
        "fc2_w": u(ks[6], (10, 500), 500),
        "fc2_b": u(ks[7], (10,), 500),
    }


if __name__ == "__main__":
    key = jax.random.PRNGKey(0)
    pkey, xkey = jax.random.split(key)
    params = init_params(pkey)

    # Input must be 28x28 so that two conv+pool stages yield 4*4*50 features.
    x = jax.random.normal(xkey, (2, 1, 28, 28), jnp.float32)

    prep = prepare_params(params)                  # one-time, batch-independent
    fwd = jax.jit(net_forward)
    out = jax.block_until_ready(fwd(x, prep))

    assert out.shape == (2, NUM_CLASSES), out.shape
    assert bool(jnp.all(jnp.isfinite(out)))
    row_sums = jnp.sum(jnp.exp(out), axis=1)
    assert bool(jnp.allclose(row_sums, 1.0, atol=1e-4)), row_sums

    ref = net_forward_reference(x, params)
    max_err = float(jnp.max(jnp.abs(out - ref)))
    assert max_err < 5e-2, f"mismatch vs XLA reference, max abs err = {max_err}"

    print("KERNEL_OK")
</pallas_src>

<mosaic_0001>
module attributes {stable_mosaic.version = 11 : i64} {
  func.func @_fused_kernel(%arg0: i32, %arg1: memref<1152x32xbf16, #tpu.memory_space<vmem>>, %arg2: memref<32x128xbf16, #tpu.memory_space<vmem>>, %arg3: memref<1x128xf32, #tpu.memory_space<vmem>>, %arg4: memref<3200x128xbf16, #tpu.memory_space<vmem>>, %arg5: memref<1x128xf32, #tpu.memory_space<vmem>>, %arg6: memref<2048x512xbf16, #tpu.memory_space<vmem>>, %arg7: memref<1x512xf32, #tpu.memory_space<vmem>>, %arg8: memref<512x128xbf16, #tpu.memory_space<vmem>>, %arg9: memref<1x128xf32, #tpu.memory_space<vmem>>, %arg10: memref<2x128xf32, #tpu.memory_space<vmem>>, %arg11: memref<344x128xbf16, #tpu.memory_space<vmem>>, %arg12: memref<288x128xf32, #tpu.memory_space<vmem>>, %arg13: memref<2x2048xbf16, #tpu.memory_space<vmem>>) attributes {dimension_semantics = [#tpu.dimension_semantics<arbitrary>], iteration_bounds = array<i64: 1>, scalar_prefetch = 0 : i64, scratch_operands = 3 : i64, tpu.core_type = #tpu.core_type<tc>, window_params = [{pipeline_mode = #tpu.pipeline_mode<synchronous>, transform_indices = @transform_0, window_bounds = array<i64: 1152, 32>}, {pipeline_mode = #tpu.pipeline_mode<synchronous>, transform_indices = @transform_1, window_bounds = array<i64: 32, 128>}, {pipeline_mode = #tpu.pipeline_mode<synchronous>, transform_indices = @transform_2, window_bounds = array<i64: 1, 128>}, {pipeline_mode = #tpu.pipeline_mode<synchronous>, transform_indices = @transform_3, window_bounds = array<i64: 3200, 128>}, {pipeline_mode = #tpu.pipeline_mode<synchronous>, transform_indices = @transform_4, window_bounds = array<i64: 1, 128>}, {pipeline_mode = #tpu.pipeline_mode<synchronous>, transform_indices = @transform_5, window_bounds = array<i64: 2048, 512>}, {pipeline_mode = #tpu.pipeline_mode<synchronous>, transform_indices = @transform_6, window_bounds = array<i64: 1, 512>}, {pipeline_mode = #tpu.pipeline_mode<synchronous>, transform_indices = @transform_7, window_bounds = array<i64: 512, 128>}, {pipeline_mode = #tpu.pipeline_mode<synchronous>, transform_indices = @transform_8, window_bounds = array<i64: 1, 128>}, {pipeline_mode = #tpu.pipeline_mode<synchronous>, transform_indices = @transform_9, window_bounds = array<i64: 2, 128>}]} {
    %c0 = arith.constant 0 : index
    %c0_0 = arith.constant 0 : index
    %0 = vector.load %arg1[%c0, %c0_0] : memref<1152x32xbf16, #tpu.memory_space<vmem>>, vector<1152x32xbf16>
    %c0_1 = arith.constant 0 : index
    %c0_2 = arith.constant 0 : index
    %1 = vector.load %arg2[%c0_1, %c0_2] : memref<32x128xbf16, #tpu.memory_space<vmem>>, vector<32x128xbf16>
    %cst = arith.constant dense<0.000000e+00> : vector<1152x128xf32>
    %2 = tpu.matmul %0, %1, %cst {dimension_numbers = #tpu.dot_dimension_numbers<[1], [0], [0], [1], [0, 0, 1, 1], [], []>} : vector<1152x32xbf16>, vector<32x128xbf16>, vector<1152x128xf32> -> vector<1152x128xf32>
    %c0_3 = arith.constant 0 : index
    %c0_4 = arith.constant 0 : index
    %3 = vector.load %arg3[%c0_3, %c0_4] : memref<1x128xf32, #tpu.memory_space<vmem>>, vector<1x128xf32>
    %4 = vector.broadcast %3 : vector<1x128xf32> to vector<1152x128xf32>
    %5 = arith.addf %2, %4 : vector<1152x128xf32>
    %cst_5 = arith.constant 0.000000e+00 : f32
    %6 = vector.broadcast %cst_5 : f32 to vector<1152x128xf32>
    %7 = arith.maximumf %5, %6 : vector<1152x128xf32>
    %8 = vector.extract_strided_slice %7 {offsets = [0, 0], sizes = [288, 128], strides = [1, 1]} : vector<1152x128xf32> to vector<288x128xf32>
    %9 = vector.extract_strided_slice %7 {offsets = [288, 0], sizes = [288, 128], strides = [1, 1]} : vector<1152x128xf32> to vector<288x128xf32>
    %10 = arith.maximumf %8, %9 : vector<288x128xf32>
    %11 = vector.extract_strided_slice %7 {offsets = [576, 0], sizes = [288, 128], strides = [1, 1]} : vector<1152x128xf32> to vector<288x128xf32>
    %12 = vector.extract_strided_slice %7 {offsets = [864, 0], sizes = [288, 128], strides = [1, 1]} : vector<1152x128xf32> to vector<288x128xf32>
    %13 = arith.maximumf %11, %12 : vector<288x128xf32>
    %14 = arith.maximumf %10, %13 : vector<288x128xf32>
    %15 = arith.truncf %14 : vector<288x128xf32> to vector<288x128xbf16>
    %c0_6 = arith.constant 0 : index
    %c0_7 = arith.constant 0 : index
    %16 = vector.load %arg11[%c0_6, %c0_7] : memref<344x128xbf16, #tpu.memory_space<vmem>>, vector<288x128xbf16>
    tpu.vector_store %arg11[%c0_6, %c0_7], %15 {strides = array<i32>} : memref<344x128xbf16, #tpu.memory_space<vmem>>, vector<288x128xbf16>,
    %cst_8 = arith.constant 0.000000e+00 : bf16
    %17 = vector.broadcast %cst_8 : bf16 to vector<56x128xbf16>
    %c288 = arith.constant 288 : index
    %c0_9 = arith.constant 0 : index
    %18 = vector.load %arg11[%c288, %c0_9] : memref<344x128xbf16, #tpu.memory_space<vmem>>, vector<56x128xbf16>
    tpu.vector_store %arg11[%c288, %c0_9], %17 {strides = array<i32>} : memref<344x128xbf16, #tpu.memory_space<vmem>>, vector<56x128xbf16>,
    %c0_10 = arith.constant 0 : index
    %c0_11 = arith.constant 0 : index
    %19 = vector.load %arg11[%c0_10, %c0_11] : memref<344x128xbf16, #tpu.memory_space<vmem>>, vector<288x128xbf16>
    %c1 = arith.constant 1 : index
    %c0_12 = arith.constant 0 : index
    %20 = vector.load %arg11[%c1, %c0_12] : memref<344x128xbf16, #tpu.memory_space<vmem>>, vector<288x128xbf16>
    %c2 = arith.constant 2 : index
    %c0_13 = arith.constant 0 : index
    %21 = vector.load %arg11[%c2, %c0_13] : memref<344x128xbf16, #tpu.memory_space<vmem>>, vector<288x128xbf16>
    %c3 = arith.constant 3 : index
    %c0_14 = arith.constant 0 : index
    %22 = vector.load %arg11[%c3, %c0_14] : memref<344x128xbf16, #tpu.memory_space<vmem>>, vector<288x128xbf16>
    %c4 = arith.constant 4 : index
    %c0_15 = arith.constant 0 : index
    %23 = vector.load %arg11[%c4, %c0_15] : memref<344x128xbf16, #tpu.memory_space<vmem>>, vector<288x128xbf16>
    %c12 = arith.constant 12 : index
    %c0_16 = arith.constant 0 : index
    %24 = vector.load %arg11[%c12, %c0_16] : memref<344x128xbf16, #tpu.memory_space<vmem>>, vector<288x128xbf16>
    %c13 = arith.constant 13 : index
    %c0_17 = arith.constant 0 : index
    %25 = vector.load %arg11[%c13, %c0_17] : memref<344x128xbf16, #tpu.memory_space<vmem>>, vector<288x128xbf16>
    %c14 = arith.constant 14 : index
    %c0_18 = arith.constant 0 : index
    %26 = vector.load %arg11[%c14, %c0_18] : memref<344x128xbf16, #tpu.memory_space<vmem>>, vector<288x128xbf16>
    %c15 = arith.constant 15 : index
    %c0_19 = arith.constant 0 : index
    %27 = vector.load %arg11[%c15, %c0_19] : memref<344x128xbf16, #tpu.memory_space<vmem>>, vector<288x128xbf16>
    %c16 = arith.constant 16 : index
    %c0_20 = arith.constant 0 : index
    %28 = vector.load %arg11[%c16, %c0_20] : memref<344x128xbf16, #tpu.memory_space<vmem>>, vector<288x128xbf16>
    %c24 = arith.constant 24 : index
    %c0_21 = arith.constant 0 : index
    %29 = vector.load %arg11[%c24, %c0_21] : memref<344x128xbf16, #tpu.memory_space<vmem>>, vector<288x128xbf16>
    %c25 = arith.constant 25 : index
    %c0_22 = arith.constant 0 : index
    %30 = vector.load %arg11[%c25, %c0_22] : memref<344x128xbf16, #tpu.memory_space<vmem>>, vector<288x128xbf16>
    %c26 = arith.constant 26 : index
    %c0_23 = arith.constant 0 : index
    %31 = vector.load %arg11[%c26, %c0_23] : memref<344x128xbf16, #tpu.memory_space<vmem>>, vector<288x128xbf16>
    %c27 = arith.constant 27 : index
    %c0_24 = arith.constant 0 : index
    %32 = vector.load %arg11[%c27, %c0_24] : memref<344x128xbf16, #tpu.memory_space<vmem>>, vector<288x128xbf16>
    %c28 = arith.constant 28 : index
    %c0_25 = arith.constant 0 : index
    %33 = vector.load %arg11[%c28, %c0_25] : memref<344x128xbf16, #tpu.memory_space<vmem>>, vector<288x128xbf16>
    %c36 = arith.constant 36 : index
    %c0_26 = arith.constant 0 : index
    %34 = vector.load %arg11[%c36, %c0_26] : memref<344x128xbf16, #tpu.memory_space<vmem>>, vector<288x128xbf16>
    %c37 = arith.constant 37 : index
    %c0_27 = arith.constant 0 : index
    %35 = vector.load %arg11[%c37, %c0_27] : memref<344x128xbf16, #tpu.memory_space<vmem>>, vector<288x128xbf16>
    %c38 = arith.constant 38 : index
    %c0_28 = arith.constant 0 : index
    %36 = vector.load %arg11[%c38, %c0_28] : memref<344x128xbf16, #tpu.memory_space<vmem>>, vector<288x128xbf16>
    %c39 = arith.constant 39 : index
    %c0_29 = arith.constant 0 : index
    %37 = vector.load %arg11[%c39, %c0_29] : memref<344x128xbf16, #tpu.memory_space<vmem>>, vector<288x128xbf16>
    %c40 = arith.constant 40 : index
    %c0_30 = arith.constant 0 : index
    %38 = vector.load %arg11[%c40, %c0_30] : memref<344x128xbf16, #tpu.memory_space<vmem>>, vector<288x128xbf16>
    %c48 = arith.constant 48 : index
    %c0_31 = arith.constant 0 : index
    %39 = vector.load %arg11[%c48, %c0_31] : memref<344x128xbf16, #tpu.memory_space<vmem>>, vector<288x128xbf16>
    %c49 = arith.constant 49 : index
    %c0_32 = arith.constant 0 : index
    %40 = vector.load %arg11[%c49, %c0_32] : memref<344x128xbf16, #tpu.memory_space<vmem>>, vector<288x128xbf16>
    %c50 = arith.constant 50 : index
    %c0_33 = arith.constant 0 : index
    %41 = vector.load %arg11[%c50, %c0_33] : memref<344x128xbf16, #tpu.memory_space<vmem>>, vector<288x128xbf16>
    %c51 = arith.constant 51 : index
    %c0_34 = arith.constant 0 : index
    %42 = vector.load %arg11[%c51, %c0_34] : memref<344x128xbf16, #tpu.memory_space<vmem>>, vector<288x128xbf16>
    %c52 = arith.constant 52 : index
    %c0_35 = arith.constant 0 : index
    %43 = vector.load %arg11[%c52, %c0_35] : memref<344x128xbf16, #tpu.memory_space<vmem>>, vector<288x128xbf16>
    %44 = tpu.concatenate %19, %20, %21, %22, %23, %24, %25, %26, %27, %28, %29, %30, %31, %32, %33, %34 in 1 : vector<288x128xbf16>, vector<288x128xbf16>, vector<288x128xbf16>, vector<288x128xbf16>, vector<288x128xbf16>, vector<288x128xbf16>, vector<288x128xbf16>, vector<288x128xbf16>, vector<288x128xbf16>, vector<288x128xbf16>, vector<288x128xbf16>, vector<288x128xbf16>, vector<288x128xbf16>, vector<288x128xbf16>, vector<288x128xbf16>, vector<288x128xbf16> -> vector<288x2048xbf16>
    %45 = tpu.concatenate %35, %36, %37, %38, %39, %40, %41, %42, %43 in 1 : vector<288x128xbf16>, vector<288x128xbf16>, vector<288x128xbf16>, vector<288x128xbf16>, vector<288x128xbf16>, vector<288x128xbf16>, vector<288x128xbf16>, vector<288x128xbf16>, vector<288x128xbf16> -> vector<288x1152xbf16>
    %46 = tpu.concatenate %44, %45 in 1 : vector<288x2048xbf16>, vector<288x1152xbf16> -> vector<288x3200xbf16>
    %c0_36 = arith.constant 0 : index
    %c0_37 = arith.constant 0 : index
    %47 = vector.load %arg4[%c0_36, %c0_37] : memref<3200x128xbf16, #tpu.memory_space<vmem>>, vector<3200x128xbf16>
    %cst_38 = arith.constant dense<0.000000e+00> : vector<288x128xf32>
    %48 = tpu.matmul %46, %47, %cst_38 {dimension_numbers = #tpu.dot_dimension_numbers<[1], [0], [0], [1], [0, 0, 1, 1], [], []>} : vector<288x3200xbf16>, vector<3200x128xbf16>, vector<288x128xf32> -> vector<288x128xf32>
    %c0_39 = arith.constant 0 : index
    %c0_40 = arith.constant 0 : index
    %49 = vector.load %arg5[%c0_39, %c0_40] : memref<1x128xf32, #tpu.memory_space<vmem>>, vector<1x128xf32>
    %50 = vector.broadcast %49 : vector<1x128xf32> to vector<288x128xf32>
    %51 = arith.addf %48, %50 : vector<288x128xf32>
    %cst_41 = arith.constant 0.000000e+00 : f32
    %52 = vector.broadcast %cst_41 : f32 to vector<288x128xf32>
    %53 = arith.maximumf %51, %52 : vector<288x128xf32>
    %c0_42 = arith.constant 0 : index
    %c0_43 = arith.constant 0 : index
    %54 = vector.load %arg12[%c0_42, %c0_43] : memref<288x128xf32, #tpu.memory_space<vmem>>, vector<288x128xf32>
    tpu.vector_store %arg12[%c0_42, %c0_43], %53 {strides = array<i32>} : memref<288x128xf32, #tpu.memory_space<vmem>>, vector<288x128xf32>,
    %c0_44 = arith.constant 0 : index
    %c0_45 = arith.constant 0 : index
    %55 = tpu.strided_load %arg12[%c0_44, %c0_45] {strides = array<i32: 144, 1>} : memref<288x128xf32, #tpu.memory_space<vmem>>, vector<2x128xf32>
    %c1_46 = arith.constant 1 : index
    %c0_47 = arith.constant 0 : index
    %56 = tpu.strided_load %arg12[%c1_46, %c0_47] {strides = array<i32: 144, 1>} : memref<288x128xf32, #tpu.memory_space<vmem>>, vector<2x128xf32>
    %57 = arith.maximumf %55, %56 : vector<2x128xf32>
    %c12_48 = arith.constant 12 : index
    %c0_49 = arith.constant 0 : index
    %58 = tpu.strided_load %arg12[%c12_48, %c0_49] {strides = array<i32: 144, 1>} : memref<288x128xf32, #tpu.memory_space<vmem>>, vector<2x128xf32>
    %c13_50 = arith.constant 13 : index
    %c0_51 = arith.constant 0 : index
    %59 = tpu.strided_load %arg12[%c13_50, %c0_51] {strides = array<i32: 144, 1>} : memref<288x128xf32, #tpu.memory_space<vmem>>, vector<2x128xf32>
    %60 = arith.maximumf %58, %59 : vector<2x128xf32>
    %61 = arith.maximumf %57, %60 : vector<2x128xf32>
    %62 = arith.truncf %61 : vector<2x128xf32> to vector<2x128xbf16>
    %c0_52 = arith.constant 0 : index
    %c0_53 = arith.constant 0 : index
    %63 = vector.load %arg13[%c0_52, %c0_53] : memref<2x2048xbf16, #tpu.memory_space<vmem>>, vector<2x128xbf16>
    tpu.vector_store %arg13[%c0_52, %c0_53], %62 {strides = array<i32>} : memref<2x2048xbf16, #tpu.memory_space<vmem>>, vector<2x128xbf16>,
    %c2_54 = arith.constant 2 : index
    %c0_55 = arith.constant 0 : index
    %64 = tpu.strided_load %arg12[%c2_54, %c0_55] {strides = array<i32: 144, 1>} : memref<288x128xf32, #tpu.memory_space<vmem>>, vector<2x128xf32>
    %c3_56 = arith.constant 3 : index
    %c0_57 = arith.constant 0 : index
    %65 = tpu.strided_load %arg12[%c3_56, %c0_57] {strides = array<i32: 144, 1>} : memref<288x128xf32, #tpu.memory_space<vmem>>, vector<2x128xf32>
    %66 = arith.maximumf %64, %65 : vector<2x128xf32>
    %c14_58 = arith.constant 14 : index
    %c0_59 = arith.constant 0 : index
    %67 = tpu.strided_load %arg12[%c14_58, %c0_59] {strides = array<i32: 144, 1>} : memref<288x128xf32, #tpu.memory_space<vmem>>, vector<2x128xf32>
    %c15_60 = arith.constant 15 : index
    %c0_61 = arith.constant 0 : index
    %68 = tpu.strided_load %arg12[%c15_60, %c0_61] {strides = array<i32: 144, 1>} : memref<288x128xf32, #tpu.memory_space<vmem>>, vector<2x128xf32>
    %69 = arith.maximumf %67, %68 : vector<2x128xf32>
    %70 = arith.maximumf %66, %69 : vector<2x128xf32>
    %71 = arith.truncf %70 : vector<2x128xf32> to vector<2x128xbf16>
    %c0_62 = arith.constant 0 : index
    %c128 = arith.constant 128 : index
    %72 = vector.load %arg13[%c0_62, %c128] : memref<2x2048xbf16, #tpu.memory_space<vmem>>, vector<2x128xbf16>
    tpu.vector_store %arg13[%c0_62, %c128], %71 {strides = array<i32>} : memref<2x2048xbf16, #tpu.memory_space<vmem>>, vector<2x128xbf16>,
    %c4_63 = arith.constant 4 : index
    %c0_64 = arith.constant 0 : index
    %73 = tpu.strided_load %arg12[%c4_63, %c0_64] {strides = array<i32: 144, 1>} : memref<288x128xf32, #tpu.memory_space<vmem>>, vector<2x128xf32>
    %c5 = arith.constant 5 : index
    %c0_65 = arith.constant 0 : index
    %74 = tpu.strided_load %arg12[%c5, %c0_65] {strides = array<i32: 144, 1>} : memref<288x128xf32, #tpu.memory_space<vmem>>, vector<2x128xf32>
    %75 = arith.maximumf %73, %74 : vector<2x128xf32>
    %c16_66 = arith.constant 16 : index
    %c0_67 = arith.constant 0 : index
    %76 = tpu.strided_load %arg12[%c16_66, %c0_67] {strides = array<i32: 144, 1>} : memref<288x128xf32, #tpu.memory_space<vmem>>, vector<2x128xf32>
    %c17 = arith.constant 17 : index
    %c0_68 = arith.constant 0 : index
    %77 = tpu.strided_load %arg12[%c17, %c0_68] {strides = array<i32: 144, 1>} : memref<288x128xf32, #tpu.memory_space<vmem>>, vector<2x128xf32>
    %78 = arith.maximumf %76, %77 : vector<2x128xf32>
    %79 = arith.maximumf %75, %78 : vector<2x128xf32>
    %80 = arith.truncf %79 : vector<2x128xf32> to vector<2x128xbf16>
    %c0_69 = arith.constant 0 : index
    %c256 = arith.constant 256 : index
    %81 = vector.load %arg13[%c0_69, %c256] : memref<2x2048xbf16, #tpu.memory_space<vmem>>, vector<2x128xbf16>
    tpu.vector_store %arg13[%c0_69, %c256], %80 {strides = array<i32>} : memref<2x2048xbf16, #tpu.memory_space<vmem>>, vector<2x128xbf16>,
    %c6 = arith.constant 6 : index
    %c0_70 = arith.constant 0 : index
    %82 = tpu.strided_load %arg12[%c6, %c0_70] {strides = array<i32: 144, 1>} : memref<288x128xf32, #tpu.memory_space<vmem>>, vector<2x128xf32>
    %c7 = arith.constant 7 : index
    %c0_71 = arith.constant 0 : index
    %83 = tpu.strided_load %arg12[%c7, %c0_71] {strides = array<i32: 144, 1>} : memref<288x128xf32, #tpu.memory_space<vmem>>, vector<2x128xf32>
    %84 = arith.maximumf %82, %83 : vector<2x128xf32>
    %c18 = arith.constant 18 : index
    %c0_72 = arith.constant 0 : index
    %85 = tpu.strided_load %arg12[%c18, %c0_72] {strides = array<i32: 144, 1>} : memref<288x128xf32, #tpu.memory_space<vmem>>, vector<2x128xf32>
    %c19 = arith.constant 19 : index
    %c0_73 = arith.constant 0 : index
    %86 = tpu.strided_load %arg12[%c19, %c0_73] {strides = array<i32: 144, 1>} : memref<288x128xf32, #tpu.memory_space<vmem>>, vector<2x128xf32>
    %87 = arith.maximumf %85, %86 : vector<2x128xf32>
    %88 = arith.maximumf %84, %87 : vector<2x128xf32>
    %89 = arith.truncf %88 : vector<2x128xf32> to vector<2x128xbf16>
    %c0_74 = arith.constant 0 : index
    %c384 = arith.constant 384 : index
    %90 = vector.load %arg13[%c0_74, %c384] : memref<2x2048xbf16, #tpu.memory_space<vmem>>, vector<2x128xbf16>
    tpu.vector_store %arg13[%c0_74, %c384], %89 {strides = array<i32>} : memref<2x2048xbf16, #tpu.memory_space<vmem>>, vector<2x128xbf16>,
    %c24_75 = arith.constant 24 : index
    %c0_76 = arith.constant 0 : index
    %91 = tpu.strided_load %arg12[%c24_75, %c0_76] {strides = array<i32: 144, 1>} : memref<288x128xf32, #tpu.memory_space<vmem>>, vector<2x128xf32>
    %c25_77 = arith.constant 25 : index
    %c0_78 = arith.constant 0 : index
    %92 = tpu.strided_load %arg12[%c25_77, %c0_78] {strides = array<i32: 144, 1>} : memref<288x128xf32, #tpu.memory_space<vmem>>, vector<2x128xf32>
    %93 = arith.maximumf %91, %92 : vector<2x128xf32>
    %c36_79 = arith.constant 36 : index
    %c0_80 = arith.constant 0 : index
    %94 = tpu.strided_load %arg12[%c36_79, %c0_80] {strides = array<i32: 144, 1>} : memref<288x128xf32, #tpu.memory_space<vmem>>, vector<2x128xf32>
    %c37_81 = arith.constant 37 : index
    %c0_82 = arith.constant 0 : index
    %95 = tpu.strided_load %arg12[%c37_81, %c0_82] {strides = array<i32: 144, 1>} : memref<288x128xf32, #tpu.memory_space<vmem>>, vector<2x128xf32>
    %96 = arith.maximumf %94, %95 : vector<2x128xf32>
    %97 = arith.maximumf %93, %96 : vector<2x128xf32>
    %98 = arith.truncf %97 : vector<2x128xf32> to vector<2x128xbf16>
    %c0_83 = arith.constant 0 : index
    %c512 = arith.constant 512 : index
    %99 = vector.load %arg13[%c0_83, %c512] : memref<2x2048xbf16, #tpu.memory_space<vmem>>, vector<2x128xbf16>
    tpu.vector_store %arg13[%c0_83, %c512], %98 {strides = array<i32>} : memref<2x2048xbf16, #tpu.memory_space<vmem>>, vector<2x128xbf16>,
    %c26_84 = arith.constant 26 : index
    %c0_85 = arith.constant 0 : index
    %100 = tpu.strided_load %arg12[%c26_84, %c0_85] {strides = array<i32: 144, 1>} : memref<288x128xf32, #tpu.memory_space<vmem>>, vector<2x128xf32>
    %c27_86 = arith.constant 27 : index
    %c0_87 = arith.constant 0 : index
    %101 = tpu.strided_load %arg12[%c27_86, %c0_87] {strides = array<i32: 144, 1>} : memref<288x128xf32, #tpu.memory_space<vmem>>, vector<2x128xf32>
    %102 = arith.maximumf %100, %101 : vector<2x128xf32>
    %c38_88 = arith.constant 38 : index
    %c0_89 = arith.constant 0 : index
    %103 = tpu.strided_load %arg12[%c38_88, %c0_89] {strides = array<i32: 144, 1>} : memref<288x128xf32, #tpu.memory_space<vmem>>, vector<2x128xf32>
    %c39_90 = arith.constant 39 : index
    %c0_91 = arith.constant 0 : index
    %104 = tpu.strided_load %arg12[%c39_90, %c0_91] {strides = array<i32: 144, 1>} : memref<288x128xf32, #tpu.memory_space<vmem>>, vector<2x128xf32>
    %105 = arith.maximumf %103, %104 : vector<2x128xf32>
    %106 = arith.maximumf %102, %105 : vector<2x128xf32>
    %107 = arith.truncf %106 : vector<2x128xf32> to vector<2x128xbf16>
    %c0_92 = arith.constant 0 : index
    %c640 = arith.constant 640 : index
    %108 = vector.load %arg13[%c0_92, %c640] : memref<2x2048xbf16, #tpu.memory_space<vmem>>, vector<2x128xbf16>
    tpu.vector_store %arg13[%c0_92, %c640], %107 {strides = array<i32>} : memref<2x2048xbf16, #tpu.memory_space<vmem>>, vector<2x128xbf16>,
    %c28_93 = arith.constant 28 : index
    %c0_94 = arith.constant 0 : index
    %109 = tpu.strided_load %arg12[%c28_93, %c0_94] {strides = array<i32: 144, 1>} : memref<288x128xf32, #tpu.memory_space<vmem>>, vector<2x128xf32>
    %c29 = arith.constant 29 : index
    %c0_95 = arith.constant 0 : index
    %110 = tpu.strided_load %arg12[%c29, %c0_95] {strides = array<i32: 144, 1>} : memref<288x128xf32, #tpu.memory_space<vmem>>, vector<2x128xf32>
    %111 = arith.maximumf %109, %110 : vector<2x128xf32>
    %c40_96 = arith.constant 40 : index
    %c0_97 = arith.constant 0 : index
    %112 = tpu.strided_load %arg12[%c40_96, %c0_97] {strides = array<i32: 144, 1>} : memref<288x128xf32, #tpu.memory_space<vmem>>, vector<2x128xf32>
    %c41 = arith.constant 41 : index
    %c0_98 = arith.constant 0 : index
    %113 = tpu.strided_load %arg12[%c41, %c0_98] {strides = array<i32: 144, 1>} : memref<288x128xf32, #tpu.memory_space<vmem>>, vector<2x128xf32>
    %114 = arith.maximumf %112, %113 : vector<2x128xf32>
    %115 = arith.maximumf %111, %114 : vector<2x128xf32>
    %116 = arith.truncf %115 : vector<2x128xf32> to vector<2x128xbf16>
    %c0_99 = arith.constant 0 : index
    %c768 = arith.constant 768 : index
    %117 = vector.load %arg13[%c0_99, %c768] : memref<2x2048xbf16, #tpu.memory_space<vmem>>, vector<2x128xbf16>
    tpu.vector_store %arg13[%c0_99, %c768], %116 {strides = array<i32>} : memref<2x2048xbf16, #tpu.memory_space<vmem>>, vector<2x128xbf16>,
    %c30 = arith.constant 30 : index
    %c0_100 = arith.constant 0 : index
    %118 = tpu.strided_load %arg12[%c30, %c0_100] {strides = array<i32: 144, 1>} : memref<288x128xf32, #tpu.memory_space<vmem>>, vector<2x128xf32>
    %c31 = arith.constant 31 : index
    %c0_101 = arith.constant 0 : index
    %119 = tpu.strided_load %arg12[%c31, %c0_101] {strides = array<i32: 144, 1>} : memref<288x128xf32, #tpu.memory_space<vmem>>, vector<2x128xf32>
    %120 = arith.maximumf %118, %119 : vector<2x128xf32>
    %c42 = arith.constant 42 : index
    %c0_102 = arith.constant 0 : index
    %121 = tpu.strided_load %arg12[%c42, %c0_102] {strides = array<i32: 144, 1>} : memref<288x128xf32, #tpu.memory_space<vmem>>, vector<2x128xf32>
    %c43 = arith.constant 43 : index
    %c0_103 = arith.constant 0 : index
    %122 = tpu.strided_load %arg12[%c43, %c0_103] {strides = array<i32: 144, 1>} : memref<288x128xf32, #tpu.memory_space<vmem>>, vector<2x128xf32>
    %123 = arith.maximumf %121, %122 : vector<2x128xf32>
    %124 = arith.maximumf %120, %123 : vector<2x128xf32>
    %125 = arith.truncf %124 : vector<2x128xf32> to vector<2x128xbf16>
    %c0_104 = arith.constant 0 : index
    %c896 = arith.constant 896 : index
    %126 = vector.load %arg13[%c0_104, %c896] : memref<2x2048xbf16, #tpu.memory_space<vmem>>, vector<2x128xbf16>
    tpu.vector_store %arg13[%c0_104, %c896], %125 {strides = array<i32>} : memref<2x2048xbf16, #tpu.memory_space<vmem>>, vector<2x128xbf16>,
    %c48_105 = arith.constant 48 : index
    %c0_106 = arith.constant 0 : index
    %127 = tpu.strided_load %arg12[%c48_105, %c0_106] {strides = array<i32: 144, 1>} : memref<288x128xf32, #tpu.memory_space<vmem>>, vector<2x128xf32>
    %c49_107 = arith.constant 49 : index
    %c0_108 = arith.constant 0 : index
    %128 = tpu.strided_load %arg12[%c49_107, %c0_108] {strides = array<i32: 144, 1>} : memref<288x128xf32, #tpu.memory_space<vmem>>, vector<2x128xf32>
    %129 = arith.maximumf %127, %128 : vector<2x128xf32>
    %c60 = arith.constant 60 : index
    %c0_109 = arith.constant 0 : index
    %130 = tpu.strided_load %arg12[%c60, %c0_109] {strides = array<i32: 144, 1>} : memref<288x128xf32, #tpu.memory_space<vmem>>, vector<2x128xf32>
    %c61 = arith.constant 61 : index
    %c0_110 = arith.constant 0 : index
    %131 = tpu.strided_load %arg12[%c61, %c0_110] {strides = array<i32: 144, 1>} : memref<288x128xf32, #tpu.memory_space<vmem>>, vector<2x128xf32>
    %132 = arith.maximumf %130, %131 : vector<2x128xf32>
    %133 = arith.maximumf %129, %132 : vector<2x128xf32>
    %134 = arith.truncf %133 : vector<2x128xf32> to vector<2x128xbf16>
    %c0_111 = arith.constant 0 : index
    %c1024 = arith.constant 1024 : index
    %135 = vector.load %arg13[%c0_111, %c1024] : memref<2x2048xbf16, #tpu.memory_space<vmem>>, vector<2x128xbf16>
    tpu.vector_store %arg13[%c0_111, %c1024], %134 {strides = array<i32>} : memref<2x2048xbf16, #tpu.memory_space<vmem>>, vector<2x128xbf16>,
    %c50_112 = arith.constant 50 : index
    %c0_113 = arith.constant 0 : index
    %136 = tpu.strided_load %arg12[%c50_112, %c0_113] {strides = array<i32: 144, 1>} : memref<288x128xf32, #tpu.memory_space<vmem>>, vector<2x128xf32>
    %c51_114 = arith.constant 51 : index
    %c0_115 = arith.constant 0 : index
    %137 = tpu.strided_load %arg12[%c51_114, %c0_115] {strides = array<i32: 144, 1>} : memref<288x128xf32, #tpu.memory_space<vmem>>, vector<2x128xf32>
    %138 = arith.maximumf %136, %137 : vector<2x128xf32>
    %c62 = arith.constant 62 : index
    %c0_116 = arith.constant 0 : index
    %139 = tpu.strided_load %arg12[%c62, %c0_116] {strides = array<i32: 144, 1>} : memref<288x128xf32, #tpu.memory_space<vmem>>, vector<2x128xf32>
    %c63 = arith.constant 63 : index
    %c0_117 = arith.constant 0 : index
    %140 = tpu.strided_load %arg12[%c63, %c0_117] {strides = array<i32: 144, 1>} : memref<288x128xf32, #tpu.memory_space<vmem>>, vector<2x128xf32>
    %141 = arith.maximumf %139, %140 : vector<2x128xf32>
    %142 = arith.maximumf %138, %141 : vector<2x128xf32>
    %143 = arith.truncf %142 : vector<2x128xf32> to vector<2x128xbf16>
    %c0_118 = arith.constant 0 : index
    %c1152 = arith.constant 1152 : index
    %144 = vector.load %arg13[%c0_118, %c1152] : memref<2x2048xbf16, #tpu.memory_space<vmem>>, vector<2x128xbf16>
    tpu.vector_store %arg13[%c0_118, %c1152], %143 {strides = array<i32>} : memref<2x2048xbf16, #tpu.memory_space<vmem>>, vector<2x128xbf16>,
    %c52_119 = arith.constant 52 : index
    %c0_120 = arith.constant 0 : index
    %145 = tpu.strided_load %arg12[%c52_119, %c0_120] {strides = array<i32: 144, 1>} : memref<288x128xf32, #tpu.memory_space<vmem>>, vector<2x128xf32>
    %c53 = arith.constant 53 : index
    %c0_121 = arith.constant 0 : index
    %146 = tpu.strided_load %arg12[%c53, %c0_121] {strides = array<i32: 144, 1>} : memref<288x128xf32, #tpu.memory_space<vmem>>, vector<2x128xf32>
    %147 = arith.maximumf %145, %146 : vector<2x128xf32>
    %c64 = arith.constant 64 : index
    %c0_122 = arith.constant 0 : index
    %148 = tpu.strided_load %arg12[%c64, %c0_122] {strides = array<i32: 144, 1>} : memref<288x128xf32, #tpu.memory_space<vmem>>, vector<2x128xf32>
    %c65 = arith.constant 65 : index
    %c0_123 = arith.constant 0 : index
    %149 = tpu.strided_load %arg12[%c65, %c0_123] {strides = array<i32: 144, 1>} : memref<288x128xf32, #tpu.memory_space<vmem>>, vector<2x128xf32>
    %150 = arith.maximumf %148, %149 : vector<2x128xf32>
    %151 = arith.maximumf %147, %150 : vector<2x128xf32>
    %152 = arith.truncf %151 : vector<2x128xf32> to vector<2x128xbf16>
    %c0_124 = arith.constant 0 : index
    %c1280 = arith.constant 1280 : index
    %153 = vector.load %arg13[%c0_124, %c1280] : memref<2x2048xbf16, #tpu.memory_space<vmem>>, vector<2x128xbf16>
    tpu.vector_store %arg13[%c0_124, %c1280], %152 {strides = array<i32>} : memref<2x2048xbf16, #tpu.memory_space<vmem>>, vector<2x128xbf16>,
    %c54 = arith.constant 54 : index
    %c0_125 = arith.constant 0 : index
    %154 = tpu.strided_load %arg12[%c54, %c0_125] {strides = array<i32: 144, 1>} : memref<288x128xf32, #tpu.memory_space<vmem>>, vector<2x128xf32>
    %c55 = arith.constant 55 : index
    %c0_126 = arith.constant 0 : index
    %155 = tpu.strided_load %arg12[%c55, %c0_126] {strides = array<i32: 144, 1>} : memref<288x128xf32, #tpu.memory_space<vmem>>, vector<2x128xf32>
    %156 = arith.maximumf %154, %155 : vector<2x128xf32>
    %c66 = arith.constant 66 : index
    %c0_127 = arith.constant 0 : index
    %157 = tpu.strided_load %arg12[%c66, %c0_127] {strides = array<i32: 144, 1>} : memref<288x128xf32, #tpu.memory_space<vmem>>, vector<2x128xf32>
    %c67 = arith.constant 67 : index
    %c0_128 = arith.constant 0 : index
    %158 = tpu.strided_load %arg12[%c67, %c0_128] {strides = array<i32: 144, 1>} : memref<288x128xf32, #tpu.memory_space<vmem>>, vector<2x128xf32>
    %159 = arith.maximumf %157, %158 : vector<2x128xf32>
    %160 = arith.maximumf %156, %159 : vector<2x128xf32>
    %161 = arith.truncf %160 : vector<2x128xf32> to vector<2x128xbf16>
    %c0_129 = arith.constant 0 : index
    %c1408 = arith.constant 1408 : index
    %162 = vector.load %arg13[%c0_129, %c1408] : memref<2x2048xbf16, #tpu.memory_space<vmem>>, vector<2x128xbf16>
    tpu.vector_store %arg13[%c0_129, %c1408], %161 {strides = array<i32>} : memref<2x2048xbf16, #tpu.memory_space<vmem>>, vector<2x128xbf16>,
    %c72 = arith.constant 72 : index
    %c0_130 = arith.constant 0 : index
    %163 = tpu.strided_load %arg12[%c72, %c0_130] {strides = array<i32: 144, 1>} : memref<288x128xf32, #tpu.memory_space<vmem>>, vector<2x128xf32>
    %c73 = arith.constant 73 : index
    %c0_131 = arith.constant 0 : index
    %164 = tpu.strided_load %arg12[%c73, %c0_131] {strides = array<i32: 144, 1>} : memref<288x128xf32, #tpu.memory_space<vmem>>, vector<2x128xf32>
    %165 = arith.maximumf %163, %164 : vector<2x128xf32>
    %c84 = arith.constant 84 : index
    %c0_132 = arith.constant 0 : index
    %166 = tpu.strided_load %arg12[%c84, %c0_132] {strides = array<i32: 144, 1>} : memref<288x128xf32, #tpu.memory_space<vmem>>, vector<2x128xf32>
    %c85 = arith.constant 85 : index
    %c0_133 = arith.constant 0 : index
    %167 = tpu.strided_load %arg12[%c85, %c0_133] {strides = array<i32: 144, 1>} : memref<288x128xf32, #tpu.memory_space<vmem>>, vector<2x128xf32>
    %168 = arith.maximumf %166, %167 : vector<2x128xf32>
    %169 = arith.maximumf %165, %168 : vector<2x128xf32>
    %170 = arith.truncf %169 : vector<2x128xf32> to vector<2x128xbf16>
    %c0_134 = arith.constant 0 : index
    %c1536 = arith.constant 1536 : index
    %171 = vector.load %arg13[%c0_134, %c1536] : memref<2x2048xbf16, #tpu.memory_space<vmem>>, vector<2x128xbf16>
    tpu.vector_store %arg13[%c0_134, %c1536], %170 {strides = array<i32>} : memref<2x2048xbf16, #tpu.memory_space<vmem>>, vector<2x128xbf16>,
    %c74 = arith.constant 74 : index
    %c0_135 = arith.constant 0 : index
    %172 = tpu.strided_load %arg12[%c74, %c0_135] {strides = array<i32: 144, 1>} : memref<288x128xf32, #tpu.memory_space<vmem>>, vector<2x128xf32>
    %c75 = arith.constant 75 : index
    %c0_136 = arith.constant 0 : index
    %173 = tpu.strided_load %arg12[%c75, %c0_136] {strides = array<i32: 144, 1>} : memref<288x128xf32, #tpu.memory_space<vmem>>, vector<2x128xf32>
    %174 = arith.maximumf %172, %173 : vector<2x128xf32>
    %c86 = arith.constant 86 : index
    %c0_137 = arith.constant 0 : index
    %175 = tpu.strided_load %arg12[%c86, %c0_137] {strides = array<i32: 144, 1>} : memref<288x128xf32, #tpu.memory_space<vmem>>, vector<2x128xf32>
    %c87 = arith.constant 87 : index
    %c0_138 = arith.constant 0 : index
    %176 = tpu.strided_load %arg12[%c87, %c0_138] {strides = array<i32: 144, 1>} : memref<288x128xf32, #tpu.memory_space<vmem>>, vector<2x128xf32>
    %177 = arith.maximumf %175, %176 : vector<2x128xf32>
    %178 = arith.maximumf %174, %177 : vector<2x128xf32>
    %179 = arith.truncf %178 : vector<2x128xf32> to vector<2x128xbf16>
    %c0_139 = arith.constant 0 : index
    %c1664 = arith.constant 1664 : index
    %180 = vector.load %arg13[%c0_139, %c1664] : memref<2x2048xbf16, #tpu.memory_space<vmem>>, vector<2x128xbf16>
    tpu.vector_store %arg13[%c0_139, %c1664], %179 {strides = array<i32>} : memref<2x2048xbf16, #tpu.memory_space<vmem>>, vector<2x128xbf16>,
    %c76 = arith.constant 76 : index
    %c0_140 = arith.constant 0 : index
    %181 = tpu.strided_load %arg12[%c76, %c0_140] {strides = array<i32: 144, 1>} : memref<288x128xf32, #tpu.memory_space<vmem>>, vector<2x128xf32>
    %c77 = arith.constant 77 : index
    %c0_141 = arith.constant 0 : index
    %182 = tpu.strided_load %arg12[%c77, %c0_141] {strides = array<i32: 144, 1>} : memref<288x128xf32, #tpu.memory_space<vmem>>, vector<2x128xf32>
    %183 = arith.maximumf %181, %182 : vector<2x128xf32>
    %c88 = arith.constant 88 : index
    %c0_142 = arith.constant 0 : index
    %184 = tpu.strided_load %arg12[%c88, %c0_142] {strides = array<i32: 144, 1>} : memref<288x128xf32, #tpu.memory_space<vmem>>, vector<2x128xf32>
    %c89 = arith.constant 89 : index
    %c0_143 = arith.constant 0 : index
    %185 = tpu.strided_load %arg12[%c89, %c0_143] {strides = array<i32: 144, 1>} : memref<288x128xf32, #tpu.memory_space<vmem>>, vector<2x128xf32>
    %186 = arith.maximumf %184, %185 : vector<2x128xf32>
    %187 = arith.maximumf %183, %186 : vector<2x128xf32>
    %188 = arith.truncf %187 : vector<2x128xf32> to vector<2x128xbf16>
    %c0_144 = arith.constant 0 : index
    %c1792 = arith.constant 1792 : index
    %189 = vector.load %arg13[%c0_144, %c1792] : memref<2x2048xbf16, #tpu.memory_space<vmem>>, vector<2x128xbf16>
    tpu.vector_store %arg13[%c0_144, %c1792], %188 {strides = array<i32>} : memref<2x2048xbf16, #tpu.memory_space<vmem>>, vector<2x128xbf16>,
    %c78 = arith.constant 78 : index
    %c0_145 = arith.constant 0 : index
    %190 = tpu.strided_load %arg12[%c78, %c0_145] {strides = array<i32: 144, 1>} : memref<288x128xf32, #tpu.memory_space<vmem>>, vector<2x128xf32>
    %c79 = arith.constant 79 : index
    %c0_146 = arith.constant 0 : index
    %191 = tpu.strided_load %arg12[%c79, %c0_146] {strides = array<i32: 144, 1>} : memref<288x128xf32, #tpu.memory_space<vmem>>, vector<2x128xf32>
    %192 = arith.maximumf %190, %191 : vector<2x128xf32>
    %c90 = arith.constant 90 : index
    %c0_147 = arith.constant 0 : index
    %193 = tpu.strided_load %arg12[%c90, %c0_147] {strides = array<i32: 144, 1>} : memref<288x128xf32, #tpu.memory_space<vmem>>, vector<2x128xf32>
    %c91 = arith.constant 91 : index
    %c0_148 = arith.constant 0 : index
    %194 = tpu.strided_load %arg12[%c91, %c0_148] {strides = array<i32: 144, 1>} : memref<288x128xf32, #tpu.memory_space<vmem>>, vector<2x128xf32>
    %195 = arith.maximumf %193, %194 : vector<2x128xf32>
    %196 = arith.maximumf %192, %195 : vector<2x128xf32>
    %197 = arith.truncf %196 : vector<2x128xf32> to vector<2x128xbf16>
    %c0_149 = arith.constant 0 : index
    %c1920 = arith.constant 1920 : index
    %198 = vector.load %arg13[%c0_149, %c1920] : memref<2x2048xbf16, #tpu.memory_space<vmem>>, vector<2x128xbf16>
    tpu.vector_store %arg13[%c0_149, %c1920], %197 {strides = array<i32>} : memref<2x2048xbf16, #tpu.memory_space<vmem>>, vector<2x128xbf16>,
    %c0_150 = arith.constant 0 : index
    %c0_151 = arith.constant 0 : index
    %199 = vector.load %arg13[%c0_150, %c0_151] : memref<2x2048xbf16, #tpu.memory_space<vmem>>, vector<2x2048xbf16>
    %c0_152 = arith.constant 0 : index
    %c0_153 = arith.constant 0 : index
    %200 = vector.load %arg6[%c0_152, %c0_153] : memref<2048x512xbf16, #tpu.memory_space<vmem>>, vector<2048x512xbf16>
    %cst_154 = arith.constant dense<0.000000e+00> : vector<2x512xf32>
    %201 = tpu.matmul %199, %200, %cst_154 {dimension_numbers = #tpu.dot_dimension_numbers<[1], [0], [0], [1], [0, 0, 1, 1], [], []>} : vector<2x2048xbf16>, vector<2048x512xbf16>, vector<2x512xf32> -> vector<2x512xf32>
    %c0_155 = arith.constant 0 : index
    %c0_156 = arith.constant 0 : index
    %202 = vector.load %arg7[%c0_155, %c0_156] : memref<1x512xf32, #tpu.memory_space<vmem>>, vector<1x512xf32>
    %203 = vector.broadcast %202 : vector<1x512xf32> to vector<2x512xf32>
    %204 = arith.addf %201, %203 : vector<2x512xf32>
    %cst_157 = arith.constant 0.000000e+00 : f32
    %205 = vector.broadcast %cst_157 : f32 to vector<2x512xf32>
    %206 = arith.maximumf %204, %205 : vector<2x512xf32>
    %207 = arith.truncf %206 : vector<2x512xf32> to vector<2x512xbf16>
    %c0_158 = arith.constant 0 : index
    %c0_159 = arith.constant 0 : index
    %208 = vector.load %arg8[%c0_158, %c0_159] : memref<512x128xbf16, #tpu.memory_space<vmem>>, vector<512x128xbf16>
    %cst_160 = arith.constant dense<0.000000e+00> : vector<2x128xf32>
    %209 = tpu.matmul %207, %208, %cst_160 {dimension_numbers = #tpu.dot_dimension_numbers<[1], [0], [0], [1], [0, 0, 1, 1], [], []>} : vector<2x512xbf16>, vector<512x128xbf16>, vector<2x128xf32> -> vector<2x128xf32>
    %c0_161 = arith.constant 0 : index
    %c0_162 = arith.constant 0 : index
    %210 = vector.load %arg9[%c0_161, %c0_162] : memref<1x128xf32, #tpu.memory_space<vmem>>, vector<1x128xf32>
    %211 = vector.broadcast %210 : vector<1x128xf32> to vector<2x128xf32>
    %212 = arith.addf %209, %211 : vector<2x128xf32>
    %213 = tpu.iota {dimensions = array<i32: 1>} : vector<2x128xi32>
    %c10_i32 = arith.constant 10 : i32
    %214 = vector.broadcast %c10_i32 : i32 to vector<2x128xi32>
    %215 = arith.cmpi slt, %213, %214 : vector<2x128xi32>
    %cst_163 = arith.constant -1.000000e+30 : f32
    %216 = vector.broadcast %cst_163 : f32 to vector<2x128xf32>
    %217 = arith.select %215, %212, %216 : vector<2x128xi1>, vector<2x128xf32>
    %cst_164 = arith.constant dense<0xFF800000> : vector<2xf32>
    %218 = vector.multi_reduction <maximumf>, %217, %cst_164 [1] : vector<2x128xf32> to vector<2xf32>
    %219 = vector.shape_cast %218 : vector<2xf32> to vector<2x1xf32>
    %220 = vector.broadcast %219 : vector<2x1xf32> to vector<2x128xf32>
    %221 = arith.subf %217, %220 : vector<2x128xf32>
    %222 = math.exp %221 : vector<2x128xf32>
    %cst_165 = arith.constant dense<0.000000e+00> : vector<2xf32>
    %223 = vector.multi_reduction <add>, %222, %cst_165 [1] : vector<2x128xf32> to vector<2xf32>
    %224 = vector.shape_cast %223 : vector<2xf32> to vector<2x1xf32>
    %225 = math.log %224 : vector<2x1xf32>
    %226 = vector.broadcast %225 : vector<2x1xf32> to vector<2x128xf32>
    %227 = arith.subf %221, %226 : vector<2x128xf32>
    %c0_166 = arith.constant 0 : index
    %c0_167 = arith.constant 0 : index
    %228 = vector.load %arg10[%c0_166, %c0_167] : memref<2x128xf32, #tpu.memory_space<vmem>>, vector<2x128xf32>
    tpu.vector_store %arg10[%c0_166, %c0_167], %227 {strides = array<i32>} : memref<2x128xf32, #tpu.memory_space<vmem>>, vector<2x128xf32>,
    return
  }
  func.func @transform_0(%arg0: i32) -> (i32, i32) {
    %c0_i32 = arith.constant 0 : i32
    %c0_i32_0 = arith.constant 0 : i32
    %c0_i32_1 = arith.constant 0 : i32
    return %c0_i32, %c0_i32_0 : i32, i32
  }
  func.func @transform_1(%arg0: i32) -> (i32, i32) {
    %c0_i32 = arith.constant 0 : i32
    %c0_i32_0 = arith.constant 0 : i32
    %c0_i32_1 = arith.constant 0 : i32
    return %c0_i32, %c0_i32_0 : i32, i32
  }
  func.func @transform_2(%arg0: i32) -> (i32, i32) {
    %c0_i32 = arith.constant 0 : i32
    %c0_i32_0 = arith.constant 0 : i32
    %c0_i32_1 = arith.constant 0 : i32
    return %c0_i32, %c0_i32_0 : i32, i32
  }
  func.func @transform_3(%arg0: i32) -> (i32, i32) {
    %c0_i32 = arith.constant 0 : i32
    %c0_i32_0 = arith.constant 0 : i32
    %c0_i32_1 = arith.constant 0 : i32
    return %c0_i32, %c0_i32_0 : i32, i32
  }
  func.func @transform_4(%arg0: i32) -> (i32, i32) {
    %c0_i32 = arith.constant 0 : i32
    %c0_i32_0 = arith.constant 0 : i32
    %c0_i32_1 = arith.constant 0 : i32
    return %c0_i32, %c0_i32_0 : i32, i32
  }
  func.func @transform_5(%arg0: i32) -> (i32, i32) {
    %c0_i32 = arith.constant 0 : i32
    %c0_i32_0 = arith.constant 0 : i32
    %c0_i32_1 = arith.constant 0 : i32
    return %c0_i32, %c0_i32_0 : i32, i32
  }
  func.func @transform_6(%arg0: i32) -> (i32, i32) {
    %c0_i32 = arith.constant 0 : i32
    %c0_i32_0 = arith.constant 0 : i32
    %c0_i32_1 = arith.constant 0 : i32
    return %c0_i32, %c0_i32_0 : i32, i32
  }
  func.func @transform_7(%arg0: i32) -> (i32, i32) {
    %c0_i32 = arith.constant 0 : i32
    %c0_i32_0 = arith.constant 0 : i32
    %c0_i32_1 = arith.constant 0 : i32
    return %c0_i32, %c0_i32_0 : i32, i32
  }
  func.func @transform_8(%arg0: i32) -> (i32, i32) {
    %c0_i32 = arith.constant 0 : i32
    %c0_i32_0 = arith.constant 0 : i32
    %c0_i32_1 = arith.constant 0 : i32
    return %c0_i32, %c0_i32_0 : i32, i32
  }
  func.func @transform_9(%arg0: i32) -> (i32, i32) {
    %c0_i32 = arith.constant 0 : i32
    %c0_i32_0 = arith.constant 0 : i32
    %c0_i32_1 = arith.constant 0 : i32
    return %c0_i32, %c0_i32_0 : i32, i32
  }
}

</mosaic_0001>

<llo_original>
// kernel: net_forward.1
$region0: #{net_forward.1}
  #allocation0 [shape = 'u32[]', space=smem, size = 0x4, offset = 0x4, fixed_abs, tag = 'smem constant byte address 0x4 - core index']
  #allocation1 [shape = 'u32[144,128]{1,0:T(1,128)}', space=vmem, size = 0x12000, scoped, tag = 'internal scratch']
  #allocation2 [shape = 'bf16[344,128]{1,0:T(8,128)(2,1)}', space=vmem, size = 0x15800, scoped, tag = 'scratch operand']
  #allocation3 [shape = 'f32[288,128]{1,0:T(8,128)}', space=vmem, size = 0x24000, scoped, tag = 'scratch operand']
  #allocation4 [shape = 'bf16[2,2048]{1,0:T(2,128)(2,1)}', space=vmem, size = 0x2000, scoped, tag = 'scratch operand']
  %s0 = inlined_call_operand.vmem [shape: bf16[1152,32], index: 0, kind: input, shape index: {}]
  %s1 = inlined_call_operand.vmem [shape: bf16[32,128], index: 1, kind: input, shape index: {}]
  %s2 = inlined_call_operand.vmem [shape: f32[1,128], index: 2, kind: input, shape index: {}]
  %s3 = inlined_call_operand.vmem [shape: bf16[3200,128], index: 3, kind: input, shape index: {}]
  %s4 = inlined_call_operand.vmem [shape: f32[1,128], index: 4, kind: input, shape index: {}]
  %s5 = inlined_call_operand.vmem [shape: bf16[2048,512], index: 5, kind: input, shape index: {}]
  %s6 = inlined_call_operand.vmem [shape: f32[1,512], index: 6, kind: input, shape index: {}]
  %s7 = inlined_call_operand.vmem [shape: bf16[512,128], index: 7, kind: input, shape index: {}]
  %s8 = inlined_call_operand.vmem [shape: f32[1,128], index: 8, kind: input, shape index: {}]
  %s9 = inlined_call_operand.hbm [shape: f32[2,128], index: 9, kind: output, shape index: {}]
  %s10 = sld [smem:[#allocation0]]
  $region46: #{net_forward.1} parent=0
    _
  %s12 = ssub.s32 1, %s10
  %s13 = scalar_select 0, %s12, %s10
  $region1: #{net_forward.1} parent=0
    #allocation5 [shape = 'u8[1024]{0}', space=vmem, size = 0x400, scoped, tag = 'output window, operand 0, single buffered']
    #allocation6 [shape = 's32[1]{0}', space=sflag, size = 0x4, scoped, tag = 'scoped memory for net_forward.1']
    %14 = vsyncpa [#allocation6], 0
    // Predicated region
    $region2: #{net_forward.1} parent=1 // pred_check
      _
    $region3: #{net_forward.1} parent=1 // pred_check_branch
      %16 = sbr.rel (0) target = $region5
    $region4: #{net_forward.1} parent=1 // pred_region
      _
    $region5: #{net_forward.1} parent=1 // pred_fallthru
      _
    // Predicated region
    $region6: #{net_forward.1} parent=1 // pred_check
      _
    $region7: #{net_forward.1} parent=1 // pred_check_branch
      %18 = sbr.rel (0) target = $region9
    $region8: #{net_forward.1} parent=1 // pred_region
      _
    $region9: #{net_forward.1} parent=1 // pred_fallthru
      _
    // Predicated region
    $region10: #{net_forward.1} parent=1 // pred_check
      _
    $region11: #{net_forward.1} parent=1 // pred_check_branch
      %20 = sbr.rel (0) target = $region13
    $region12: #{net_forward.1} parent=1 // pred_region
      _
    $region13: #{net_forward.1} parent=1 // pred_fallthru
      _
    // Predicated region
    $region14: #{net_forward.1} parent=1 // pred_check
      _
    $region15: #{net_forward.1} parent=1 // pred_check_branch
      %22 = sbr.rel (0) target = $region17
    $region16: #{net_forward.1} parent=1 // pred_region
      _
    $region17: #{net_forward.1} parent=1 // pred_fallthru
      _
    // Predicated region
    $region18: #{net_forward.1} parent=1 // pred_check
      _
    $region19: #{net_forward.1} parent=1 // pred_check_branch
      %24 = sbr.rel (0) target = $region21
    $region20: #{net_forward.1} parent=1 // pred_region
      _
    $region21: #{net_forward.1} parent=1 // pred_fallthru
      _
    // Predicated region
    $region22: #{net_forward.1} parent=1 // pred_check
      _
    $region23: #{net_forward.1} parent=1 // pred_check_branch
      %26 = sbr.rel (0) target = $region25
    $region24: #{net_forward.1} parent=1 // pred_region
      _
    $region25: #{net_forward.1} parent=1 // pred_fallthru
      _
    // Predicated region
    $region26: #{net_forward.1} parent=1 // pred_check
      _
    $region27: #{net_forward.1} parent=1 // pred_check_branch
      %28 = sbr.rel (0) target = $region29
    $region28: #{net_forward.1} parent=1 // pred_region
      _
    $region29: #{net_forward.1} parent=1 // pred_fallthru
      _
    // Predicated region
    $region30: #{net_forward.1} parent=1 // pred_check
      _
    $region31: #{net_forward.1} parent=1 // pred_check_branch
      %30 = sbr.rel (0) target = $region33
    $region32: #{net_forward.1} parent=1 // pred_region
      _
    $region33: #{net_forward.1} parent=1 // pred_fallthru
      _
    // Predicated region
    $region34: #{net_forward.1} parent=1 // pred_check
      _
    $region35: #{net_forward.1} parent=1 // pred_check_branch
      %32 = sbr.rel (0) target = $region37
    $region36: #{net_forward.1} parent=1 // pred_region
      _
    $region37: #{net_forward.1} parent=1 // pred_fallthru
      _
    %v34 = vld [vmem:[%s0] sm:$0xf]
    %v35 = vld [vmem:[%s0 + $0x4] sm:$0xf]
    %v36 = vld [vmem:[%s0 + $0x8] sm:$0xf]
    %v37 = vld [vmem:[%s0 + $0xc] sm:$0xf]
    %v38 = vld [vmem:[%s0 + $0x10] sm:$0xf]
    %v39 = vld [vmem:[%s0 + $0x14] sm:$0xf]
    %v40 = vld [vmem:[%s0 + $0x18] sm:$0xf]
    %v41 = vld [vmem:[%s0 + $0x1c] sm:$0xf]
    %v42 = vld [vmem:[%s0 + $0x20] sm:$0xf]
    %v43 = vld [vmem:[%s0 + $0x24] sm:$0xf]
    %v44 = vld [vmem:[%s0 + $0x28] sm:$0xf]
    %v45 = vld [vmem:[%s0 + $0x2c] sm:$0xf]
    %v46 = vld [vmem:[%s0 + $0x30] sm:$0xf]
    %v47 = vld [vmem:[%s0 + $0x34] sm:$0xf]
    %v48 = vld [vmem:[%s0 + $0x38] sm:$0xf]
    %v49 = vld [vmem:[%s0 + $0x3c] sm:$0xf]
    %v50 = vld [vmem:[%s0 + $0x40] sm:$0xf]
    %v51 = vld [vmem:[%s0 + $0x44] sm:$0xf]
    %v52 = vld [vmem:[%s0 + $0x48] sm:$0xf]
    %v53 = vld [vmem:[%s0 + $0x4c] sm:$0xf]
    %v54 = vld [vmem:[%s0 + $0x50] sm:$0xf]
    %v55 = vld [vmem:[%s0 + $0x54] sm:$0xf]
    %v56 = vld [vmem:[%s0 + $0x58] sm:$0xf]
    %v57 = vld [vmem:[%s0 + $0x5c] sm:$0xf]
    %v58 = vld [vmem:[%s0 + $0x60] sm:$0xf]
    %v59 = vld [vmem:[%s0 + $0x64] sm:$0xf]
    %v60 = vld [vmem:[%s0 + $0x68] sm:$0xf]
    %v61 = vld [vmem:[%s0 + $0x6c] sm:$0xf]
    %v62 = vld [vmem:[%s0 + $0x70] sm:$0xf]
    %v63 = vld [vmem:[%s0 + $0x74] sm:$0xf]
    %v64 = vld [vmem:[%s0 + $0x78] sm:$0xf]
    %v65 = vld [vmem:[%s0 + $0x7c] sm:$0xf]
    %v66 = vld [vmem:[%s0 + $0x80] sm:$0xf]
    %v67 = vld [vmem:[%s0 + $0x84] sm:$0xf]
    %v68 = vld [vmem:[%s0 + $0x88] sm:$0xf]
    %v69 = vld [vmem:[%s0 + $0x8c] sm:$0xf]
    %v70 = vld [vmem:[%s0 + $0x90] sm:$0xf]
    %v71 = vld [vmem:[%s0 + $0x94] sm:$0xf]
    %v72 = vld [vmem:[%s0 + $0x98] sm:$0xf]
    %v73 = vld [vmem:[%s0 + $0x9c] sm:$0xf]
    %v74 = vld [vmem:[%s0 + $0xa0] sm:$0xf]
    %v75 = vld [vmem:[%s0 + $0xa4] sm:$0xf]
    %v76 = vld [vmem:[%s0 + $0xa8] sm:$0xf]
    %v77 = vld [vmem:[%s0 + $0xac] sm:$0xf]
    %v78 = vld [vmem:[%s0 + $0xb0] sm:$0xf]
    %v79 = vld [vmem:[%s0 + $0xb4] sm:$0xf]
    %v80 = vld [vmem:[%s0 + $0xb8] sm:$0xf]
    %v81 = vld [vmem:[%s0 + $0xbc] sm:$0xf]
    %v82 = vld [vmem:[%s0 + $0xc0] sm:$0xf]
    %v83 = vld [vmem:[%s0 + $0xc4] sm:$0xf]
    %v84 = vld [vmem:[%s0 + $0xc8] sm:$0xf]
    %v85 = vld [vmem:[%s0 + $0xcc] sm:$0xf]
    %v86 = vld [vmem:[%s0 + $0xd0] sm:$0xf]
    %v87 = vld [vmem:[%s0 + $0xd4] sm:$0xf]
    %v88 = vld [vmem:[%s0 + $0xd8] sm:$0xf]
    %v89 = vld [vmem:[%s0 + $0xdc] sm:$0xf]
    %v90 = vld [vmem:[%s0 + $0xe0] sm:$0xf]
    %v91 = vld [vmem:[%s0 + $0xe4] sm:$0xf]
    %v92 = vld [vmem:[%s0 + $0xe8] sm:$0xf]
    %v93 = vld [vmem:[%s0 + $0xec] sm:$0xf]
    %v94 = vld [vmem:[%s0 + $0xf0] sm:$0xf]
    %v95 = vld [vmem:[%s0 + $0xf4] sm:$0xf]
    %v96 = vld [vmem:[%s0 + $0xf8] sm:$0xf]
    %v97 = vld [vmem:[%s0 + $0xfc] sm:$0xf]
    %v98 = vld [vmem:[%s0 + $0x100] sm:$0xf]
    %v99 = vld [vmem:[%s0 + $0x104] sm:$0xf]
    %v100 = vld [vmem:[%s0 + $0x108] sm:$0xf]
    %v101 = vld [vmem:[%s0 + $0x10c] sm:$0xf]
    %v102 = vld [vmem:[%s0 + $0x110] sm:$0xf]
    %v103 = vld [vmem:[%s0 + $0x114] sm:$0xf]
    %v104 = vld [vmem:[%s0 + $0x118] sm:$0xf]
    %v105 = vld [vmem:[%s0 + $0x11c] sm:$0xf]
    %v106 = vld [vmem:[%s0 + $0x120] sm:$0xf]
    %v107 = vld [vmem:[%s0 + $0x124] sm:$0xf]
    %v108 = vld [vmem:[%s0 + $0x128] sm:$0xf]
    %v109 = vld [vmem:[%s0 + $0x12c] sm:$0xf]
    %v110 = vld [vmem:[%s0 + $0x130] sm:$0xf]
    %v111 = vld [vmem:[%s0 + $0x134] sm:$0xf]
    %v112 = vld [vmem:[%s0 + $0x138] sm:$0xf]
    %v113 = vld [vmem:[%s0 + $0x13c] sm:$0xf]
    %v114 = vld [vmem:[%s0 + $0x140] sm:$0xf]
    %v115 = vld [vmem:[%s0 + $0x144] sm:$0xf]
    %v116 = vld [vmem:[%s0 + $0x148] sm:$0xf]
    %v117 = vld [vmem:[%s0 + $0x14c] sm:$0xf]
    %v118 = vld [vmem:[%s0 + $0x150] sm:$0xf]
    %v119 = vld [vmem:[%s0 + $0x154] sm:$0xf]
    %v120 = vld [vmem:[%s0 + $0x158] sm:$0xf]
    %v121 = vld [vmem:[%s0 + $0x15c] sm:$0xf]
    %v122 = vld [vmem:[%s0 + $0x160] sm:$0xf]
    %v123 = vld [vmem:[%s0 + $0x164] sm:$0xf]
    %v124 = vld [vmem:[%s0 + $0x168] sm:$0xf]
    %v125 = vld [vmem:[%s0 + $0x16c] sm:$0xf]
    %v126 = vld [vmem:[%s0 + $0x170] sm:$0xf]
    %v127 = vld [vmem:[%s0 + $0x174] sm:$0xf]
    %v128 = vld [vmem:[%s0 + $0x178] sm:$0xf]
    %v129 = vld [vmem:[%s0 + $0x17c] sm:$0xf]
    %v130 = vld [vmem:[%s0 + $0x180] sm:$0xf]
    %v131 = vld [vmem:[%s0 + $0x184] sm:$0xf]
    %v132 = vld [vmem:[%s0 + $0x188] sm:$0xf]
    %v133 = vld [vmem:[%s0 + $0x18c] sm:$0xf]
    %v134 = vld [vmem:[%s0 + $0x190] sm:$0xf]
    %v135 = vld [vmem:[%s0 + $0x194] sm:$0xf]
    %v136 = vld [vmem:[%s0 + $0x198] sm:$0xf]
    %v137 = vld [vmem:[%s0 + $0x19c] sm:$0xf]
    %v138 = vld [vmem:[%s0 + $0x1a0] sm:$0xf]
    %v139 = vld [vmem:[%s0 + $0x1a4] sm:$0xf]
    %v140 = vld [vmem:[%s0 + $0x1a8] sm:$0xf]
    %v141 = vld [vmem:[%s0 + $0x1ac] sm:$0xf]
    %v142 = vld [vmem:[%s0 + $0x1b0] sm:$0xf]
    %v143 = vld [vmem:[%s0 + $0x1b4] sm:$0xf]
    %v144 = vld [vmem:[%s0 + $0x1b8] sm:$0xf]
    %v145 = vld [vmem:[%s0 + $0x1bc] sm:$0xf]
    %v146 = vld [vmem:[%s0 + $0x1c0] sm:$0xf]
    %v147 = vld [vmem:[%s0 + $0x1c4] sm:$0xf]
    %v148 = vld [vmem:[%s0 + $0x1c8] sm:$0xf]
    %v149 = vld [vmem:[%s0 + $0x1cc] sm:$0xf]
    %v150 = vld [vmem:[%s0 + $0x1d0] sm:$0xf]
    %v151 = vld [vmem:[%s0 + $0x1d4] sm:$0xf]
    %v152 = vld [vmem:[%s0 + $0x1d8] sm:$0xf]
    %v153 = vld [vmem:[%s0 + $0x1dc] sm:$0xf]
    %v154 = vld [vmem:[%s0 + $0x1e0] sm:$0xf]
    %v155 = vld [vmem:[%s0 + $0x1e4] sm:$0xf]
    %v156 = vld [vmem:[%s0 + $0x1e8] sm:$0xf]
    %v157 = vld [vmem:[%s0 + $0x1ec] sm:$0xf]
    %v158 = vld [vmem:[%s0 + $0x1f0] sm:$0xf]
    %v159 = vld [vmem:[%s0 + $0x1f4] sm:$0xf]
    %v160 = vld [vmem:[%s0 + $0x1f8] sm:$0xf]
    %v161 = vld [vmem:[%s0 + $0x1fc] sm:$0xf]
    %v162 = vld [vmem:[%s0 + $0x200] sm:$0xf]
    %v163 = vld [vmem:[%s0 + $0x204] sm:$0xf]
    %v164 = vld [vmem:[%s0 + $0x208] sm:$0xf]
    %v165 = vld [vmem:[%s0 + $0x20c] sm:$0xf]
    %v166 = vld [vmem:[%s0 + $0x210] sm:$0xf]
    %v167 = vld [vmem:[%s0 + $0x214] sm:$0xf]
    %v168 = vld [vmem:[%s0 + $0x218] sm:$0xf]
    %v169 = vld [vmem:[%s0 + $0x21c] sm:$0xf]
    %v170 = vld [vmem:[%s0 + $0x220] sm:$0xf]
    %v171 = vld [vmem:[%s0 + $0x224] sm:$0xf]
    %v172 = vld [vmem:[%s0 + $0x228] sm:$0xf]
    %v173 = vld [vmem:[%s0 + $0x22c] sm:$0xf]
    %v174 = vld [vmem:[%s0 + $0x230] sm:$0xf]
    %v175 = vld [vmem:[%s0 + $0x234] sm:$0xf]
    %v176 = vld [vmem:[%s0 + $0x238] sm:$0xf]
    %v177 = vld [vmem:[%s0 + $0x23c] sm:$0xf]
    %v178 = vld [vmem:[%s1] sm:$0xf]
    %v179 = vld [vmem:[%s1 + $0x4] sm:$0xf]
    %v180 = vld [vmem:[%s1 + $0x8] sm:$0xf]
    %v181 = vld [vmem:[%s1 + $0xc] sm:$0xf]
    %v182 = vld [vmem:[%s2] sm:$0x1]
    %v184 = vlaneseq
    %v185 = vshrl.u32 %v184, 7
    %v186 = vsub.s32 0, %v185
    %v187 = vrot.slane %v182, %v186
    %v333 = vunpack.c.l.b16 %v34
    %v334 = vunpack.c.l.b16 %v35
    %v335 = vunpack.c.l.b16 %v36
    %v336 = vunpack.c.l.b16 %v37
    %v337 = vunpack.c.l.b16 %v38
    %v338 = vunpack.c.l.b16 %v39
    %v339 = vunpack.c.l.b16 %v40
    %v340 = vunpack.c.l.b16 %v41
    %v341 = vunpack.c.l.b16 %v42
    %v342 = vunpack.c.l.b16 %v43
    %v343 = vunpack.c.l.b16 %v44
    %v344 = vunpack.c.l.b16 %v45
    %v345 = vunpack.c.l.b16 %v46
    %v346 = vunpack.c.l.b16 %v47
    %v347 = vunpack.c.l.b16 %v48
    %v348 = vunpack.c.l.b16 %v49
    %v349 = vunpack.c.l.b16 %v50
    %v350 = vunpack.c.l.b16 %v51
    %v351 = vunpack.c.l.b16 %v52
    %v352 = vunpack.c.l.b16 %v53
    %v353 = vunpack.c.l.b16 %v54
    %v354 = vunpack.c.l.b16 %v55
    %v355 = vunpack.c.l.b16 %v56
    %v356 = vunpack.c.l.b16 %v57
    %v357 = vunpack.c.l.b16 %v58
    %v358 = vunpack.c.l.b16 %v59
    %v359 = vunpack.c.l.b16 %v60
    %v360 = vunpack.c.l.b16 %v61
    %v361 = vunpack.c.l.b16 %v62
    %v362 = vunpack.c.l.b16 %v63
    %v363 = vunpack.c.l.b16 %v64
    %v364 = vunpack.c.l.b16 %v65
    %v365 = vunpack.c.l.b16 %v66
    %v366 = vunpack.c.l.b16 %v67
    %v367 = vunpack.c.l.b16 %v68
    %v368 = vunpack.c.l.b16 %v69
    %v369 = vunpack.c.l.b16 %v70
    %v370 = vunpack.c.l.b16 %v71
    %v371 = vunpack.c.l.b16 %v72
    %v372 = vunpack.c.l.b16 %v73
    %v373 = vunpack.c.l.b16 %v74
    %v374 = vunpack.c.l.b16 %v75
    %v375 = vunpack.c.l.b16 %v76
    %v376 = vunpack.c.l.b16 %v77
    %v377 = vunpack.c.l.b16 %v78
    %v378 = vunpack.c.l.b16 %v79
    %v379 = vunpack.c.l.b16 %v80
    %v380 = vunpack.c.l.b16 %v81
    %v381 = vunpack.c.l.b16 %v82
    %v382 = vunpack.c.l.b16 %v83
    %v383 = vunpack.c.l.b16 %v84
    %v384 = vunpack.c.l.b16 %v85
    %v385 = vunpack.c.l.b16 %v86
    %v386 = vunpack.c.l.b16 %v87
    %v387 = vunpack.c.l.b16 %v88
    %v388 = vunpack.c.l.b16 %v89
    %v389 = vunpack.c.l.b16 %v90
    %v390 = vunpack.c.l.b16 %v91
    %v391 = vunpack.c.l.b16 %v92
    %v392 = vunpack.c.l.b16 %v93
    %v393 = vunpack.c.l.b16 %v94
    %v394 = vunpack.c.l.b16 %v95
    %v395 = vunpack.c.l.b16 %v96
    %v396 = vunpack.c.l.b16 %v97
    %v397 = vunpack.c.l.b16 %v98
    %v398 = vunpack.c.l.b16 %v99
    %v399 = vunpack.c.l.b16 %v100
    %v400 = vunpack.c.l.b16 %v101
    %v401 = vunpack.c.l.b16 %v102
    %v402 = vunpack.c.l.b16 %v103
    %v403 = vunpack.c.l.b16 %v104
    %v404 = vunpack.c.l.b16 %v105
    %v405 = vunpack.c.l.b16 %v106
    %v406 = vunpack.c.l.b16 %v107
    %v407 = vunpack.c.l.b16 %v108
    %v408 = vunpack.c.l.b16 %v109
    %v409 = vunpack.c.l.b16 %v110
    %v410 = vunpack.c.l.b16 %v111
    %v411 = vunpack.c.l.b16 %v112
    %v412 = vunpack.c.l.b16 %v113
    %v413 = vunpack.c.l.b16 %v114
    %v414 = vunpack.c.l.b16 %v115
    %v415 = vunpack.c.l.b16 %v116
    %v416 = vunpack.c.l.b16 %v117
    %v417 = vunpack.c.l.b16 %v118
    %v418 = vunpack.c.l.b16 %v119
    %v419 = vunpack.c.l.b16 %v120
    %v420 = vunpack.c.l.b16 %v121
    %v421 = vunpack.c.l.b16 %v122
    %v422 = vunpack.c.l.b16 %v123
    %v423 = vunpack.c.l.b16 %v124
    %v424 = vunpack.c.l.b16 %v125
    %v425 = vunpack.c.l.b16 %v126
    %v426 = vunpack.c.l.b16 %v127
    %v427 = vunpack.c.l.b16 %v128
    %v428 = vunpack.c.l.b16 %v129
    %v429 = vunpack.c.l.b16 %v130
    %v430 = vunpack.c.l.b16 %v131
    %v431 = vunpack.c.l.b16 %v132
    %v432 = vunpack.c.l.b16 %v133
    %v433 = vunpack.c.l.b16 %v134
    %v434 = vunpack.c.l.b16 %v135
    %v435 = vunpack.c.l.b16 %v136
    %v436 = vunpack.c.l.b16 %v137
    %v437 = vunpack.c.l.b16 %v138
    %v438 = vunpack.c.l.b16 %v139
    %v439 = vunpack.c.l.b16 %v140
    %v440 = vunpack.c.l.b16 %v141
    %v441 = vunpack.c.l.b16 %v142
    %v442 = vunpack.c.l.b16 %v143
    %v443 = vunpack.c.l.b16 %v144
    %v444 = vunpack.c.l.b16 %v145
    %v445 = vunpack.c.l.b16 %v146
    %v446 = vunpack.c.l.b16 %v147
    %v447 = vunpack.c.l.b16 %v148
    %v448 = vunpack.c.l.b16 %v149
    %v449 = vunpack.c.l.b16 %v150
    %v450 = vunpack.c.l.b16 %v151
    %v451 = vunpack.c.l.b16 %v152
    %v452 = vunpack.c.l.b16 %v153
    %v453 = vunpack.c.l.b16 %v154
    %v454 = vunpack.c.l.b16 %v155
    %v455 = vunpack.c.l.b16 %v156
    %v456 = vunpack.c.l.b16 %v157
    %v457 = vunpack.c.l.b16 %v158
    %v458 = vunpack.c.l.b16 %v159
    %v459 = vunpack.c.l.b16 %v160
    %v460 = vunpack.c.l.b16 %v161
    %v461 = vunpack.c.l.b16 %v162
    %v462 = vunpack.c.l.b16 %v163
    %v463 = vunpack.c.l.b16 %v164
    %v464 = vunpack.c.l.b16 %v165
    %v465 = vunpack.c.l.b16 %v166
    %v466 = vunpack.c.l.b16 %v167
    %v467 = vunpack.c.l.b16 %v168
    %v468 = vunpack.c.l.b16 %v169
    %v469 = vunpack.c.l.b16 %v170
    %v470 = vunpack.c.l.b16 %v171
    %v471 = vunpack.c.l.b16 %v172
    %v472 = vunpack.c.l.b16 %v173
    %v473 = vunpack.c.l.b16 %v174
    %v474 = vunpack.c.l.b16 %v175
    %v475 = vunpack.c.l.b16 %v176
    %v476 = vunpack.c.l.b16 %v177
    %v477 = vpack.c.b16 %v334, %v333
    %v478 = vpack.c.b16 %v336, %v335
    %v479 = vpack.c.b16 %v338, %v337
    %v480 = vpack.c.b16 %v340, %v339
    %v481 = vpack.c.b16 %v342, %v341
    %v482 = vpack.c.b16 %v344, %v343
    %v483 = vpack.c.b16 %v346, %v345
    %v484 = vpack.c.b16 %v348, %v347
    %v485 = vpack.c.b16 %v350, %v349
    %v486 = vpack.c.b16 %v352, %v351
    %v487 = vpack.c.b16 %v354, %v353
    %v488 = vpack.c.b16 %v356, %v355
    %v489 = vpack.c.b16 %v358, %v357
    %v490 = vpack.c.b16 %v360, %v359
    %v491 = vpack.c.b16 %v362, %v361
    %v492 = vpack.c.b16 %v364, %v363
    %v493 = vpack.c.b16 %v366, %v365
    %v494 = vpack.c.b16 %v368, %v367
    %v495 = vpack.c.b16 %v370, %v369
    %v496 = vpack.c.b16 %v372, %v371
    %v497 = vpack.c.b16 %v374, %v373
    %v498 = vpack.c.b16 %v376, %v375
    %v499 = vpack.c.b16 %v378, %v377
    %v500 = vpack.c.b16 %v380, %v379
    %v501 = vpack.c.b16 %v382, %v381
    %v502 = vpack.c.b16 %v384, %v383
    %v503 = vpack.c.b16 %v386, %v385
    %v504 = vpack.c.b16 %v388, %v387
    %v505 = vpack.c.b16 %v390, %v389
    %v506 = vpack.c.b16 %v392, %v391
    %v507 = vpack.c.b16 %v394, %v393
    %v508 = vpack.c.b16 %v396, %v395
    %v509 = vpack.c.b16 %v398, %v397
    %v510 = vpack.c.b16 %v400, %v399
    %v511 = vpack.c.b16 %v402, %v401
    %v512 = vpack.c.b16 %v404, %v403
    %v513 = vpack.c.b16 %v406, %v405
    %v514 = vpack.c.b16 %v408, %v407
    %v515 = vpack.c.b16 %v410, %v409
    %v516 = vpack.c.b16 %v412, %v411
    %v517 = vpack.c.b16 %v414, %v413
    %v518 = vpack.c.b16 %v416, %v415
    %v519 = vpack.c.b16 %v418, %v417
    %v520 = vpack.c.b16 %v420, %v419
    %v521 = vpack.c.b16 %v422, %v421
    %v522 = vpack.c.b16 %v424, %v423
    %v523 = vpack.c.b16 %v426, %v425
    %v524 = vpack.c.b16 %v428, %v427
    %v525 = vpack.c.b16 %v430, %v429
    %v526 = vpack.c.b16 %v432, %v431
    %v527 = vpack.c.b16 %v434, %v433
    %v528 = vpack.c.b16 %v436, %v435
    %v529 = vpack.c.b16 %v438, %v437
    %v530 = vpack.c.b16 %v440, %v439
    %v531 = vpack.c.b16 %v442, %v441
    %v532 = vpack.c.b16 %v444, %v443
    %v533 = vpack.c.b16 %v446, %v445
    %v534 = vpack.c.b16 %v448, %v447
    %v535 = vpack.c.b16 %v450, %v449
    %v536 = vpack.c.b16 %v452, %v451
    %v537 = vpack.c.b16 %v454, %v453
    %v538 = vpack.c.b16 %v456, %v455
    %v539 = vpack.c.b16 %v458, %v457
    %v540 = vpack.c.b16 %v460, %v459
    %v541 = vpack.c.b16 %v462, %v461
    %v542 = vpack.c.b16 %v464, %v463
    %v543 = vpack.c.b16 %v466, %v465
    %v544 = vpack.c.b16 %v468, %v467
    %v545 = vpack.c.b16 %v470, %v469
    %v546 = vpack.c.b16 %v472, %v471
    %v547 = vpack.c.b16 %v474, %v473
    %v548 = vpack.c.b16 %v476, %v475
    %v553 = vunpack.c.l.b16 %v178
    %v554 = vunpack.c.l.b16 %v179
    %v555 = vunpack.c.l.b16 %v180
    %v556 = vunpack.c.l.b16 %v181
    %v557 = vpack.c.b16 %v554, %v553
    %v558 = vpack.c.b16 %v556, %v555
    %vm561 = vcmask 261120
    %v563 = vsel %vm561, %v477, 0
    %v566 = vsel %vm561, %v478, 0
    %v569 = vsel %vm561, %v479, 0
    %v572 = vsel %vm561, %v480, 0
    %v575 = vsel %vm561, %v481, 0
    %v578 = vsel %vm561, %v482, 0
    %v581 = vsel %vm561, %v483, 0
    %v584 = vsel %vm561, %v484, 0
    %v587 = vsel %vm561, %v485, 0
    %v590 = vsel %vm561, %v486, 0
    %v593 = vsel %vm561, %v487, 0
    %v596 = vsel %vm561, %v488, 0
    %v599 = vsel %vm561, %v489, 0
    %v602 = vsel %vm561, %v490, 0
    %v605 = vsel %vm561, %v491, 0
    %v608 = vsel %vm561, %v492, 0
    %v611 = vsel %vm561, %v493, 0
    %v614 = vsel %vm561, %v494, 0
    %v617 = vsel %vm561, %v495, 0
    %v620 = vsel %vm561, %v496, 0
    %v623 = vsel %vm561, %v497, 0
    %v626 = vsel %vm561, %v498, 0
    %v629 = vsel %vm561, %v499, 0
    %v632 = vsel %vm561, %v500, 0
    %v635 = vsel %vm561, %v501, 0
    %v638 = vsel %vm561, %v502, 0
    %v641 = vsel %vm561, %v503, 0
    %v644 = vsel %vm561, %v504, 0
    %v647 = vsel %vm561, %v505, 0
    %v650 = vsel %vm561, %v506, 0
    %v653 = vsel %vm561, %v507, 0
    %v656 = vsel %vm561, %v508, 0
    %v659 = vsel %vm561, %v509, 0
    %v662 = vsel %vm561, %v510, 0
    %v665 = vsel %vm561, %v511, 0
    %v668 = vsel %vm561, %v512, 0
    %v671 = vsel %vm561, %v513, 0
    %v674 = vsel %vm561, %v514, 0
    %v677 = vsel %vm561, %v515, 0
    %v680 = vsel %vm561, %v516, 0
    %v683 = vsel %vm561, %v517, 0
    %v686 = vsel %vm561, %v518, 0
    %v689 = vsel %vm561, %v519, 0
    %v692 = vsel %vm561, %v520, 0
    %v695 = vsel %vm561, %v521, 0
    %v698 = vsel %vm561, %v522, 0
    %v701 = vsel %vm561, %v523, 0
    %v704 = vsel %vm561, %v524, 0
    %v707 = vsel %vm561, %v525, 0
    %v710 = vsel %vm561, %v526, 0
    %v713 = vsel %vm561, %v527, 0
    %v716 = vsel %vm561, %v528, 0
    %v719 = vsel %vm561, %v529, 0
    %v722 = vsel %vm561, %v530, 0
    %v725 = vsel %vm561, %v531, 0
    %v728 = vsel %vm561, %v532, 0
    %v731 = vsel %vm561, %v533, 0
    %v734 = vsel %vm561, %v534, 0
    %v737 = vsel %vm561, %v535, 0
    %v740 = vsel %vm561, %v536, 0
    %v743 = vsel %vm561, %v537, 0
    %v746 = vsel %vm561, %v538, 0
    %v749 = vsel %vm561, %v539, 0
    %v752 = vsel %vm561, %v540, 0
    %v755 = vsel %vm561, %v541, 0
    %v758 = vsel %vm561, %v542, 0
    %v761 = vsel %vm561, %v543, 0
    %v764 = vsel %vm561, %v544, 0
    %v767 = vsel %vm561, %v545, 0
    %v770 = vsel %vm561, %v546, 0
    %v773 = vsel %vm561, %v547, 0
    %v776 = vsel %vm561, %v548, 0
    %778 = vmatprep.subr.bf16.mxu0 0
    %779 = vmatpush1.bf16.msra.mxu0 0
    %780 = vmatprep.subr.bf16.mxu0 0
    %781 = vmatpush1.bf16.msra.mxu0 0
    %782 = vmatprep.subr.bf16.mxu0 0
    %783 = vmatpush1.bf16.msra.mxu0 0
    %784 = vmatprep.subr.bf16.mxu0 0
    %785 = vmatpush1.bf16.msra.mxu0 0
    %786 = vmatprep.subr.bf16.mxu0 0
    %787 = vmatpush1.bf16.msra.mxu0 0
    %788 = vmatprep.subr.bf16.mxu0 0
    %789 = vmatpush1.bf16.msra.mxu0 0
    %790 = vmatprep.subr.bf16.mxu0 0
    %791 = vmatpush1.bf16.msra.mxu0 %v558
    %792 = vmatprep.subr.bf16.mxu0 0
    %793 = vmatpush1.bf16.msra.mxu0 %v557
    %794 = vmatprep.subr.bf16.mxu0 0
    %795 = vmatpush2.bf16.msra.mxu0 0
    %796 = vmatprep.subr.bf16.mxu0 0
    %797 = vmatpush2.bf16.msra.mxu0 0
    %798 = vmatprep.subr.bf16.mxu0 0
    %799 = vmatpush2.bf16.msra.mxu0 0
    %800 = vmatprep.subr.bf16.mxu0 0
    %801 = vmatpush2.bf16.msra.mxu0 0
    %802 = vmatprep.subr.bf16.mxu0 0
    %803 = vmatpush2.bf16.msra.mxu0 0
    %804 = vmatprep.subr.bf16.mxu0 0
    %805 = vmatpush2.bf16.msra.mxu0 0
    %806 = vmatprep.subr.bf16.mxu0 0
    %807 = vmatpush2.bf16.msra.mxu0 0
    %808 = vmatprep.subr.bf16.mxu0 0
    %809 = vmatpush2.bf16.msra.mxu0 0
    %810 = vmatprep.mubr.bf16.mxu0 0
    %811 = vmatmul.mubr.bf16.gmra.mxu0 %v563
    %v812 = vpop.f32.mrf.mxu0
    %v813 = vadd.f32 %v187, %v812
    %v814 = vpop.f32.mrf.mxu0
    %v815 = vpop.f32.mrf.mxu0
    %v816 = vadd.f32 %v187, %v815
    %v817 = vpop.f32.mrf.mxu0
    %818 = vmatprep.mubr.bf16.mxu0 0
    %819 = vmatmul.mubr.bf16.gmra.mxu0 %v566
    %v820 = vpop.f32.mrf.mxu0
    %v821 = vadd.f32 %v187, %v820
    %v822 = vpop.f32.mrf.mxu0
    %v823 = vpop.f32.mrf.mxu0
    %v824 = vadd.f32 %v187, %v823
    %v825 = vpop.f32.mrf.mxu0
    %826 = vmatprep.mubr.bf16.mxu0 0
    %827 = vmatmul.mubr.bf16.gmra.mxu0 %v569
    %v828 = vpop.f32.mrf.mxu0
    %v829 = vadd.f32 %v187, %v828
    %v830 = vpop.f32.mrf.mxu0
    %v831 = vpop.f32.mrf.mxu0
    %v832 = vadd.f32 %v187, %v831
    %v833 = vpop.f32.mrf.mxu0
    %834 = vmatprep.mubr.bf16.mxu0 0
    %835 = vmatmul.mubr.bf16.gmra.mxu0 %v572
    %v836 = vpop.f32.mrf.mxu0
    %v837 = vadd.f32 %v187, %v836
    %v838 = vpop.f32.mrf.mxu0
    %v839 = vpop.f32.mrf.mxu0
    %v840 = vadd.f32 %v187, %v839
    %v841 = vpop.f32.mrf.mxu0
    %842 = vmatprep.mubr.bf16.mxu0 0
    %843 = vmatmul.mubr.bf16.gmra.mxu0 %v575
    %v844 = vpop.f32.mrf.mxu0
    %v845 = vadd.f32 %v187, %v844
    %v846 = vpop.f32.mrf.mxu0
    %v847 = vpop.f32.mrf.mxu0
    %v848 = vadd.f32 %v187, %v847
    %v849 = vpop.f32.mrf.mxu0
    %850 = vmatprep.mubr.bf16.mxu0 0
    %851 = vmatmul.mubr.bf16.gmra.mxu0 %v578
    %v852 = vpop.f32.mrf.mxu0
    %v853 = vadd.f32 %v187, %v852
    %v854 = vpop.f32.mrf.mxu0
    %v855 = vpop.f32.mrf.mxu0
    %v856 = vadd.f32 %v187, %v855
    %v857 = vpop.f32.mrf.mxu0
    %858 = vmatprep.mubr.bf16.mxu0 0
    %859 = vmatmul.mubr.bf16.gmra.mxu0 %v581
    %v860 = vpop.f32.mrf.mxu0
    %v861 = vadd.f32 %v187, %v860
    %v862 = vpop.f32.mrf.mxu0
    %v863 = vpop.f32.mrf.mxu0
    %v864 = vadd.f32 %v187, %v863
    %v865 = vpop.f32.mrf.mxu0
    %866 = vmatprep.mubr.bf16.mxu0 0
    %867 = vmatmul.mubr.bf16.gmra.mxu0 %v584
    %v868 = vpop.f32.mrf.mxu0
    %v869 = vadd.f32 %v187, %v868
    %v870 = vpop.f32.mrf.mxu0
    %v871 = vpop.f32.mrf.mxu0
    %v872 = vadd.f32 %v187, %v871
    %v873 = vpop.f32.mrf.mxu0
    %874 = vmatprep.mubr.bf16.mxu0 0
    %875 = vmatmul.mubr.bf16.gmra.mxu0 %v587
    %v876 = vpop.f32.mrf.mxu0
    %v877 = vadd.f32 %v187, %v876
    %v878 = vpop.f32.mrf.mxu0
    %v879 = vpop.f32.mrf.mxu0
    %v880 = vadd.f32 %v187, %v879
    %v881 = vpop.f32.mrf.mxu0
    %882 = vmatprep.mubr.bf16.mxu0 0
    %883 = vmatmul.mubr.bf16.gmra.mxu0 %v590
    %v884 = vpop.f32.mrf.mxu0
    %v885 = vadd.f32 %v187, %v884
    %v886 = vpop.f32.mrf.mxu0
    %v887 = vpop.f32.mrf.mxu0
    %v888 = vadd.f32 %v187, %v887
    %v889 = vpop.f32.mrf.mxu0
    %890 = vmatprep.mubr.bf16.mxu0 0
    %891 = vmatmul.mubr.bf16.gmra.mxu0 %v593
    %v892 = vpop.f32.mrf.mxu0
    %v893 = vadd.f32 %v187, %v892
    %v894 = vpop.f32.mrf.mxu0
    %v895 = vpop.f32.mrf.mxu0
    %v896 = vadd.f32 %v187, %v895
    %v897 = vpop.f32.mrf.mxu0
    %898 = vmatprep.mubr.bf16.mxu0 0
    %899 = vmatmul.mubr.bf16.gmra.mxu0 %v596
    %v900 = vpop.f32.mrf.mxu0
    %v901 = vadd.f32 %v187, %v900
    %v902 = vpop.f32.mrf.mxu0
    %v903 = vpop.f32.mrf.mxu0
    %v904 = vadd.f32 %v187, %v903
    %v905 = vpop.f32.mrf.mxu0
    %906 = vmatprep.mubr.bf16.mxu0 0
    %907 = vmatmul.mubr.bf16.gmra.mxu0 %v599
    %v908 = vpop.f32.mrf.mxu0
    %v909 = vadd.f32 %v187, %v908
    %v910 = vpop.f32.mrf.mxu0
    %v911 = vpop.f32.mrf.mxu0
    %v912 = vadd.f32 %v187, %v911
    %v913 = vpop.f32.mrf.mxu0
    %914 = vmatprep.mubr.bf16.mxu0 0
    %915 = vmatmul.mubr.bf16.gmra.mxu0 %v602
    %v916 = vpop.f32.mrf.mxu0
    %v917 = vadd.f32 %v187, %v916
    %v918 = vpop.f32.mrf.mxu0
    %v919 = vpop.f32.mrf.mxu0
    %v920 = vadd.f32 %v187, %v919
    %v921 = vpop.f32.mrf.mxu0
    %922 = vmatprep.mubr.bf16.mxu0 0
    %923 = vmatmul.mubr.bf16.gmra.mxu0 %v605
    %v924 = vpop.f32.mrf.mxu0
    %v925 = vadd.f32 %v187, %v924
    %v926 = vpop.f32.mrf.mxu0
    %v927 = vpop.f32.mrf.mxu0
    %v928 = vadd.f32 %v187, %v927
    %v929 = vpop.f32.mrf.mxu0
    %930 = vmatprep.mubr.bf16.mxu0 0
    %931 = vmatmul.mubr.bf16.gmra.mxu0 %v608
    %v932 = vpop.f32.mrf.mxu0
    %v933 = vadd.f32 %v187, %v932
    %v934 = vpop.f32.mrf.mxu0
    %v935 = vpop.f32.mrf.mxu0
    %v936 = vadd.f32 %v187, %v935
    %v937 = vpop.f32.mrf.mxu0
    %938 = vmatprep.mubr.bf16.mxu0 0
    %939 = vmatmul.mubr.bf16.gmra.mxu0 %v611
    %v940 = vpop.f32.mrf.mxu0
    %v941 = vadd.f32 %v187, %v940
    %v942 = vpop.f32.mrf.mxu0
    %v943 = vpop.f32.mrf.mxu0
    %v944 = vadd.f32 %v187, %v943
    %v945 = vpop.f32.mrf.mxu0
    %946 = vmatprep.mubr.bf16.mxu0 0
    %947 = vmatmul.mubr.bf16.gmra.mxu0 %v614
    %v948 = vpop.f32.mrf.mxu0
    %v949 = vadd.f32 %v187, %v948
    %v950 = vpop.f32.mrf.mxu0
    %v951 = vpop.f32.mrf.mxu0
    %v952 = vadd.f32 %v187, %v951
    %v953 = vpop.f32.mrf.mxu0
    %954 = vmatprep.mubr.bf16.mxu0 0
    %955 = vmatmul.mubr.bf16.gmra.mxu0 %v617
    %v956 = vpop.f32.mrf.mxu0
    %v957 = vadd.f32 %v187, %v956
    %v958 = vpop.f32.mrf.mxu0
    %v959 = vpop.f32.mrf.mxu0
    %v960 = vadd.f32 %v187, %v959
    %v961 = vpop.f32.mrf.mxu0
    %962 = vmatprep.mubr.bf16.mxu0 0
    %963 = vmatmul.mubr.bf16.gmra.mxu0 %v620
    %v964 = vpop.f32.mrf.mxu0
    %v965 = vadd.f32 %v187, %v964
    %v966 = vpop.f32.mrf.mxu0
    %v967 = vpop.f32.mrf.mxu0
    %v968 = vadd.f32 %v187, %v967
    %v969 = vpop.f32.mrf.mxu0
    %970 = vmatprep.mubr.bf16.mxu0 0
    %971 = vmatmul.mubr.bf16.gmra.mxu0 %v623
    %v972 = vpop.f32.mrf.mxu0
    %v973 = vadd.f32 %v187, %v972
    %v974 = vpop.f32.mrf.mxu0
    %v975 = vpop.f32.mrf.mxu0
    %v976 = vadd.f32 %v187, %v975
    %v977 = vpop.f32.mrf.mxu0
    %978 = vmatprep.mubr.bf16.mxu0 0
    %979 = vmatmul.mubr.bf16.gmra.mxu0 %v626
    %v980 = vpop.f32.mrf.mxu0
    %v981 = vadd.f32 %v187, %v980
    %v982 = vpop.f32.mrf.mxu0
    %v983 = vpop.f32.mrf.mxu0
    %v984 = vadd.f32 %v187, %v983
    %v985 = vpop.f32.mrf.mxu0
    %986 = vmatprep.mubr.bf16.mxu0 0
    %987 = vmatmul.mubr.bf16.gmra.mxu0 %v629
    %v988 = vpop.f32.mrf.mxu0
    %v989 = vadd.f32 %v187, %v988
    %v990 = vpop.f32.mrf.mxu0
    %v991 = vpop.f32.mrf.mxu0
    %v992 = vadd.f32 %v187, %v991
    %v993 = vpop.f32.mrf.mxu0
    %994 = vmatprep.mubr.bf16.mxu0 0
    %995 = vmatmul.mubr.bf16.gmra.mxu0 %v632
    %v996 = vpop.f32.mrf.mxu0
    %v997 = vadd.f32 %v187, %v996
    %v998 = vpop.f32.mrf.mxu0
    %v999 = vpop.f32.mrf.mxu0
    %v1000 = vadd.f32 %v187, %v999
    %v1001 = vpop.f32.mrf.mxu0
    %1002 = vmatprep.mubr.bf16.mxu0 0
    %1003 = vmatmul.mubr.bf16.gmra.mxu0 %v635
    %v1004 = vpop.f32.mrf.mxu0
    %v1005 = vadd.f32 %v187, %v1004
    %v1006 = vpop.f32.mrf.mxu0
    %v1007 = vpop.f32.mrf.mxu0
    %v1008 = vadd.f32 %v187, %v1007
    %v1009 = vpop.f32.mrf.mxu0
    %1010 = vmatprep.mubr.bf16.mxu0 0
    %1011 = vmatmul.mubr.bf16.gmra.mxu0 %v638
    %v1012 = vpop.f32.mrf.mxu0
    %v1013 = vadd.f32 %v187, %v1012
    %v1014 = vpop.f32.mrf.mxu0
    %v1015 = vpop.f32.mrf.mxu0
    %v1016 = vadd.f32 %v187, %v1015
    %v1017 = vpop.f32.mrf.mxu0
    %1018 = vmatprep.mubr.bf16.mxu0 0
    %1019 = vmatmul.mubr.bf16.gmra.mxu0 %v641
    %v1020 = vpop.f32.mrf.mxu0
    %v1021 = vadd.f32 %v187, %v1020
    %v1022 = vpop.f32.mrf.mxu0
    %v1023 = vpop.f32.mrf.mxu0
    %v1024 = vadd.f32 %v187, %v1023
    %v1025 = vpop.f32.mrf.mxu0
    %1026 = vmatprep.mubr.bf16.mxu0 0
    %1027 = vmatmul.mubr.bf16.gmra.mxu0 %v644
    %v1028 = vpop.f32.mrf.mxu0
    %v1029 = vadd.f32 %v187, %v1028
    %v1030 = vpop.f32.mrf.mxu0
    %v1031 = vpop.f32.mrf.mxu0
    %v1032 = vadd.f32 %v187, %v1031
    %v1033 = vpop.f32.mrf.mxu0
    %1034 = vmatprep.mubr.bf16.mxu0 0
    %1035 = vmatmul.mubr.bf16.gmra.mxu0 %v647
    %v1036 = vpop.f32.mrf.mxu0
    %v1037 = vadd.f32 %v187, %v1036
    %v1038 = vpop.f32.mrf.mxu0
    %v1039 = vpop.f32.mrf.mxu0
    %v1040 = vadd.f32 %v187, %v1039
    %v1041 = vpop.f32.mrf.mxu0
    %1042 = vmatprep.mubr.bf16.mxu0 0
    %1043 = vmatmul.mubr.bf16.gmra.mxu0 %v650
    %v1044 = vpop.f32.mrf.mxu0
    %v1045 = vadd.f32 %v187, %v1044
    %v1046 = vpop.f32.mrf.mxu0
    %v1047 = vpop.f32.mrf.mxu0
    %v1048 = vadd.f32 %v187, %v1047
    %v1049 = vpop.f32.mrf.mxu0
    %1050 = vmatprep.mubr.bf16.mxu0 0
    %1051 = vmatmul.mubr.bf16.gmra.mxu0 %v653
    %v1052 = vpop.f32.mrf.mxu0
    %v1053 = vadd.f32 %v187, %v1052
    %v1054 = vpop.f32.mrf.mxu0
    %v1055 = vpop.f32.mrf.mxu0
    %v1056 = vadd.f32 %v187, %v1055
    %v1057 = vpop.f32.mrf.mxu0
    %1058 = vmatprep.mubr.bf16.mxu0 0
    %1059 = vmatmul.mubr.bf16.gmra.mxu0 %v656
    %v1060 = vpop.f32.mrf.mxu0
    %v1061 = vadd.f32 %v187, %v1060
    %v1062 = vpop.f32.mrf.mxu0
    %v1063 = vpop.f32.mrf.mxu0
    %v1064 = vadd.f32 %v187, %v1063
    %v1065 = vpop.f32.mrf.mxu0
    %1066 = vmatprep.mubr.bf16.mxu0 0
    %1067 = vmatmul.mubr.bf16.gmra.mxu0 %v659
    %v1068 = vpop.f32.mrf.mxu0
    %v1069 = vadd.f32 %v187, %v1068
    %v1070 = vpop.f32.mrf.mxu0
    %v1071 = vpop.f32.mrf.mxu0
    %v1072 = vadd.f32 %v187, %v1071
    %v1073 = vpop.f32.mrf.mxu0
    %1074 = vmatprep.mubr.bf16.mxu0 0
    %1075 = vmatmul.mubr.bf16.gmra.mxu0 %v662
    %v1076 = vpop.f32.mrf.mxu0
    %v1077 = vadd.f32 %v187, %v1076
    %v1078 = vpop.f32.mrf.mxu0
    %v1079 = vpop.f32.mrf.mxu0
    %v1080 = vadd.f32 %v187, %v1079
    %v1081 = vpop.f32.mrf.mxu0
    %1082 = vmatprep.mubr.bf16.mxu0 0
    %1083 = vmatmul.mubr.bf16.gmra.mxu0 %v665
    %v1084 = vpop.f32.mrf.mxu0
    %v1085 = vadd.f32 %v187, %v1084
    %v1086 = vpop.f32.mrf.mxu0
    %v1087 = vpop.f32.mrf.mxu0
    %v1088 = vadd.f32 %v187, %v1087
    %v1089 = vpop.f32.mrf.mxu0
    %1090 = vmatprep.mubr.bf16.mxu0 0
    %1091 = vmatmul.mubr.bf16.gmra.mxu0 %v668
    %v1092 = vpop.f32.mrf.mxu0
    %v1093 = vadd.f32 %v187, %v1092
    %v1094 = vpop.f32.mrf.mxu0
    %v1095 = vpop.f32.mrf.mxu0
    %v1096 = vadd.f32 %v187, %v1095
    %v1097 = vpop.f32.mrf.mxu0
    %1098 = vmatprep.mubr.bf16.mxu0 0
    %1099 = vmatmul.mubr.bf16.gmra.mxu0 %v671
    %v1100 = vpop.f32.mrf.mxu0
    %v1101 = vadd.f32 %v187, %v1100
    %v1102 = vpop.f32.mrf.mxu0
    %v1103 = vpop.f32.mrf.mxu0
    %v1104 = vadd.f32 %v187, %v1103
    %v1105 = vpop.f32.mrf.mxu0
    %1106 = vmatprep.mubr.bf16.mxu0 0
    %1107 = vmatmul.mubr.bf16.gmra.mxu0 %v674
    %v1108 = vpop.f32.mrf.mxu0
    %v1109 = vadd.f32 %v187, %v1108
    %v1110 = vpop.f32.mrf.mxu0
    %v1111 = vpop.f32.mrf.mxu0
    %v1112 = vadd.f32 %v187, %v1111
    %v1113 = vpop.f32.mrf.mxu0
    %1114 = vmatprep.mubr.bf16.mxu0 0
    %1115 = vmatmul.mubr.bf16.gmra.mxu0 %v677
    %v1116 = vpop.f32.mrf.mxu0
    %v1117 = vadd.f32 %v187, %v1116
    %v1118 = vpop.f32.mrf.mxu0
    %v1119 = vpop.f32.mrf.mxu0
    %v1120 = vadd.f32 %v187, %v1119
    %v1121 = vpop.f32.mrf.mxu0
    %1122 = vmatprep.mubr.bf16.mxu0 0
    %1123 = vmatmul.mubr.bf16.gmra.mxu0 %v680
    %v1124 = vpop.f32.mrf.mxu0
    %v1125 = vadd.f32 %v187, %v1124
    %v1126 = vpop.f32.mrf.mxu0
    %v1127 = vpop.f32.mrf.mxu0
    %v1128 = vadd.f32 %v187, %v1127
    %v1129 = vpop.f32.mrf.mxu0
    %1130 = vmatprep.mubr.bf16.mxu0 0
    %1131 = vmatmul.mubr.bf16.gmra.mxu0 %v683
    %v1132 = vpop.f32.mrf.mxu0
    %v1133 = vadd.f32 %v187, %v1132
    %v1134 = vpop.f32.mrf.mxu0
    %v1135 = vpop.f32.mrf.mxu0
    %v1136 = vadd.f32 %v187, %v1135
    %v1137 = vpop.f32.mrf.mxu0
    %1138 = vmatprep.mubr.bf16.mxu0 0
    %1139 = vmatmul.mubr.bf16.gmra.mxu0 %v686
    %v1140 = vpop.f32.mrf.mxu0
    %v1141 = vadd.f32 %v187, %v1140
    %v1142 = vpop.f32.mrf.mxu0
    %v1143 = vpop.f32.mrf.mxu0
    %v1144 = vadd.f32 %v187, %v1143
    %v1145 = vpop.f32.mrf.mxu0
    %1146 = vmatprep.mubr.bf16.mxu0 0
    %1147 = vmatmul.mubr.bf16.gmra.mxu0 %v689
    %v1148 = vpop.f32.mrf.mxu0
    %v1149 = vadd.f32 %v187, %v1148
    %v1150 = vpop.f32.mrf.mxu0
    %v1151 = vpop.f32.mrf.mxu0
    %v1152 = vadd.f32 %v187, %v1151
    %v1153 = vpop.f32.mrf.mxu0
    %1154 = vmatprep.mubr.bf16.mxu0 0
    %1155 = vmatmul.mubr.bf16.gmra.mxu0 %v692
    %v1156 = vpop.f32.mrf.mxu0
    %v1157 = vadd.f32 %v187, %v1156
    %v1158 = vpop.f32.mrf.mxu0
    %v1159 = vpop.f32.mrf.mxu0
    %v1160 = vadd.f32 %v187, %v1159
    %v1161 = vpop.f32.mrf.mxu0
    %1162 = vmatprep.mubr.bf16.mxu0 0
    %1163 = vmatmul.mubr.bf16.gmra.mxu0 %v695
    %v1164 = vpop.f32.mrf.mxu0
    %v1165 = vadd.f32 %v187, %v1164
    %v1166 = vpop.f32.mrf.mxu0
    %v1167 = vpop.f32.mrf.mxu0
    %v1168 = vadd.f32 %v187, %v1167
    %v1169 = vpop.f32.mrf.mxu0
    %1170 = vmatprep.mubr.bf16.mxu0 0
    %1171 = vmatmul.mubr.bf16.gmra.mxu0 %v698
    %v1172 = vpop.f32.mrf.mxu0
    %v1173 = vadd.f32 %v187, %v1172
    %v1174 = vpop.f32.mrf.mxu0
    %v1175 = vpop.f32.mrf.mxu0
    %v1176 = vadd.f32 %v187, %v1175
    %v1177 = vpop.f32.mrf.mxu0
    %1178 = vmatprep.mubr.bf16.mxu0 0
    %1179 = vmatmul.mubr.bf16.gmra.mxu0 %v701
    %v1180 = vpop.f32.mrf.mxu0
    %v1181 = vadd.f32 %v187, %v1180
    %v1182 = vpop.f32.mrf.mxu0
    %v1183 = vpop.f32.mrf.mxu0
    %v1184 = vadd.f32 %v187, %v1183
    %v1185 = vpop.f32.mrf.mxu0
    %1186 = vmatprep.mubr.bf16.mxu0 0
    %1187 = vmatmul.mubr.bf16.gmra.mxu0 %v704
    %v1188 = vpop.f32.mrf.mxu0
    %v1189 = vadd.f32 %v187, %v1188
    %v1190 = vpop.f32.mrf.mxu0
    %v1191 = vpop.f32.mrf.mxu0
    %v1192 = vadd.f32 %v187, %v1191
    %v1193 = vpop.f32.mrf.mxu0
    %1194 = vmatprep.mubr.bf16.mxu0 0
    %1195 = vmatmul.mubr.bf16.gmra.mxu0 %v707
    %v1196 = vpop.f32.mrf.mxu0
    %v1197 = vadd.f32 %v187, %v1196
    %v1198 = vpop.f32.mrf.mxu0
    %v1199 = vpop.f32.mrf.mxu0
    %v1200 = vadd.f32 %v187, %v1199
    %v1201 = vpop.f32.mrf.mxu0
    %1202 = vmatprep.mubr.bf16.mxu0 0
    %1203 = vmatmul.mubr.bf16.gmra.mxu0 %v710
    %v1204 = vpop.f32.mrf.mxu0
    %v1205 = vadd.f32 %v187, %v1204
    %v1206 = vpop.f32.mrf.mxu0
    %v1207 = vpop.f32.mrf.mxu0
    %v1208 = vadd.f32 %v187, %v1207
    %v1209 = vpop.f32.mrf.mxu0
    %1210 = vmatprep.mubr.bf16.mxu0 0
    %1211 = vmatmul.mubr.bf16.gmra.mxu0 %v713
    %v1212 = vpop.f32.mrf.mxu0
    %v1213 = vadd.f32 %v187, %v1212
    %v1214 = vpop.f32.mrf.mxu0
    %v1215 = vpop.f32.mrf.mxu0
    %v1216 = vadd.f32 %v187, %v1215
    %v1217 = vpop.f32.mrf.mxu0
    %1218 = vmatprep.mubr.bf16.mxu0 0
    %1219 = vmatmul.mubr.bf16.gmra.mxu0 %v716
    %v1220 = vpop.f32.mrf.mxu0
    %v1221 = vadd.f32 %v187, %v1220
    %v1222 = vpop.f32.mrf.mxu0
    %v1223 = vpop.f32.mrf.mxu0
    %v1224 = vadd.f32 %v187, %v1223
    %v1225 = vpop.f32.mrf.mxu0
    %1226 = vmatprep.mubr.bf16.mxu0 0
    %1227 = vmatmul.mubr.bf16.gmra.mxu0 %v719
    %v1228 = vpop.f32.mrf.mxu0
    %v1229 = vadd.f32 %v187, %v1228
    %v1230 = vpop.f32.mrf.mxu0
    %v1231 = vpop.f32.mrf.mxu0
    %v1232 = vadd.f32 %v187, %v1231
    %v1233 = vpop.f32.mrf.mxu0
    %1234 = vmatprep.mubr.bf16.mxu0 0
    %1235 = vmatmul.mubr.bf16.gmra.mxu0 %v722
    %v1236 = vpop.f32.mrf.mxu0
    %v1237 = vadd.f32 %v187, %v1236
    %v1238 = vpop.f32.mrf.mxu0
    %v1239 = vpop.f32.mrf.mxu0
    %v1240 = vadd.f32 %v187, %v1239
    %v1241 = vpop.f32.mrf.mxu0
    %1242 = vmatprep.mubr.bf16.mxu0 0
    %1243 = vmatmul.mubr.bf16.gmra.mxu0 %v725
    %v1244 = vpop.f32.mrf.mxu0
    %v1245 = vadd.f32 %v187, %v1244
    %v1246 = vpop.f32.mrf.mxu0
    %v1247 = vpop.f32.mrf.mxu0
    %v1248 = vadd.f32 %v187, %v1247
    %v1249 = vpop.f32.mrf.mxu0
    %1250 = vmatprep.mubr.bf16.mxu0 0
    %1251 = vmatmul.mubr.bf16.gmra.mxu0 %v728
    %v1252 = vpop.f32.mrf.mxu0
    %v1253 = vadd.f32 %v187, %v1252
    %v1254 = vpop.f32.mrf.mxu0
    %v1255 = vpop.f32.mrf.mxu0
    %v1256 = vadd.f32 %v187, %v1255
    %v1257 = vpop.f32.mrf.mxu0
    %1258 = vmatprep.mubr.bf16.mxu0 0
    %1259 = vmatmul.mubr.bf16.gmra.mxu0 %v731
    %v1260 = vpop.f32.mrf.mxu0
    %v1261 = vadd.f32 %v187, %v1260
    %v1262 = vpop.f32.mrf.mxu0
    %v1263 = vpop.f32.mrf.mxu0
    %v1264 = vadd.f32 %v187, %v1263
    %v1265 = vpop.f32.mrf.mxu0
    %1266 = vmatprep.mubr.bf16.mxu0 0
    %1267 = vmatmul.mubr.bf16.gmra.mxu0 %v734
    %v1268 = vpop.f32.mrf.mxu0
    %v1269 = vadd.f32 %v187, %v1268
    %v1270 = vpop.f32.mrf.mxu0
    %v1271 = vpop.f32.mrf.mxu0
    %v1272 = vadd.f32 %v187, %v1271
    %v1273 = vpop.f32.mrf.mxu0
    %1274 = vmatprep.mubr.bf16.mxu0 0
    %1275 = vmatmul.mubr.bf16.gmra.mxu0 %v737
    %v1276 = vpop.f32.mrf.mxu0
    %v1277 = vadd.f32 %v187, %v1276
    %v1278 = vpop.f32.mrf.mxu0
    %v1279 = vpop.f32.mrf.mxu0
    %v1280 = vadd.f32 %v187, %v1279
    %v1281 = vpop.f32.mrf.mxu0
    %1282 = vmatprep.mubr.bf16.mxu0 0
    %1283 = vmatmul.mubr.bf16.gmra.mxu0 %v740
    %v1284 = vpop.f32.mrf.mxu0
    %v1285 = vadd.f32 %v187, %v1284
    %v1286 = vpop.f32.mrf.mxu0
    %v1287 = vpop.f32.mrf.mxu0
    %v1288 = vadd.f32 %v187, %v1287
    %v1289 = vpop.f32.mrf.mxu0
    %1290 = vmatprep.mubr.bf16.mxu0 0
    %1291 = vmatmul.mubr.bf16.gmra.mxu0 %v743
    %v1292 = vpop.f32.mrf.mxu0
    %v1293 = vadd.f32 %v187, %v1292
    %v1294 = vpop.f32.mrf.mxu0
    %v1295 = vpop.f32.mrf.mxu0
    %v1296 = vadd.f32 %v187, %v1295
    %v1297 = vpop.f32.mrf.mxu0
    %1298 = vmatprep.mubr.bf16.mxu0 0
    %1299 = vmatmul.mubr.bf16.gmra.mxu0 %v746
    %v1300 = vpop.f32.mrf.mxu0
    %v1301 = vadd.f32 %v187, %v1300
    %v1302 = vpop.f32.mrf.mxu0
    %v1303 = vpop.f32.mrf.mxu0
    %v1304 = vadd.f32 %v187, %v1303
    %v1305 = vpop.f32.mrf.mxu0
    %1306 = vmatprep.mubr.bf16.mxu0 0
    %1307 = vmatmul.mubr.bf16.gmra.mxu0 %v749
    %v1308 = vpop.f32.mrf.mxu0
    %v1309 = vadd.f32 %v187, %v1308
    %v1310 = vpop.f32.mrf.mxu0
    %v1311 = vpop.f32.mrf.mxu0
    %v1312 = vadd.f32 %v187, %v1311
    %v1313 = vpop.f32.mrf.mxu0
    %1314 = vmatprep.mubr.bf16.mxu0 0
    %1315 = vmatmul.mubr.bf16.gmra.mxu0 %v752
    %v1316 = vpop.f32.mrf.mxu0
    %v1317 = vadd.f32 %v187, %v1316
    %v1318 = vpop.f32.mrf.mxu0
    %v1319 = vpop.f32.mrf.mxu0
    %v1320 = vadd.f32 %v187, %v1319
    %v1321 = vpop.f32.mrf.mxu0
    %1322 = vmatprep.mubr.bf16.mxu0 0
    %1323 = vmatmul.mubr.bf16.gmra.mxu0 %v755
    %v1324 = vpop.f32.mrf.mxu0
    %v1325 = vadd.f32 %v187, %v1324
    %v1326 = vpop.f32.mrf.mxu0
    %v1327 = vpop.f32.mrf.mxu0
    %v1328 = vadd.f32 %v187, %v1327
    %v1329 = vpop.f32.mrf.mxu0
    %1330 = vmatprep.mubr.bf16.mxu0 0
    %1331 = vmatmul.mubr.bf16.gmra.mxu0 %v758
    %v1332 = vpop.f32.mrf.mxu0
    %v1333 = vadd.f32 %v187, %v1332
    %v1334 = vpop.f32.mrf.mxu0
    %v1335 = vpop.f32.mrf.mxu0
    %v1336 = vadd.f32 %v187, %v1335
    %v1337 = vpop.f32.mrf.mxu0
    %1338 = vmatprep.mubr.bf16.mxu0 0
    %1339 = vmatmul.mubr.bf16.gmra.mxu0 %v761
    %v1340 = vpop.f32.mrf.mxu0
    %v1341 = vadd.f32 %v187, %v1340
    %v1342 = vpop.f32.mrf.mxu0
    %v1343 = vpop.f32.mrf.mxu0
    %v1344 = vadd.f32 %v187, %v1343
    %v1345 = vpop.f32.mrf.mxu0
    %1346 = vmatprep.mubr.bf16.mxu0 0
    %1347 = vmatmul.mubr.bf16.gmra.mxu0 %v764
    %v1348 = vpop.f32.mrf.mxu0
    %v1349 = vadd.f32 %v187, %v1348
    %v1350 = vpop.f32.mrf.mxu0
    %v1351 = vpop.f32.mrf.mxu0
    %v1352 = vadd.f32 %v187, %v1351
    %v1353 = vpop.f32.mrf.mxu0
    %1354 = vmatprep.mubr.bf16.mxu0 0
    %1355 = vmatmul.mubr.bf16.gmra.mxu0 %v767
    %v1356 = vpop.f32.mrf.mxu0
    %v1357 = vadd.f32 %v187, %v1356
    %v1358 = vpop.f32.mrf.mxu0
    %v1359 = vpop.f32.mrf.mxu0
    %v1360 = vadd.f32 %v187, %v1359
    %v1361 = vpop.f32.mrf.mxu0
    %1362 = vmatprep.mubr.bf16.mxu0 0
    %1363 = vmatmul.mubr.bf16.gmra.mxu0 %v770
    %v1364 = vpop.f32.mrf.mxu0
    %v1365 = vadd.f32 %v187, %v1364
    %v1366 = vpop.f32.mrf.mxu0
    %v1367 = vpop.f32.mrf.mxu0
    %v1368 = vadd.f32 %v187, %v1367
    %v1369 = vpop.f32.mrf.mxu0
    %1370 = vmatprep.mubr.bf16.mxu0 0
    %1371 = vmatmul.mubr.bf16.gmra.mxu0 %v773
    %v1372 = vpop.f32.mrf.mxu0
    %v1373 = vadd.f32 %v187, %v1372
    %v1374 = vpop.f32.mrf.mxu0
    %v1375 = vpop.f32.mrf.mxu0
    %v1376 = vadd.f32 %v187, %v1375
    %v1377 = vpop.f32.mrf.mxu0
    %1378 = vmatprep.mubr.bf16.mxu0 0
    %1379 = vmatmul.mubr.bf16.gmra.mxu0 %v776
    %v1380 = vpop.f32.mrf.mxu0
    %v1381 = vadd.f32 %v187, %v1380
    %v1382 = vpop.f32.mrf.mxu0
    %v1383 = vpop.f32.mrf.mxu0
    %v1384 = vadd.f32 %v187, %v1383
    %v1385 = vpop.f32.mrf.mxu0
    %1386 = vdwg.mxu0
    %v1387 = vmax.f32 %v813, 0.0
    %v1388 = vmax.f32 %v816, 0.0
    %v1389 = vmax.f32 %v821, 0.0
    %v1390 = vmax.f32 %v824, 0.0
    %v1391 = vmax.f32 %v829, 0.0
    %v1392 = vmax.f32 %v832, 0.0
    %v1393 = vmax.f32 %v837, 0.0
    %v1394 = vmax.f32 %v840, 0.0
    %v1395 = vmax.f32 %v845, 0.0
    %v1396 = vmax.f32 %v848, 0.0
    %v1397 = vmax.f32 %v853, 0.0
    %v1398 = vmax.f32 %v856, 0.0
    %v1399 = vmax.f32 %v861, 0.0
    %v1400 = vmax.f32 %v864, 0.0
    %v1401 = vmax.f32 %v869, 0.0
    %v1402 = vmax.f32 %v872, 0.0
    %v1403 = vmax.f32 %v877, 0.0
    %v1404 = vmax.f32 %v880, 0.0
    %v1405 = vmax.f32 %v885, 0.0
    %v1406 = vmax.f32 %v888, 0.0
    %v1407 = vmax.f32 %v893, 0.0
    %v1408 = vmax.f32 %v896, 0.0
    %v1409 = vmax.f32 %v901, 0.0
    %v1410 = vmax.f32 %v904, 0.0
    %v1411 = vmax.f32 %v909, 0.0
    %v1412 = vmax.f32 %v912, 0.0
    %v1413 = vmax.f32 %v917, 0.0
    %v1414 = vmax.f32 %v920, 0.0
    %v1415 = vmax.f32 %v925, 0.0
    %v1416 = vmax.f32 %v928, 0.0
    %v1417 = vmax.f32 %v933, 0.0
    %v1418 = vmax.f32 %v936, 0.0
    %v1419 = vmax.f32 %v941, 0.0
    %v1420 = vmax.f32 %v944, 0.0
    %v1421 = vmax.f32 %v949, 0.0
    %v1422 = vmax.f32 %v952, 0.0
    %v1423 = vmax.f32 %v957, 0.0
    %v1424 = vmax.f32 %v960, 0.0
    %v1425 = vmax.f32 %v965, 0.0
    %v1426 = vmax.f32 %v968, 0.0
    %v1427 = vmax.f32 %v973, 0.0
    %v1428 = vmax.f32 %v976, 0.0
    %v1429 = vmax.f32 %v981, 0.0
    %v1430 = vmax.f32 %v984, 0.0
    %v1431 = vmax.f32 %v989, 0.0
    %v1432 = vmax.f32 %v992, 0.0
    %v1433 = vmax.f32 %v997, 0.0
    %v1434 = vmax.f32 %v1000, 0.0
    %v1435 = vmax.f32 %v1005, 0.0
    %v1436 = vmax.f32 %v1008, 0.0
    %v1437 = vmax.f32 %v1013, 0.0
    %v1438 = vmax.f32 %v1016, 0.0
    %v1439 = vmax.f32 %v1021, 0.0
    %v1440 = vmax.f32 %v1024, 0.0
    %v1441 = vmax.f32 %v1029, 0.0
    %v1442 = vmax.f32 %v1032, 0.0
    %v1443 = vmax.f32 %v1037, 0.0
    %v1444 = vmax.f32 %v1040, 0.0
    %v1445 = vmax.f32 %v1045, 0.0
    %v1446 = vmax.f32 %v1048, 0.0
    %v1447 = vmax.f32 %v1053, 0.0
    %v1448 = vmax.f32 %v1056, 0.0
    %v1449 = vmax.f32 %v1061, 0.0
    %v1450 = vmax.f32 %v1064, 0.0
    %v1451 = vmax.f32 %v1069, 0.0
    %v1452 = vmax.f32 %v1072, 0.0
    %v1453 = vmax.f32 %v1077, 0.0
    %v1454 = vmax.f32 %v1080, 0.0
    %v1455 = vmax.f32 %v1085, 0.0
    %v1456 = vmax.f32 %v1088, 0.0
    %v1457 = vmax.f32 %v1093, 0.0
    %v1458 = vmax.f32 %v1096, 0.0
    %v1459 = vmax.f32 %v1101, 0.0
    %v1460 = vmax.f32 %v1104, 0.0
    %v1461 = vmax.f32 %v1109, 0.0
    %v1462 = vmax.f32 %v1112, 0.0
    %v1463 = vmax.f32 %v1117, 0.0
    %v1464 = vmax.f32 %v1120, 0.0
    %v1465 = vmax.f32 %v1125, 0.0
    %v1466 = vmax.f32 %v1128, 0.0
    %v1467 = vmax.f32 %v1133, 0.0
    %v1468 = vmax.f32 %v1136, 0.0
    %v1469 = vmax.f32 %v1141, 0.0
    %v1470 = vmax.f32 %v1144, 0.0
    %v1471 = vmax.f32 %v1149, 0.0
    %v1472 = vmax.f32 %v1152, 0.0
    %v1473 = vmax.f32 %v1157, 0.0
    %v1474 = vmax.f32 %v1160, 0.0
    %v1475 = vmax.f32 %v1165, 0.0
    %v1476 = vmax.f32 %v1168, 0.0
    %v1477 = vmax.f32 %v1173, 0.0
    %v1478 = vmax.f32 %v1176, 0.0
    %v1479 = vmax.f32 %v1181, 0.0
    %v1480 = vmax.f32 %v1184, 0.0
    %v1481 = vmax.f32 %v1189, 0.0
    %v1482 = vmax.f32 %v1192, 0.0
    %v1483 = vmax.f32 %v1197, 0.0
    %v1484 = vmax.f32 %v1200, 0.0
    %v1485 = vmax.f32 %v1205, 0.0
    %v1486 = vmax.f32 %v1208, 0.0
    %v1487 = vmax.f32 %v1213, 0.0
    %v1488 = vmax.f32 %v1216, 0.0
    %v1489 = vmax.f32 %v1221, 0.0
    %v1490 = vmax.f32 %v1224, 0.0
    %v1491 = vmax.f32 %v1229, 0.0
    %v1492 = vmax.f32 %v1232, 0.0
    %v1493 = vmax.f32 %v1237, 0.0
    %v1494 = vmax.f32 %v1240, 0.0
    %v1495 = vmax.f32 %v1245, 0.0
    %v1496 = vmax.f32 %v1248, 0.0
    %v1497 = vmax.f32 %v1253, 0.0
    %v1498 = vmax.f32 %v1256, 0.0
    %v1499 = vmax.f32 %v1261, 0.0
    %v1500 = vmax.f32 %v1264, 0.0
    %v1501 = vmax.f32 %v1269, 0.0
    %v1502 = vmax.f32 %v1272, 0.0
    %v1503 = vmax.f32 %v1277, 0.0
    %v1504 = vmax.f32 %v1280, 0.0
    %v1505 = vmax.f32 %v1285, 0.0
    %v1506 = vmax.f32 %v1288, 0.0
    %v1507 = vmax.f32 %v1293, 0.0
    %v1508 = vmax.f32 %v1296, 0.0
    %v1509 = vmax.f32 %v1301, 0.0
    %v1510 = vmax.f32 %v1304, 0.0
    %v1511 = vmax.f32 %v1309, 0.0
    %v1512 = vmax.f32 %v1312, 0.0
    %v1513 = vmax.f32 %v1317, 0.0
    %v1514 = vmax.f32 %v1320, 0.0
    %v1515 = vmax.f32 %v1325, 0.0
    %v1516 = vmax.f32 %v1328, 0.0
    %v1517 = vmax.f32 %v1333, 0.0
    %v1518 = vmax.f32 %v1336, 0.0
    %v1519 = vmax.f32 %v1341, 0.0
    %v1520 = vmax.f32 %v1344, 0.0
    %v1521 = vmax.f32 %v1349, 0.0
    %v1522 = vmax.f32 %v1352, 0.0
    %v1523 = vmax.f32 %v1357, 0.0
    %v1524 = vmax.f32 %v1360, 0.0
    %v1525 = vmax.f32 %v1365, 0.0
    %v1526 = vmax.f32 %v1368, 0.0
    %v1527 = vmax.f32 %v1373, 0.0
    %v1528 = vmax.f32 %v1376, 0.0
    %v1529 = vmax.f32 %v1381, 0.0
    %v1530 = vmax.f32 %v1384, 0.0
    %v1531 = vmax.f32 %v1387, %v1423
    %v1532 = vmax.f32 %v1388, %v1424
    %v1533 = vmax.f32 %v1389, %v1425
    %v1534 = vmax.f32 %v1390, %v1426
    %v1535 = vmax.f32 %v1391, %v1427
    %v1536 = vmax.f32 %v1392, %v1428
    %v1537 = vmax.f32 %v1393, %v1429
    %v1538 = vmax.f32 %v1394, %v1430
    %v1539 = vmax.f32 %v1395, %v1431
    %v1540 = vmax.f32 %v1396, %v1432
    %v1541 = vmax.f32 %v1397, %v1433
    %v1542 = vmax.f32 %v1398, %v1434
    %v1543 = vmax.f32 %v1399, %v1435
    %v1544 = vmax.f32 %v1400, %v1436
    %v1545 = vmax.f32 %v1401, %v1437
    %v1546 = vmax.f32 %v1402, %v1438
    %v1547 = vmax.f32 %v1403, %v1439
    %v1548 = vmax.f32 %v1404, %v1440
    %v1549 = vmax.f32 %v1405, %v1441
    %v1550 = vmax.f32 %v1406, %v1442
    %v1551 = vmax.f32 %v1407, %v1443
    %v1552 = vmax.f32 %v1408, %v1444
    %v1553 = vmax.f32 %v1409, %v1445
    %v1554 = vmax.f32 %v1410, %v1446
    %v1555 = vmax.f32 %v1411, %v1447
    %v1556 = vmax.f32 %v1412, %v1448
    %v1557 = vmax.f32 %v1413, %v1449
    %v1558 = vmax.f32 %v1414, %v1450
    %v1559 = vmax.f32 %v1415, %v1451
    %v1560 = vmax.f32 %v1416, %v1452
    %v1561 = vmax.f32 %v1417, %v1453
    %v1562 = vmax.f32 %v1418, %v1454
    %v1563 = vmax.f32 %v1419, %v1455
    %v1564 = vmax.f32 %v1420, %v1456
    %v1565 = vmax.f32 %v1421, %v1457
    %v1566 = vmax.f32 %v1422, %v1458
    %v1567 = vmax.f32 %v1459, %v1495
    %v1568 = vmax.f32 %v1460, %v1496
    %v1569 = vmax.f32 %v1461, %v1497
    %v1570 = vmax.f32 %v1462, %v1498
    %v1571 = vmax.f32 %v1463, %v1499
    %v1572 = vmax.f32 %v1464, %v1500
    %v1573 = vmax.f32 %v1465, %v1501
    %v1574 = vmax.f32 %v1466, %v1502
    %v1575 = vmax.f32 %v1467, %v1503
    %v1576 = vmax.f32 %v1468, %v1504
    %v1577 = vmax.f32 %v1469, %v1505
    %v1578 = vmax.f32 %v1470, %v1506
    %v1579 = vmax.f32 %v1471, %v1507
    %v1580 = vmax.f32 %v1472, %v1508
    %v1581 = vmax.f32 %v1473, %v1509
    %v1582 = vmax.f32 %v1474, %v1510
    %v1583 = vmax.f32 %v1475, %v1511
    %v1584 = vmax.f32 %v1476, %v1512
    %v1585 = vmax.f32 %v1477, %v1513
    %v1586 = vmax.f32 %v1478, %v1514
    %v1587 = vmax.f32 %v1479, %v1515
    %v1588 = vmax.f32 %v1480, %v1516
    %v1589 = vmax.f32 %v1481, %v1517
    %v1590 = vmax.f32 %v1482, %v1518
    %v1591 = vmax.f32 %v1483, %v1519
    %v1592 = vmax.f32 %v1484, %v1520
    %v1593 = vmax.f32 %v1485, %v1521
    %v1594 = vmax.f32 %v1486, %v1522
    %v1595 = vmax.f32 %v1487, %v1523
    %v1596 = vmax.f32 %v1488, %v1524
    %v1597 = vmax.f32 %v1489, %v1525
    %v1598 = vmax.f32 %v1490, %v1526
    %v1599 = vmax.f32 %v1491, %v1527
    %v1600 = vmax.f32 %v1492, %v1528
    %v1601 = vmax.f32 %v1493, %v1529
    %v1602 = vmax.f32 %v1494, %v1530
    %v1603 = vmax.f32 %v1531, %v1567
    %v1604 = vmax.f32 %v1532, %v1568
    %v1605 = vmax.f32 %v1533, %v1569
    %v1606 = vmax.f32 %v1534, %v1570
    %v1607 = vmax.f32 %v1535, %v1571
    %v1608 = vmax.f32 %v1536, %v1572
    %v1609 = vmax.f32 %v1537, %v1573
    %v1610 = vmax.f32 %v1538, %v1574
    %v1611 = vmax.f32 %v1539, %v1575
    %v1612 = vmax.f32 %v1540, %v1576
    %v1613 = vmax.f32 %v1541, %v1577
    %v1614 = vmax.f32 %v1542, %v1578
    %v1615 = vmax.f32 %v1543, %v1579
    %v1616 = vmax.f32 %v1544, %v1580
    %v1617 = vmax.f32 %v1545, %v1581
    %v1618 = vmax.f32 %v1546, %v1582
    %v1619 = vmax.f32 %v1547, %v1583
    %v1620 = vmax.f32 %v1548, %v1584
    %v1621 = vmax.f32 %v1549, %v1585
    %v1622 = vmax.f32 %v1550, %v1586
    %v1623 = vmax.f32 %v1551, %v1587
    %v1624 = vmax.f32 %v1552, %v1588
    %v1625 = vmax.f32 %v1553, %v1589
    %v1626 = vmax.f32 %v1554, %v1590
    %v1627 = vmax.f32 %v1555, %v1591
    %v1628 = vmax.f32 %v1556, %v1592
    %v1629 = vmax.f32 %v1557, %v1593
    %v1630 = vmax.f32 %v1558, %v1594
    %v1631 = vmax.f32 %v1559, %v1595
    %v1632 = vmax.f32 %v1560, %v1596
    %v1633 = vmax.f32 %v1561, %v1597
    %v1634 = vmax.f32 %v1562, %v1598
    %v1635 = vmax.f32 %v1563, %v1599
    %v1636 = vmax.f32 %v1564, %v1600
    %v1637 = vmax.f32 %v1565, %v1601
    %v1638 = vmax.f32 %v1566, %v1602
    %v1639 = vpack.c.bf16 %v1604, %v1603
    %v1640 = vpack.c.bf16 %v1606, %v1605
    %v1641 = vpack.c.bf16 %v1608, %v1607
    %v1642 = vpack.c.bf16 %v1610, %v1609
    %v1643 = vpack.c.bf16 %v1612, %v1611
    %v1644 = vpack.c.bf16 %v1614, %v1613
    %v1645 = vpack.c.bf16 %v1616, %v1615
    %v1646 = vpack.c.bf16 %v1618, %v1617
    %v1647 = vpack.c.bf16 %v1620, %v1619
    %v1648 = vpack.c.bf16 %v1622, %v1621
    %v1649 = vpack.c.bf16 %v1624, %v1623
    %v1650 = vpack.c.bf16 %v1626, %v1625
    %v1651 = vpack.c.bf16 %v1628, %v1627
    %v1652 = vpack.c.bf16 %v1630, %v1629
    %v1653 = vpack.c.bf16 %v1632, %v1631
    %v1654 = vpack.c.bf16 %v1634, %v1633
    %v1655 = vpack.c.bf16 %v1636, %v1635
    %v1656 = vpack.c.bf16 %v1638, %v1637
    %v1675 = vunpack.c.l.b16 %v1639
    %v1676 = vunpack.c.h.b16 %v1639
    %v1677 = vunpack.c.l.b16 %v1640
    %v1678 = vunpack.c.h.b16 %v1640
    %v1679 = vunpack.c.l.b16 %v1641
    %v1680 = vunpack.c.h.b16 %v1641
    %v1681 = vunpack.c.l.b16 %v1642
    %v1682 = vunpack.c.h.b16 %v1642
    %v1683 = vunpack.c.l.b16 %v1643
    %v1684 = vunpack.c.h.b16 %v1643
    %v1685 = vunpack.c.l.b16 %v1644
    %v1686 = vunpack.c.h.b16 %v1644
    %v1687 = vunpack.c.l.b16 %v1645
    %v1688 = vunpack.c.h.b16 %v1645
    %v1689 = vunpack.c.l.b16 %v1646
    %v1690 = vunpack.c.h.b16 %v1646
    %v1691 = vunpack.c.l.b16 %v1647
    %v1692 = vunpack.c.h.b16 %v1647
    %v1693 = vunpack.c.l.b16 %v1648
    %v1694 = vunpack.c.h.b16 %v1648
    %v1695 = vunpack.c.l.b16 %v1649
    %v1696 = vunpack.c.h.b16 %v1649
    %v1697 = vunpack.c.l.b16 %v1650
    %v1698 = vunpack.c.h.b16 %v1650
    %v1699 = vunpack.c.l.b16 %v1651
    %v1700 = vunpack.c.h.b16 %v1651
    %v1701 = vunpack.c.l.b16 %v1652
    %v1702 = vunpack.c.h.b16 %v1652
    %v1703 = vunpack.c.l.b16 %v1653
    %v1704 = vunpack.c.h.b16 %v1653
    %v1705 = vunpack.c.l.b16 %v1654
    %v1706 = vunpack.c.h.b16 %v1654
    %v1707 = vunpack.c.l.b16 %v1655
    %v1708 = vunpack.c.h.b16 %v1655
    %v1709 = vunpack.c.l.b16 %v1656
    %v1710 = vunpack.c.h.b16 %v1656
    %v1711 = vpack.c.b16 %v1675, %v1675
    %v1712 = vpack.c.b16 %v1676, %v1676
    %v1713 = vpack.c.b16 %v1677, %v1677
    %v1714 = vpack.c.b16 %v1678, %v1678
    %v1715 = vpack.c.b16 %v1679, %v1679
    %v1716 = vpack.c.b16 %v1680, %v1680
    %v1717 = vpack.c.b16 %v1681, %v1681
    %v1718 = vpack.c.b16 %v1682, %v1682
    %v1719 = vpack.c.b16 %v1683, %v1683
    %v1720 = vpack.c.b16 %v1684, %v1684
    %v1721 = vpack.c.b16 %v1685, %v1685
    %v1722 = vpack.c.b16 %v1686, %v1686
    %v1723 = vpack.c.b16 %v1687, %v1687
    %v1724 = vpack.c.b16 %v1688, %v1688
    %v1725 = vpack.c.b16 %v1689, %v1689
    %v1726 = vpack.c.b16 %v1690, %v1690
    %v1727 = vpack.c.b16 %v1691, %v1691
    %v1728 = vpack.c.b16 %v1692, %v1692
    %v1729 = vpack.c.b16 %v1693, %v1693
    %v1730 = vpack.c.b16 %v1694, %v1694
    %v1731 = vpack.c.b16 %v1695, %v1695
    %v1732 = vpack.c.b16 %v1696, %v1696
    %v1733 = vpack.c.b16 %v1697, %v1697
    %v1734 = vpack.c.b16 %v1698, %v1698
    %v1735 = vpack.c.b16 %v1699, %v1699
    %v1736 = vpack.c.b16 %v1700, %v1700
    %v1737 = vpack.c.b16 %v1701, %v1701
    %v1738 = vpack.c.b16 %v1702, %v1702
    %v1739 = vpack.c.b16 %v1703, %v1703
    %v1740 = vpack.c.b16 %v1704, %v1704
    %v1741 = vpack.c.b16 %v1705, %v1705
    %v1742 = vpack.c.b16 %v1706, %v1706
    %v1743 = vpack.c.b16 %v1707, %v1707
    %v1744 = vpack.c.b16 %v1708, %v1708
    %v1745 = vpack.c.b16 %v1709, %v1709
    %v1746 = vpack.c.b16 %v1710, %v1710
    %1783 = vst [vmem:[#allocation2] sm:$0xf] %v1711
    %1784 = vst [vmem:[#allocation2 + $0x4] sm:$0xf] %v1712
    %1785 = vst [vmem:[#allocation2 + $0x8] sm:$0xf] %v1713
    %1786 = vst [vmem:[#allocation2 + $0xc] sm:$0xf] %v1714
    %1787 = vst [vmem:[#allocation2 + $0x10] sm:$0xf] %v1715
    %1788 = vst [vmem:[#allocation2 + $0x14] sm:$0xf] %v1716
    %1789 = vst [vmem:[#allocation2 + $0x18] sm:$0xf] %v1717
    %1790 = vst [vmem:[#allocation2 + $0x1c] sm:$0xf] %v1718
    %1791 = vst [vmem:[#allocation2 + $0x20] sm:$0xf] %v1719
    %1792 = vst [vmem:[#allocation2 + $0x24] sm:$0xf] %v1720
    %1793 = vst [vmem:[#allocation2 + $0x28] sm:$0xf] %v1721
    %1794 = vst [vmem:[#allocation2 + $0x2c] sm:$0xf] %v1722
    %1795 = vst [vmem:[#allocation2 + $0x30] sm:$0xf] %v1723
    %1796 = vst [vmem:[#allocation2 + $0x34] sm:$0xf] %v1724
    %1797 = vst [vmem:[#allocation2 + $0x38] sm:$0xf] %v1725
    %1798 = vst [vmem:[#allocation2 + $0x3c] sm:$0xf] %v1726
    %1799 = vst [vmem:[#allocation2 + $0x40] sm:$0xf] %v1727
    %1800 = vst [vmem:[#allocation2 + $0x44] sm:$0xf] %v1728
    %1801 = vst [vmem:[#allocation2 + $0x48] sm:$0xf] %v1729
    %1802 = vst [vmem:[#allocation2 + $0x4c] sm:$0xf] %v1730
    %1803 = vst [vmem:[#allocation2 + $0x50] sm:$0xf] %v1731
    %1804 = vst [vmem:[#allocation2 + $0x54] sm:$0xf] %v1732
    %1805 = vst [vmem:[#allocation2 + $0x58] sm:$0xf] %v1733
    %1806 = vst [vmem:[#allocation2 + $0x5c] sm:$0xf] %v1734
    %1807 = vst [vmem:[#allocation2 + $0x60] sm:$0xf] %v1735
    %1808 = vst [vmem:[#allocation2 + $0x64] sm:$0xf] %v1736
    %1809 = vst [vmem:[#allocation2 + $0x68] sm:$0xf] %v1737
    %1810 = vst [vmem:[#allocation2 + $0x6c] sm:$0xf] %v1738
    %1811 = vst [vmem:[#allocation2 + $0x70] sm:$0xf] %v1739
    %1812 = vst [vmem:[#allocation2 + $0x74] sm:$0xf] %v1740
    %1813 = vst [vmem:[#allocation2 + $0x78] sm:$0xf] %v1741
    %1814 = vst [vmem:[#allocation2 + $0x7c] sm:$0xf] %v1742
    %1815 = vst [vmem:[#allocation2 + $0x80] sm:$0xf] %v1743
    %1816 = vst [vmem:[#allocation2 + $0x84] sm:$0xf] %v1744
    %1817 = vst [vmem:[#allocation2 + $0x88] sm:$0xf] %v1745
    %1818 = vst [vmem:[#allocation2 + $0x8c] sm:$0xf] %v1746
    %1819 = vst [vmem:[#allocation2 + $0x90] sm:$0xf] 0
    %1820 = vst [vmem:[#allocation2 + $0x94] sm:$0xf] 0
    %1821 = vst [vmem:[#allocation2 + $0x98] sm:$0xf] 0
    %1822 = vst [vmem:[#allocation2 + $0x9c] sm:$0xf] 0
    %1823 = vst [vmem:[#allocation2 + $0xa0] sm:$0xf] 0
    %1824 = vst [vmem:[#allocation2 + $0xa4] sm:$0xf] 0
    %1825 = vst [vmem:[#allocation2 + $0xa8] sm:$0xf] 0
    %v1826 = vld [vmem:[#allocation2] sm:$0xf]
    %v1827 = vld [vmem:[#allocation2 + $0x4] sm:$0xf]
    %v1828 = vld [vmem:[#allocation2 + $0x8] sm:$0xf]
    %v1829 = vld [vmem:[#allocation2 + $0xc] sm:$0xf]
    %v1830 = vld [vmem:[#allocation2 + $0x10] sm:$0xf]
    %v1831 = vld [vmem:[#allocation2 + $0x14] sm:$0xf]
    %v1832 = vld [vmem:[#allocation2 + $0x18] sm:$0xf]
    %v1833 = vld [vmem:[#allocation2 + $0x1c] sm:$0xf]
    %v1834 = vld [vmem:[#allocation2 + $0x20] sm:$0xf]
    %v1835 = vld [vmem:[#allocation2 + $0x24] sm:$0xf]
    %v1836 = vld [vmem:[#allocation2 + $0x28] sm:$0xf]
    %v1837 = vld [vmem:[#allocation2 + $0x2c] sm:$0xf]
    %v1838 = vld [vmem:[#allocation2 + $0x30] sm:$0xf]
    %v1839 = vld [vmem:[#allocation2 + $0x34] sm:$0xf]
    %v1840 = vld [vmem:[#allocation2 + $0x38] sm:$0xf]
    %v1841 = vld [vmem:[#allocation2 + $0x3c] sm:$0xf]
    %v1842 = vld [vmem:[#allocation2 + $0x40] sm:$0xf]
    %v1843 = vld [vmem:[#allocation2 + $0x44] sm:$0xf]
    %v1844 = vld [vmem:[#allocation2 + $0x48] sm:$0xf]
    %v1845 = vld [vmem:[#allocation2 + $0x4c] sm:$0xf]
    %v1846 = vld [vmem:[#allocation2 + $0x50] sm:$0xf]
    %v1847 = vld [vmem:[#allocation2 + $0x54] sm:$0xf]
    %v1848 = vld [vmem:[#allocation2 + $0x58] sm:$0xf]
    %v1849 = vld [vmem:[#allocation2 + $0x5c] sm:$0xf]
    %v1850 = vld [vmem:[#allocation2 + $0x60] sm:$0xf]
    %v1851 = vld [vmem:[#allocation2 + $0x64] sm:$0xf]
    %v1852 = vld [vmem:[#allocation2 + $0x68] sm:$0xf]
    %v1853 = vld [vmem:[#allocation2 + $0x6c] sm:$0xf]
    %v1854 = vld [vmem:[#allocation2 + $0x70] sm:$0xf]
    %v1855 = vld [vmem:[#allocation2 + $0x74] sm:$0xf]
    %v1856 = vld [vmem:[#allocation2 + $0x78] sm:$0xf]
    %v1857 = vld [vmem:[#allocation2 + $0x7c] sm:$0xf]
    %v1858 = vld [vmem:[#allocation2 + $0x80] sm:$0xf]
    %v1859 = vld [vmem:[#allocation2 + $0x84] sm:$0xf]
    %v1860 = vld [vmem:[#allocation2 + $0x88] sm:$0xf]
    %v1861 = vld [vmem:[#allocation2 + $0x8c] sm:$0xf]
    %v1862 = vld [vmem:[#allocation2 + $0x90] sm:$0x1]
    %v1863 = vld [vmem:[#allocation2] sm:$0xe]
    %v1864 = vld [vmem:[#allocation2 + $0x90] sm:$0x3]
    %v1865 = vld [vmem:[#allocation2] sm:$0xc]
    %v1866 = vld [vmem:[#allocation2 + $0x4] sm:$0xc]
    %v1867 = vld [vmem:[#allocation2 + $0x90] sm:$0xf]
    %v1868 = vld [vmem:[#allocation2 + $0x94] sm:$0x3]
    %v1869 = vld [vmem:[#allocation2 + $0x94] sm:$0x7]
    %v1870 = vld [vmem:[#allocation2 + $0x4] sm:$0x8]
    %v1871 = vld [vmem:[#allocation2 + $0x94] sm:$0xf]
    %v1872 = vld [vmem:[#allocation2 + $0x98] sm:$0xf]
    %v1873 = vld [vmem:[#allocation2 + $0x9c] sm:$0x1]
    %v1874 = vld [vmem:[#allocation2 + $0xc] sm:$0xe]
    %v1875 = vld [vmem:[#allocation2 + $0x9c] sm:$0x3]
    %v1876 = vld [vmem:[#allocation2 + $0xc] sm:$0xc]
    %v1877 = vld [vmem:[#allocation2 + $0x10] sm:$0xc]
    %v1878 = vld [vmem:[#allocation2 + $0x9c] sm:$0xf]
    %v1879 = vld [vmem:[#allocation2 + $0xa0] sm:$0x3]
    %v1880 = vld [vmem:[#allocation2 + $0xa0] sm:$0x7]
    %v1881 = vld [vmem:[#allocation2 + $0x10] sm:$0x8]
    %v1882 = vld [vmem:[#allocation2 + $0xa0] sm:$0xf]
    %v1883 = vld [vmem:[#allocation2 + $0xa4] sm:$0xf]
    %v1884 = vld [vmem:[#allocation2 + $0x18] sm:$0xf]
    %v1885 = vld [vmem:[#allocation2 + $0x1c] sm:$0xf]
    %v1886 = vld [vmem:[#allocation2 + $0x20] sm:$0xf]
    %v1887 = vld [vmem:[#allocation2 + $0x24] sm:$0xf]
    %v1888 = vld [vmem:[#allocation2 + $0x28] sm:$0xf]
    %v1889 = vld [vmem:[#allocation2 + $0x2c] sm:$0xf]
    %v1890 = vld [vmem:[#allocation2 + $0x30] sm:$0xf]
    %v1891 = vld [vmem:[#allocation2 + $0x34] sm:$0xf]
    %v1892 = vld [vmem:[#allocation2 + $0x38] sm:$0xf]
    %v1893 = vld [vmem:[#allocation2 + $0x3c] sm:$0xf]
    %v1894 = vld [vmem:[#allocation2 + $0x40] sm:$0xf]
    %v1895 = vld [vmem:[#allocation2 + $0x44] sm:$0xf]
    %v1896 = vld [vmem:[#allocation2 + $0x48] sm:$0xf]
    %v1897 = vld [vmem:[#allocation2 + $0x4c] sm:$0xf]
    %v1898 = vld [vmem:[#allocation2 + $0x50] sm:$0xf]
    %v1899 = vld [vmem:[#allocation2 + $0x54] sm:$0xf]
    %v1900 = vld [vmem:[#allocation2 + $0x58] sm:$0xf]
    %v1901 = vld [vmem:[#allocation2 + $0x5c] sm:$0xf]
    %v1902 = vld [vmem:[#allocation2 + $0x60] sm:$0xf]
    %v1903 = vld [vmem:[#allocation2 + $0x64] sm:$0xf]
    %v1904 = vld [vmem:[#allocation2 + $0x68] sm:$0xf]
    %v1905 = vld [vmem:[#allocation2 + $0x6c] sm:$0xf]
    %v1906 = vld [vmem:[#allocation2 + $0x70] sm:$0xf]
    %v1907 = vld [vmem:[#allocation2 + $0x74] sm:$0xf]
    %v1908 = vld [vmem:[#allocation2 + $0x78] sm:$0xf]
    %v1909 = vld [vmem:[#allocation2 + $0x7c] sm:$0xf]
    %v1910 = vld [vmem:[#allocation2 + $0x80] sm:$0xf]
    %v1911 = vld [vmem:[#allocation2 + $0x84] sm:$0xf]
    %v1912 = vld [vmem:[#allocation2 + $0x88] sm:$0xf]
    %v1913 = vld [vmem:[#allocation2 + $0x8c] sm:$0xf]
    %v1914 = vld [vmem:[#allocation2 + $0x90] sm:$0xf]
    %v1915 = vld [vmem:[#allocation2 + $0x94] sm:$0xf]
    %v1916 = vld [vmem:[#allocation2 + $0x98] sm:$0xf]
    %v1917 = vld [vmem:[#allocation2 + $0x9c] sm:$0xf]
    %v1918 = vld [vmem:[#allocation2 + $0xa0] sm:$0xf]
    %v1919 = vld [vmem:[#allocation2 + $0xa4] sm:$0xf]
    %v1920 = vld [vmem:[#allocation2 + $0xa8] sm:$0x1]
    %v1921 = vld [vmem:[#allocation2 + $0x18] sm:$0xe]
    %v1922 = vld [vmem:[#allocation2 + $0xa8] sm:$0x3]
    %v1923 = vld [vmem:[#allocation2 + $0x18] sm:$0xc]
    %v1960 = vunpack.c.l.b16 %v1826
    %v1961 = vunpack.c.l.b16 %v1827
    %v1962 = vunpack.c.l.b16 %v1828
    %v1963 = vunpack.c.l.b16 %v1829
    %v1964 = vunpack.c.l.b16 %v1830
    %v1965 = vunpack.c.l.b16 %v1831
    %v1966 = vunpack.c.l.b16 %v1832
    %v1967 = vunpack.c.l.b16 %v1833
    %v1968 = vunpack.c.l.b16 %v1834
    %v1969 = vunpack.c.l.b16 %v1835
    %v1970 = vunpack.c.l.b16 %v1836
    %v1971 = vunpack.c.l.b16 %v1837
    %v1972 = vunpack.c.l.b16 %v1838
    %v1973 = vunpack.c.l.b16 %v1839
    %v1974 = vunpack.c.l.b16 %v1840
    %v1975 = vunpack.c.l.b16 %v1841
    %v1976 = vunpack.c.l.b16 %v1842
    %v1977 = vunpack.c.l.b16 %v1843
    %v1978 = vunpack.c.l.b16 %v1844
    %v1979 = vunpack.c.l.b16 %v1845
    %v1980 = vunpack.c.l.b16 %v1846
    %v1981 = vunpack.c.l.b16 %v1847
    %v1982 = vunpack.c.l.b16 %v1848
    %v1983 = vunpack.c.l.b16 %v1849
    %v1984 = vunpack.c.l.b16 %v1850
    %v1985 = vunpack.c.l.b16 %v1851
    %v1986 = vunpack.c.l.b16 %v1852
    %v1987 = vunpack.c.l.b16 %v1853
    %v1988 = vunpack.c.l.b16 %v1854
    %v1989 = vunpack.c.l.b16 %v1855
    %v1990 = vunpack.c.l.b16 %v1856
    %v1991 = vunpack.c.l.b16 %v1857
    %v1992 = vunpack.c.l.b16 %v1858
    %v1993 = vunpack.c.l.b16 %v1859
    %v1994 = vunpack.c.l.b16 %v1860
    %v1995 = vunpack.c.l.b16 %v1861
    %v1996 = vpack.c.b16 %v1961, %v1960
    %v1997 = vpack.c.b16 %v1963, %v1962
    %v1998 = vpack.c.b16 %v1965, %v1964
    %v1999 = vpack.c.b16 %v1967, %v1966
    %v2000 = vpack.c.b16 %v1969, %v1968
    %v2001 = vpack.c.b16 %v1971, %v1970
    %v2002 = vpack.c.b16 %v1973, %v1972
    %v2003 = vpack.c.b16 %v1975, %v1974
    %v2004 = vpack.c.b16 %v1977, %v1976
    %v2005 = vpack.c.b16 %v1979, %v1978
    %v2006 = vpack.c.b16 %v1981, %v1980
    %v2007 = vpack.c.b16 %v1983, %v1982
    %v2008 = vpack.c.b16 %v1985, %v1984
    %v2009 = vpack.c.b16 %v1987, %v1986
    %v2010 = vpack.c.b16 %v1989, %v1988
    %v2011 = vpack.c.b16 %v1991, %v1990
    %v2012 = vpack.c.b16 %v1993, %v1992
    %v2013 = vpack.c.b16 %v1995, %v1994
    %v2033 = vunpack.c.l.b16 %v1862
    %v2034 = vpack.c.b16 %v2033, %v2033
    %vm2035 = vsmask.f32 7424
    %v2037 = vshrl.u32 %v1996, 16
    %v2039 = vshll.u32 %v1996, 16
    %v2041 = vrot.slane %v2039, 1
    %v2042 = vor.u32 %v2037, %v2041
    %v2044 = vshll.u32 %v1997, 16
    %v2046 = vrot.slane %v2044, 1
    %v2047 = vsel %vm2035, %v2042, %v2046
    %v2048 = vshrl.u32 %v1997, 16
    %v2050 = vor.u32 %v2048, %v2046
    %v2052 = vshll.u32 %v1998, 16
    %v2054 = vrot.slane %v2052, 1
    %v2055 = vsel %vm2035, %v2050, %v2054
    %v2056 = vshrl.u32 %v1998, 16
    %v2058 = vor.u32 %v2056, %v2054
    %v2060 = vshll.u32 %v1999, 16
    %v2062 = vrot.slane %v2060, 1
    %v2063 = vsel %vm2035, %v2058, %v2062
    %v2064 = vshrl.u32 %v1999, 16
    %v2066 = vor.u32 %v2064, %v2062
    %v2068 = vshll.u32 %v2000, 16
    %v2070 = vrot.slane %v2068, 1
    %v2071 = vsel %vm2035, %v2066, %v2070
    %v2072 = vshrl.u32 %v2000, 16
    %v2074 = vor.u32 %v2072, %v2070
    %v2076 = vshll.u32 %v2001, 16
    %v2078 = vrot.slane %v2076, 1
    %v2079 = vsel %vm2035, %v2074, %v2078
    %v2080 = vshrl.u32 %v2001, 16
    %v2082 = vor.u32 %v2080, %v2078
    %v2084 = vshll.u32 %v2002, 16
    %v2086 = vrot.slane %v2084, 1
    %v2087 = vsel %vm2035, %v2082, %v2086
    %v2088 = vshrl.u32 %v2002, 16
    %v2090 = vor.u32 %v2088, %v2086
    %v2092 = vshll.u32 %v2003, 16
    %v2094 = vrot.slane %v2092, 1
    %v2095 = vsel %vm2035, %v2090, %v2094
    %v2096 = vshrl.u32 %v2003, 16
    %v2098 = vor.u32 %v2096, %v2094
    %v2100 = vshll.u32 %v2004, 16
    %v2102 = vrot.slane %v2100, 1
    %v2103 = vsel %vm2035, %v2098, %v2102
    %v2104 = vshrl.u32 %v2004, 16
    %v2106 = vor.u32 %v2104, %v2102
    %v2108 = vshll.u32 %v2005, 16
    %v2110 = vrot.slane %v2108, 1
    %v2111 = vsel %vm2035, %v2106, %v2110
    %v2112 = vshrl.u32 %v2005, 16
    %v2114 = vor.u32 %v2112, %v2110
    %v2116 = vshll.u32 %v2006, 16
    %v2118 = vrot.slane %v2116, 1
    %v2119 = vsel %vm2035, %v2114, %v2118
    %v2120 = vshrl.u32 %v2006, 16
    %v2122 = vor.u32 %v2120, %v2118
    %v2124 = vshll.u32 %v2007, 16
    %v2126 = vrot.slane %v2124, 1
    %v2127 = vsel %vm2035, %v2122, %v2126
    %v2128 = vshrl.u32 %v2007, 16
    %v2130 = vor.u32 %v2128, %v2126
    %v2132 = vshll.u32 %v2008, 16
    %v2134 = vrot.slane %v2132, 1
    %v2135 = vsel %vm2035, %v2130, %v2134
    %v2136 = vshrl.u32 %v2008, 16
    %v2138 = vor.u32 %v2136, %v2134
    %v2140 = vshll.u32 %v2009, 16
    %v2142 = vrot.slane %v2140, 1
    %v2143 = vsel %vm2035, %v2138, %v2142
    %v2144 = vshrl.u32 %v2009, 16
    %v2146 = vor.u32 %v2144, %v2142
    %v2148 = vshll.u32 %v2010, 16
    %v2150 = vrot.slane %v2148, 1
    %v2151 = vsel %vm2035, %v2146, %v2150
    %v2152 = vshrl.u32 %v2010, 16
    %v2154 = vor.u32 %v2152, %v2150
    %v2156 = vshll.u32 %v2011, 16
    %v2158 = vrot.slane %v2156, 1
    %v2159 = vsel %vm2035, %v2154, %v2158
    %v2160 = vshrl.u32 %v2011, 16
    %v2162 = vor.u32 %v2160, %v2158
    %v2164 = vshll.u32 %v2012, 16
    %v2166 = vrot.slane %v2164, 1
    %v2167 = vsel %vm2035, %v2162, %v2166
    %v2168 = vshrl.u32 %v2012, 16
    %v2170 = vor.u32 %v2168, %v2166
    %v2172 = vshll.u32 %v2013, 16
    %v2174 = vrot.slane %v2172, 1
    %v2175 = vsel %vm2035, %v2170, %v2174
    %v2176 = vshrl.u32 %v2013, 16
    %v2178 = vor.u32 %v2176, %v2174
    %v2180 = vshll.u32 %v2034, 16
    %v2182 = vrot.slane %v2180, 1
    %v2183 = vsel %vm2035, %v2178, %v2182
    %v2203 = vunpack.c.l.b16 %v1863
    %v2204 = vpack.c.b16 %v1961, %v2203
    %vm2205 = vcmask 1046528
    %v2206 = vrot.slane %v2204, 1
    %v2207 = vrot.slane %v1997, 1
    %v2208 = vsel %vm2205, %v2206, %v2207
    %v2209 = vrot.slane %v1998, 1
    %v2210 = vsel %vm2205, %v2207, %v2209
    %v2211 = vrot.slane %v1999, 1
    %v2212 = vsel %vm2205, %v2209, %v2211
    %v2213 = vrot.slane %v2000, 1
    %v2214 = vsel %vm2205, %v2211, %v2213
    %v2215 = vrot.slane %v2001, 1
    %v2216 = vsel %vm2205, %v2213, %v2215
    %v2217 = vrot.slane %v2002, 1
    %v2218 = vsel %vm2205, %v2215, %v2217
    %v2219 = vrot.slane %v2003, 1
    %v2220 = vsel %vm2205, %v2217, %v2219
    %v2221 = vrot.slane %v2004, 1
    %v2222 = vsel %vm2205, %v2219, %v2221
    %v2223 = vrot.slane %v2005, 1
    %v2224 = vsel %vm2205, %v2221, %v2223
    %v2225 = vrot.slane %v2006, 1
    %v2226 = vsel %vm2205, %v2223, %v2225
    %v2227 = vrot.slane %v2007, 1
    %v2228 = vsel %vm2205, %v2225, %v2227
    %v2229 = vrot.slane %v2008, 1
    %v2230 = vsel %vm2205, %v2227, %v2229
    %v2231 = vrot.slane %v2009, 1
    %v2232 = vsel %vm2205, %v2229, %v2231
    %v2233 = vrot.slane %v2010, 1
    %v2234 = vsel %vm2205, %v2231, %v2233
    %v2235 = vrot.slane %v2011, 1
    %v2236 = vsel %vm2205, %v2233, %v2235
    %v2237 = vrot.slane %v2012, 1
    %v2238 = vsel %vm2205, %v2235, %v2237
    %v2239 = vrot.slane %v2013, 1
    %v2240 = vsel %vm2205, %v2237, %v2239
    %v2241 = vrot.slane %v2034, 1
    %v2242 = vsel %vm2205, %v2239, %v2241
    %v2262 = vunpack.c.l.b16 %v1864
    %v2263 = vpack.c.b16 %v2262, %v2262
    %vm2264 = vsmask.f32 6400
    %v2266 = vshrl.u32 %v2204, 16
    %v2268 = vrot.slane %v2266, 1
    %v2269 = vshll.u32 %v2204, 16
    %v2271 = vrot.slane %v2269, 2
    %v2272 = vor.u32 %v2268, %v2271
    %v2273 = vrot.slane %v2048, 1
    %v2274 = vrot.slane %v2044, 2
    %v2275 = vor.u32 %v2273, %v2274
    %v2276 = vsel %vm2264, %v2272, %v2275
    %v2277 = vrot.slane %v2056, 1
    %v2278 = vrot.slane %v2052, 2
    %v2279 = vor.u32 %v2277, %v2278
    %v2280 = vsel %vm2264, %v2275, %v2279
    %v2281 = vrot.slane %v2064, 1
    %v2282 = vrot.slane %v2060, 2
    %v2283 = vor.u32 %v2281, %v2282
    %v2284 = vsel %vm2264, %v2279, %v2283
    %v2285 = vrot.slane %v2072, 1
    %v2286 = vrot.slane %v2068, 2
    %v2287 = vor.u32 %v2285, %v2286
    %v2288 = vsel %vm2264, %v2283, %v2287
    %v2289 = vrot.slane %v2080, 1
    %v2290 = vrot.slane %v2076, 2
    %v2291 = vor.u32 %v2289, %v2290
    %v2292 = vsel %vm2264, %v2287, %v2291
    %v2293 = vrot.slane %v2088, 1
    %v2294 = vrot.slane %v2084, 2
    %v2295 = vor.u32 %v2293, %v2294
    %v2296 = vsel %vm2264, %v2291, %v2295
    %v2297 = vrot.slane %v2096, 1
    %v2298 = vrot.slane %v2092, 2
    %v2299 = vor.u32 %v2297, %v2298
    %v2300 = vsel %vm2264, %v2295, %v2299
    %v2301 = vrot.slane %v2104, 1
    %v2302 = vrot.slane %v2100, 2
    %v2303 = vor.u32 %v2301, %v2302
    %v2304 = vsel %vm2264, %v2299, %v2303
    %v2305 = vrot.slane %v2112, 1
    %v2306 = vrot.slane %v2108, 2
    %v2307 = vor.u32 %v2305, %v2306
    %v2308 = vsel %vm2264, %v2303, %v2307
    %v2309 = vrot.slane %v2120, 1
    %v2310 = vrot.slane %v2116, 2
    %v2311 = vor.u32 %v2309, %v2310
    %v2312 = vsel %vm2264, %v2307, %v2311
    %v2313 = vrot.slane %v2128, 1
    %v2314 = vrot.slane %v2124, 2
    %v2315 = vor.u32 %v2313, %v2314
    %v2316 = vsel %vm2264, %v2311, %v2315
    %v2317 = vrot.slane %v2136, 1
    %v2318 = vrot.slane %v2132, 2
    %v2319 = vor.u32 %v2317, %v2318
    %v2320 = vsel %vm2264, %v2315, %v2319
    %v2321 = vrot.slane %v2144, 1
    %v2322 = vrot.slane %v2140, 2
    %v2323 = vor.u32 %v2321, %v2322
    %v2324 = vsel %vm2264, %v2319, %v2323
    %v2325 = vrot.slane %v2152, 1
    %v2326 = vrot.slane %v2148, 2
    %v2327 = vor.u32 %v2325, %v2326
    %v2328 = vsel %vm2264, %v2323, %v2327
    %v2329 = vrot.slane %v2160, 1
    %v2330 = vrot.slane %v2156, 2
    %v2331 = vor.u32 %v2329, %v2330
    %v2332 = vsel %vm2264, %v2327, %v2331
    %v2333 = vrot.slane %v2168, 1
    %v2334 = vrot.slane %v2164, 2
    %v2335 = vor.u32 %v2333, %v2334
    %v2336 = vsel %vm2264, %v2331, %v2335
    %v2337 = vrot.slane %v2176, 1
    %v2338 = vrot.slane %v2172, 2
    %v2339 = vor.u32 %v2337, %v2338
    %v2340 = vsel %vm2264, %v2335, %v2339
    %v2342 = vshrl.u32 %v2263, 16
    %v2344 = vrot.slane %v2342, 1
    %v2345 = vshll.u32 %v2263, 16
    %v2347 = vrot.slane %v2345, 2
    %v2348 = vor.u32 %v2344, %v2347
    %v2349 = vsel %vm2264, %v2339, %v2348
    %v2369 = vunpack.c.l.b16 %v1865
    %v2370 = vpack.c.b16 %v1961, %v2369
    %vm2371 = vcmask 1045504
    %v2372 = vrot.slane %v2370, 2
    %v2373 = vrot.slane %v1997, 2
    %v2374 = vsel %vm2371, %v2372, %v2373
    %v2375 = vrot.slane %v1998, 2
    %v2376 = vsel %vm2371, %v2373, %v2375
    %v2377 = vrot.slane %v1999, 2
    %v2378 = vsel %vm2371, %v2375, %v2377
    %v2379 = vrot.slane %v2000, 2
    %v2380 = vsel %vm2371, %v2377, %v2379
    %v2381 = vrot.slane %v2001, 2
    %v2382 = vsel %vm2371, %v2379, %v2381
    %v2383 = vrot.slane %v2002, 2
    %v2384 = vsel %vm2371, %v2381, %v2383
    %v2385 = vrot.slane %v2003, 2
    %v2386 = vsel %vm2371, %v2383, %v2385
    %v2387 = vrot.slane %v2004, 2
    %v2388 = vsel %vm2371, %v2385, %v2387
    %v2389 = vrot.slane %v2005, 2
    %v2390 = vsel %vm2371, %v2387, %v2389
    %v2391 = vrot.slane %v2006, 2
    %v2392 = vsel %vm2371, %v2389, %v2391
    %v2393 = vrot.slane %v2007, 2
    %v2394 = vsel %vm2371, %v2391, %v2393
    %v2395 = vrot.slane %v2008, 2
    %v2396 = vsel %vm2371, %v2393, %v2395
    %v2397 = vrot.slane %v2009, 2
    %v2398 = vsel %vm2371, %v2395, %v2397
    %v2399 = vrot.slane %v2010, 2
    %v2400 = vsel %vm2371, %v2397, %v2399
    %v2401 = vrot.slane %v2011, 2
    %v2402 = vsel %vm2371, %v2399, %v2401
    %v2403 = vrot.slane %v2012, 2
    %v2404 = vsel %vm2371, %v2401, %v2403
    %v2405 = vrot.slane %v2013, 2
    %v2406 = vsel %vm2371, %v2403, %v2405
    %v2407 = vrot.slane %v2263, 2
    %v2408 = vsel %vm2371, %v2405, %v2407
    %v2430 = vunpack.c.l.b16 %v1866
    %v2431 = vunpack.c.l.b16 %v1867
    %v2432 = vunpack.c.l.b16 %v1868
    %v2433 = vpack.c.b16 %v1962, %v2430
    %v2434 = vpack.c.b16 %v1964, %v1963
    %v2435 = vpack.c.b16 %v1966, %v1965
    %v2436 = vpack.c.b16 %v1968, %v1967
    %v2437 = vpack.c.b16 %v1970, %v1969
    %v2438 = vpack.c.b16 %v1972, %v1971
    %v2439 = vpack.c.b16 %v1974, %v1973
    %v2440 = vpack.c.b16 %v1976, %v1975
    %v2441 = vpack.c.b16 %v1978, %v1977
    %v2442 = vpack.c.b16 %v1980, %v1979
    %v2443 = vpack.c.b16 %v1982, %v1981
    %v2444 = vpack.c.b16 %v1984, %v1983
    %v2445 = vpack.c.b16 %v1986, %v1985
    %v2446 = vpack.c.b16 %v1988, %v1987
    %v2447 = vpack.c.b16 %v1990, %v1989
    %v2448 = vpack.c.b16 %v1992, %v1991
    %v2449 = vpack.c.b16 %v1994, %v1993
    %v2450 = vpack.c.b16 %v2431, %v1995
    %v2451 = vpack.c.b16 %v2432, %v2432
    %v2452 = vrot.slane %v2433, 2
    %v2453 = vrot.slane %v2434, 2
    %v2454 = vsel %vm2371, %v2452, %v2453
    %v2455 = vrot.slane %v2435, 2
    %v2456 = vsel %vm2371, %v2453, %v2455
    %v2457 = vrot.slane %v2436, 2
    %v2458 = vsel %vm2371, %v2455, %v2457
    %v2459 = vrot.slane %v2437, 2
    %v2460 = vsel %vm2371, %v2457, %v2459
    %v2461 = vrot.slane %v2438, 2
    %v2462 = vsel %vm2371, %v2459, %v2461
    %v2463 = vrot.slane %v2439, 2
    %v2464 = vsel %vm2371, %v2461, %v2463
    %v2465 = vrot.slane %v2440, 2
    %v2466 = vsel %vm2371, %v2463, %v2465
    %v2467 = vrot.slane %v2441, 2
    %v2468 = vsel %vm2371, %v2465, %v2467
    %v2469 = vrot.slane %v2442, 2
    %v2470 = vsel %vm2371, %v2467, %v2469
    %v2471 = vrot.slane %v2443, 2
    %v2472 = vsel %vm2371, %v2469, %v2471
    %v2473 = vrot.slane %v2444, 2
    %v2474 = vsel %vm2371, %v2471, %v2473
    %v2475 = vrot.slane %v2445, 2
    %v2476 = vsel %vm2371, %v2473, %v2475
    %v2477 = vrot.slane %v2446, 2
    %v2478 = vsel %vm2371, %v2475, %v2477
    %v2479 = vrot.slane %v2447, 2
    %v2480 = vsel %vm2371, %v2477, %v2479
    %v2481 = vrot.slane %v2448, 2
    %v2482 = vsel %vm2371, %v2479, %v2481
    %v2483 = vrot.slane %v2449, 2
    %v2484 = vsel %vm2371, %v2481, %v2483
    %v2485 = vrot.slane %v2450, 2
    %v2486 = vsel %vm2371, %v2483, %v2485
    %v2487 = vrot.slane %v2451, 2
    %v2488 = vsel %vm2371, %v2485, %v2487
    %v2508 = vunpack.c.l.b16 %v1869
    %v2509 = vpack.c.b16 %v2508, %v2508
    %vm2510 = vsmask.f32 5376
    %v2512 = vshrl.u32 %v2433, 16
    %v2514 = vrot.slane %v2512, 2
    %v2515 = vshll.u32 %v2433, 16
    %v2517 = vrot.slane %v2515, 3
    %v2518 = vor.u32 %v2514, %v2517
    %v2520 = vshrl.u32 %v2434, 16
    %v2522 = vrot.slane %v2520, 2
    %v2523 = vshll.u32 %v2434, 16
    %v2525 = vrot.slane %v2523, 3
    %v2526 = vor.u32 %v2522, %v2525
    %v2527 = vsel %vm2510, %v2518, %v2526
    %v2529 = vshrl.u32 %v2435, 16
    %v2531 = vrot.slane %v2529, 2
    %v2532 = vshll.u32 %v2435, 16
    %v2534 = vrot.slane %v2532, 3
    %v2535 = vor.u32 %v2531, %v2534
    %v2536 = vsel %vm2510, %v2526, %v2535
    %v2538 = vshrl.u32 %v2436, 16
    %v2540 = vrot.slane %v2538, 2
    %v2541 = vshll.u32 %v2436, 16
    %v2543 = vrot.slane %v2541, 3
    %v2544 = vor.u32 %v2540, %v2543
    %v2545 = vsel %vm2510, %v2535, %v2544
    %v2547 = vshrl.u32 %v2437, 16
    %v2549 = vrot.slane %v2547, 2
    %v2550 = vshll.u32 %v2437, 16
    %v2552 = vrot.slane %v2550, 3
    %v2553 = vor.u32 %v2549, %v2552
    %v2554 = vsel %vm2510, %v2544, %v2553
    %v2556 = vshrl.u32 %v2438, 16
    %v2558 = vrot.slane %v2556, 2
    %v2559 = vshll.u32 %v2438, 16
    %v2561 = vrot.slane %v2559, 3
    %v2562 = vor.u32 %v2558, %v2561
    %v2563 = vsel %vm2510, %v2553, %v2562
    %v2565 = vshrl.u32 %v2439, 16
    %v2567 = vrot.slane %v2565, 2
    %v2568 = vshll.u32 %v2439, 16
    %v2570 = vrot.slane %v2568, 3
    %v2571 = vor.u32 %v2567, %v2570
    %v2572 = vsel %vm2510, %v2562, %v2571
    %v2574 = vshrl.u32 %v2440, 16
    %v2576 = vrot.slane %v2574, 2
    %v2577 = vshll.u32 %v2440, 16
    %v2579 = vrot.slane %v2577, 3
    %v2580 = vor.u32 %v2576, %v2579
    %v2581 = vsel %vm2510, %v2571, %v2580
    %v2583 = vshrl.u32 %v2441, 16
    %v2585 = vrot.slane %v2583, 2
    %v2586 = vshll.u32 %v2441, 16
    %v2588 = vrot.slane %v2586, 3
    %v2589 = vor.u32 %v2585, %v2588
    %v2590 = vsel %vm2510, %v2580, %v2589
    %v2592 = vshrl.u32 %v2442, 16
    %v2594 = vrot.slane %v2592, 2
    %v2595 = vshll.u32 %v2442, 16
    %v2597 = vrot.slane %v2595, 3
    %v2598 = vor.u32 %v2594, %v2597
    %v2599 = vsel %vm2510, %v2589, %v2598
    %v2601 = vshrl.u32 %v2443, 16
    %v2603 = vrot.slane %v2601, 2
    %v2604 = vshll.u32 %v2443, 16
    %v2606 = vrot.slane %v2604, 3
    %v2607 = vor.u32 %v2603, %v2606
    %v2608 = vsel %vm2510, %v2598, %v2607
    %v2610 = vshrl.u32 %v2444, 16
    %v2612 = vrot.slane %v2610, 2
    %v2613 = vshll.u32 %v2444, 16
    %v2615 = vrot.slane %v2613, 3
    %v2616 = vor.u32 %v2612, %v2615
    %v2617 = vsel %vm2510, %v2607, %v2616
    %v2619 = vshrl.u32 %v2445, 16
    %v2621 = vrot.slane %v2619, 2
    %v2622 = vshll.u32 %v2445, 16
    %v2624 = vrot.slane %v2622, 3
    %v2625 = vor.u32 %v2621, %v2624
    %v2626 = vsel %vm2510, %v2616, %v2625
    %v2628 = vshrl.u32 %v2446, 16
    %v2630 = vrot.slane %v2628, 2
    %v2631 = vshll.u32 %v2446, 16
    %v2633 = vrot.slane %v2631, 3
    %v2634 = vor.u32 %v2630, %v2633
    %v2635 = vsel %vm2510, %v2625, %v2634
    %v2637 = vshrl.u32 %v2447, 16
    %v2639 = vrot.slane %v2637, 2
    %v2640 = vshll.u32 %v2447, 16
    %v2642 = vrot.slane %v2640, 3
    %v2643 = vor.u32 %v2639, %v2642
    %v2644 = vsel %vm2510, %v2634, %v2643
    %v2646 = vshrl.u32 %v2448, 16
    %v2648 = vrot.slane %v2646, 2
    %v2649 = vshll.u32 %v2448, 16
    %v2651 = vrot.slane %v2649, 3
    %v2652 = vor.u32 %v2648, %v2651
    %v2653 = vsel %vm2510, %v2643, %v2652
    %v2655 = vshrl.u32 %v2449, 16
    %v2657 = vrot.slane %v2655, 2
    %v2658 = vshll.u32 %v2449, 16
    %v2660 = vrot.slane %v2658, 3
    %v2661 = vor.u32 %v2657, %v2660
    %v2662 = vsel %vm2510, %v2652, %v2661
    %v2664 = vshrl.u32 %v2450, 16
    %v2666 = vrot.slane %v2664, 2
    %v2667 = vshll.u32 %v2450, 16
    %v2669 = vrot.slane %v2667, 3
    %v2670 = vor.u32 %v2666, %v2669
    %v2671 = vsel %vm2510, %v2661, %v2670
    %v2673 = vshrl.u32 %v2509, 16
    %v2675 = vrot.slane %v2673, 2
    %v2676 = vshll.u32 %v2509, 16
    %v2678 = vrot.slane %v2676, 3
    %v2679 = vor.u32 %v2675, %v2678
    %v2680 = vsel %vm2510, %v2670, %v2679
    %v2700 = vunpack.c.l.b16 %v1870
    %v2701 = vpack.c.b16 %v1962, %v2700
    %vm2702 = vcmask 1044480
    %v2703 = vrot.slane %v2701, 3
    %v2704 = vrot.slane %v2434, 3
    %v2705 = vsel %vm2702, %v2703, %v2704
    %v2706 = vrot.slane %v2435, 3
    %v2707 = vsel %vm2702, %v2704, %v2706
    %v2708 = vrot.slane %v2436, 3
    %v2709 = vsel %vm2702, %v2706, %v2708
    %v2710 = vrot.slane %v2437, 3
    %v2711 = vsel %vm2702, %v2708, %v2710
    %v2712 = vrot.slane %v2438, 3
    %v2713 = vsel %vm2702, %v2710, %v2712
    %v2714 = vrot.slane %v2439, 3
    %v2715 = vsel %vm2702, %v2712, %v2714
    %v2716 = vrot.slane %v2440, 3
    %v2717 = vsel %vm2702, %v2714, %v2716
    %v2718 = vrot.slane %v2441, 3
    %v2719 = vsel %vm2702, %v2716, %v2718
    %v2720 = vrot.slane %v2442, 3
    %v2721 = vsel %vm2702, %v2718, %v2720
    %v2722 = vrot.slane %v2443, 3
    %v2723 = vsel %vm2702, %v2720, %v2722
    %v2724 = vrot.slane %v2444, 3
    %v2725 = vsel %vm2702, %v2722, %v2724
    %v2726 = vrot.slane %v2445, 3
    %v2727 = vsel %vm2702, %v2724, %v2726
    %v2728 = vrot.slane %v2446, 3
    %v2729 = vsel %vm2702, %v2726, %v2728
    %v2730 = vrot.slane %v2447, 3
    %v2731 = vsel %vm2702, %v2728, %v2730
    %v2732 = vrot.slane %v2448, 3
    %v2733 = vsel %vm2702, %v2730, %v2732
    %v2734 = vrot.slane %v2449, 3
    %v2735 = vsel %vm2702, %v2732, %v2734
    %v2736 = vrot.slane %v2450, 3
    %v2737 = vsel %vm2702, %v2734, %v2736
    %v2738 = vrot.slane %v2509, 3
    %v2739 = vsel %vm2702, %v2736, %v2738
    %v2759 = vunpack.c.l.b16 %v1871
    %v2760 = vpack.c.b16 %v2759, %v2759
    %vm2761 = vsmask.f32 4352
    %v2763 = vshrl.u32 %v2701, 16
    %v2765 = vrot.slane %v2763, 3
    %v2766 = vshll.u32 %v2701, 16
    %v2768 = vrot.slane %v2766, 4
    %v2769 = vor.u32 %v2765, %v2768
    %v2770 = vrot.slane %v2520, 3
    %v2771 = vrot.slane %v2523, 4
    %v2772 = vor.u32 %v2770, %v2771
    %v2773 = vsel %vm2761, %v2769, %v2772
    %v2774 = vrot.slane %v2529, 3
    %v2775 = vrot.slane %v2532, 4
    %v2776 = vor.u32 %v2774, %v2775
    %v2777 = vsel %vm2761, %v2772, %v2776
    %v2778 = vrot.slane %v2538, 3
    %v2779 = vrot.slane %v2541, 4
    %v2780 = vor.u32 %v2778, %v2779
    %v2781 = vsel %vm2761, %v2776, %v2780
    %v2782 = vrot.slane %v2547, 3
    %v2783 = vrot.slane %v2550, 4
    %v2784 = vor.u32 %v2782, %v2783
    %v2785 = vsel %vm2761, %v2780, %v2784
    %v2786 = vrot.slane %v2556, 3
    %v2787 = vrot.slane %v2559, 4
    %v2788 = vor.u32 %v2786, %v2787
    %v2789 = vsel %vm2761, %v2784, %v2788
    %v2790 = vrot.slane %v2565, 3
    %v2791 = vrot.slane %v2568, 4
    %v2792 = vor.u32 %v2790, %v2791
    %v2793 = vsel %vm2761, %v2788, %v2792
    %v2794 = vrot.slane %v2574, 3
    %v2795 = vrot.slane %v2577, 4
    %v2796 = vor.u32 %v2794, %v2795
    %v2797 = vsel %vm2761, %v2792, %v2796
    %v2798 = vrot.slane %v2583, 3
    %v2799 = vrot.slane %v2586, 4
    %v2800 = vor.u32 %v2798, %v2799
    %v2801 = vsel %vm2761, %v2796, %v2800
    %v2802 = vrot.slane %v2592, 3
    %v2803 = vrot.slane %v2595, 4
    %v2804 = vor.u32 %v2802, %v2803
    %v2805 = vsel %vm2761, %v2800, %v2804
    %v2806 = vrot.slane %v2601, 3
    %v2807 = vrot.slane %v2604, 4
    %v2808 = vor.u32 %v2806, %v2807
    %v2809 = vsel %vm2761, %v2804, %v2808
    %v2810 = vrot.slane %v2610, 3
    %v2811 = vrot.slane %v2613, 4
    %v2812 = vor.u32 %v2810, %v2811
    %v2813 = vsel %vm2761, %v2808, %v2812
    %v2814 = vrot.slane %v2619, 3
    %v2815 = vrot.slane %v2622, 4
    %v2816 = vor.u32 %v2814, %v2815
    %v2817 = vsel %vm2761, %v2812, %v2816
    %v2818 = vrot.slane %v2628, 3
    %v2819 = vrot.slane %v2631, 4
    %v2820 = vor.u32 %v2818, %v2819
    %v2821 = vsel %vm2761, %v2816, %v2820
    %v2822 = vrot.slane %v2637, 3
    %v2823 = vrot.slane %v2640, 4
    %v2824 = vor.u32 %v2822, %v2823
    %v2825 = vsel %vm2761, %v2820, %v2824
    %v2826 = vrot.slane %v2646, 3
    %v2827 = vrot.slane %v2649, 4
    %v2828 = vor.u32 %v2826, %v2827
    %v2829 = vsel %vm2761, %v2824, %v2828
    %v2830 = vrot.slane %v2655, 3
    %v2831 = vrot.slane %v2658, 4
    %v2832 = vor.u32 %v2830, %v2831
    %v2833 = vsel %vm2761, %v2828, %v2832
    %v2834 = vrot.slane %v2664, 3
    %v2835 = vrot.slane %v2667, 4
    %v2836 = vor.u32 %v2834, %v2835
    %v2837 = vsel %vm2761, %v2832, %v2836
    %v2839 = vshrl.u32 %v2760, 16
    %v2841 = vrot.slane %v2839, 3
    %v2842 = vshll.u32 %v2760, 16
    %v2844 = vrot.slane %v2842, 4
    %v2845 = vor.u32 %v2841, %v2844
    %v2846 = vsel %vm2761, %v2836, %v2845
    %v2865 = vpack.c.b16 %v2759, %v2431
    %v2868 = vunpack.c.l.b16 %v1872
    %v2869 = vpack.c.b16 %v2868, %v2759
    %v2889 = vunpack.c.l.b16 %v1873
    %v2890 = vpack.c.b16 %v2889, %v2889
    %v2891 = vrot.slane %v2523, 1
    %v2892 = vor.u32 %v2520, %v2891
    %v2893 = vrot.slane %v2532, 1
    %v2894 = vsel %vm2035, %v2892, %v2893
    %v2895 = vor.u32 %v2529, %v2893
    %v2896 = vrot.slane %v2541, 1
    %v2897 = vsel %vm2035, %v2895, %v2896
    %v2898 = vor.u32 %v2538, %v2896
    %v2899 = vrot.slane %v2550, 1
    %v2900 = vsel %vm2035, %v2898, %v2899
    %v2901 = vor.u32 %v2547, %v2899
    %v2902 = vrot.slane %v2559, 1
    %v2903 = vsel %vm2035, %v2901, %v2902
    %v2904 = vor.u32 %v2556, %v2902
    %v2905 = vrot.slane %v2568, 1
    %v2906 = vsel %vm2035, %v2904, %v2905
    %v2907 = vor.u32 %v2565, %v2905
    %v2908 = vrot.slane %v2577, 1
    %v2909 = vsel %vm2035, %v2907, %v2908
    %v2910 = vor.u32 %v2574, %v2908
    %v2911 = vrot.slane %v2586, 1
    %v2912 = vsel %vm2035, %v2910, %v2911
    %v2913 = vor.u32 %v2583, %v2911
    %v2914 = vrot.slane %v2595, 1
    %v2915 = vsel %vm2035, %v2913, %v2914
    %v2916 = vor.u32 %v2592, %v2914
    %v2917 = vrot.slane %v2604, 1
    %v2918 = vsel %vm2035, %v2916, %v2917
    %v2919 = vor.u32 %v2601, %v2917
    %v2920 = vrot.slane %v2613, 1
    %v2921 = vsel %vm2035, %v2919, %v2920
    %v2922 = vor.u32 %v2610, %v2920
    %v2923 = vrot.slane %v2622, 1
    %v2924 = vsel %vm2035, %v2922, %v2923
    %v2925 = vor.u32 %v2619, %v2923
    %v2926 = vrot.slane %v2631, 1
    %v2927 = vsel %vm2035, %v2925, %v2926
    %v2928 = vor.u32 %v2628, %v2926
    %v2929 = vrot.slane %v2640, 1
    %v2930 = vsel %vm2035, %v2928, %v2929
    %v2931 = vor.u32 %v2637, %v2929
    %v2932 = vrot.slane %v2649, 1
    %v2933 = vsel %vm2035, %v2931, %v2932
    %v2934 = vor.u32 %v2646, %v2932
    %v2935 = vrot.slane %v2658, 1
    %v2936 = vsel %vm2035, %v2934, %v2935
    %v2937 = vor.u32 %v2655, %v2935
    %v2938 = vrot.slane %v2667, 1
    %v2939 = vsel %vm2035, %v2937, %v2938
    %v2940 = vor.u32 %v2664, %v2938
    %v2942 = vshll.u32 %v2869, 16
    %v2944 = vrot.slane %v2942, 1
    %v2945 = vsel %vm2035, %v2940, %v2944
    %v2946 = vshrl.u32 %v2869, 16
    %v2948 = vor.u32 %v2946, %v2944
    %v2950 = vshll.u32 %v2890, 16
    %v2952 = vrot.slane %v2950, 1
    %v2953 = vsel %vm2035, %v2948, %v2952
    %v2973 = vunpack.c.l.b16 %v1874
    %v2974 = vpack.c.b16 %v1964, %v2973
    %v2975 = vrot.slane %v2974, 1
    %v2976 = vrot.slane %v2435, 1
    %v2977 = vsel %vm2205, %v2975, %v2976
    %v2978 = vrot.slane %v2436, 1
    %v2979 = vsel %vm2205, %v2976, %v2978
    %v2980 = vrot.slane %v2437, 1
    %v2981 = vsel %vm2205, %v2978, %v2980
    %v2982 = vrot.slane %v2438, 1
    %v2983 = vsel %vm2205, %v2980, %v2982
    %v2984 = vrot.slane %v2439, 1
    %v2985 = vsel %vm2205, %v2982, %v2984
    %v2986 = vrot.slane %v2440, 1
    %v2987 = vsel %vm2205, %v2984, %v2986
    %v2988 = vrot.slane %v2441, 1
    %v2989 = vsel %vm2205, %v2986, %v2988
    %v2990 = vrot.slane %v2442, 1
    %v2991 = vsel %vm2205, %v2988, %v2990
    %v2992 = vrot.slane %v2443, 1
    %v2993 = vsel %vm2205, %v2990, %v2992
    %v2994 = vrot.slane %v2444, 1
    %v2995 = vsel %vm2205, %v2992, %v2994
    %v2996 = vrot.slane %v2445, 1
    %v2997 = vsel %vm2205, %v2994, %v2996
    %v2998 = vrot.slane %v2446, 1
    %v2999 = vsel %vm2205, %v2996, %v2998
    %v3000 = vrot.slane %v2447, 1
    %v3001 = vsel %vm2205, %v2998, %v3000
    %v3002 = vrot.slane %v2448, 1
    %v3003 = vsel %vm2205, %v3000, %v3002
    %v3004 = vrot.slane %v2449, 1
    %v3005 = vsel %vm2205, %v3002, %v3004
    %v3006 = vrot.slane %v2450, 1
    %v3007 = vsel %vm2205, %v3004, %v3006
    %v3008 = vrot.slane %v2869, 1
    %v3009 = vsel %vm2205, %v3006, %v3008
    %v3010 = vrot.slane %v2890, 1
    %v3011 = vsel %vm2205, %v3008, %v3010
    %v3031 = vunpack.c.l.b16 %v1875
    %v3032 = vpack.c.b16 %v3031, %v3031
    %v3034 = vshrl.u32 %v2974, 16
    %v3036 = vrot.slane %v3034, 1
    %v3037 = vshll.u32 %v2974, 16
    %v3039 = vrot.slane %v3037, 2
    %v3040 = vor.u32 %v3036, %v3039
    %v3041 = vrot.slane %v2529, 1
    %v3042 = vrot.slane %v2532, 2
    %v3043 = vor.u32 %v3041, %v3042
    %v3044 = vsel %vm2264, %v3040, %v3043
    %v3045 = vrot.slane %v2538, 1
    %v3046 = vrot.slane %v2541, 2
    %v3047 = vor.u32 %v3045, %v3046
    %v3048 = vsel %vm2264, %v3043, %v3047
    %v3049 = vrot.slane %v2547, 1
    %v3050 = vrot.slane %v2550, 2
    %v3051 = vor.u32 %v3049, %v3050
    %v3052 = vsel %vm2264, %v3047, %v3051
    %v3053 = vrot.slane %v2556, 1
    %v3054 = vrot.slane %v2559, 2
    %v3055 = vor.u32 %v3053, %v3054
    %v3056 = vsel %vm2264, %v3051, %v3055
    %v3057 = vrot.slane %v2565, 1
    %v3058 = vrot.slane %v2568, 2
    %v3059 = vor.u32 %v3057, %v3058
    %v3060 = vsel %vm2264, %v3055, %v3059
    %v3061 = vrot.slane %v2574, 1
    %v3062 = vrot.slane %v2577, 2
    %v3063 = vor.u32 %v3061, %v3062
    %v3064 = vsel %vm2264, %v3059, %v3063
    %v3065 = vrot.slane %v2583, 1
    %v3066 = vrot.slane %v2586, 2
    %v3067 = vor.u32 %v3065, %v3066
    %v3068 = vsel %vm2264, %v3063, %v3067
    %v3069 = vrot.slane %v2592, 1
    %v3070 = vrot.slane %v2595, 2
    %v3071 = vor.u32 %v3069, %v3070
    %v3072 = vsel %vm2264, %v3067, %v3071
    %v3073 = vrot.slane %v2601, 1
    %v3074 = vrot.slane %v2604, 2
    %v3075 = vor.u32 %v3073, %v3074
    %v3076 = vsel %vm2264, %v3071, %v3075
    %v3077 = vrot.slane %v2610, 1
    %v3078 = vrot.slane %v2613, 2
    %v3079 = vor.u32 %v3077, %v3078
    %v3080 = vsel %vm2264, %v3075, %v3079
    %v3081 = vrot.slane %v2619, 1
    %v3082 = vrot.slane %v2622, 2
    %v3083 = vor.u32 %v3081, %v3082
    %v3084 = vsel %vm2264, %v3079, %v3083
    %v3085 = vrot.slane %v2628, 1
    %v3086 = vrot.slane %v2631, 2
    %v3087 = vor.u32 %v3085, %v3086
    %v3088 = vsel %vm2264, %v3083, %v3087
    %v3089 = vrot.slane %v2637, 1
    %v3090 = vrot.slane %v2640, 2
    %v3091 = vor.u32 %v3089, %v3090
    %v3092 = vsel %vm2264, %v3087, %v3091
    %v3093 = vrot.slane %v2646, 1
    %v3094 = vrot.slane %v2649, 2
    %v3095 = vor.u32 %v3093, %v3094
    %v3096 = vsel %vm2264, %v3091, %v3095
    %v3097 = vrot.slane %v2655, 1
    %v3098 = vrot.slane %v2658, 2
    %v3099 = vor.u32 %v3097, %v3098
    %v3100 = vsel %vm2264, %v3095, %v3099
    %v3101 = vrot.slane %v2664, 1
    %v3102 = vrot.slane %v2667, 2
    %v3103 = vor.u32 %v3101, %v3102
    %v3104 = vsel %vm2264, %v3099, %v3103
    %v3105 = vrot.slane %v2946, 1
    %v3106 = vrot.slane %v2942, 2
    %v3107 = vor.u32 %v3105, %v3106
    %v3108 = vsel %vm2264, %v3103, %v3107
    %v3110 = vshrl.u32 %v3032, 16
    %v3112 = vrot.slane %v3110, 1
    %v3113 = vshll.u32 %v3032, 16
    %v3115 = vrot.slane %v3113, 2
    %v3116 = vor.u32 %v3112, %v3115
    %v3117 = vsel %vm2264, %v3107, %v3116
    %v3137 = vunpack.c.l.b16 %v1876
    %v3138 = vpack.c.b16 %v1964, %v3137
    %v3139 = vrot.slane %v3138, 2
    %v3140 = vsel %vm2371, %v3139, %v2455
    %v3141 = vrot.slane %v2869, 2
    %v3142 = vsel %vm2371, %v2485, %v3141
    %v3143 = vrot.slane %v3032, 2
    %v3144 = vsel %vm2371, %v3141, %v3143
    %v3151 = vunpack.c.l.b16 %v1877
    %v3152 = vunpack.c.l.b16 %v1878
    %v3153 = vunpack.c.l.b16 %v1879
    %v3154 = vpack.c.b16 %v1965, %v3151
    %v3155 = vpack.c.b16 %v3152, %v2868
    %v3156 = vpack.c.b16 %v3153, %v3153
    %v3157 = vrot.slane %v3154, 2
    %v3158 = vsel %vm2371, %v3157, %v2377
    %v3159 = vrot.slane %v2865, 2
    %v3160 = vsel %vm2371, %v2405, %v3159
    %v3161 = vrot.slane %v3155, 2
    %v3162 = vsel %vm2371, %v3159, %v3161
    %v3163 = vrot.slane %v3156, 2
    %v3164 = vsel %vm2371, %v3161, %v3163
    %v3170 = vunpack.c.l.b16 %v1880
    %v3171 = vpack.c.b16 %v3170, %v3170
    %v3173 = vunpack.c.l.b16 %v1881
    %v3174 = vpack.c.b16 %v1965, %v3173
    %v3176 = vshrl.u32 %v3174, 16
    %v3178 = vshll.u32 %v3174, 16
    %v3180 = vrot.slane %v3178, 1
    %v3181 = vor.u32 %v3176, %v3180
    %v3182 = vsel %vm2035, %v3181, %v2062
    %v3184 = vshll.u32 %v2865, 16
    %v3186 = vrot.slane %v3184, 1
    %v3187 = vsel %vm2035, %v2178, %v3186
    %v3188 = vshrl.u32 %v2865, 16
    %v3190 = vor.u32 %v3188, %v3186
    %v3192 = vshll.u32 %v3155, 16
    %v3194 = vrot.slane %v3192, 1
    %v3195 = vsel %vm2035, %v3190, %v3194
    %v3196 = vshrl.u32 %v3155, 16
    %v3198 = vor.u32 %v3196, %v3194
    %v3200 = vshll.u32 %v3171, 16
    %v3202 = vrot.slane %v3200, 1
    %v3203 = vsel %vm2035, %v3198, %v3202
    %v3204 = vshrl.u32 %v3171, 16
    %v3206 = vor.u32 %v3204, %v3202
    %v3208 = vunpack.c.l.b16 %v1882
    %v3209 = vpack.c.b16 %v3208, %v3208
    %v3210 = vrot.slane %v3174, 1
    %v3211 = vsel %vm2205, %v3210, %v2211
    %v3212 = vrot.slane %v2865, 1
    %v3213 = vsel %vm2205, %v2239, %v3212
    %v3214 = vrot.slane %v3155, 1
    %v3215 = vsel %vm2205, %v3212, %v3214
    %v3216 = vrot.slane %v3209, 1
    %v3217 = vsel %vm2205, %v3214, %v3216
    %v3218 = vpack.c.b16 %v3208, %v3152
    %vm3219 = vsmask.f32 2304
    %v3220 = vrot.slane %v2529, 5
    %v3221 = vrot.slane %v2532, 6
    %v3222 = vor.u32 %v3220, %v3221
    %v3223 = vrot.slane %v2538, 5
    %v3224 = vrot.slane %v2541, 6
    %v3225 = vor.u32 %v3223, %v3224
    %v3226 = vsel %vm3219, %v3222, %v3225
    %v3227 = vrot.slane %v2547, 5
    %v3228 = vrot.slane %v2550, 6
    %v3229 = vor.u32 %v3227, %v3228
    %v3230 = vsel %vm3219, %v3225, %v3229
    %v3231 = vrot.slane %v2556, 5
    %v3232 = vrot.slane %v2559, 6
    %v3233 = vor.u32 %v3231, %v3232
    %v3234 = vsel %vm3219, %v3229, %v3233
    %v3235 = vrot.slane %v2565, 5
    %v3236 = vrot.slane %v2568, 6
    %v3237 = vor.u32 %v3235, %v3236
    %v3238 = vsel %vm3219, %v3233, %v3237
    %v3239 = vrot.slane %v2574, 5
    %v3240 = vrot.slane %v2577, 6
    %v3241 = vor.u32 %v3239, %v3240
    %v3242 = vsel %vm3219, %v3237, %v3241
    %v3243 = vrot.slane %v2583, 5
    %v3244 = vrot.slane %v2586, 6
    %v3245 = vor.u32 %v3243, %v3244
    %v3246 = vsel %vm3219, %v3241, %v3245
    %v3247 = vrot.slane %v2592, 5
    %v3248 = vrot.slane %v2595, 6
    %v3249 = vor.u32 %v3247, %v3248
    %v3250 = vsel %vm3219, %v3245, %v3249
    %v3251 = vrot.slane %v2601, 5
    %v3252 = vrot.slane %v2604, 6
    %v3253 = vor.u32 %v3251, %v3252
    %v3254 = vsel %vm3219, %v3249, %v3253
    %v3255 = vrot.slane %v2610, 5
    %v3256 = vrot.slane %v2613, 6
    %v3257 = vor.u32 %v3255, %v3256
    %v3258 = vsel %vm3219, %v3253, %v3257
    %v3259 = vrot.slane %v2619, 5
    %v3260 = vrot.slane %v2622, 6
    %v3261 = vor.u32 %v3259, %v3260
    %v3262 = vsel %vm3219, %v3257, %v3261
    %v3263 = vrot.slane %v2628, 5
    %v3264 = vrot.slane %v2631, 6
    %v3265 = vor.u32 %v3263, %v3264
    %v3266 = vsel %vm3219, %v3261, %v3265
    %v3267 = vrot.slane %v2637, 5
    %v3268 = vrot.slane %v2640, 6
    %v3269 = vor.u32 %v3267, %v3268
    %v3270 = vsel %vm3219, %v3265, %v3269
    %v3271 = vrot.slane %v2646, 5
    %v3272 = vrot.slane %v2649, 6
    %v3273 = vor.u32 %v3271, %v3272
    %v3274 = vsel %vm3219, %v3269, %v3273
    %v3275 = vrot.slane %v2655, 5
    %v3276 = vrot.slane %v2658, 6
    %v3277 = vor.u32 %v3275, %v3276
    %v3278 = vsel %vm3219, %v3273, %v3277
    %v3279 = vrot.slane %v2664, 5
    %v3280 = vrot.slane %v2667, 6
    %v3281 = vor.u32 %v3279, %v3280
    %v3282 = vsel %vm3219, %v3277, %v3281
    %v3283 = vrot.slane %v2946, 5
    %v3284 = vrot.slane %v2942, 6
    %v3285 = vor.u32 %v3283, %v3284
    %v3286 = vsel %vm3219, %v3281, %v3285
    %v3288 = vshrl.u32 %v3218, 16
    %v3290 = vrot.slane %v3288, 5
    %v3291 = vshll.u32 %v3218, 16
    %v3293 = vrot.slane %v3291, 6
    %v3294 = vor.u32 %v3290, %v3293
    %v3295 = vsel %vm3219, %v3285, %v3294
    %v3297 = vunpack.c.l.b16 %v1883
    %v3298 = vpack.c.b16 %v3297, %v3208
    %v3299 = vrot.slane %v2064, 5
    %v3300 = vrot.slane %v2060, 6
    %v3301 = vor.u32 %v3299, %v3300
    %v3302 = vrot.slane %v2072, 5
    %v3303 = vrot.slane %v2068, 6
    %v3304 = vor.u32 %v3302, %v3303
    %v3305 = vsel %vm3219, %v3301, %v3304
    %v3306 = vrot.slane %v2080, 5
    %v3307 = vrot.slane %v2076, 6
    %v3308 = vor.u32 %v3306, %v3307
    %v3309 = vsel %vm3219, %v3304, %v3308
    %v3310 = vrot.slane %v2088, 5
    %v3311 = vrot.slane %v2084, 6
    %v3312 = vor.u32 %v3310, %v3311
    %v3313 = vsel %vm3219, %v3308, %v3312
    %v3314 = vrot.slane %v2096, 5
    %v3315 = vrot.slane %v2092, 6
    %v3316 = vor.u32 %v3314, %v3315
    %v3317 = vsel %vm3219, %v3312, %v3316
    %v3318 = vrot.slane %v2104, 5
    %v3319 = vrot.slane %v2100, 6
    %v3320 = vor.u32 %v3318, %v3319
    %v3321 = vsel %vm3219, %v3316, %v3320
    %v3322 = vrot.slane %v2112, 5
    %v3323 = vrot.slane %v2108, 6
    %v3324 = vor.u32 %v3322, %v3323
    %v3325 = vsel %vm3219, %v3320, %v3324
    %v3326 = vrot.slane %v2120, 5
    %v3327 = vrot.slane %v2116, 6
    %v3328 = vor.u32 %v3326, %v3327
    %v3329 = vsel %vm3219, %v3324, %v3328
    %v3330 = vrot.slane %v2128, 5
    %v3331 = vrot.slane %v2124, 6
    %v3332 = vor.u32 %v3330, %v3331
    %v3333 = vsel %vm3219, %v3328, %v3332
    %v3334 = vrot.slane %v2136, 5
    %v3335 = vrot.slane %v2132, 6
    %v3336 = vor.u32 %v3334, %v3335
    %v3337 = vsel %vm3219, %v3332, %v3336
    %v3338 = vrot.slane %v2144, 5
    %v3339 = vrot.slane %v2140, 6
    %v3340 = vor.u32 %v3338, %v3339
    %v3341 = vsel %vm3219, %v3336, %v3340
    %v3342 = vrot.slane %v2152, 5
    %v3343 = vrot.slane %v2148, 6
    %v3344 = vor.u32 %v3342, %v3343
    %v3345 = vsel %vm3219, %v3340, %v3344
    %v3346 = vrot.slane %v2160, 5
    %v3347 = vrot.slane %v2156, 6
    %v3348 = vor.u32 %v3346, %v3347
    %v3349 = vsel %vm3219, %v3344, %v3348
    %v3350 = vrot.slane %v2168, 5
    %v3351 = vrot.slane %v2164, 6
    %v3352 = vor.u32 %v3350, %v3351
    %v3353 = vsel %vm3219, %v3348, %v3352
    %v3354 = vrot.slane %v2176, 5
    %v3355 = vrot.slane %v2172, 6
    %v3356 = vor.u32 %v3354, %v3355
    %v3357 = vsel %vm3219, %v3352, %v3356
    %v3358 = vrot.slane %v3188, 5
    %v3359 = vrot.slane %v3184, 6
    %v3360 = vor.u32 %v3358, %v3359
    %v3361 = vsel %vm3219, %v3356, %v3360
    %v3362 = vrot.slane %v3196, 5
    %v3363 = vrot.slane %v3192, 6
    %v3364 = vor.u32 %v3362, %v3363
    %v3365 = vsel %vm3219, %v3360, %v3364
    %v3367 = vshrl.u32 %v3298, 16
    %v3369 = vrot.slane %v3367, 5
    %v3370 = vshll.u32 %v3298, 16
    %v3372 = vrot.slane %v3370, 6
    %v3373 = vor.u32 %v3369, %v3372
    %v3374 = vsel %vm3219, %v3364, %v3373
    %v3412 = vunpack.c.l.b16 %v1884
    %v3413 = vunpack.c.l.b16 %v1885
    %v3414 = vunpack.c.l.b16 %v1886
    %v3415 = vunpack.c.l.b16 %v1887
    %v3416 = vunpack.c.l.b16 %v1888
    %v3417 = vunpack.c.l.b16 %v1889
    %v3418 = vunpack.c.l.b16 %v1890
    %v3419 = vunpack.c.l.b16 %v1891
    %v3420 = vunpack.c.l.b16 %v1892
    %v3421 = vunpack.c.l.b16 %v1893
    %v3422 = vunpack.c.l.b16 %v1894
    %v3423 = vunpack.c.l.b16 %v1895
    %v3424 = vunpack.c.l.b16 %v1896
    %v3425 = vunpack.c.l.b16 %v1897
    %v3426 = vunpack.c.l.b16 %v1898
    %v3427 = vunpack.c.l.b16 %v1899
    %v3428 = vunpack.c.l.b16 %v1900
    %v3429 = vunpack.c.l.b16 %v1901
    %v3430 = vunpack.c.l.b16 %v1902
    %v3431 = vunpack.c.l.b16 %v1903
    %v3432 = vunpack.c.l.b16 %v1904
    %v3433 = vunpack.c.l.b16 %v1905
    %v3434 = vunpack.c.l.b16 %v1906
    %v3435 = vunpack.c.l.b16 %v1907
    %v3436 = vunpack.c.l.b16 %v1908
    %v3437 = vunpack.c.l.b16 %v1909
    %v3438 = vunpack.c.l.b16 %v1910
    %v3439 = vunpack.c.l.b16 %v1911
    %v3440 = vunpack.c.l.b16 %v1912
    %v3441 = vunpack.c.l.b16 %v1913
    %v3442 = vunpack.c.l.b16 %v1914
    %v3443 = vunpack.c.l.b16 %v1915
    %v3444 = vunpack.c.l.b16 %v1916
    %v3445 = vunpack.c.l.b16 %v1917
    %v3446 = vunpack.c.l.b16 %v1918
    %v3447 = vunpack.c.l.b16 %v1919
    %v3448 = vunpack.c.l.b16 %v1920
    %v3449 = vpack.c.b16 %v3413, %v3412
    %v3450 = vpack.c.b16 %v3415, %v3414
    %v3451 = vpack.c.b16 %v3417, %v3416
    %v3452 = vpack.c.b16 %v3419, %v3418
    %v3453 = vpack.c.b16 %v3421, %v3420
    %v3454 = vpack.c.b16 %v3423, %v3422
    %v3455 = vpack.c.b16 %v3425, %v3424
    %v3456 = vpack.c.b16 %v3427, %v3426
    %v3457 = vpack.c.b16 %v3429, %v3428
    %v3458 = vpack.c.b16 %v3431, %v3430
    %v3459 = vpack.c.b16 %v3433, %v3432
    %v3460 = vpack.c.b16 %v3435, %v3434
    %v3461 = vpack.c.b16 %v3437, %v3436
    %v3462 = vpack.c.b16 %v3439, %v3438
    %v3463 = vpack.c.b16 %v3441, %v3440
    %v3464 = vpack.c.b16 %v3443, %v3442
    %v3465 = vpack.c.b16 %v3445, %v3444
    %v3466 = vpack.c.b16 %v3447, %v3446
    %v3467 = vpack.c.b16 %v3448, %v3448
    %vm3468 = vcmask 1041408
    %v3469 = vrot.slane %v3449, 6
    %v3470 = vrot.slane %v3450, 6
    %v3471 = vsel %vm3468, %v3469, %v3470
    %v3472 = vrot.slane %v3451, 6
    %v3473 = vsel %vm3468, %v3470, %v3472
    %v3474 = vrot.slane %v3452, 6
    %v3475 = vsel %vm3468, %v3472, %v3474
    %v3476 = vrot.slane %v3453, 6
    %v3477 = vsel %vm3468, %v3474, %v3476
    %v3478 = vrot.slane %v3454, 6
    %v3479 = vsel %vm3468, %v3476, %v3478
    %v3480 = vrot.slane %v3455, 6
    %v3481 = vsel %vm3468, %v3478, %v3480
    %v3482 = vrot.slane %v3456, 6
    %v3483 = vsel %vm3468, %v3480, %v3482
    %v3484 = vrot.slane %v3457, 6
    %v3485 = vsel %vm3468, %v3482, %v3484
    %v3486 = vrot.slane %v3458, 6
    %v3487 = vsel %vm3468, %v3484, %v3486
    %v3488 = vrot.slane %v3459, 6
    %v3489 = vsel %vm3468, %v3486, %v3488
    %v3490 = vrot.slane %v3460, 6
    %v3491 = vsel %vm3468, %v3488, %v3490
    %v3492 = vrot.slane %v3461, 6
    %v3493 = vsel %vm3468, %v3490, %v3492
    %v3494 = vrot.slane %v3462, 6
    %v3495 = vsel %vm3468, %v3492, %v3494
    %v3496 = vrot.slane %v3463, 6
    %v3497 = vsel %vm3468, %v3494, %v3496
    %v3498 = vrot.slane %v3464, 6
    %v3499 = vsel %vm3468, %v3496, %v3498
    %v3500 = vrot.slane %v3465, 6
    %v3501 = vsel %vm3468, %v3498, %v3500
    %v3502 = vrot.slane %v3466, 6
    %v3503 = vsel %vm3468, %v3500, %v3502
    %v3504 = vrot.slane %v3467, 6
    %v3505 = vsel %vm3468, %v3502, %v3504
    %v3507 = vunpack.c.l.b16 %v1921
    %v3508 = vpack.c.b16 %v3413, %v3507
    %vm3509 = vsmask.f32 1280
    %v3511 = vshrl.u32 %v3508, 16
    %v3513 = vrot.slane %v3511, 6
    %v3514 = vshll.u32 %v3508, 16
    %v3516 = vrot.slane %v3514, 7
    %v3517 = vor.u32 %v3513, %v3516
    %v3519 = vshrl.u32 %v3450, 16
    %v3521 = vrot.slane %v3519, 6
    %v3522 = vshll.u32 %v3450, 16
    %v3524 = vrot.slane %v3522, 7
    %v3525 = vor.u32 %v3521, %v3524
    %v3526 = vsel %vm3509, %v3517, %v3525
    %v3528 = vshrl.u32 %v3451, 16
    %v3530 = vrot.slane %v3528, 6
    %v3531 = vshll.u32 %v3451, 16
    %v3533 = vrot.slane %v3531, 7
    %v3534 = vor.u32 %v3530, %v3533
    %v3535 = vsel %vm3509, %v3525, %v3534
    %v3537 = vshrl.u32 %v3452, 16
    %v3539 = vrot.slane %v3537, 6
    %v3540 = vshll.u32 %v3452, 16
    %v3542 = vrot.slane %v3540, 7
    %v3543 = vor.u32 %v3539, %v3542
    %v3544 = vsel %vm3509, %v3534, %v3543
    %v3546 = vshrl.u32 %v3453, 16
    %v3548 = vrot.slane %v3546, 6
    %v3549 = vshll.u32 %v3453, 16
    %v3551 = vrot.slane %v3549, 7
    %v3552 = vor.u32 %v3548, %v3551
    %v3553 = vsel %vm3509, %v3543, %v3552
    %v3555 = vshrl.u32 %v3454, 16
    %v3557 = vrot.slane %v3555, 6
    %v3558 = vshll.u32 %v3454, 16
    %v3560 = vrot.slane %v3558, 7
    %v3561 = vor.u32 %v3557, %v3560
    %v3562 = vsel %vm3509, %v3552, %v3561
    %v3564 = vshrl.u32 %v3455, 16
    %v3566 = vrot.slane %v3564, 6
    %v3567 = vshll.u32 %v3455, 16
    %v3569 = vrot.slane %v3567, 7
    %v3570 = vor.u32 %v3566, %v3569
    %v3571 = vsel %vm3509, %v3561, %v3570
    %v3573 = vshrl.u32 %v3456, 16
    %v3575 = vrot.slane %v3573, 6
    %v3576 = vshll.u32 %v3456, 16
    %v3578 = vrot.slane %v3576, 7
    %v3579 = vor.u32 %v3575, %v3578
    %v3580 = vsel %vm3509, %v3570, %v3579
    %v3582 = vshrl.u32 %v3457, 16
    %v3584 = vrot.slane %v3582, 6
    %v3585 = vshll.u32 %v3457, 16
    %v3587 = vrot.slane %v3585, 7
    %v3588 = vor.u32 %v3584, %v3587
    %v3589 = vsel %vm3509, %v3579, %v3588
    %v3591 = vshrl.u32 %v3458, 16
    %v3593 = vrot.slane %v3591, 6
    %v3594 = vshll.u32 %v3458, 16
    %v3596 = vrot.slane %v3594, 7
    %v3597 = vor.u32 %v3593, %v3596
    %v3598 = vsel %vm3509, %v3588, %v3597
    %v3600 = vshrl.u32 %v3459, 16
    %v3602 = vrot.slane %v3600, 6
    %v3603 = vshll.u32 %v3459, 16
    %v3605 = vrot.slane %v3603, 7
    %v3606 = vor.u32 %v3602, %v3605
    %v3607 = vsel %vm3509, %v3597, %v3606
    %v3609 = vshrl.u32 %v3460, 16
    %v3611 = vrot.slane %v3609, 6
    %v3612 = vshll.u32 %v3460, 16
    %v3614 = vrot.slane %v3612, 7
    %v3615 = vor.u32 %v3611, %v3614
    %v3616 = vsel %vm3509, %v3606, %v3615
    %v3618 = vshrl.u32 %v3461, 16
    %v3620 = vrot.slane %v3618, 6
    %v3621 = vshll.u32 %v3461, 16
    %v3623 = vrot.slane %v3621, 7
    %v3624 = vor.u32 %v3620, %v3623
    %v3625 = vsel %vm3509, %v3615, %v3624
    %v3627 = vshrl.u32 %v3462, 16
    %v3629 = vrot.slane %v3627, 6
    %v3630 = vshll.u32 %v3462, 16
    %v3632 = vrot.slane %v3630, 7
    %v3633 = vor.u32 %v3629, %v3632
    %v3634 = vsel %vm3509, %v3624, %v3633
    %v3636 = vshrl.u32 %v3463, 16
    %v3638 = vrot.slane %v3636, 6
    %v3639 = vshll.u32 %v3463, 16
    %v3641 = vrot.slane %v3639, 7
    %v3642 = vor.u32 %v3638, %v3641
    %v3643 = vsel %vm3509, %v3633, %v3642
    %v3645 = vshrl.u32 %v3464, 16
    %v3647 = vrot.slane %v3645, 6
    %v3648 = vshll.u32 %v3464, 16
    %v3650 = vrot.slane %v3648, 7
    %v3651 = vor.u32 %v3647, %v3650
    %v3652 = vsel %vm3509, %v3642, %v3651
    %v3654 = vshrl.u32 %v3465, 16
    %v3656 = vrot.slane %v3654, 6
    %v3657 = vshll.u32 %v3465, 16
    %v3659 = vrot.slane %v3657, 7
    %v3660 = vor.u32 %v3656, %v3659
    %v3661 = vsel %vm3509, %v3651, %v3660
    %v3663 = vshrl.u32 %v3466, 16
    %v3665 = vrot.slane %v3663, 6
    %v3666 = vshll.u32 %v3466, 16
    %v3668 = vrot.slane %v3666, 7
    %v3669 = vor.u32 %v3665, %v3668
    %v3670 = vsel %vm3509, %v3660, %v3669
    %v3672 = vshrl.u32 %v3467, 16
    %v3674 = vrot.slane %v3672, 6
    %v3675 = vshll.u32 %v3467, 16
    %v3677 = vrot.slane %v3675, 7
    %v3678 = vor.u32 %v3674, %v3677
    %v3679 = vsel %vm3509, %v3669, %v3678
    %v3681 = vunpack.c.l.b16 %v1922
    %v3682 = vpack.c.b16 %v3681, %v3681
    %vm3683 = vcmask 1040384
    %v3684 = vrot.slane %v3508, 7
    %v3685 = vrot.slane %v3450, 7
    %v3686 = vsel %vm3683, %v3684, %v3685
    %v3687 = vrot.slane %v3451, 7
    %v3688 = vsel %vm3683, %v3685, %v3687
    %v3689 = vrot.slane %v3452, 7
    %v3690 = vsel %vm3683, %v3687, %v3689
    %v3691 = vrot.slane %v3453, 7
    %v3692 = vsel %vm3683, %v3689, %v3691
    %v3693 = vrot.slane %v3454, 7
    %v3694 = vsel %vm3683, %v3691, %v3693
    %v3695 = vrot.slane %v3455, 7
    %v3696 = vsel %vm3683, %v3693, %v3695
    %v3697 = vrot.slane %v3456, 7
    %v3698 = vsel %vm3683, %v3695, %v3697
    %v3699 = vrot.slane %v3457, 7
    %v3700 = vsel %vm3683, %v3697, %v3699
    %v3701 = vrot.slane %v3458, 7
    %v3702 = vsel %vm3683, %v3699, %v3701
    %v3703 = vrot.slane %v3459, 7
    %v3704 = vsel %vm3683, %v3701, %v3703
    %v3705 = vrot.slane %v3460, 7
    %v3706 = vsel %vm3683, %v3703, %v3705
    %v3707 = vrot.slane %v3461, 7
    %v3708 = vsel %vm3683, %v3705, %v3707
    %v3709 = vrot.slane %v3462, 7
    %v3710 = vsel %vm3683, %v3707, %v3709
    %v3711 = vrot.slane %v3463, 7
    %v3712 = vsel %vm3683, %v3709, %v3711
    %v3713 = vrot.slane %v3464, 7
    %v3714 = vsel %vm3683, %v3711, %v3713
    %v3715 = vrot.slane %v3465, 7
    %v3716 = vsel %vm3683, %v3713, %v3715
    %v3717 = vrot.slane %v3466, 7
    %v3718 = vsel %vm3683, %v3715, %v3717
    %v3719 = vrot.slane %v3682, 7
    %v3720 = vsel %vm3683, %v3717, %v3719
    %v3722 = vunpack.c.l.b16 %v1923
    %v3723 = vpack.c.b16 %v3413, %v3722
    %vm3724 = vsmask.f32 256
    %v3726 = vshrl.u32 %v3723, 16
    %v3728 = vrot.slane %v3726, 7
    %v3729 = vshll.u32 %v3723, 16
    %v3731 = vor.u32 %v3728, %v3729
    %v3732 = vrot.slane %v3519, 7
    %v3733 = vor.u32 %v3732, %v3522
    %v3734 = vsel %vm3724, %v3728, %v3733
    %v3735 = vrot.slane %v3528, 7
    %v3736 = vor.u32 %v3735, %v3531
    %v3737 = vsel %vm3724, %v3732, %v3736
    %v3738 = vrot.slane %v3537, 7
    %v3739 = vor.u32 %v3738, %v3540
    %v3740 = vsel %vm3724, %v3735, %v3739
    %v3741 = vrot.slane %v3546, 7
    %v3742 = vor.u32 %v3741, %v3549
    %v3743 = vsel %vm3724, %v3738, %v3742
    %v3744 = vrot.slane %v3555, 7
    %v3745 = vor.u32 %v3744, %v3558
    %v3746 = vsel %vm3724, %v3741, %v3745
    %v3747 = vrot.slane %v3564, 7
    %v3748 = vor.u32 %v3747, %v3567
    %v3749 = vsel %vm3724, %v3744, %v3748
    %v3750 = vrot.slane %v3573, 7
    %v3751 = vor.u32 %v3750, %v3576
    %v3752 = vsel %vm3724, %v3747, %v3751
    %v3753 = vrot.slane %v3582, 7
    %v3754 = vor.u32 %v3753, %v3585
    %v3755 = vsel %vm3724, %v3750, %v3754
    %v3756 = vrot.slane %v3591, 7
    %v3757 = vor.u32 %v3756, %v3594
    %v3758 = vsel %vm3724, %v3753, %v3757
    %v3759 = vrot.slane %v3600, 7
    %v3760 = vor.u32 %v3759, %v3603
    %v3761 = vsel %vm3724, %v3756, %v3760
    %v3762 = vrot.slane %v3609, 7
    %v3763 = vor.u32 %v3762, %v3612
    %v3764 = vsel %vm3724, %v3759, %v3763
    %v3765 = vrot.slane %v3618, 7
    %v3766 = vor.u32 %v3765, %v3621
    %v3767 = vsel %vm3724, %v3762, %v3766
    %v3768 = vrot.slane %v3627, 7
    %v3769 = vor.u32 %v3768, %v3630
    %v3770 = vsel %vm3724, %v3765, %v3769
    %v3771 = vrot.slane %v3636, 7
    %v3772 = vor.u32 %v3771, %v3639
    %v3773 = vsel %vm3724, %v3768, %v3772
    %v3774 = vrot.slane %v3645, 7
    %v3775 = vor.u32 %v3774, %v3648
    %v3776 = vsel %vm3724, %v3771, %v3775
    %v3777 = vrot.slane %v3654, 7
    %v3778 = vor.u32 %v3777, %v3657
    %v3779 = vsel %vm3724, %v3774, %v3778
    %v3780 = vrot.slane %v3663, 7
    %v3781 = vor.u32 %v3780, %v3666
    %v3782 = vsel %vm3724, %v3777, %v3781
    %v3784 = vshrl.u32 %v3682, 16
    %v3786 = vrot.slane %v3784, 7
    %v3787 = vshll.u32 %v3682, 16
    %v3789 = vor.u32 %v3786, %v3787
    %v3790 = vsel %vm3724, %v3780, %v3789
    %v3792 = vshrl.u32 %v3154, 16
    %v3794 = vrot.slane %v3792, 2
    %v3795 = vshll.u32 %v3154, 16
    %v3797 = vrot.slane %v3795, 3
    %v3798 = vor.u32 %v3794, %v3797
    %v3799 = vrot.slane %v2064, 2
    %v3800 = vrot.slane %v2060, 3
    %v3801 = vor.u32 %v3799, %v3800
    %v3802 = vsel %vm2510, %v3798, %v3801
    %v3804 = vshrl.u32 %v3182, 16
    %v3806 = vrot.slane %v3804, 2
    %v3807 = vshll.u32 %v3182, 16
    %v3809 = vrot.slane %v3807, 3
    %v3810 = vor.u32 %v3806, %v3809
    %v3812 = vshrl.u32 %v2071, 16
    %v3814 = vrot.slane %v3812, 2
    %v3815 = vshll.u32 %v2071, 16
    %v3817 = vrot.slane %v3815, 3
    %v3818 = vor.u32 %v3814, %v3817
    %v3819 = vsel %vm2510, %v3810, %v3818
    %v3821 = vshrl.u32 %v3211, 16
    %v3823 = vrot.slane %v3821, 2
    %v3824 = vshll.u32 %v3211, 16
    %v3826 = vrot.slane %v3824, 3
    %v3827 = vor.u32 %v3823, %v3826
    %v3829 = vshrl.u32 %v2214, 16
    %v3831 = vrot.slane %v3829, 2
    %v3832 = vshll.u32 %v2214, 16
    %v3834 = vrot.slane %v3832, 3
    %v3835 = vor.u32 %v3831, %v3834
    %v3836 = vsel %vm2510, %v3827, %v3835
    %v3838 = vshrl.u32 %v3222, 16
    %v3840 = vrot.slane %v3838, 2
    %v3841 = vshll.u32 %v3222, 16
    %v3843 = vrot.slane %v3841, 3
    %v3844 = vor.u32 %v3840, %v3843
    %v3846 = vshrl.u32 %v3226, 16
    %v3848 = vrot.slane %v3846, 2
    %v3849 = vshll.u32 %v3226, 16
    %v3851 = vrot.slane %v3849, 3
    %v3852 = vor.u32 %v3848, %v3851
    %v3853 = vsel %vm2510, %v3844, %v3852
    %v3855 = vshrl.u32 %v3301, 16
    %v3857 = vrot.slane %v3855, 2
    %v3858 = vshll.u32 %v3301, 16
    %v3860 = vrot.slane %v3858, 3
    %v3861 = vor.u32 %v3857, %v3860
    %v3863 = vshrl.u32 %v3305, 16
    %v3865 = vrot.slane %v3863, 2
    %v3866 = vshll.u32 %v3305, 16
    %v3868 = vrot.slane %v3866, 3
    %v3869 = vor.u32 %v3865, %v3868
    %v3870 = vsel %vm2510, %v3861, %v3869
    %v3872 = vshrl.u32 %v3469, 16
    %v3874 = vrot.slane %v3872, 2
    %v3875 = vshll.u32 %v3469, 16
    %v3877 = vrot.slane %v3875, 3
    %v3878 = vor.u32 %v3874, %v3877
    %v3880 = vshrl.u32 %v3471, 16
    %v3882 = vrot.slane %v3880, 2
    %v3883 = vshll.u32 %v3471, 16
    %v3885 = vrot.slane %v3883, 3
    %v3886 = vor.u32 %v3882, %v3885
    %v3887 = vsel %vm2510, %v3878, %v3886
    %v3889 = vshrl.u32 %v3517, 16
    %v3891 = vrot.slane %v3889, 2
    %v3892 = vshll.u32 %v3517, 16
    %v3894 = vrot.slane %v3892, 3
    %v3895 = vor.u32 %v3891, %v3894
    %v3897 = vshrl.u32 %v3526, 16
    %v3899 = vrot.slane %v3897, 2
    %v3900 = vshll.u32 %v3526, 16
    %v3902 = vrot.slane %v3900, 3
    %v3903 = vor.u32 %v3899, %v3902
    %v3904 = vsel %vm2510, %v3895, %v3903
    %v3906 = vshrl.u32 %v3684, 16
    %v3908 = vrot.slane %v3906, 2
    %v3909 = vshll.u32 %v3684, 16
    %v3911 = vrot.slane %v3909, 3
    %v3912 = vor.u32 %v3908, %v3911
    %v3914 = vshrl.u32 %v3686, 16
    %v3916 = vrot.slane %v3914, 2
    %v3917 = vshll.u32 %v3686, 16
    %v3919 = vrot.slane %v3917, 3
    %v3920 = vor.u32 %v3916, %v3919
    %v3921 = vsel %vm2510, %v3912, %v3920
    %v3923 = vshrl.u32 %v3731, 16
    %v3925 = vrot.slane %v3923, 2
    %v3926 = vshll.u32 %v3731, 16
    %v3928 = vrot.slane %v3926, 3
    %v3929 = vor.u32 %v3925, %v3928
    %v3931 = vshrl.u32 %v3734, 16
    %v3933 = vrot.slane %v3931, 2
    %v3934 = vshll.u32 %v3734, 16
    %v3936 = vrot.slane %v3934, 3
    %v3937 = vor.u32 %v3933, %v3936
    %v3938 = vsel %vm2510, %v3929, %v3937
    %v3939 = vrot.slane %v2072, 2
    %v3940 = vrot.slane %v2068, 3
    %v3941 = vor.u32 %v3939, %v3940
    %v3942 = vsel %vm2510, %v3801, %v3941
    %v3944 = vshrl.u32 %v2079, 16
    %v3946 = vrot.slane %v3944, 2
    %v3947 = vshll.u32 %v2079, 16
    %v3949 = vrot.slane %v3947, 3
    %v3950 = vor.u32 %v3946, %v3949
    %v3951 = vsel %vm2510, %v3818, %v3950
    %v3953 = vshrl.u32 %v2216, 16
    %v3955 = vrot.slane %v3953, 2
    %v3956 = vshll.u32 %v2216, 16
    %v3958 = vrot.slane %v3956, 3
    %v3959 = vor.u32 %v3955, %v3958
    %v3960 = vsel %vm2510, %v3835, %v3959
    %v3962 = vshrl.u32 %v3230, 16
    %v3964 = vrot.slane %v3962, 2
    %v3965 = vshll.u32 %v3230, 16
    %v3967 = vrot.slane %v3965, 3
    %v3968 = vor.u32 %v3964, %v3967
    %v3969 = vsel %vm2510, %v3852, %v3968
    %v3971 = vshrl.u32 %v3309, 16
    %v3973 = vrot.slane %v3971, 2
    %v3974 = vshll.u32 %v3309, 16
    %v3976 = vrot.slane %v3974, 3
    %v3977 = vor.u32 %v3973, %v3976
    %v3978 = vsel %vm2510, %v3869, %v3977
    %v3980 = vshrl.u32 %v3473, 16
    %v3982 = vrot.slane %v3980, 2
    %v3983 = vshll.u32 %v3473, 16
    %v3985 = vrot.slane %v3983, 3
    %v3986 = vor.u32 %v3982, %v3985
    %v3987 = vsel %vm2510, %v3886, %v3986
    %v3989 = vshrl.u32 %v3535, 16
    %v3991 = vrot.slane %v3989, 2
    %v3992 = vshll.u32 %v3535, 16
    %v3994 = vrot.slane %v3992, 3
    %v3995 = vor.u32 %v3991, %v3994
    %v3996 = vsel %vm2510, %v3903, %v3995
    %v3998 = vshrl.u32 %v3688, 16
    %v4000 = vrot.slane %v3998, 2
    %v4001 = vshll.u32 %v3688, 16
    %v4003 = vrot.slane %v4001, 3
    %v4004 = vor.u32 %v4000, %v4003
    %v4005 = vsel %vm2510, %v3920, %v4004
    %v4007 = vshrl.u32 %v3737, 16
    %v4009 = vrot.slane %v4007, 2
    %v4010 = vshll.u32 %v3737, 16
    %v4012 = vrot.slane %v4010, 3
    %v4013 = vor.u32 %v4009, %v4012
    %v4014 = vsel %vm2510, %v3937, %v4013
    %v4015 = vrot.slane %v2080, 2
    %v4016 = vrot.slane %v2076, 3
    %v4017 = vor.u32 %v4015, %v4016
    %v4018 = vsel %vm2510, %v3941, %v4017
    %v4020 = vshrl.u32 %v2087, 16
    %v4022 = vrot.slane %v4020, 2
    %v4023 = vshll.u32 %v2087, 16
    %v4025 = vrot.slane %v4023, 3
    %v4026 = vor.u32 %v4022, %v4025
    %v4027 = vsel %vm2510, %v3950, %v4026
    %v4029 = vshrl.u32 %v2218, 16
    %v4031 = vrot.slane %v4029, 2
    %v4032 = vshll.u32 %v2218, 16
    %v4034 = vrot.slane %v4032, 3
    %v4035 = vor.u32 %v4031, %v4034
    %v4036 = vsel %vm2510, %v3959, %v4035
    %v4038 = vshrl.u32 %v3234, 16
    %v4040 = vrot.slane %v4038, 2
    %v4041 = vshll.u32 %v3234, 16
    %v4043 = vrot.slane %v4041, 3
    %v4044 = vor.u32 %v4040, %v4043
    %v4045 = vsel %vm2510, %v3968, %v4044
    %v4047 = vshrl.u32 %v3313, 16
    %v4049 = vrot.slane %v4047, 2
    %v4050 = vshll.u32 %v3313, 16
    %v4052 = vrot.slane %v4050, 3
    %v4053 = vor.u32 %v4049, %v4052
    %v4054 = vsel %vm2510, %v3977, %v4053
    %v4056 = vshrl.u32 %v3475, 16
    %v4058 = vrot.slane %v4056, 2
    %v4059 = vshll.u32 %v3475, 16
    %v4061 = vrot.slane %v4059, 3
    %v4062 = vor.u32 %v4058, %v4061
    %v4063 = vsel %vm2510, %v3986, %v4062
    %v4065 = vshrl.u32 %v3544, 16
    %v4067 = vrot.slane %v4065, 2
    %v4068 = vshll.u32 %v3544, 16
    %v4070 = vrot.slane %v4068, 3
    %v4071 = vor.u32 %v4067, %v4070
    %v4072 = vsel %vm2510, %v3995, %v4071
    %v4074 = vshrl.u32 %v3690, 16
    %v4076 = vrot.slane %v4074, 2
    %v4077 = vshll.u32 %v3690, 16
    %v4079 = vrot.slane %v4077, 3
    %v4080 = vor.u32 %v4076, %v4079
    %v4081 = vsel %vm2510, %v4004, %v4080
    %v4083 = vshrl.u32 %v3740, 16
    %v4085 = vrot.slane %v4083, 2
    %v4086 = vshll.u32 %v3740, 16
    %v4088 = vrot.slane %v4086, 3
    %v4089 = vor.u32 %v4085, %v4088
    %v4090 = vsel %vm2510, %v4013, %v4089
    %v4091 = vrot.slane %v2088, 2
    %v4092 = vrot.slane %v2084, 3
    %v4093 = vor.u32 %v4091, %v4092
    %v4094 = vsel %vm2510, %v4017, %v4093
    %v4096 = vshrl.u32 %v2095, 16
    %v4098 = vrot.slane %v4096, 2
    %v4099 = vshll.u32 %v2095, 16
    %v4101 = vrot.slane %v4099, 3
    %v4102 = vor.u32 %v4098, %v4101
    %v4103 = vsel %vm2510, %v4026, %v4102
    %v4105 = vshrl.u32 %v2220, 16
    %v4107 = vrot.slane %v4105, 2
    %v4108 = vshll.u32 %v2220, 16
    %v4110 = vrot.slane %v4108, 3
    %v4111 = vor.u32 %v4107, %v4110
    %v4112 = vsel %vm2510, %v4035, %v4111
    %v4114 = vshrl.u32 %v3238, 16
    %v4116 = vrot.slane %v4114, 2
    %v4117 = vshll.u32 %v3238, 16
    %v4119 = vrot.slane %v4117, 3
    %v4120 = vor.u32 %v4116, %v4119
    %v4121 = vsel %vm2510, %v4044, %v4120
    %v4123 = vshrl.u32 %v3317, 16
    %v4125 = vrot.slane %v4123, 2
    %v4126 = vshll.u32 %v3317, 16
    %v4128 = vrot.slane %v4126, 3
    %v4129 = vor.u32 %v4125, %v4128
    %v4130 = vsel %vm2510, %v4053, %v4129
    %v4132 = vshrl.u32 %v3477, 16
    %v4134 = vrot.slane %v4132, 2
    %v4135 = vshll.u32 %v3477, 16
    %v4137 = vrot.slane %v4135, 3
    %v4138 = vor.u32 %v4134, %v4137
    %v4139 = vsel %vm2510, %v4062, %v4138
    %v4141 = vshrl.u32 %v3553, 16
    %v4143 = vrot.slane %v4141, 2
    %v4144 = vshll.u32 %v3553, 16
    %v4146 = vrot.slane %v4144, 3
    %v4147 = vor.u32 %v4143, %v4146
    %v4148 = vsel %vm2510, %v4071, %v4147
    %v4150 = vshrl.u32 %v3692, 16
    %v4152 = vrot.slane %v4150, 2
    %v4153 = vshll.u32 %v3692, 16
    %v4155 = vrot.slane %v4153, 3
    %v4156 = vor.u32 %v4152, %v4155
    %v4157 = vsel %vm2510, %v4080, %v4156
    %v4159 = vshrl.u32 %v3743, 16
    %v4161 = vrot.slane %v4159, 2
    %v4162 = vshll.u32 %v3743, 16
    %v4164 = vrot.slane %v4162, 3
    %v4165 = vor.u32 %v4161, %v4164
    %v4166 = vsel %vm2510, %v4089, %v4165
    %v4167 = vrot.slane %v2096, 2
    %v4168 = vrot.slane %v2092, 3
    %v4169 = vor.u32 %v4167, %v4168
    %v4170 = vsel %vm2510, %v4093, %v4169
    %v4172 = vshrl.u32 %v2103, 16
    %v4174 = vrot.slane %v4172, 2
    %v4175 = vshll.u32 %v2103, 16
    %v4177 = vrot.slane %v4175, 3
    %v4178 = vor.u32 %v4174, %v4177
    %v4179 = vsel %vm2510, %v4102, %v4178
    %v4181 = vshrl.u32 %v2222, 16
    %v4183 = vrot.slane %v4181, 2
    %v4184 = vshll.u32 %v2222, 16
    %v4186 = vrot.slane %v4184, 3
    %v4187 = vor.u32 %v4183, %v4186
    %v4188 = vsel %vm2510, %v4111, %v4187
    %v4190 = vshrl.u32 %v3242, 16
    %v4192 = vrot.slane %v4190, 2
    %v4193 = vshll.u32 %v3242, 16
    %v4195 = vrot.slane %v4193, 3
    %v4196 = vor.u32 %v4192, %v4195
    %v4197 = vsel %vm2510, %v4120, %v4196
    %v4199 = vshrl.u32 %v3321, 16
    %v4201 = vrot.slane %v4199, 2
    %v4202 = vshll.u32 %v3321, 16
    %v4204 = vrot.slane %v4202, 3
    %v4205 = vor.u32 %v4201, %v4204
    %v4206 = vsel %vm2510, %v4129, %v4205
    %v4208 = vshrl.u32 %v3479, 16
    %v4210 = vrot.slane %v4208, 2
    %v4211 = vshll.u32 %v3479, 16
    %v4213 = vrot.slane %v4211, 3
    %v4214 = vor.u32 %v4210, %v4213
    %v4215 = vsel %vm2510, %v4138, %v4214
    %v4217 = vshrl.u32 %v3562, 16
    %v4219 = vrot.slane %v4217, 2
    %v4220 = vshll.u32 %v3562, 16
    %v4222 = vrot.slane %v4220, 3
    %v4223 = vor.u32 %v4219, %v4222
    %v4224 = vsel %vm2510, %v4147, %v4223
    %v4226 = vshrl.u32 %v3694, 16
    %v4228 = vrot.slane %v4226, 2
    %v4229 = vshll.u32 %v3694, 16
    %v4231 = vrot.slane %v4229, 3
    %v4232 = vor.u32 %v4228, %v4231
    %v4233 = vsel %vm2510, %v4156, %v4232
    %v4235 = vshrl.u32 %v3746, 16
    %v4237 = vrot.slane %v4235, 2
    %v4238 = vshll.u32 %v3746, 16
    %v4240 = vrot.slane %v4238, 3
    %v4241 = vor.u32 %v4237, %v4240
    %v4242 = vsel %vm2510, %v4165, %v4241
    %v4243 = vrot.slane %v2104, 2
    %v4244 = vrot.slane %v2100, 3
    %v4245 = vor.u32 %v4243, %v4244
    %v4246 = vsel %vm2510, %v4169, %v4245
    %v4248 = vshrl.u32 %v2111, 16
    %v4250 = vrot.slane %v4248, 2
    %v4251 = vshll.u32 %v2111, 16
    %v4253 = vrot.slane %v4251, 3
    %v4254 = vor.u32 %v4250, %v4253
    %v4255 = vsel %vm2510, %v4178, %v4254
    %v4257 = vshrl.u32 %v2224, 16
    %v4259 = vrot.slane %v4257, 2
    %v4260 = vshll.u32 %v2224, 16
    %v4262 = vrot.slane %v4260, 3
    %v4263 = vor.u32 %v4259, %v4262
    %v4264 = vsel %vm2510, %v4187, %v4263
    %v4266 = vshrl.u32 %v3246, 16
    %v4268 = vrot.slane %v4266, 2
    %v4269 = vshll.u32 %v3246, 16
    %v4271 = vrot.slane %v4269, 3
    %v4272 = vor.u32 %v4268, %v4271
    %v4273 = vsel %vm2510, %v4196, %v4272
    %v4275 = vshrl.u32 %v3325, 16
    %v4277 = vrot.slane %v4275, 2
    %v4278 = vshll.u32 %v3325, 16
    %v4280 = vrot.slane %v4278, 3
    %v4281 = vor.u32 %v4277, %v4280
    %v4282 = vsel %vm2510, %v4205, %v4281
    %v4284 = vshrl.u32 %v3481, 16
    %v4286 = vrot.slane %v4284, 2
    %v4287 = vshll.u32 %v3481, 16
    %v4289 = vrot.slane %v4287, 3
    %v4290 = vor.u32 %v4286, %v4289
    %v4291 = vsel %vm2510, %v4214, %v4290
    %v4293 = vshrl.u32 %v3571, 16
    %v4295 = vrot.slane %v4293, 2
    %v4296 = vshll.u32 %v3571, 16
    %v4298 = vrot.slane %v4296, 3
    %v4299 = vor.u32 %v4295, %v4298
    %v4300 = vsel %vm2510, %v4223, %v4299
    %v4302 = vshrl.u32 %v3696, 16
    %v4304 = vrot.slane %v4302, 2
    %v4305 = vshll.u32 %v3696, 16
    %v4307 = vrot.slane %v4305, 3
    %v4308 = vor.u32 %v4304, %v4307
    %v4309 = vsel %vm2510, %v4232, %v4308
    %v4311 = vshrl.u32 %v3749, 16
    %v4313 = vrot.slane %v4311, 2
    %v4314 = vshll.u32 %v3749, 16
    %v4316 = vrot.slane %v4314, 3
    %v4317 = vor.u32 %v4313, %v4316
    %v4318 = vsel %vm2510, %v4241, %v4317
    %v4319 = vrot.slane %v2112, 2
    %v4320 = vrot.slane %v2108, 3
    %v4321 = vor.u32 %v4319, %v4320
    %v4322 = vsel %vm2510, %v4245, %v4321
    %v4324 = vshrl.u32 %v2119, 16
    %v4326 = vrot.slane %v4324, 2
    %v4327 = vshll.u32 %v2119, 16
    %v4329 = vrot.slane %v4327, 3
    %v4330 = vor.u32 %v4326, %v4329
    %v4331 = vsel %vm2510, %v4254, %v4330
    %v4333 = vshrl.u32 %v2226, 16
    %v4335 = vrot.slane %v4333, 2
    %v4336 = vshll.u32 %v2226, 16
    %v4338 = vrot.slane %v4336, 3
    %v4339 = vor.u32 %v4335, %v4338
    %v4340 = vsel %vm2510, %v4263, %v4339
    %v4342 = vshrl.u32 %v3250, 16
    %v4344 = vrot.slane %v4342, 2
    %v4345 = vshll.u32 %v3250, 16
    %v4347 = vrot.slane %v4345, 3
    %v4348 = vor.u32 %v4344, %v4347
    %v4349 = vsel %vm2510, %v4272, %v4348
    %v4351 = vshrl.u32 %v3329, 16
    %v4353 = vrot.slane %v4351, 2
    %v4354 = vshll.u32 %v3329, 16
    %v4356 = vrot.slane %v4354, 3
    %v4357 = vor.u32 %v4353, %v4356
    %v4358 = vsel %vm2510, %v4281, %v4357
    %v4360 = vshrl.u32 %v3483, 16
    %v4362 = vrot.slane %v4360, 2
    %v4363 = vshll.u32 %v3483, 16
    %v4365 = vrot.slane %v4363, 3
    %v4366 = vor.u32 %v4362, %v4365
    %v4367 = vsel %vm2510, %v4290, %v4366
    %v4369 = vshrl.u32 %v3580, 16
    %v4371 = vrot.slane %v4369, 2
    %v4372 = vshll.u32 %v3580, 16
    %v4374 = vrot.slane %v4372, 3
    %v4375 = vor.u32 %v4371, %v4374
    %v4376 = vsel %vm2510, %v4299, %v4375
    %v4378 = vshrl.u32 %v3698, 16
    %v4380 = vrot.slane %v4378, 2
    %v4381 = vshll.u32 %v3698, 16
    %v4383 = vrot.slane %v4381, 3
    %v4384 = vor.u32 %v4380, %v4383
    %v4385 = vsel %vm2510, %v4308, %v4384
    %v4387 = vshrl.u32 %v3752, 16
    %v4389 = vrot.slane %v4387, 2
    %v4390 = vshll.u32 %v3752, 16
    %v4392 = vrot.slane %v4390, 3
    %v4393 = vor.u32 %v4389, %v4392
    %v4394 = vsel %vm2510, %v4317, %v4393
    %v4395 = vrot.slane %v2120, 2
    %v4396 = vrot.slane %v2116, 3
    %v4397 = vor.u32 %v4395, %v4396
    %v4398 = vsel %vm2510, %v4321, %v4397
    %v4400 = vshrl.u32 %v2127, 16
    %v4402 = vrot.slane %v4400, 2
    %v4403 = vshll.u32 %v2127, 16
    %v4405 = vrot.slane %v4403, 3
    %v4406 = vor.u32 %v4402, %v4405
    %v4407 = vsel %vm2510, %v4330, %v4406
    %v4409 = vshrl.u32 %v2228, 16
    %v4411 = vrot.slane %v4409, 2
    %v4412 = vshll.u32 %v2228, 16
    %v4414 = vrot.slane %v4412, 3
    %v4415 = vor.u32 %v4411, %v4414
    %v4416 = vsel %vm2510, %v4339, %v4415
    %v4418 = vshrl.u32 %v3254, 16
    %v4420 = vrot.slane %v4418, 2
    %v4421 = vshll.u32 %v3254, 16
    %v4423 = vrot.slane %v4421, 3
    %v4424 = vor.u32 %v4420, %v4423
    %v4425 = vsel %vm2510, %v4348, %v4424
    %v4427 = vshrl.u32 %v3333, 16
    %v4429 = vrot.slane %v4427, 2
    %v4430 = vshll.u32 %v3333, 16
    %v4432 = vrot.slane %v4430, 3
    %v4433 = vor.u32 %v4429, %v4432
    %v4434 = vsel %vm2510, %v4357, %v4433
    %v4436 = vshrl.u32 %v3485, 16
    %v4438 = vrot.slane %v4436, 2
    %v4439 = vshll.u32 %v3485, 16
    %v4441 = vrot.slane %v4439, 3
    %v4442 = vor.u32 %v4438, %v4441
    %v4443 = vsel %vm2510, %v4366, %v4442
    %v4445 = vshrl.u32 %v3589, 16
    %v4447 = vrot.slane %v4445, 2
    %v4448 = vshll.u32 %v3589, 16
    %v4450 = vrot.slane %v4448, 3
    %v4451 = vor.u32 %v4447, %v4450
    %v4452 = vsel %vm2510, %v4375, %v4451
    %v4454 = vshrl.u32 %v3700, 16
    %v4456 = vrot.slane %v4454, 2
    %v4457 = vshll.u32 %v3700, 16
    %v4459 = vrot.slane %v4457, 3
    %v4460 = vor.u32 %v4456, %v4459
    %v4461 = vsel %vm2510, %v4384, %v4460
    %v4463 = vshrl.u32 %v3755, 16
    %v4465 = vrot.slane %v4463, 2
    %v4466 = vshll.u32 %v3755, 16
    %v4468 = vrot.slane %v4466, 3
    %v4469 = vor.u32 %v4465, %v4468
    %v4470 = vsel %vm2510, %v4393, %v4469
    %v4471 = vrot.slane %v2128, 2
    %v4472 = vrot.slane %v2124, 3
    %v4473 = vor.u32 %v4471, %v4472
    %v4474 = vsel %vm2510, %v4397, %v4473
    %v4476 = vshrl.u32 %v2135, 16
    %v4478 = vrot.slane %v4476, 2
    %v4479 = vshll.u32 %v2135, 16
    %v4481 = vrot.slane %v4479, 3
    %v4482 = vor.u32 %v4478, %v4481
    %v4483 = vsel %vm2510, %v4406, %v4482
    %v4485 = vshrl.u32 %v2230, 16
    %v4487 = vrot.slane %v4485, 2
    %v4488 = vshll.u32 %v2230, 16
    %v4490 = vrot.slane %v4488, 3
    %v4491 = vor.u32 %v4487, %v4490
    %v4492 = vsel %vm2510, %v4415, %v4491
    %v4494 = vshrl.u32 %v3258, 16
    %v4496 = vrot.slane %v4494, 2
    %v4497 = vshll.u32 %v3258, 16
    %v4499 = vrot.slane %v4497, 3
    %v4500 = vor.u32 %v4496, %v4499
    %v4501 = vsel %vm2510, %v4424, %v4500
    %v4503 = vshrl.u32 %v3337, 16
    %v4505 = vrot.slane %v4503, 2
    %v4506 = vshll.u32 %v3337, 16
    %v4508 = vrot.slane %v4506, 3
    %v4509 = vor.u32 %v4505, %v4508
    %v4510 = vsel %vm2510, %v4433, %v4509
    %v4512 = vshrl.u32 %v3487, 16
    %v4514 = vrot.slane %v4512, 2
    %v4515 = vshll.u32 %v3487, 16
    %v4517 = vrot.slane %v4515, 3
    %v4518 = vor.u32 %v4514, %v4517
    %v4519 = vsel %vm2510, %v4442, %v4518
    %v4521 = vshrl.u32 %v3598, 16
    %v4523 = vrot.slane %v4521, 2
    %v4524 = vshll.u32 %v3598, 16
    %v4526 = vrot.slane %v4524, 3
    %v4527 = vor.u32 %v4523, %v4526
    %v4528 = vsel %vm2510, %v4451, %v4527
    %v4530 = vshrl.u32 %v3702, 16
    %v4532 = vrot.slane %v4530, 2
    %v4533 = vshll.u32 %v3702, 16
    %v4535 = vrot.slane %v4533, 3
    %v4536 = vor.u32 %v4532, %v4535
    %v4537 = vsel %vm2510, %v4460, %v4536
    %v4539 = vshrl.u32 %v3758, 16
    %v4541 = vrot.slane %v4539, 2
    %v4542 = vshll.u32 %v3758, 16
    %v4544 = vrot.slane %v4542, 3
    %v4545 = vor.u32 %v4541, %v4544
    %v4546 = vsel %vm2510, %v4469, %v4545
    %v4547 = vrot.slane %v2136, 2
    %v4548 = vrot.slane %v2132, 3
    %v4549 = vor.u32 %v4547, %v4548
    %v4550 = vsel %vm2510, %v4473, %v4549
    %v4552 = vshrl.u32 %v2143, 16
    %v4554 = vrot.slane %v4552, 2
    %v4555 = vshll.u32 %v2143, 16
    %v4557 = vrot.slane %v4555, 3
    %v4558 = vor.u32 %v4554, %v4557
    %v4559 = vsel %vm2510, %v4482, %v4558
    %v4561 = vshrl.u32 %v2232, 16
    %v4563 = vrot.slane %v4561, 2
    %v4564 = vshll.u32 %v2232, 16
    %v4566 = vrot.slane %v4564, 3
    %v4567 = vor.u32 %v4563, %v4566
    %v4568 = vsel %vm2510, %v4491, %v4567
    %v4570 = vshrl.u32 %v3262, 16
    %v4572 = vrot.slane %v4570, 2
    %v4573 = vshll.u32 %v3262, 16
    %v4575 = vrot.slane %v4573, 3
    %v4576 = vor.u32 %v4572, %v4575
    %v4577 = vsel %vm2510, %v4500, %v4576
    %v4579 = vshrl.u32 %v3341, 16
    %v4581 = vrot.slane %v4579, 2
    %v4582 = vshll.u32 %v3341, 16
    %v4584 = vrot.slane %v4582, 3
    %v4585 = vor.u32 %v4581, %v4584
    %v4586 = vsel %vm2510, %v4509, %v4585
    %v4588 = vshrl.u32 %v3489, 16
    %v4590 = vrot.slane %v4588, 2
    %v4591 = vshll.u32 %v3489, 16
    %v4593 = vrot.slane %v4591, 3
    %v4594 = vor.u32 %v4590, %v4593
    %v4595 = vsel %vm2510, %v4518, %v4594
    %v4597 = vshrl.u32 %v3607, 16
    %v4599 = vrot.slane %v4597, 2
    %v4600 = vshll.u32 %v3607, 16
    %v4602 = vrot.slane %v4600, 3
    %v4603 = vor.u32 %v4599, %v4602
    %v4604 = vsel %vm2510, %v4527, %v4603
    %v4606 = vshrl.u32 %v3704, 16
    %v4608 = vrot.slane %v4606, 2
    %v4609 = vshll.u32 %v3704, 16
    %v4611 = vrot.slane %v4609, 3
    %v4612 = vor.u32 %v4608, %v4611
    %v4613 = vsel %vm2510, %v4536, %v4612
    %v4615 = vshrl.u32 %v3761, 16
    %v4617 = vrot.slane %v4615, 2
    %v4618 = vshll.u32 %v3761, 16
    %v4620 = vrot.slane %v4618, 3
    %v4621 = vor.u32 %v4617, %v4620
    %v4622 = vsel %vm2510, %v4545, %v4621
    %v4623 = vrot.slane %v2144, 2
    %v4624 = vrot.slane %v2140, 3
    %v4625 = vor.u32 %v4623, %v4624
    %v4626 = vsel %vm2510, %v4549, %v4625
    %v4628 = vshrl.u32 %v2151, 16
    %v4630 = vrot.slane %v4628, 2
    %v4631 = vshll.u32 %v2151, 16
    %v4633 = vrot.slane %v4631, 3
    %v4634 = vor.u32 %v4630, %v4633
    %v4635 = vsel %vm2510, %v4558, %v4634
    %v4637 = vshrl.u32 %v2234, 16
    %v4639 = vrot.slane %v4637, 2
    %v4640 = vshll.u32 %v2234, 16
    %v4642 = vrot.slane %v4640, 3
    %v4643 = vor.u32 %v4639, %v4642
    %v4644 = vsel %vm2510, %v4567, %v4643
    %v4646 = vshrl.u32 %v3266, 16
    %v4648 = vrot.slane %v4646, 2
    %v4649 = vshll.u32 %v3266, 16
    %v4651 = vrot.slane %v4649, 3
    %v4652 = vor.u32 %v4648, %v4651
    %v4653 = vsel %vm2510, %v4576, %v4652
    %v4655 = vshrl.u32 %v3345, 16
    %v4657 = vrot.slane %v4655, 2
    %v4658 = vshll.u32 %v3345, 16
    %v4660 = vrot.slane %v4658, 3
    %v4661 = vor.u32 %v4657, %v4660
    %v4662 = vsel %vm2510, %v4585, %v4661
    %v4664 = vshrl.u32 %v3491, 16
    %v4666 = vrot.slane %v4664, 2
    %v4667 = vshll.u32 %v3491, 16
    %v4669 = vrot.slane %v4667, 3
    %v4670 = vor.u32 %v4666, %v4669
    %v4671 = vsel %vm2510, %v4594, %v4670
    %v4673 = vshrl.u32 %v3616, 16
    %v4675 = vrot.slane %v4673, 2
    %v4676 = vshll.u32 %v3616, 16
    %v4678 = vrot.slane %v4676, 3
    %v4679 = vor.u32 %v4675, %v4678
    %v4680 = vsel %vm2510, %v4603, %v4679
    %v4682 = vshrl.u32 %v3706, 16
    %v4684 = vrot.slane %v4682, 2
    %v4685 = vshll.u32 %v3706, 16
    %v4687 = vrot.slane %v4685, 3
    %v4688 = vor.u32 %v4684, %v4687
    %v4689 = vsel %vm2510, %v4612, %v4688
    %v4691 = vshrl.u32 %v3764, 16
    %v4693 = vrot.slane %v4691, 2
    %v4694 = vshll.u32 %v3764, 16
    %v4696 = vrot.slane %v4694, 3
    %v4697 = vor.u32 %v4693, %v4696
    %v4698 = vsel %vm2510, %v4621, %v4697
    %v4699 = vrot.slane %v2152, 2
    %v4700 = vrot.slane %v2148, 3
    %v4701 = vor.u32 %v4699, %v4700
    %v4702 = vsel %vm2510, %v4625, %v4701
    %v4704 = vshrl.u32 %v2159, 16
    %v4706 = vrot.slane %v4704, 2
    %v4707 = vshll.u32 %v2159, 16
    %v4709 = vrot.slane %v4707, 3
    %v4710 = vor.u32 %v4706, %v4709
    %v4711 = vsel %vm2510, %v4634, %v4710
    %v4713 = vshrl.u32 %v2236, 16
    %v4715 = vrot.slane %v4713, 2
    %v4716 = vshll.u32 %v2236, 16
    %v4718 = vrot.slane %v4716, 3
    %v4719 = vor.u32 %v4715, %v4718
    %v4720 = vsel %vm2510, %v4643, %v4719
    %v4722 = vshrl.u32 %v3270, 16
    %v4724 = vrot.slane %v4722, 2
    %v4725 = vshll.u32 %v3270, 16
    %v4727 = vrot.slane %v4725, 3
    %v4728 = vor.u32 %v4724, %v4727
    %v4729 = vsel %vm2510, %v4652, %v4728
    %v4731 = vshrl.u32 %v3349, 16
    %v4733 = vrot.slane %v4731, 2
    %v4734 = vshll.u32 %v3349, 16
    %v4736 = vrot.slane %v4734, 3
    %v4737 = vor.u32 %v4733, %v4736
    %v4738 = vsel %vm2510, %v4661, %v4737
    %v4740 = vshrl.u32 %v3493, 16
    %v4742 = vrot.slane %v4740, 2
    %v4743 = vshll.u32 %v3493, 16
    %v4745 = vrot.slane %v4743, 3
    %v4746 = vor.u32 %v4742, %v4745
    %v4747 = vsel %vm2510, %v4670, %v4746
    %v4749 = vshrl.u32 %v3625, 16
    %v4751 = vrot.slane %v4749, 2
    %v4752 = vshll.u32 %v3625, 16
    %v4754 = vrot.slane %v4752, 3
    %v4755 = vor.u32 %v4751, %v4754
    %v4756 = vsel %vm2510, %v4679, %v4755
    %v4758 = vshrl.u32 %v3708, 16
    %v4760 = vrot.slane %v4758, 2
    %v4761 = vshll.u32 %v3708, 16
    %v4763 = vrot.slane %v4761, 3
    %v4764 = vor.u32 %v4760, %v4763
    %v4765 = vsel %vm2510, %v4688, %v4764
    %v4767 = vshrl.u32 %v3767, 16
    %v4769 = vrot.slane %v4767, 2
    %v4770 = vshll.u32 %v3767, 16
    %v4772 = vrot.slane %v4770, 3
    %v4773 = vor.u32 %v4769, %v4772
    %v4774 = vsel %vm2510, %v4697, %v4773
    %v4775 = vrot.slane %v2160, 2
    %v4776 = vrot.slane %v2156, 3
    %v4777 = vor.u32 %v4775, %v4776
    %v4778 = vsel %vm2510, %v4701, %v4777
    %v4780 = vshrl.u32 %v2167, 16
    %v4782 = vrot.slane %v4780, 2
    %v4783 = vshll.u32 %v2167, 16
    %v4785 = vrot.slane %v4783, 3
    %v4786 = vor.u32 %v4782, %v4785
    %v4787 = vsel %vm2510, %v4710, %v4786
    %v4789 = vshrl.u32 %v2238, 16
    %v4791 = vrot.slane %v4789, 2
    %v4792 = vshll.u32 %v2238, 16
    %v4794 = vrot.slane %v4792, 3
    %v4795 = vor.u32 %v4791, %v4794
    %v4796 = vsel %vm2510, %v4719, %v4795
    %v4798 = vshrl.u32 %v3274, 16
    %v4800 = vrot.slane %v4798, 2
    %v4801 = vshll.u32 %v3274, 16
    %v4803 = vrot.slane %v4801, 3
    %v4804 = vor.u32 %v4800, %v4803
    %v4805 = vsel %vm2510, %v4728, %v4804
    %v4807 = vshrl.u32 %v3353, 16
    %v4809 = vrot.slane %v4807, 2
    %v4810 = vshll.u32 %v3353, 16
    %v4812 = vrot.slane %v4810, 3
    %v4813 = vor.u32 %v4809, %v4812
    %v4814 = vsel %vm2510, %v4737, %v4813
    %v4816 = vshrl.u32 %v3495, 16
    %v4818 = vrot.slane %v4816, 2
    %v4819 = vshll.u32 %v3495, 16
    %v4821 = vrot.slane %v4819, 3
    %v4822 = vor.u32 %v4818, %v4821
    %v4823 = vsel %vm2510, %v4746, %v4822
    %v4825 = vshrl.u32 %v3634, 16
    %v4827 = vrot.slane %v4825, 2
    %v4828 = vshll.u32 %v3634, 16
    %v4830 = vrot.slane %v4828, 3
    %v4831 = vor.u32 %v4827, %v4830
    %v4832 = vsel %vm2510, %v4755, %v4831
    %v4834 = vshrl.u32 %v3710, 16
    %v4836 = vrot.slane %v4834, 2
    %v4837 = vshll.u32 %v3710, 16
    %v4839 = vrot.slane %v4837, 3
    %v4840 = vor.u32 %v4836, %v4839
    %v4841 = vsel %vm2510, %v4764, %v4840
    %v4843 = vshrl.u32 %v3770, 16
    %v4845 = vrot.slane %v4843, 2
    %v4846 = vshll.u32 %v3770, 16
    %v4848 = vrot.slane %v4846, 3
    %v4849 = vor.u32 %v4845, %v4848
    %v4850 = vsel %vm2510, %v4773, %v4849
    %v4851 = vrot.slane %v2168, 2
    %v4852 = vrot.slane %v2164, 3
    %v4853 = vor.u32 %v4851, %v4852
    %v4854 = vsel %vm2510, %v4777, %v4853
    %v4856 = vshrl.u32 %v2175, 16
    %v4858 = vrot.slane %v4856, 2
    %v4859 = vshll.u32 %v2175, 16
    %v4861 = vrot.slane %v4859, 3
    %v4862 = vor.u32 %v4858, %v4861
    %v4863 = vsel %vm2510, %v4786, %v4862
    %v4865 = vshrl.u32 %v2240, 16
    %v4867 = vrot.slane %v4865, 2
    %v4868 = vshll.u32 %v2240, 16
    %v4870 = vrot.slane %v4868, 3
    %v4871 = vor.u32 %v4867, %v4870
    %v4872 = vsel %vm2510, %v4795, %v4871
    %v4874 = vshrl.u32 %v3278, 16
    %v4876 = vrot.slane %v4874, 2
    %v4877 = vshll.u32 %v3278, 16
    %v4879 = vrot.slane %v4877, 3
    %v4880 = vor.u32 %v4876, %v4879
    %v4881 = vsel %vm2510, %v4804, %v4880
    %v4883 = vshrl.u32 %v3357, 16
    %v4885 = vrot.slane %v4883, 2
    %v4886 = vshll.u32 %v3357, 16
    %v4888 = vrot.slane %v4886, 3
    %v4889 = vor.u32 %v4885, %v4888
    %v4890 = vsel %vm2510, %v4813, %v4889
    %v4892 = vshrl.u32 %v3497, 16
    %v4894 = vrot.slane %v4892, 2
    %v4895 = vshll.u32 %v3497, 16
    %v4897 = vrot.slane %v4895, 3
    %v4898 = vor.u32 %v4894, %v4897
    %v4899 = vsel %vm2510, %v4822, %v4898
    %v4901 = vshrl.u32 %v3643, 16
    %v4903 = vrot.slane %v4901, 2
    %v4904 = vshll.u32 %v3643, 16
    %v4906 = vrot.slane %v4904, 3
    %v4907 = vor.u32 %v4903, %v4906
    %v4908 = vsel %vm2510, %v4831, %v4907
    %v4910 = vshrl.u32 %v3712, 16
    %v4912 = vrot.slane %v4910, 2
    %v4913 = vshll.u32 %v3712, 16
    %v4915 = vrot.slane %v4913, 3
    %v4916 = vor.u32 %v4912, %v4915
    %v4917 = vsel %vm2510, %v4840, %v4916
    %v4919 = vshrl.u32 %v3773, 16
    %v4921 = vrot.slane %v4919, 2
    %v4922 = vshll.u32 %v3773, 16
    %v4924 = vrot.slane %v4922, 3
    %v4925 = vor.u32 %v4921, %v4924
    %v4926 = vsel %vm2510, %v4849, %v4925
    %v4927 = vrot.slane %v2176, 2
    %v4928 = vrot.slane %v2172, 3
    %v4929 = vor.u32 %v4927, %v4928
    %v4930 = vsel %vm2510, %v4853, %v4929
    %v4932 = vshrl.u32 %v3187, 16
    %v4934 = vrot.slane %v4932, 2
    %v4935 = vshll.u32 %v3187, 16
    %v4937 = vrot.slane %v4935, 3
    %v4938 = vor.u32 %v4934, %v4937
    %v4939 = vsel %vm2510, %v4862, %v4938
    %v4941 = vshrl.u32 %v3213, 16
    %v4943 = vrot.slane %v4941, 2
    %v4944 = vshll.u32 %v3213, 16
    %v4946 = vrot.slane %v4944, 3
    %v4947 = vor.u32 %v4943, %v4946
    %v4948 = vsel %vm2510, %v4871, %v4947
    %v4950 = vshrl.u32 %v3282, 16
    %v4952 = vrot.slane %v4950, 2
    %v4953 = vshll.u32 %v3282, 16
    %v4955 = vrot.slane %v4953, 3
    %v4956 = vor.u32 %v4952, %v4955
    %v4957 = vsel %vm2510, %v4880, %v4956
    %v4959 = vshrl.u32 %v3361, 16
    %v4961 = vrot.slane %v4959, 2
    %v4962 = vshll.u32 %v3361, 16
    %v4964 = vrot.slane %v4962, 3
    %v4965 = vor.u32 %v4961, %v4964
    %v4966 = vsel %vm2510, %v4889, %v4965
    %v4968 = vshrl.u32 %v3499, 16
    %v4970 = vrot.slane %v4968, 2
    %v4971 = vshll.u32 %v3499, 16
    %v4973 = vrot.slane %v4971, 3
    %v4974 = vor.u32 %v4970, %v4973
    %v4975 = vsel %vm2510, %v4898, %v4974
    %v4977 = vshrl.u32 %v3652, 16
    %v4979 = vrot.slane %v4977, 2
    %v4980 = vshll.u32 %v3652, 16
    %v4982 = vrot.slane %v4980, 3
    %v4983 = vor.u32 %v4979, %v4982
    %v4984 = vsel %vm2510, %v4907, %v4983
    %v4986 = vshrl.u32 %v3714, 16
    %v4988 = vrot.slane %v4986, 2
    %v4989 = vshll.u32 %v3714, 16
    %v4991 = vrot.slane %v4989, 3
    %v4992 = vor.u32 %v4988, %v4991
    %v4993 = vsel %vm2510, %v4916, %v4992
    %v4995 = vshrl.u32 %v3776, 16
    %v4997 = vrot.slane %v4995, 2
    %v4998 = vshll.u32 %v3776, 16
    %v5000 = vrot.slane %v4998, 3
    %v5001 = vor.u32 %v4997, %v5000
    %v5002 = vsel %vm2510, %v4925, %v5001
    %v5003 = vrot.slane %v3188, 2
    %v5004 = vrot.slane %v3184, 3
    %v5005 = vor.u32 %v5003, %v5004
    %v5006 = vsel %vm2510, %v4929, %v5005
    %v5008 = vshrl.u32 %v3195, 16
    %v5010 = vrot.slane %v5008, 2
    %v5011 = vshll.u32 %v3195, 16
    %v5013 = vrot.slane %v5011, 3
    %v5014 = vor.u32 %v5010, %v5013
    %v5015 = vsel %vm2510, %v4938, %v5014
    %v5017 = vshrl.u32 %v3215, 16
    %v5019 = vrot.slane %v5017, 2
    %v5020 = vshll.u32 %v3215, 16
    %v5022 = vrot.slane %v5020, 3
    %v5023 = vor.u32 %v5019, %v5022
    %v5024 = vsel %vm2510, %v4947, %v5023
    %v5026 = vshrl.u32 %v3286, 16
    %v5028 = vrot.slane %v5026, 2
    %v5029 = vshll.u32 %v3286, 16
    %v5031 = vrot.slane %v5029, 3
    %v5032 = vor.u32 %v5028, %v5031
    %v5033 = vsel %vm2510, %v4956, %v5032
    %v5035 = vshrl.u32 %v3365, 16
    %v5037 = vrot.slane %v5035, 2
    %v5038 = vshll.u32 %v3365, 16
    %v5040 = vrot.slane %v5038, 3
    %v5041 = vor.u32 %v5037, %v5040
    %v5042 = vsel %vm2510, %v4965, %v5041
    %v5044 = vshrl.u32 %v3501, 16
    %v5046 = vrot.slane %v5044, 2
    %v5047 = vshll.u32 %v3501, 16
    %v5049 = vrot.slane %v5047, 3
    %v5050 = vor.u32 %v5046, %v5049
    %v5051 = vsel %vm2510, %v4974, %v5050
    %v5053 = vshrl.u32 %v3661, 16
    %v5055 = vrot.slane %v5053, 2
    %v5056 = vshll.u32 %v3661, 16
    %v5058 = vrot.slane %v5056, 3
    %v5059 = vor.u32 %v5055, %v5058
    %v5060 = vsel %vm2510, %v4983, %v5059
    %v5062 = vshrl.u32 %v3716, 16
    %v5064 = vrot.slane %v5062, 2
    %v5065 = vshll.u32 %v3716, 16
    %v5067 = vrot.slane %v5065, 3
    %v5068 = vor.u32 %v5064, %v5067
    %v5069 = vsel %vm2510, %v4992, %v5068
    %v5071 = vshrl.u32 %v3779, 16
    %v5073 = vrot.slane %v5071, 2
    %v5074 = vshll.u32 %v3779, 16
    %v5076 = vrot.slane %v5074, 3
    %v5077 = vor.u32 %v5073, %v5076
    %v5078 = vsel %vm2510, %v5001, %v5077
    %v5079 = vrot.slane %v3196, 2
    %v5080 = vrot.slane %v3192, 3
    %v5081 = vor.u32 %v5079, %v5080
    %v5082 = vsel %vm2510, %v5005, %v5081
    %v5084 = vshrl.u32 %v3203, 16
    %v5086 = vrot.slane %v5084, 2
    %v5087 = vshll.u32 %v3203, 16
    %v5089 = vrot.slane %v5087, 3
    %v5090 = vor.u32 %v5086, %v5089
    %v5091 = vsel %vm2510, %v5014, %v5090
    %v5093 = vshrl.u32 %v3217, 16
    %v5095 = vrot.slane %v5093, 2
    %v5096 = vshll.u32 %v3217, 16
    %v5098 = vrot.slane %v5096, 3
    %v5099 = vor.u32 %v5095, %v5098
    %v5100 = vsel %vm2510, %v5023, %v5099
    %v5102 = vshrl.u32 %v3295, 16
    %v5104 = vrot.slane %v5102, 2
    %v5105 = vshll.u32 %v3295, 16
    %v5107 = vrot.slane %v5105, 3
    %v5108 = vor.u32 %v5104, %v5107
    %v5109 = vsel %vm2510, %v5032, %v5108
    %v5111 = vshrl.u32 %v3374, 16
    %v5113 = vrot.slane %v5111, 2
    %v5114 = vshll.u32 %v3374, 16
    %v5116 = vrot.slane %v5114, 3
    %v5117 = vor.u32 %v5113, %v5116
    %v5118 = vsel %vm2510, %v5041, %v5117
    %v5120 = vshrl.u32 %v3503, 16
    %v5122 = vrot.slane %v5120, 2
    %v5123 = vshll.u32 %v3503, 16
    %v5125 = vrot.slane %v5123, 3
    %v5126 = vor.u32 %v5122, %v5125
    %v5127 = vsel %vm2510, %v5050, %v5126
    %v5129 = vshrl.u32 %v3670, 16
    %v5131 = vrot.slane %v5129, 2
    %v5132 = vshll.u32 %v3670, 16
    %v5134 = vrot.slane %v5132, 3
    %v5135 = vor.u32 %v5131, %v5134
    %v5136 = vsel %vm2510, %v5059, %v5135
    %v5138 = vshrl.u32 %v3718, 16
    %v5140 = vrot.slane %v5138, 2
    %v5141 = vshll.u32 %v3718, 16
    %v5143 = vrot.slane %v5141, 3
    %v5144 = vor.u32 %v5140, %v5143
    %v5145 = vsel %vm2510, %v5068, %v5144
    %v5147 = vshrl.u32 %v3782, 16
    %v5149 = vrot.slane %v5147, 2
    %v5150 = vshll.u32 %v3782, 16
    %v5152 = vrot.slane %v5150, 3
    %v5153 = vor.u32 %v5149, %v5152
    %v5154 = vsel %vm2510, %v5077, %v5153
    %v5155 = vrot.slane %v3204, 2
    %v5156 = vrot.slane %v3200, 3
    %v5157 = vor.u32 %v5155, %v5156
    %v5158 = vsel %vm2510, %v5081, %v5157
    %v5160 = vshrl.u32 %v3206, 16
    %v5162 = vrot.slane %v5160, 2
    %v5163 = vshll.u32 %v3206, 16
    %v5165 = vrot.slane %v5163, 3
    %v5166 = vor.u32 %v5162, %v5165
    %v5167 = vsel %vm2510, %v5090, %v5166
    %v5169 = vshrl.u32 %v3216, 16
    %v5171 = vrot.slane %v5169, 2
    %v5172 = vshll.u32 %v3216, 16
    %v5174 = vrot.slane %v5172, 3
    %v5175 = vor.u32 %v5171, %v5174
    %v5176 = vsel %vm2510, %v5099, %v5175
    %v5178 = vshrl.u32 %v3294, 16
    %v5180 = vrot.slane %v5178, 2
    %v5181 = vshll.u32 %v3294, 16
    %v5183 = vrot.slane %v5181, 3
    %v5184 = vor.u32 %v5180, %v5183
    %v5185 = vsel %vm2510, %v5108, %v5184
    %v5187 = vshrl.u32 %v3373, 16
    %v5189 = vrot.slane %v5187, 2
    %v5190 = vshll.u32 %v3373, 16
    %v5192 = vrot.slane %v5190, 3
    %v5193 = vor.u32 %v5189, %v5192
    %v5194 = vsel %vm2510, %v5117, %v5193
    %v5196 = vshrl.u32 %v3505, 16
    %v5198 = vrot.slane %v5196, 2
    %v5199 = vshll.u32 %v3505, 16
    %v5201 = vrot.slane %v5199, 3
    %v5202 = vor.u32 %v5198, %v5201
    %v5203 = vsel %vm2510, %v5126, %v5202
    %v5205 = vshrl.u32 %v3679, 16
    %v5207 = vrot.slane %v5205, 2
    %v5208 = vshll.u32 %v3679, 16
    %v5210 = vrot.slane %v5208, 3
    %v5211 = vor.u32 %v5207, %v5210
    %v5212 = vsel %vm2510, %v5135, %v5211
    %v5214 = vshrl.u32 %v3720, 16
    %v5216 = vrot.slane %v5214, 2
    %v5217 = vshll.u32 %v3720, 16
    %v5219 = vrot.slane %v5217, 3
    %v5220 = vor.u32 %v5216, %v5219
    %v5221 = vsel %vm2510, %v5144, %v5220
    %v5223 = vshrl.u32 %v3790, 16
    %v5225 = vrot.slane %v5223, 2
    %v5226 = vshll.u32 %v3790, 16
    %v5228 = vrot.slane %v5226, 3
    %v5229 = vor.u32 %v5225, %v5228
    %v5230 = vsel %vm2510, %v5153, %v5229
    %v5393 = vld [vmem:[%s3] sm:$0xf]
    %v5394 = vld [vmem:[%s3 + $0x4] sm:$0xf]
    %v5395 = vld [vmem:[%s3 + $0x8] sm:$0xf]
    %v5396 = vld [vmem:[%s3 + $0xc] sm:$0xf]
    %v5397 = vld [vmem:[%s3 + $0x10] sm:$0xf]
    %v5398 = vld [vmem:[%s3 + $0x14] sm:$0xf]
    %v5399 = vld [vmem:[%s3 + $0x18] sm:$0xf]
    %v5400 = vld [vmem:[%s3 + $0x1c] sm:$0xf]
    %v5401 = vld [vmem:[%s3 + $0x20] sm:$0xf]
    %v5402 = vld [vmem:[%s3 + $0x24] sm:$0xf]
    %v5403 = vld [vmem:[%s3 + $0x28] sm:$0xf]
    %v5404 = vld [vmem:[%s3 + $0x2c] sm:$0xf]
    %v5405 = vld [vmem:[%s3 + $0x30] sm:$0xf]
    %v5406 = vld [vmem:[%s3 + $0x34] sm:$0xf]
    %v5407 = vld [vmem:[%s3 + $0x38] sm:$0xf]
    %v5408 = vld [vmem:[%s3 + $0x3c] sm:$0xf]
    %v5409 = vld [vmem:[%s3 + $0x40] sm:$0xf]
    %v5410 = vld [vmem:[%s3 + $0x44] sm:$0xf]
    %v5411 = vld [vmem:[%s3 + $0x48] sm:$0xf]
    %v5412 = vld [vmem:[%s3 + $0x4c] sm:$0xf]
    %v5413 = vld [vmem:[%s3 + $0x50] sm:$0xf]
    %v5414 = vld [vmem:[%s3 + $0x54] sm:$0xf]
    %v5415 = vld [vmem:[%s3 + $0x58] sm:$0xf]
    %v5416 = vld [vmem:[%s3 + $0x5c] sm:$0xf]
    %v5417 = vld [vmem:[%s3 + $0x60] sm:$0xf]
    %v5418 = vld [vmem:[%s3 + $0x64] sm:$0xf]
    %v5419 = vld [vmem:[%s3 + $0x68] sm:$0xf]
    %v5420 = vld [vmem:[%s3 + $0x6c] sm:$0xf]
    %v5421 = vld [vmem:[%s3 + $0x70] sm:$0xf]
    %v5422 = vld [vmem:[%s3 + $0x74] sm:$0xf]
    %v5423 = vld [vmem:[%s3 + $0x78] sm:$0xf]
    %v5424 = vld [vmem:[%s3 + $0x7c] sm:$0xf]
    %v5425 = vld [vmem:[%s3 + $0x80] sm:$0xf]
    %v5426 = vld [vmem:[%s3 + $0x84] sm:$0xf]
    %v5427 = vld [vmem:[%s3 + $0x88] sm:$0xf]
    %v5428 = vld [vmem:[%s3 + $0x8c] sm:$0xf]
    %v5429 = vld [vmem:[%s3 + $0x90] sm:$0xf]
    %v5430 = vld [vmem:[%s3 + $0x94] sm:$0xf]
    %v5431 = vld [vmem:[%s3 + $0x98] sm:$0xf]
    %v5432 = vld [vmem:[%s3 + $0x9c] sm:$0xf]
    %v5433 = vld [vmem:[%s3 + $0xa0] sm:$0xf]
    %v5434 = vld [vmem:[%s3 + $0xa4] sm:$0xf]
    %v5435 = vld [vmem:[%s3 + $0xa8] sm:$0xf]
    %v5436 = vld [vmem:[%s3 + $0xac] sm:$0xf]
    %v5437 = vld [vmem:[%s3 + $0xb0] sm:$0xf]
    %v5438 = vld [vmem:[%s3 + $0xb4] sm:$0xf]
    %v5439 = vld [vmem:[%s3 + $0xb8] sm:$0xf]
    %v5440 = vld [vmem:[%s3 + $0xbc] sm:$0xf]
    %v5441 = vld [vmem:[%s3 + $0xc0] sm:$0xf]
    %v5442 = vld [vmem:[%s3 + $0xc4] sm:$0xf]
    %v5443 = vld [vmem:[%s3 + $0xc8] sm:$0xf]
    %v5444 = vld [vmem:[%s3 + $0xcc] sm:$0xf]
    %v5445 = vld [vmem:[%s3 + $0xd0] sm:$0xf]
    %v5446 = vld [vmem:[%s3 + $0xd4] sm:$0xf]
    %v5447 = vld [vmem:[%s3 + $0xd8] sm:$0xf]
    %v5448 = vld [vmem:[%s3 + $0xdc] sm:$0xf]
    %v5449 = vld [vmem:[%s3 + $0xe0] sm:$0xf]
    %v5450 = vld [vmem:[%s3 + $0xe4] sm:$0xf]
    %v5451 = vld [vmem:[%s3 + $0xe8] sm:$0xf]
    %v5452 = vld [vmem:[%s3 + $0xec] sm:$0xf]
    %v5453 = vld [vmem:[%s3 + $0xf0] sm:$0xf]
    %v5454 = vld [vmem:[%s3 + $0xf4] sm:$0xf]
    %v5455 = vld [vmem:[%s3 + $0xf8] sm:$0xf]
    %v5456 = vld [vmem:[%s3 + $0xfc] sm:$0xf]
    %v5457 = vld [vmem:[%s3 + $0x100] sm:$0xf]
    %v5458 = vld [vmem:[%s3 + $0x104] sm:$0xf]
    %v5459 = vld [vmem:[%s3 + $0x108] sm:$0xf]
    %v5460 = vld [vmem:[%s3 + $0x10c] sm:$0xf]
    %v5461 = vld [vmem:[%s3 + $0x110] sm:$0xf]
    %v5462 = vld [vmem:[%s3 + $0x114] sm:$0xf]
    %v5463 = vld [vmem:[%s3 + $0x118] sm:$0xf]
    %v5464 = vld [vmem:[%s3 + $0x11c] sm:$0xf]
    %v5465 = vld [vmem:[%s3 + $0x120] sm:$0xf]
    %v5466 = vld [vmem:[%s3 + $0x124] sm:$0xf]
    %v5467 = vld [vmem:[%s3 + $0x128] sm:$0xf]
    %v5468 = vld [vmem:[%s3 + $0x12c] sm:$0xf]
    %v5469 = vld [vmem:[%s3 + $0x130] sm:$0xf]
    %v5470 = vld [vmem:[%s3 + $0x134] sm:$0xf]
    %v5471 = vld [vmem:[%s3 + $0x138] sm:$0xf]
    %v5472 = vld [vmem:[%s3 + $0x13c] sm:$0xf]
    %v5473 = vld [vmem:[%s3 + $0x140] sm:$0xf]
    %v5474 = vld [vmem:[%s3 + $0x144] sm:$0xf]
    %v5475 = vld [vmem:[%s3 + $0x148] sm:$0xf]
    %v5476 = vld [vmem:[%s3 + $0x14c] sm:$0xf]
    %v5477 = vld [vmem:[%s3 + $0x150] sm:$0xf]
    %v5478 = vld [vmem:[%s3 + $0x154] sm:$0xf]
    %v5479 = vld [vmem:[%s3 + $0x158] sm:$0xf]
    %v5480 = vld [vmem:[%s3 + $0x15c] sm:$0xf]
    %v5481 = vld [vmem:[%s3 + $0x160] sm:$0xf]
    %v5482 = vld [vmem:[%s3 + $0x164] sm:$0xf]
    %v5483 = vld [vmem:[%s3 + $0x168] sm:$0xf]
    %v5484 = vld [vmem:[%s3 + $0x16c] sm:$0xf]
    %v5485 = vld [vmem:[%s3 + $0x170] sm:$0xf]
    %v5486 = vld [vmem:[%s3 + $0x174] sm:$0xf]
    %v5487 = vld [vmem:[%s3 + $0x178] sm:$0xf]
    %v5488 = vld [vmem:[%s3 + $0x17c] sm:$0xf]
    %v5489 = vld [vmem:[%s3 + $0x180] sm:$0xf]
    %v5490 = vld [vmem:[%s3 + $0x184] sm:$0xf]
    %v5491 = vld [vmem:[%s3 + $0x188] sm:$0xf]
    %v5492 = vld [vmem:[%s3 + $0x18c] sm:$0xf]
    %v5493 = vld [vmem:[%s3 + $0x190] sm:$0xf]
    %v5494 = vld [vmem:[%s3 + $0x194] sm:$0xf]
    %v5495 = vld [vmem:[%s3 + $0x198] sm:$0xf]
    %v5496 = vld [vmem:[%s3 + $0x19c] sm:$0xf]
    %v5497 = vld [vmem:[%s3 + $0x1a0] sm:$0xf]
    %v5498 = vld [vmem:[%s3 + $0x1a4] sm:$0xf]
    %v5499 = vld [vmem:[%s3 + $0x1a8] sm:$0xf]
    %v5500 = vld [vmem:[%s3 + $0x1ac] sm:$0xf]
    %v5501 = vld [vmem:[%s3 + $0x1b0] sm:$0xf]
    %v5502 = vld [vmem:[%s3 + $0x1b4] sm:$0xf]
    %v5503 = vld [vmem:[%s3 + $0x1b8] sm:$0xf]
    %v5504 = vld [vmem:[%s3 + $0x1bc] sm:$0xf]
    %v5505 = vld [vmem:[%s3 + $0x1c0] sm:$0xf]
    %v5506 = vld [vmem:[%s3 + $0x1c4] sm:$0xf]
    %v5507 = vld [vmem:[%s3 + $0x1c8] sm:$0xf]
    %v5508 = vld [vmem:[%s3 + $0x1cc] sm:$0xf]
    %v5509 = vld [vmem:[%s3 + $0x1d0] sm:$0xf]
    %v5510 = vld [vmem:[%s3 + $0x1d4] sm:$0xf]
    %v5511 = vld [vmem:[%s3 + $0x1d8] sm:$0xf]
    %v5512 = vld [vmem:[%s3 + $0x1dc] sm:$0xf]
    %v5513 = vld [vmem:[%s3 + $0x1e0] sm:$0xf]
    %v5514 = vld [vmem:[%s3 + $0x1e4] sm:$0xf]
    %v5515 = vld [vmem:[%s3 + $0x1e8] sm:$0xf]
    %v5516 = vld [vmem:[%s3 + $0x1ec] sm:$0xf]
    %v5517 = vld [vmem:[%s3 + $0x1f0] sm:$0xf]
    %v5518 = vld [vmem:[%s3 + $0x1f4] sm:$0xf]
    %v5519 = vld [vmem:[%s3 + $0x1f8] sm:$0xf]
    %v5520 = vld [vmem:[%s3 + $0x1fc] sm:$0xf]
    %v5521 = vld [vmem:[%s3 + $0x200] sm:$0xf]
    %v5522 = vld [vmem:[%s3 + $0x204] sm:$0xf]
    %v5523 = vld [vmem:[%s3 + $0x208] sm:$0xf]
    %v5524 = vld [vmem:[%s3 + $0x20c] sm:$0xf]
    %v5525 = vld [vmem:[%s3 + $0x210] sm:$0xf]
    %v5526 = vld [vmem:[%s3 + $0x214] sm:$0xf]
    %v5527 = vld [vmem:[%s3 + $0x218] sm:$0xf]
    %v5528 = vld [vmem:[%s3 + $0x21c] sm:$0xf]
    %v5529 = vld [vmem:[%s3 + $0x220] sm:$0xf]
    %v5530 = vld [vmem:[%s3 + $0x224] sm:$0xf]
    %v5531 = vld [vmem:[%s3 + $0x228] sm:$0xf]
    %v5532 = vld [vmem:[%s3 + $0x22c] sm:$0xf]
    %v5533 = vld [vmem:[%s3 + $0x230] sm:$0xf]
    %v5534 = vld [vmem:[%s3 + $0x234] sm:$0xf]
    %v5535 = vld [vmem:[%s3 + $0x238] sm:$0xf]
    %v5536 = vld [vmem:[%s3 + $0x23c] sm:$0xf]
    %v5537 = vld [vmem:[%s3 + $0x240] sm:$0xf]
    %v5538 = vld [vmem:[%s3 + $0x244] sm:$0xf]
    %v5539 = vld [vmem:[%s3 + $0x248] sm:$0xf]
    %v5540 = vld [vmem:[%s3 + $0x24c] sm:$0xf]
    %v5541 = vld [vmem:[%s3 + $0x250] sm:$0xf]
    %v5542 = vld [vmem:[%s3 + $0x254] sm:$0xf]
    %v5543 = vld [vmem:[%s3 + $0x258] sm:$0xf]
    %v5544 = vld [vmem:[%s3 + $0x25c] sm:$0xf]
    %v5545 = vld [vmem:[%s3 + $0x260] sm:$0xf]
    %v5546 = vld [vmem:[%s3 + $0x264] sm:$0xf]
    %v5547 = vld [vmem:[%s3 + $0x268] sm:$0xf]
    %v5548 = vld [vmem:[%s3 + $0x26c] sm:$0xf]
    %v5549 = vld [vmem:[%s3 + $0x270] sm:$0xf]
    %v5550 = vld [vmem:[%s3 + $0x274] sm:$0xf]
    %v5551 = vld [vmem:[%s3 + $0x278] sm:$0xf]
    %v5552 = vld [vmem:[%s3 + $0x27c] sm:$0xf]
    %v5553 = vld [vmem:[%s3 + $0x280] sm:$0xf]
    %v5554 = vld [vmem:[%s3 + $0x284] sm:$0xf]
    %v5555 = vld [vmem:[%s3 + $0x288] sm:$0xf]
    %v5556 = vld [vmem:[%s3 + $0x28c] sm:$0xf]
    %v5557 = vld [vmem:[%s3 + $0x290] sm:$0xf]
    %v5558 = vld [vmem:[%s3 + $0x294] sm:$0xf]
    %v5559 = vld [vmem:[%s3 + $0x298] sm:$0xf]
    %v5560 = vld [vmem:[%s3 + $0x29c] sm:$0xf]
    %v5561 = vld [vmem:[%s3 + $0x2a0] sm:$0xf]
    %v5562 = vld [vmem:[%s3 + $0x2a4] sm:$0xf]
    %v5563 = vld [vmem:[%s3 + $0x2a8] sm:$0xf]
    %v5564 = vld [vmem:[%s3 + $0x2ac] sm:$0xf]
    %v5565 = vld [vmem:[%s3 + $0x2b0] sm:$0xf]
    %v5566 = vld [vmem:[%s3 + $0x2b4] sm:$0xf]
    %v5567 = vld [vmem:[%s3 + $0x2b8] sm:$0xf]
    %v5568 = vld [vmem:[%s3 + $0x2bc] sm:$0xf]
    %v5569 = vld [vmem:[%s3 + $0x2c0] sm:$0xf]
    %v5570 = vld [vmem:[%s3 + $0x2c4] sm:$0xf]
    %v5571 = vld [vmem:[%s3 + $0x2c8] sm:$0xf]
    %v5572 = vld [vmem:[%s3 + $0x2cc] sm:$0xf]
    %v5573 = vld [vmem:[%s3 + $0x2d0] sm:$0xf]
    %v5574 = vld [vmem:[%s3 + $0x2d4] sm:$0xf]
    %v5575 = vld [vmem:[%s3 + $0x2d8] sm:$0xf]
    %v5576 = vld [vmem:[%s3 + $0x2dc] sm:$0xf]
    %v5577 = vld [vmem:[%s3 + $0x2e0] sm:$0xf]
    %v5578 = vld [vmem:[%s3 + $0x2e4] sm:$0xf]
    %v5579 = vld [vmem:[%s3 + $0x2e8] sm:$0xf]
    %v5580 = vld [vmem:[%s3 + $0x2ec] sm:$0xf]
    %v5581 = vld [vmem:[%s3 + $0x2f0] sm:$0xf]
    %v5582 = vld [vmem:[%s3 + $0x2f4] sm:$0xf]
    %v5583 = vld [vmem:[%s3 + $0x2f8] sm:$0xf]
    %v5584 = vld [vmem:[%s3 + $0x2fc] sm:$0xf]
    %v5585 = vld [vmem:[%s3 + $0x300] sm:$0xf]
    %v5586 = vld [vmem:[%s3 + $0x304] sm:$0xf]
    %v5587 = vld [vmem:[%s3 + $0x308] sm:$0xf]
    %v5588 = vld [vmem:[%s3 + $0x30c] sm:$0xf]
    %v5589 = vld [vmem:[%s3 + $0x310] sm:$0xf]
    %v5590 = vld [vmem:[%s3 + $0x314] sm:$0xf]
    %v5591 = vld [vmem:[%s3 + $0x318] sm:$0xf]
    %v5592 = vld [vmem:[%s3 + $0x31c] sm:$0xf]
    %v5593 = vld [vmem:[%s3 + $0x320] sm:$0xf]
    %v5594 = vld [vmem:[%s3 + $0x324] sm:$0xf]
    %v5595 = vld [vmem:[%s3 + $0x328] sm:$0xf]
    %v5596 = vld [vmem:[%s3 + $0x32c] sm:$0xf]
    %v5597 = vld [vmem:[%s3 + $0x330] sm:$0xf]
    %v5598 = vld [vmem:[%s3 + $0x334] sm:$0xf]
    %v5599 = vld [vmem:[%s3 + $0x338] sm:$0xf]
    %v5600 = vld [vmem:[%s3 + $0x33c] sm:$0xf]
    %v5601 = vld [vmem:[%s3 + $0x340] sm:$0xf]
    %v5602 = vld [vmem:[%s3 + $0x344] sm:$0xf]
    %v5603 = vld [vmem:[%s3 + $0x348] sm:$0xf]
    %v5604 = vld [vmem:[%s3 + $0x34c] sm:$0xf]
    %v5605 = vld [vmem:[%s3 + $0x350] sm:$0xf]
    %v5606 = vld [vmem:[%s3 + $0x354] sm:$0xf]
    %v5607 = vld [vmem:[%s3 + $0x358] sm:$0xf]
    %v5608 = vld [vmem:[%s3 + $0x35c] sm:$0xf]
    %v5609 = vld [vmem:[%s3 + $0x360] sm:$0xf]
    %v5610 = vld [vmem:[%s3 + $0x364] sm:$0xf]
    %v5611 = vld [vmem:[%s3 + $0x368] sm:$0xf]
    %v5612 = vld [vmem:[%s3 + $0x36c] sm:$0xf]
    %v5613 = vld [vmem:[%s3 + $0x370] sm:$0xf]
    %v5614 = vld [vmem:[%s3 + $0x374] sm:$0xf]
    %v5615 = vld [vmem:[%s3 + $0x378] sm:$0xf]
    %v5616 = vld [vmem:[%s3 + $0x37c] sm:$0xf]
    %v5617 = vld [vmem:[%s3 + $0x380] sm:$0xf]
    %v5618 = vld [vmem:[%s3 + $0x384] sm:$0xf]
    %v5619 = vld [vmem:[%s3 + $0x388] sm:$0xf]
    %v5620 = vld [vmem:[%s3 + $0x38c] sm:$0xf]
    %v5621 = vld [vmem:[%s3 + $0x390] sm:$0xf]
    %v5622 = vld [vmem:[%s3 + $0x394] sm:$0xf]
    %v5623 = vld [vmem:[%s3 + $0x398] sm:$0xf]
    %v5624 = vld [vmem:[%s3 + $0x39c] sm:$0xf]
    %v5625 = vld [vmem:[%s3 + $0x3a0] sm:$0xf]
    %v5626 = vld [vmem:[%s3 + $0x3a4] sm:$0xf]
    %v5627 = vld [vmem:[%s3 + $0x3a8] sm:$0xf]
    %v5628 = vld [vmem:[%s3 + $0x3ac] sm:$0xf]
    %v5629 = vld [vmem:[%s3 + $0x3b0] sm:$0xf]
    %v5630 = vld [vmem:[%s3 + $0x3b4] sm:$0xf]
    %v5631 = vld [vmem:[%s3 + $0x3b8] sm:$0xf]
    %v5632 = vld [vmem:[%s3 + $0x3bc] sm:$0xf]
    %v5633 = vld [vmem:[%s3 + $0x3c0] sm:$0xf]
    %v5634 = vld [vmem:[%s3 + $0x3c4] sm:$0xf]
    %v5635 = vld [vmem:[%s3 + $0x3c8] sm:$0xf]
    %v5636 = vld [vmem:[%s3 + $0x3cc] sm:$0xf]
    %v5637 = vld [vmem:[%s3 + $0x3d0] sm:$0xf]
    %v5638 = vld [vmem:[%s3 + $0x3d4] sm:$0xf]
    %v5639 = vld [vmem:[%s3 + $0x3d8] sm:$0xf]
    %v5640 = vld [vmem:[%s3 + $0x3dc] sm:$0xf]
    %v5641 = vld [vmem:[%s3 + $0x3e0] sm:$0xf]
    %v5642 = vld [vmem:[%s3 + $0x3e4] sm:$0xf]
    %v5643 = vld [vmem:[%s3 + $0x3e8] sm:$0xf]
    %v5644 = vld [vmem:[%s3 + $0x3ec] sm:$0xf]
    %v5645 = vld [vmem:[%s3 + $0x3f0] sm:$0xf]
    %v5646 = vld [vmem:[%s3 + $0x3f4] sm:$0xf]
    %v5647 = vld [vmem:[%s3 + $0x3f8] sm:$0xf]
    %v5648 = vld [vmem:[%s3 + $0x3fc] sm:$0xf]
    %v5649 = vld [vmem:[%s3 + $0x400] sm:$0xf]
    %v5650 = vld [vmem:[%s3 + $0x404] sm:$0xf]
    %v5651 = vld [vmem:[%s3 + $0x408] sm:$0xf]
    %v5652 = vld [vmem:[%s3 + $0x40c] sm:$0xf]
    %v5653 = vld [vmem:[%s3 + $0x410] sm:$0xf]
    %v5654 = vld [vmem:[%s3 + $0x414] sm:$0xf]
    %v5655 = vld [vmem:[%s3 + $0x418] sm:$0xf]
    %v5656 = vld [vmem:[%s3 + $0x41c] sm:$0xf]
    %v5657 = vld [vmem:[%s3 + $0x420] sm:$0xf]
    %v5658 = vld [vmem:[%s3 + $0x424] sm:$0xf]
    %v5659 = vld [vmem:[%s3 + $0x428] sm:$0xf]
    %v5660 = vld [vmem:[%s3 + $0x42c] sm:$0xf]
    %v5661 = vld [vmem:[%s3 + $0x430] sm:$0xf]
    %v5662 = vld [vmem:[%s3 + $0x434] sm:$0xf]
    %v5663 = vld [vmem:[%s3 + $0x438] sm:$0xf]
    %v5664 = vld [vmem:[%s3 + $0x43c] sm:$0xf]
    %v5665 = vld [vmem:[%s3 + $0x440] sm:$0xf]
    %v5666 = vld [vmem:[%s3 + $0x444] sm:$0xf]
    %v5667 = vld [vmem:[%s3 + $0x448] sm:$0xf]
    %v5668 = vld [vmem:[%s3 + $0x44c] sm:$0xf]
    %v5669 = vld [vmem:[%s3 + $0x450] sm:$0xf]
    %v5670 = vld [vmem:[%s3 + $0x454] sm:$0xf]
    %v5671 = vld [vmem:[%s3 + $0x458] sm:$0xf]
    %v5672 = vld [vmem:[%s3 + $0x45c] sm:$0xf]
    %v5673 = vld [vmem:[%s3 + $0x460] sm:$0xf]
    %v5674 = vld [vmem:[%s3 + $0x464] sm:$0xf]
    %v5675 = vld [vmem:[%s3 + $0x468] sm:$0xf]
    %v5676 = vld [vmem:[%s3 + $0x46c] sm:$0xf]
    %v5677 = vld [vmem:[%s3 + $0x470] sm:$0xf]
    %v5678 = vld [vmem:[%s3 + $0x474] sm:$0xf]
    %v5679 = vld [vmem:[%s3 + $0x478] sm:$0xf]
    %v5680 = vld [vmem:[%s3 + $0x47c] sm:$0xf]
    %v5681 = vld [vmem:[%s3 + $0x480] sm:$0xf]
    %v5682 = vld [vmem:[%s3 + $0x484] sm:$0xf]
    %v5683 = vld [vmem:[%s3 + $0x488] sm:$0xf]
    %v5684 = vld [vmem:[%s3 + $0x48c] sm:$0xf]
    %v5685 = vld [vmem:[%s3 + $0x490] sm:$0xf]
    %v5686 = vld [vmem:[%s3 + $0x494] sm:$0xf]
    %v5687 = vld [vmem:[%s3 + $0x498] sm:$0xf]
    %v5688 = vld [vmem:[%s3 + $0x49c] sm:$0xf]
    %v5689 = vld [vmem:[%s3 + $0x4a0] sm:$0xf]
    %v5690 = vld [vmem:[%s3 + $0x4a4] sm:$0xf]
    %v5691 = vld [vmem:[%s3 + $0x4a8] sm:$0xf]
    %v5692 = vld [vmem:[%s3 + $0x4ac] sm:$0xf]
    %v5693 = vld [vmem:[%s3 + $0x4b0] sm:$0xf]
    %v5694 = vld [vmem:[%s3 + $0x4b4] sm:$0xf]
    %v5695 = vld [vmem:[%s3 + $0x4b8] sm:$0xf]
    %v5696 = vld [vmem:[%s3 + $0x4bc] sm:$0xf]
    %v5697 = vld [vmem:[%s3 + $0x4c0] sm:$0xf]
    %v5698 = vld [vmem:[%s3 + $0x4c4] sm:$0xf]
    %v5699 = vld [vmem:[%s3 + $0x4c8] sm:$0xf]
    %v5700 = vld [vmem:[%s3 + $0x4cc] sm:$0xf]
    %v5701 = vld [vmem:[%s3 + $0x4d0] sm:$0xf]
    %v5702 = vld [vmem:[%s3 + $0x4d4] sm:$0xf]
    %v5703 = vld [vmem:[%s3 + $0x4d8] sm:$0xf]
    %v5704 = vld [vmem:[%s3 + $0x4dc] sm:$0xf]
    %v5705 = vld [vmem:[%s3 + $0x4e0] sm:$0xf]
    %v5706 = vld [vmem:[%s3 + $0x4e4] sm:$0xf]
    %v5707 = vld [vmem:[%s3 + $0x4e8] sm:$0xf]
    %v5708 = vld [vmem:[%s3 + $0x4ec] sm:$0xf]
    %v5709 = vld [vmem:[%s3 + $0x4f0] sm:$0xf]
    %v5710 = vld [vmem:[%s3 + $0x4f4] sm:$0xf]
    %v5711 = vld [vmem:[%s3 + $0x4f8] sm:$0xf]
    %v5712 = vld [vmem:[%s3 + $0x4fc] sm:$0xf]
    %v5713 = vld [vmem:[%s3 + $0x500] sm:$0xf]
    %v5714 = vld [vmem:[%s3 + $0x504] sm:$0xf]
    %v5715 = vld [vmem:[%s3 + $0x508] sm:$0xf]
    %v5716 = vld [vmem:[%s3 + $0x50c] sm:$0xf]
    %v5717 = vld [vmem:[%s3 + $0x510] sm:$0xf]
    %v5718 = vld [vmem:[%s3 + $0x514] sm:$0xf]
    %v5719 = vld [vmem:[%s3 + $0x518] sm:$0xf]
    %v5720 = vld [vmem:[%s3 + $0x51c] sm:$0xf]
    %v5721 = vld [vmem:[%s3 + $0x520] sm:$0xf]
    %v5722 = vld [vmem:[%s3 + $0x524] sm:$0xf]
    %v5723 = vld [vmem:[%s3 + $0x528] sm:$0xf]
    %v5724 = vld [vmem:[%s3 + $0x52c] sm:$0xf]
    %v5725 = vld [vmem:[%s3 + $0x530] sm:$0xf]
    %v5726 = vld [vmem:[%s3 + $0x534] sm:$0xf]
    %v5727 = vld [vmem:[%s3 + $0x538] sm:$0xf]
    %v5728 = vld [vmem:[%s3 + $0x53c] sm:$0xf]
    %v5729 = vld [vmem:[%s3 + $0x540] sm:$0xf]
    %v5730 = vld [vmem:[%s3 + $0x544] sm:$0xf]
    %v5731 = vld [vmem:[%s3 + $0x548] sm:$0xf]
    %v5732 = vld [vmem:[%s3 + $0x54c] sm:$0xf]
    %v5733 = vld [vmem:[%s3 + $0x550] sm:$0xf]
    %v5734 = vld [vmem:[%s3 + $0x554] sm:$0xf]
    %v5735 = vld [vmem:[%s3 + $0x558] sm:$0xf]
    %v5736 = vld [vmem:[%s3 + $0x55c] sm:$0xf]
    %v5737 = vld [vmem:[%s3 + $0x560] sm:$0xf]
    %v5738 = vld [vmem:[%s3 + $0x564] sm:$0xf]
    %v5739 = vld [vmem:[%s3 + $0x568] sm:$0xf]
    %v5740 = vld [vmem:[%s3 + $0x56c] sm:$0xf]
    %v5741 = vld [vmem:[%s3 + $0x570] sm:$0xf]
    %v5742 = vld [vmem:[%s3 + $0x574] sm:$0xf]
    %v5743 = vld [vmem:[%s3 + $0x578] sm:$0xf]
    %v5744 = vld [vmem:[%s3 + $0x57c] sm:$0xf]
    %v5745 = vld [vmem:[%s3 + $0x580] sm:$0xf]
    %v5746 = vld [vmem:[%s3 + $0x584] sm:$0xf]
    %v5747 = vld [vmem:[%s3 + $0x588] sm:$0xf]
    %v5748 = vld [vmem:[%s3 + $0x58c] sm:$0xf]
    %v5749 = vld [vmem:[%s3 + $0x590] sm:$0xf]
    %v5750 = vld [vmem:[%s3 + $0x594] sm:$0xf]
    %v5751 = vld [vmem:[%s3 + $0x598] sm:$0xf]
    %v5752 = vld [vmem:[%s3 + $0x59c] sm:$0xf]
    %v5753 = vld [vmem:[%s3 + $0x5a0] sm:$0xf]
    %v5754 = vld [vmem:[%s3 + $0x5a4] sm:$0xf]
    %v5755 = vld [vmem:[%s3 + $0x5a8] sm:$0xf]
    %v5756 = vld [vmem:[%s3 + $0x5ac] sm:$0xf]
    %v5757 = vld [vmem:[%s3 + $0x5b0] sm:$0xf]
    %v5758 = vld [vmem:[%s3 + $0x5b4] sm:$0xf]
    %v5759 = vld [vmem:[%s3 + $0x5b8] sm:$0xf]
    %v5760 = vld [vmem:[%s3 + $0x5bc] sm:$0xf]
    %v5761 = vld [vmem:[%s3 + $0x5c0] sm:$0xf]
    %v5762 = vld [vmem:[%s3 + $0x5c4] sm:$0xf]
    %v5763 = vld [vmem:[%s3 + $0x5c8] sm:$0xf]
    %v5764 = vld [vmem:[%s3 + $0x5cc] sm:$0xf]
    %v5765 = vld [vmem:[%s3 + $0x5d0] sm:$0xf]
    %v5766 = vld [vmem:[%s3 + $0x5d4] sm:$0xf]
    %v5767 = vld [vmem:[%s3 + $0x5d8] sm:$0xf]
    %v5768 = vld [vmem:[%s3 + $0x5dc] sm:$0xf]
    %v5769 = vld [vmem:[%s3 + $0x5e0] sm:$0xf]
    %v5770 = vld [vmem:[%s3 + $0x5e4] sm:$0xf]
    %v5771 = vld [vmem:[%s3 + $0x5e8] sm:$0xf]
    %v5772 = vld [vmem:[%s3 + $0x5ec] sm:$0xf]
    %v5773 = vld [vmem:[%s3 + $0x5f0] sm:$0xf]
    %v5774 = vld [vmem:[%s3 + $0x5f4] sm:$0xf]
    %v5775 = vld [vmem:[%s3 + $0x5f8] sm:$0xf]
    %v5776 = vld [vmem:[%s3 + $0x5fc] sm:$0xf]
    %v5777 = vld [vmem:[%s3 + $0x600] sm:$0xf]
    %v5778 = vld [vmem:[%s3 + $0x604] sm:$0xf]
    %v5779 = vld [vmem:[%s3 + $0x608] sm:$0xf]
    %v5780 = vld [vmem:[%s3 + $0x60c] sm:$0xf]
    %v5781 = vld [vmem:[%s3 + $0x610] sm:$0xf]
    %v5782 = vld [vmem:[%s3 + $0x614] sm:$0xf]
    %v5783 = vld [vmem:[%s3 + $0x618] sm:$0xf]
    %v5784 = vld [vmem:[%s3 + $0x61c] sm:$0xf]
    %v5785 = vld [vmem:[%s3 + $0x620] sm:$0xf]
    %v5786 = vld [vmem:[%s3 + $0x624] sm:$0xf]
    %v5787 = vld [vmem:[%s3 + $0x628] sm:$0xf]
    %v5788 = vld [vmem:[%s3 + $0x62c] sm:$0xf]
    %v5789 = vld [vmem:[%s3 + $0x630] sm:$0xf]
    %v5790 = vld [vmem:[%s3 + $0x634] sm:$0xf]
    %v5791 = vld [vmem:[%s3 + $0x638] sm:$0xf]
    %v5792 = vld [vmem:[%s3 + $0x63c] sm:$0xf]
    %v5793 = vld [vmem:[%s4] sm:$0x1]
    %v5795 = vlaneseq
    %v5796 = vshrl.u32 %v5795, 7
    %v5797 = vsub.s32 0, %v5796
    %v5798 = vrot.slane %v5793, %v5797
    %v6200 = vunpack.c.l.b16 %v5393
    %v6201 = vunpack.c.l.b16 %v5394
    %v6202 = vunpack.c.l.b16 %v5395
    %v6203 = vunpack.c.l.b16 %v5396
    %v6204 = vunpack.c.l.b16 %v5397
    %v6205 = vunpack.c.l.b16 %v5398
    %v6206 = vunpack.c.l.b16 %v5399
    %v6207 = vunpack.c.l.b16 %v5400
    %v6208 = vunpack.c.l.b16 %v5401
    %v6209 = vunpack.c.l.b16 %v5402
    %v6210 = vunpack.c.l.b16 %v5403
    %v6211 = vunpack.c.l.b16 %v5404
    %v6212 = vunpack.c.l.b16 %v5405
    %v6213 = vunpack.c.l.b16 %v5406
    %v6214 = vunpack.c.l.b16 %v5407
    %v6215 = vunpack.c.l.b16 %v5408
    %v6216 = vunpack.c.l.b16 %v5409
    %v6217 = vunpack.c.l.b16 %v5410
    %v6218 = vunpack.c.l.b16 %v5411
    %v6219 = vunpack.c.l.b16 %v5412
    %v6220 = vunpack.c.l.b16 %v5413
    %v6221 = vunpack.c.l.b16 %v5414
    %v6222 = vunpack.c.l.b16 %v5415
    %v6223 = vunpack.c.l.b16 %v5416
    %v6224 = vunpack.c.l.b16 %v5417
    %v6225 = vunpack.c.l.b16 %v5418
    %v6226 = vunpack.c.l.b16 %v5419
    %v6227 = vunpack.c.l.b16 %v5420
    %v6228 = vunpack.c.l.b16 %v5421
    %v6229 = vunpack.c.l.b16 %v5422
    %v6230 = vunpack.c.l.b16 %v5423
    %v6231 = vunpack.c.l.b16 %v5424
    %v6232 = vunpack.c.l.b16 %v5425
    %v6233 = vunpack.c.l.b16 %v5426
    %v6234 = vunpack.c.l.b16 %v5427
    %v6235 = vunpack.c.l.b16 %v5428
    %v6236 = vunpack.c.l.b16 %v5429
    %v6237 = vunpack.c.l.b16 %v5430
    %v6238 = vunpack.c.l.b16 %v5431
    %v6239 = vunpack.c.l.b16 %v5432
    %v6240 = vunpack.c.l.b16 %v5433
    %v6241 = vunpack.c.l.b16 %v5434
    %v6242 = vunpack.c.l.b16 %v5435
    %v6243 = vunpack.c.l.b16 %v5436
    %v6244 = vunpack.c.l.b16 %v5437
    %v6245 = vunpack.c.l.b16 %v5438
    %v6246 = vunpack.c.l.b16 %v5439
    %v6247 = vunpack.c.l.b16 %v5440
    %v6248 = vunpack.c.l.b16 %v5441
    %v6249 = vunpack.c.l.b16 %v5442
    %v6250 = vunpack.c.l.b16 %v5443
    %v6251 = vunpack.c.l.b16 %v5444
    %v6252 = vunpack.c.l.b16 %v5445
    %v6253 = vunpack.c.l.b16 %v5446
    %v6254 = vunpack.c.l.b16 %v5447
    %v6255 = vunpack.c.l.b16 %v5448
    %v6256 = vunpack.c.l.b16 %v5449
    %v6257 = vunpack.c.l.b16 %v5450
    %v6258 = vunpack.c.l.b16 %v5451
    %v6259 = vunpack.c.l.b16 %v5452
    %v6260 = vunpack.c.l.b16 %v5453
    %v6261 = vunpack.c.l.b16 %v5454
    %v6262 = vunpack.c.l.b16 %v5455
    %v6263 = vunpack.c.l.b16 %v5456
    %v6264 = vunpack.c.l.b16 %v5457
    %v6265 = vunpack.c.l.b16 %v5458
    %v6266 = vunpack.c.l.b16 %v5459
    %v6267 = vunpack.c.l.b16 %v5460
    %v6268 = vunpack.c.l.b16 %v5461
    %v6269 = vunpack.c.l.b16 %v5462
    %v6270 = vunpack.c.l.b16 %v5463
    %v6271 = vunpack.c.l.b16 %v5464
    %v6272 = vunpack.c.l.b16 %v5465
    %v6273 = vunpack.c.l.b16 %v5466
    %v6274 = vunpack.c.l.b16 %v5467
    %v6275 = vunpack.c.l.b16 %v5468
    %v6276 = vunpack.c.l.b16 %v5469
    %v6277 = vunpack.c.l.b16 %v5470
    %v6278 = vunpack.c.l.b16 %v5471
    %v6279 = vunpack.c.l.b16 %v5472
    %v6280 = vunpack.c.l.b16 %v5473
    %v6281 = vunpack.c.l.b16 %v5474
    %v6282 = vunpack.c.l.b16 %v5475
    %v6283 = vunpack.c.l.b16 %v5476
    %v6284 = vunpack.c.l.b16 %v5477
    %v6285 = vunpack.c.l.b16 %v5478
    %v6286 = vunpack.c.l.b16 %v5479
    %v6287 = vunpack.c.l.b16 %v5480
    %v6288 = vunpack.c.l.b16 %v5481
    %v6289 = vunpack.c.l.b16 %v5482
    %v6290 = vunpack.c.l.b16 %v5483
    %v6291 = vunpack.c.l.b16 %v5484
    %v6292 = vunpack.c.l.b16 %v5485
    %v6293 = vunpack.c.l.b16 %v5486
    %v6294 = vunpack.c.l.b16 %v5487
    %v6295 = vunpack.c.l.b16 %v5488
    %v6296 = vunpack.c.l.b16 %v5489
    %v6297 = vunpack.c.l.b16 %v5490
    %v6298 = vunpack.c.l.b16 %v5491
    %v6299 = vunpack.c.l.b16 %v5492
    %v6300 = vunpack.c.l.b16 %v5493
    %v6301 = vunpack.c.l.b16 %v5494
    %v6302 = vunpack.c.l.b16 %v5495
    %v6303 = vunpack.c.l.b16 %v5496
    %v6304 = vunpack.c.l.b16 %v5497
    %v6305 = vunpack.c.l.b16 %v5498
    %v6306 = vunpack.c.l.b16 %v5499
    %v6307 = vunpack.c.l.b16 %v5500
    %v6308 = vunpack.c.l.b16 %v5501
    %v6309 = vunpack.c.l.b16 %v5502
    %v6310 = vunpack.c.l.b16 %v5503
    %v6311 = vunpack.c.l.b16 %v5504
    %v6312 = vunpack.c.l.b16 %v5505
    %v6313 = vunpack.c.l.b16 %v5506
    %v6314 = vunpack.c.l.b16 %v5507
    %v6315 = vunpack.c.l.b16 %v5508
    %v6316 = vunpack.c.l.b16 %v5509
    %v6317 = vunpack.c.l.b16 %v5510
    %v6318 = vunpack.c.l.b16 %v5511
    %v6319 = vunpack.c.l.b16 %v5512
    %v6320 = vunpack.c.l.b16 %v5513
    %v6321 = vunpack.c.l.b16 %v5514
    %v6322 = vunpack.c.l.b16 %v5515
    %v6323 = vunpack.c.l.b16 %v5516
    %v6324 = vunpack.c.l.b16 %v5517
    %v6325 = vunpack.c.l.b16 %v5518
    %v6326 = vunpack.c.l.b16 %v5519
    %v6327 = vunpack.c.l.b16 %v5520
    %v6328 = vunpack.c.l.b16 %v5521
    %v6329 = vunpack.c.l.b16 %v5522
    %v6330 = vunpack.c.l.b16 %v5523
    %v6331 = vunpack.c.l.b16 %v5524
    %v6332 = vunpack.c.l.b16 %v5525
    %v6333 = vunpack.c.l.b16 %v5526
    %v6334 = vunpack.c.l.b16 %v5527
    %v6335 = vunpack.c.l.b16 %v5528
    %v6336 = vunpack.c.l.b16 %v5529
    %v6337 = vunpack.c.l.b16 %v5530
    %v6338 = vunpack.c.l.b16 %v5531
    %v6339 = vunpack.c.l.b16 %v5532
    %v6340 = vunpack.c.l.b16 %v5533
    %v6341 = vunpack.c.l.b16 %v5534
    %v6342 = vunpack.c.l.b16 %v5535
    %v6343 = vunpack.c.l.b16 %v5536
    %v6344 = vunpack.c.l.b16 %v5537
    %v6345 = vunpack.c.l.b16 %v5538
    %v6346 = vunpack.c.l.b16 %v5539
    %v6347 = vunpack.c.l.b16 %v5540
    %v6348 = vunpack.c.l.b16 %v5541
    %v6349 = vunpack.c.l.b16 %v5542
    %v6350 = vunpack.c.l.b16 %v5543
    %v6351 = vunpack.c.l.b16 %v5544
    %v6352 = vunpack.c.l.b16 %v5545
    %v6353 = vunpack.c.l.b16 %v5546
    %v6354 = vunpack.c.l.b16 %v5547
    %v6355 = vunpack.c.l.b16 %v5548
    %v6356 = vunpack.c.l.b16 %v5549
    %v6357 = vunpack.c.l.b16 %v5550
    %v6358 = vunpack.c.l.b16 %v5551
    %v6359 = vunpack.c.l.b16 %v5552
    %v6360 = vunpack.c.l.b16 %v5553
    %v6361 = vunpack.c.l.b16 %v5554
    %v6362 = vunpack.c.l.b16 %v5555
    %v6363 = vunpack.c.l.b16 %v5556
    %v6364 = vunpack.c.l.b16 %v5557
    %v6365 = vunpack.c.l.b16 %v5558
    %v6366 = vunpack.c.l.b16 %v5559
    %v6367 = vunpack.c.l.b16 %v5560
    %v6368 = vunpack.c.l.b16 %v5561
    %v6369 = vunpack.c.l.b16 %v5562
    %v6370 = vunpack.c.l.b16 %v5563
    %v6371 = vunpack.c.l.b16 %v5564
    %v6372 = vunpack.c.l.b16 %v5565
    %v6373 = vunpack.c.l.b16 %v5566
    %v6374 = vunpack.c.l.b16 %v5567
    %v6375 = vunpack.c.l.b16 %v5568
    %v6376 = vunpack.c.l.b16 %v5569
    %v6377 = vunpack.c.l.b16 %v5570
    %v6378 = vunpack.c.l.b16 %v5571
    %v6379 = vunpack.c.l.b16 %v5572
    %v6380 = vunpack.c.l.b16 %v5573
    %v6381 = vunpack.c.l.b16 %v5574
    %v6382 = vunpack.c.l.b16 %v5575
    %v6383 = vunpack.c.l.b16 %v5576
    %v6384 = vunpack.c.l.b16 %v5577
    %v6385 = vunpack.c.l.b16 %v5578
    %v6386 = vunpack.c.l.b16 %v5579
    %v6387 = vunpack.c.l.b16 %v5580
    %v6388 = vunpack.c.l.b16 %v5581
    %v6389 = vunpack.c.l.b16 %v5582
    %v6390 = vunpack.c.l.b16 %v5583
    %v6391 = vunpack.c.l.b16 %v5584
    %v6392 = vunpack.c.l.b16 %v5585
    %v6393 = vunpack.c.l.b16 %v5586
    %v6394 = vunpack.c.l.b16 %v5587
    %v6395 = vunpack.c.l.b16 %v5588
    %v6396 = vunpack.c.l.b16 %v5589
    %v6397 = vunpack.c.l.b16 %v5590
    %v6398 = vunpack.c.l.b16 %v5591
    %v6399 = vunpack.c.l.b16 %v5592
    %v6400 = vunpack.c.l.b16 %v5593
    %v6401 = vunpack.c.l.b16 %v5594
    %v6402 = vunpack.c.l.b16 %v5595
    %v6403 = vunpack.c.l.b16 %v5596
    %v6404 = vunpack.c.l.b16 %v5597
    %v6405 = vunpack.c.l.b16 %v5598
    %v6406 = vunpack.c.l.b16 %v5599
    %v6407 = vunpack.c.l.b16 %v5600
    %v6408 = vunpack.c.l.b16 %v5601
    %v6409 = vunpack.c.l.b16 %v5602
    %v6410 = vunpack.c.l.b16 %v5603
    %v6411 = vunpack.c.l.b16 %v5604
    %v6412 = vunpack.c.l.b16 %v5605
    %v6413 = vunpack.c.l.b16 %v5606
    %v6414 = vunpack.c.l.b16 %v5607
    %v6415 = vunpack.c.l.b16 %v5608
    %v6416 = vunpack.c.l.b16 %v5609
    %v6417 = vunpack.c.l.b16 %v5610
    %v6418 = vunpack.c.l.b16 %v5611
    %v6419 = vunpack.c.l.b16 %v5612
    %v6420 = vunpack.c.l.b16 %v5613
    %v6421 = vunpack.c.l.b16 %v5614
    %v6422 = vunpack.c.l.b16 %v5615
    %v6423 = vunpack.c.l.b16 %v5616
    %v6424 = vunpack.c.l.b16 %v5617
    %v6425 = vunpack.c.l.b16 %v5618
    %v6426 = vunpack.c.l.b16 %v5619
    %v6427 = vunpack.c.l.b16 %v5620
    %v6428 = vunpack.c.l.b16 %v5621
    %v6429 = vunpack.c.l.b16 %v5622
    %v6430 = vunpack.c.l.b16 %v5623
    %v6431 = vunpack.c.l.b16 %v5624
    %v6432 = vunpack.c.l.b16 %v5625
    %v6433 = vunpack.c.l.b16 %v5626
    %v6434 = vunpack.c.l.b16 %v5627
    %v6435 = vunpack.c.l.b16 %v5628
    %v6436 = vunpack.c.l.b16 %v5629
    %v6437 = vunpack.c.l.b16 %v5630
    %v6438 = vunpack.c.l.b16 %v5631
    %v6439 = vunpack.c.l.b16 %v5632
    %v6440 = vunpack.c.l.b16 %v5633
    %v6441 = vunpack.c.l.b16 %v5634
    %v6442 = vunpack.c.l.b16 %v5635
    %v6443 = vunpack.c.l.b16 %v5636
    %v6444 = vunpack.c.l.b16 %v5637
    %v6445 = vunpack.c.l.b16 %v5638
    %v6446 = vunpack.c.l.b16 %v5639
    %v6447 = vunpack.c.l.b16 %v5640
    %v6448 = vunpack.c.l.b16 %v5641
    %v6449 = vunpack.c.l.b16 %v5642
    %v6450 = vunpack.c.l.b16 %v5643
    %v6451 = vunpack.c.l.b16 %v5644
    %v6452 = vunpack.c.l.b16 %v5645
    %v6453 = vunpack.c.l.b16 %v5646
    %v6454 = vunpack.c.l.b16 %v5647
    %v6455 = vunpack.c.l.b16 %v5648
    %v6456 = vunpack.c.l.b16 %v5649
    %v6457 = vunpack.c.l.b16 %v5650
    %v6458 = vunpack.c.l.b16 %v5651
    %v6459 = vunpack.c.l.b16 %v5652
    %v6460 = vunpack.c.l.b16 %v5653
    %v6461 = vunpack.c.l.b16 %v5654
    %v6462 = vunpack.c.l.b16 %v5655
    %v6463 = vunpack.c.l.b16 %v5656
    %v6464 = vunpack.c.l.b16 %v5657
    %v6465 = vunpack.c.l.b16 %v5658
    %v6466 = vunpack.c.l.b16 %v5659
    %v6467 = vunpack.c.l.b16 %v5660
    %v6468 = vunpack.c.l.b16 %v5661
    %v6469 = vunpack.c.l.b16 %v5662
    %v6470 = vunpack.c.l.b16 %v5663
    %v6471 = vunpack.c.l.b16 %v5664
    %v6472 = vunpack.c.l.b16 %v5665
    %v6473 = vunpack.c.l.b16 %v5666
    %v6474 = vunpack.c.l.b16 %v5667
    %v6475 = vunpack.c.l.b16 %v5668
    %v6476 = vunpack.c.l.b16 %v5669
    %v6477 = vunpack.c.l.b16 %v5670
    %v6478 = vunpack.c.l.b16 %v5671
    %v6479 = vunpack.c.l.b16 %v5672
    %v6480 = vunpack.c.l.b16 %v5673
    %v6481 = vunpack.c.l.b16 %v5674
    %v6482 = vunpack.c.l.b16 %v5675
    %v6483 = vunpack.c.l.b16 %v5676
    %v6484 = vunpack.c.l.b16 %v5677
    %v6485 = vunpack.c.l.b16 %v5678
    %v6486 = vunpack.c.l.b16 %v5679
    %v6487 = vunpack.c.l.b16 %v5680
    %v6488 = vunpack.c.l.b16 %v5681
    %v6489 = vunpack.c.l.b16 %v5682
    %v6490 = vunpack.c.l.b16 %v5683
    %v6491 = vunpack.c.l.b16 %v5684
    %v6492 = vunpack.c.l.b16 %v5685
    %v6493 = vunpack.c.l.b16 %v5686
    %v6494 = vunpack.c.l.b16 %v5687
    %v6495 = vunpack.c.l.b16 %v5688
    %v6496 = vunpack.c.l.b16 %v5689
    %v6497 = vunpack.c.l.b16 %v5690
    %v6498 = vunpack.c.l.b16 %v5691
    %v6499 = vunpack.c.l.b16 %v5692
    %v6500 = vunpack.c.l.b16 %v5693
    %v6501 = vunpack.c.l.b16 %v5694
    %v6502 = vunpack.c.l.b16 %v5695
    %v6503 = vunpack.c.l.b16 %v5696
    %v6504 = vunpack.c.l.b16 %v5697
    %v6505 = vunpack.c.l.b16 %v5698
    %v6506 = vunpack.c.l.b16 %v5699
    %v6507 = vunpack.c.l.b16 %v5700
    %v6508 = vunpack.c.l.b16 %v5701
    %v6509 = vunpack.c.l.b16 %v5702
    %v6510 = vunpack.c.l.b16 %v5703
    %v6511 = vunpack.c.l.b16 %v5704
    %v6512 = vunpack.c.l.b16 %v5705
    %v6513 = vunpack.c.l.b16 %v5706
    %v6514 = vunpack.c.l.b16 %v5707
    %v6515 = vunpack.c.l.b16 %v5708
    %v6516 = vunpack.c.l.b16 %v5709
    %v6517 = vunpack.c.l.b16 %v5710
    %v6518 = vunpack.c.l.b16 %v5711
    %v6519 = vunpack.c.l.b16 %v5712
    %v6520 = vunpack.c.l.b16 %v5713
    %v6521 = vunpack.c.l.b16 %v5714
    %v6522 = vunpack.c.l.b16 %v5715
    %v6523 = vunpack.c.l.b16 %v5716
    %v6524 = vunpack.c.l.b16 %v5717
    %v6525 = vunpack.c.l.b16 %v5718
    %v6526 = vunpack.c.l.b16 %v5719
    %v6527 = vunpack.c.l.b16 %v5720
    %v6528 = vunpack.c.l.b16 %v5721
    %v6529 = vunpack.c.l.b16 %v5722
    %v6530 = vunpack.c.l.b16 %v5723
    %v6531 = vunpack.c.l.b16 %v5724
    %v6532 = vunpack.c.l.b16 %v5725
    %v6533 = vunpack.c.l.b16 %v5726
    %v6534 = vunpack.c.l.b16 %v5727
    %v6535 = vunpack.c.l.b16 %v5728
    %v6536 = vunpack.c.l.b16 %v5729
    %v6537 = vunpack.c.l.b16 %v5730
    %v6538 = vunpack.c.l.b16 %v5731
    %v6539 = vunpack.c.l.b16 %v5732
    %v6540 = vunpack.c.l.b16 %v5733
    %v6541 = vunpack.c.l.b16 %v5734
    %v6542 = vunpack.c.l.b16 %v5735
    %v6543 = vunpack.c.l.b16 %v5736
    %v6544 = vunpack.c.l.b16 %v5737
    %v6545 = vunpack.c.l.b16 %v5738
    %v6546 = vunpack.c.l.b16 %v5739
    %v6547 = vunpack.c.l.b16 %v5740
    %v6548 = vunpack.c.l.b16 %v5741
    %v6549 = vunpack.c.l.b16 %v5742
    %v6550 = vunpack.c.l.b16 %v5743
    %v6551 = vunpack.c.l.b16 %v5744
    %v6552 = vunpack.c.l.b16 %v5745
    %v6553 = vunpack.c.l.b16 %v5746
    %v6554 = vunpack.c.l.b16 %v5747
    %v6555 = vunpack.c.l.b16 %v5748
    %v6556 = vunpack.c.l.b16 %v5749
    %v6557 = vunpack.c.l.b16 %v5750
    %v6558 = vunpack.c.l.b16 %v5751
    %v6559 = vunpack.c.l.b16 %v5752
    %v6560 = vunpack.c.l.b16 %v5753
    %v6561 = vunpack.c.l.b16 %v5754
    %v6562 = vunpack.c.l.b16 %v5755
    %v6563 = vunpack.c.l.b16 %v5756
    %v6564 = vunpack.c.l.b16 %v5757
    %v6565 = vunpack.c.l.b16 %v5758
    %v6566 = vunpack.c.l.b16 %v5759
    %v6567 = vunpack.c.l.b16 %v5760
    %v6568 = vunpack.c.l.b16 %v5761
    %v6569 = vunpack.c.l.b16 %v5762
    %v6570 = vunpack.c.l.b16 %v5763
    %v6571 = vunpack.c.l.b16 %v5764
    %v6572 = vunpack.c.l.b16 %v5765
    %v6573 = vunpack.c.l.b16 %v5766
    %v6574 = vunpack.c.l.b16 %v5767
    %v6575 = vunpack.c.l.b16 %v5768
    %v6576 = vunpack.c.l.b16 %v5769
    %v6577 = vunpack.c.l.b16 %v5770
    %v6578 = vunpack.c.l.b16 %v5771
    %v6579 = vunpack.c.l.b16 %v5772
    %v6580 = vunpack.c.l.b16 %v5773
    %v6581 = vunpack.c.l.b16 %v5774
    %v6582 = vunpack.c.l.b16 %v5775
    %v6583 = vunpack.c.l.b16 %v5776
    %v6584 = vunpack.c.l.b16 %v5777
    %v6585 = vunpack.c.l.b16 %v5778
    %v6586 = vunpack.c.l.b16 %v5779
    %v6587 = vunpack.c.l.b16 %v5780
    %v6588 = vunpack.c.l.b16 %v5781
    %v6589 = vunpack.c.l.b16 %v5782
    %v6590 = vunpack.c.l.b16 %v5783
    %v6591 = vunpack.c.l.b16 %v5784
    %v6592 = vunpack.c.l.b16 %v5785
    %v6593 = vunpack.c.l.b16 %v5786
    %v6594 = vunpack.c.l.b16 %v5787
    %v6595 = vunpack.c.l.b16 %v5788
    %v6596 = vunpack.c.l.b16 %v5789
    %v6597 = vunpack.c.l.b16 %v5790
    %v6598 = vunpack.c.l.b16 %v5791
    %v6599 = vunpack.c.l.b16 %v5792
    %v6600 = vpack.c.b16 %v6201, %v6200
    %v6601 = vpack.c.b16 %v6203, %v6202
    %v6602 = vpack.c.b16 %v6205, %v6204
    %v6603 = vpack.c.b16 %v6207, %v6206
    %v6604 = vpack.c.b16 %v6209, %v6208
    %v6605 = vpack.c.b16 %v6211, %v6210
    %v6606 = vpack.c.b16 %v6213, %v6212
    %v6607 = vpack.c.b16 %v6215, %v6214
    %v6608 = vpack.c.b16 %v6217, %v6216
    %v6609 = vpack.c.b16 %v6219, %v6218
    %v6610 = vpack.c.b16 %v6221, %v6220
    %v6611 = vpack.c.b16 %v6223, %v6222
    %v6612 = vpack.c.b16 %v6225, %v6224
    %v6613 = vpack.c.b16 %v6227, %v6226
    %v6614 = vpack.c.b16 %v6229, %v6228
    %v6615 = vpack.c.b16 %v6231, %v6230
    %v6616 = vpack.c.b16 %v6233, %v6232
    %v6617 = vpack.c.b16 %v6235, %v6234
    %v6618 = vpack.c.b16 %v6237, %v6236
    %v6619 = vpack.c.b16 %v6239, %v6238
    %v6620 = vpack.c.b16 %v6241, %v6240
    %v6621 = vpack.c.b16 %v6243, %v6242
    %v6622 = vpack.c.b16 %v6245, %v6244
    %v6623 = vpack.c.b16 %v6247, %v6246
    %v6624 = vpack.c.b16 %v6249, %v6248
    %v6625 = vpack.c.b16 %v6251, %v6250
    %v6626 = vpack.c.b16 %v6253, %v6252
    %v6627 = vpack.c.b16 %v6255, %v6254
    %v6628 = vpack.c.b16 %v6257, %v6256
    %v6629 = vpack.c.b16 %v6259, %v6258
    %v6630 = vpack.c.b16 %v6261, %v6260
    %v6631 = vpack.c.b16 %v6263, %v6262
    %v6632 = vpack.c.b16 %v6265, %v6264
    %v6633 = vpack.c.b16 %v6267, %v6266
    %v6634 = vpack.c.b16 %v6269, %v6268
    %v6635 = vpack.c.b16 %v6271, %v6270
    %v6636 = vpack.c.b16 %v6273, %v6272
    %v6637 = vpack.c.b16 %v6275, %v6274
    %v6638 = vpack.c.b16 %v6277, %v6276
    %v6639 = vpack.c.b16 %v6279, %v6278
    %v6640 = vpack.c.b16 %v6281, %v6280
    %v6641 = vpack.c.b16 %v6283, %v6282
    %v6642 = vpack.c.b16 %v6285, %v6284
    %v6643 = vpack.c.b16 %v6287, %v6286
    %v6644 = vpack.c.b16 %v6289, %v6288
    %v6645 = vpack.c.b16 %v6291, %v6290
    %v6646 = vpack.c.b16 %v6293, %v6292
    %v6647 = vpack.c.b16 %v6295, %v6294
    %v6648 = vpack.c.b16 %v6297, %v6296
    %v6649 = vpack.c.b16 %v6299, %v6298
    %v6650 = vpack.c.b16 %v6301, %v6300
    %v6651 = vpack.c.b16 %v6303, %v6302
    %v6652 = vpack.c.b16 %v6305, %v6304
    %v6653 = vpack.c.b16 %v6307, %v6306
    %v6654 = vpack.c.b16 %v6309, %v6308
    %v6655 = vpack.c.b16 %v6311, %v6310
    %v6656 = vpack.c.b16 %v6313, %v6312
    %v6657 = vpack.c.b16 %v6315, %v6314
    %v6658 = vpack.c.b16 %v6317, %v6316
    %v6659 = vpack.c.b16 %v6319, %v6318
    %v6660 = vpack.c.b16 %v6321, %v6320
    %v6661 = vpack.c.b16 %v6323, %v6322
    %v6662 = vpack.c.b16 %v6325, %v6324
    %v6663 = vpack.c.b16 %v6327, %v6326
    %v6664 = vpack.c.b16 %v6329, %v6328
    %v6665 = vpack.c.b16 %v6331, %v6330
    %v6666 = vpack.c.b16 %v6333, %v6332
    %v6667 = vpack.c.b16 %v6335, %v6334
    %v6668 = vpack.c.b16 %v6337, %v6336
    %v6669 = vpack.c.b16 %v6339, %v6338
    %v6670 = vpack.c.b16 %v6341, %v6340
    %v6671 = vpack.c.b16 %v6343, %v6342
    %v6672 = vpack.c.b16 %v6345, %v6344
    %v6673 = vpack.c.b16 %v6347, %v6346
    %v6674 = vpack.c.b16 %v6349, %v6348
    %v6675 = vpack.c.b16 %v6351, %v6350
    %v6676 = vpack.c.b16 %v6353, %v6352
    %v6677 = vpack.c.b16 %v6355, %v6354
    %v6678 = vpack.c.b16 %v6357, %v6356
    %v6679 = vpack.c.b16 %v6359, %v6358
    %v6680 = vpack.c.b16 %v6361, %v6360
    %v6681 = vpack.c.b16 %v6363, %v6362
    %v6682 = vpack.c.b16 %v6365, %v6364
    %v6683 = vpack.c.b16 %v6367, %v6366
    %v6684 = vpack.c.b16 %v6369, %v6368
    %v6685 = vpack.c.b16 %v6371, %v6370
    %v6686 = vpack.c.b16 %v6373, %v6372
    %v6687 = vpack.c.b16 %v6375, %v6374
    %v6688 = vpack.c.b16 %v6377, %v6376
    %v6689 = vpack.c.b16 %v6379, %v6378
    %v6690 = vpack.c.b16 %v6381, %v6380
    %v6691 = vpack.c.b16 %v6383, %v6382
    %v6692 = vpack.c.b16 %v6385, %v6384
    %v6693 = vpack.c.b16 %v6387, %v6386
    %v6694 = vpack.c.b16 %v6389, %v6388
    %v6695 = vpack.c.b16 %v6391, %v6390
    %v6696 = vpack.c.b16 %v6393, %v6392
    %v6697 = vpack.c.b16 %v6395, %v6394
    %v6698 = vpack.c.b16 %v6397, %v6396
    %v6699 = vpack.c.b16 %v6399, %v6398
    %v6700 = vpack.c.b16 %v6401, %v6400
    %v6701 = vpack.c.b16 %v6403, %v6402
    %v6702 = vpack.c.b16 %v6405, %v6404
    %v6703 = vpack.c.b16 %v6407, %v6406
    %v6704 = vpack.c.b16 %v6409, %v6408
    %v6705 = vpack.c.b16 %v6411, %v6410
    %v6706 = vpack.c.b16 %v6413, %v6412
    %v6707 = vpack.c.b16 %v6415, %v6414
    %v6708 = vpack.c.b16 %v6417, %v6416
    %v6709 = vpack.c.b16 %v6419, %v6418
    %v6710 = vpack.c.b16 %v6421, %v6420
    %v6711 = vpack.c.b16 %v6423, %v6422
    %v6712 = vpack.c.b16 %v6425, %v6424
    %v6713 = vpack.c.b16 %v6427, %v6426
    %v6714 = vpack.c.b16 %v6429, %v6428
    %v6715 = vpack.c.b16 %v6431, %v6430
    %v6716 = vpack.c.b16 %v6433, %v6432
    %v6717 = vpack.c.b16 %v6435, %v6434
    %v6718 = vpack.c.b16 %v6437, %v6436
    %v6719 = vpack.c.b16 %v6439, %v6438
    %v6720 = vpack.c.b16 %v6441, %v6440
    %v6721 = vpack.c.b16 %v6443, %v6442
    %v6722 = vpack.c.b16 %v6445, %v6444
    %v6723 = vpack.c.b16 %v6447, %v6446
    %v6724 = vpack.c.b16 %v6449, %v6448
    %v6725 = vpack.c.b16 %v6451, %v6450
    %v6726 = vpack.c.b16 %v6453, %v6452
    %v6727 = vpack.c.b16 %v6455, %v6454
    %v6728 = vpack.c.b16 %v6457, %v6456
    %v6729 = vpack.c.b16 %v6459, %v6458
    %v6730 = vpack.c.b16 %v6461, %v6460
    %v6731 = vpack.c.b16 %v6463, %v6462
    %v6732 = vpack.c.b16 %v6465, %v6464
    %v6733 = vpack.c.b16 %v6467, %v6466
    %v6734 = vpack.c.b16 %v6469, %v6468
    %v6735 = vpack.c.b16 %v6471, %v6470
    %v6736 = vpack.c.b16 %v6473, %v6472
    %v6737 = vpack.c.b16 %v6475, %v6474
    %v6738 = vpack.c.b16 %v6477, %v6476
    %v6739 = vpack.c.b16 %v6479, %v6478
    %v6740 = vpack.c.b16 %v6481, %v6480
    %v6741 = vpack.c.b16 %v6483, %v6482
    %v6742 = vpack.c.b16 %v6485, %v6484
    %v6743 = vpack.c.b16 %v6487, %v6486
    %v6744 = vpack.c.b16 %v6489, %v6488
    %v6745 = vpack.c.b16 %v6491, %v6490
    %v6746 = vpack.c.b16 %v6493, %v6492
    %v6747 = vpack.c.b16 %v6495, %v6494
    %v6748 = vpack.c.b16 %v6497, %v6496
    %v6749 = vpack.c.b16 %v6499, %v6498
    %v6750 = vpack.c.b16 %v6501, %v6500
    %v6751 = vpack.c.b16 %v6503, %v6502
    %v6752 = vpack.c.b16 %v6505, %v6504
    %v6753 = vpack.c.b16 %v6507, %v6506
    %v6754 = vpack.c.b16 %v6509, %v6508
    %v6755 = vpack.c.b16 %v6511, %v6510
    %v6756 = vpack.c.b16 %v6513, %v6512
    %v6757 = vpack.c.b16 %v6515, %v6514
    %v6758 = vpack.c.b16 %v6517, %v6516
    %v6759 = vpack.c.b16 %v6519, %v6518
    %v6760 = vpack.c.b16 %v6521, %v6520
    %v6761 = vpack.c.b16 %v6523, %v6522
    %v6762 = vpack.c.b16 %v6525, %v6524
    %v6763 = vpack.c.b16 %v6527, %v6526
    %v6764 = vpack.c.b16 %v6529, %v6528
    %v6765 = vpack.c.b16 %v6531, %v6530
    %v6766 = vpack.c.b16 %v6533, %v6532
    %v6767 = vpack.c.b16 %v6535, %v6534
    %v6768 = vpack.c.b16 %v6537, %v6536
    %v6769 = vpack.c.b16 %v6539, %v6538
    %v6770 = vpack.c.b16 %v6541, %v6540
    %v6771 = vpack.c.b16 %v6543, %v6542
    %v6772 = vpack.c.b16 %v6545, %v6544
    %v6773 = vpack.c.b16 %v6547, %v6546
    %v6774 = vpack.c.b16 %v6549, %v6548
    %v6775 = vpack.c.b16 %v6551, %v6550
    %v6776 = vpack.c.b16 %v6553, %v6552
    %v6777 = vpack.c.b16 %v6555, %v6554
    %v6778 = vpack.c.b16 %v6557, %v6556
    %v6779 = vpack.c.b16 %v6559, %v6558
    %v6780 = vpack.c.b16 %v6561, %v6560
    %v6781 = vpack.c.b16 %v6563, %v6562
    %v6782 = vpack.c.b16 %v6565, %v6564
    %v6783 = vpack.c.b16 %v6567, %v6566
    %v6784 = vpack.c.b16 %v6569, %v6568
    %v6785 = vpack.c.b16 %v6571, %v6570
    %v6786 = vpack.c.b16 %v6573, %v6572
    %v6787 = vpack.c.b16 %v6575, %v6574
    %v6788 = vpack.c.b16 %v6577, %v6576
    %v6789 = vpack.c.b16 %v6579, %v6578
    %v6790 = vpack.c.b16 %v6581, %v6580
    %v6791 = vpack.c.b16 %v6583, %v6582
    %v6792 = vpack.c.b16 %v6585, %v6584
    %v6793 = vpack.c.b16 %v6587, %v6586
    %v6794 = vpack.c.b16 %v6589, %v6588
    %v6795 = vpack.c.b16 %v6591, %v6590
    %v6796 = vpack.c.b16 %v6593, %v6592
    %v6797 = vpack.c.b16 %v6595, %v6594
    %v6798 = vpack.c.b16 %v6597, %v6596
    %v6799 = vpack.c.b16 %v6599, %v6598
    %7000 = vmatprep.subr.bf16.mxu0 0
    %7001 = vmatpush1.bf16.msra.mxu0 %v6607
    %7002 = vmatprep.subr.bf16.mxu0 0
    %7003 = vmatpush1.bf16.msra.mxu0 %v6606
    %7004 = vmatprep.subr.bf16.mxu0 0
    %7005 = vmatpush1.bf16.msra.mxu0 %v6605
    %7006 = vmatprep.subr.bf16.mxu0 0
    %7007 = vmatpush1.bf16.msra.mxu0 %v6604
    %7008 = vmatprep.subr.bf16.mxu0 0
    %7009 = vmatpush1.bf16.msra.mxu0 %v6603
    %7010 = vmatprep.subr.bf16.mxu0 0
    %7011 = vmatpush1.bf16.msra.mxu0 %v6602
    %7012 = vmatprep.subr.bf16.mxu0 0
    %7013 = vmatpush1.bf16.msra.mxu0 %v6601
    %7014 = vmatprep.subr.bf16.mxu0 0
    %7015 = vmatpush1.bf16.msra.mxu0 %v6600
    %7016 = vmatprep.subr.bf16.mxu0 0
    %7017 = vmatpush2.bf16.msra.mxu0 %v6615
    %7018 = vmatprep.subr.bf16.mxu0 0
    %7019 = vmatpush2.bf16.msra.mxu0 %v6614
    %7020 = vmatprep.subr.bf16.mxu0 0
    %7021 = vmatpush2.bf16.msra.mxu0 %v6613
    %7022 = vmatprep.subr.bf16.mxu0 0
    %7023 = vmatpush2.bf16.msra.mxu0 %v6612
    %7024 = vmatprep.subr.bf16.mxu0 0
    %7025 = vmatpush2.bf16.msra.mxu0 %v6611
    %7026 = vmatprep.subr.bf16.mxu0 0
    %7027 = vmatpush2.bf16.msra.mxu0 %v6610
    %7028 = vmatprep.subr.bf16.mxu0 0
    %7029 = vmatpush2.bf16.msra.mxu0 %v6609
    %7030 = vmatprep.subr.bf16.mxu0 0
    %7031 = vmatpush2.bf16.msra.mxu0 %v6608
    %7032 = vmatprep.mubr.bf16.mxu0 %v2047
    %7033 = vmatmul.mubr.bf16.gmra.mxu0 %v1996
    %v7034 = vpop.f32.mrf.mxu0
    %v7035 = vadd.f32 %v5798, %v7034
    %v7036 = vpop.f32.mrf.mxu0
    %v7037 = vpop.f32.mrf.mxu0
    %v7038 = vadd.f32 %v5798, %v7037
    %v7039 = vpop.f32.mrf.mxu0
    %7040 = vmatprep.mubr.bf16.mxu0 %v2055
    %7041 = vmatmul.mubr.bf16.gmra.mxu0 %v1997
    %v7042 = vpop.f32.mrf.mxu0
    %v7043 = vadd.f32 %v5798, %v7042
    %v7044 = vpop.f32.mrf.mxu0
    %v7045 = vpop.f32.mrf.mxu0
    %v7046 = vadd.f32 %v5798, %v7045
    %v7047 = vpop.f32.mrf.mxu0
    %7048 = vmatprep.mubr.bf16.mxu0 %v2063
    %7049 = vmatmul.mubr.bf16.gmra.mxu0 %v1998
    %v7050 = vpop.f32.mrf.mxu0
    %v7051 = vadd.f32 %v5798, %v7050
    %v7052 = vpop.f32.mrf.mxu0
    %v7053 = vpop.f32.mrf.mxu0
    %v7054 = vadd.f32 %v5798, %v7053
    %v7055 = vpop.f32.mrf.mxu0
    %7056 = vmatprep.mubr.bf16.mxu0 %v2071
    %7057 = vmatmul.mubr.bf16.gmra.mxu0 %v1999
    %v7058 = vpop.f32.mrf.mxu0
    %v7059 = vadd.f32 %v5798, %v7058
    %v7060 = vpop.f32.mrf.mxu0
    %v7061 = vpop.f32.mrf.mxu0
    %v7062 = vadd.f32 %v5798, %v7061
    %v7063 = vpop.f32.mrf.mxu0
    %7064 = vmatprep.mubr.bf16.mxu0 %v2079
    %7065 = vmatmul.mubr.bf16.gmra.mxu0 %v2000
    %v7066 = vpop.f32.mrf.mxu0
    %v7067 = vadd.f32 %v5798, %v7066
    %v7068 = vpop.f32.mrf.mxu0
    %v7069 = vpop.f32.mrf.mxu0
    %v7070 = vadd.f32 %v5798, %v7069
    %v7071 = vpop.f32.mrf.mxu0
    %7072 = vmatprep.mubr.bf16.mxu0 %v2087
    %7073 = vmatmul.mubr.bf16.gmra.mxu0 %v2001
    %v7074 = vpop.f32.mrf.mxu0
    %v7075 = vadd.f32 %v5798, %v7074
    %v7076 = vpop.f32.mrf.mxu0
    %v7077 = vpop.f32.mrf.mxu0
    %v7078 = vadd.f32 %v5798, %v7077
    %v7079 = vpop.f32.mrf.mxu0
    %7080 = vmatprep.mubr.bf16.mxu0 %v2095
    %7081 = vmatmul.mubr.bf16.gmra.mxu0 %v2002
    %v7082 = vpop.f32.mrf.mxu0
    %v7083 = vadd.f32 %v5798, %v7082
    %v7084 = vpop.f32.mrf.mxu0
    %v7085 = vpop.f32.mrf.mxu0
    %v7086 = vadd.f32 %v5798, %v7085
    %v7087 = vpop.f32.mrf.mxu0
    %7088 = vmatprep.mubr.bf16.mxu0 %v2103
    %7089 = vmatmul.mubr.bf16.gmra.mxu0 %v2003
    %v7090 = vpop.f32.mrf.mxu0
    %v7091 = vadd.f32 %v5798, %v7090
    %v7092 = vpop.f32.mrf.mxu0
    %v7093 = vpop.f32.mrf.mxu0
    %v7094 = vadd.f32 %v5798, %v7093
    %v7095 = vpop.f32.mrf.mxu0
    %7096 = vmatprep.mubr.bf16.mxu0 %v2111
    %7097 = vmatmul.mubr.bf16.gmra.mxu0 %v2004
    %v7098 = vpop.f32.mrf.mxu0
    %v7099 = vadd.f32 %v5798, %v7098
    %v7100 = vpop.f32.mrf.mxu0
    %v7101 = vpop.f32.mrf.mxu0
    %v7102 = vadd.f32 %v5798, %v7101
    %v7103 = vpop.f32.mrf.mxu0
    %7104 = vmatprep.mubr.bf16.mxu0 %v2119
    %7105 = vmatmul.mubr.bf16.gmra.mxu0 %v2005
    %v7106 = vpop.f32.mrf.mxu0
    %v7107 = vadd.f32 %v5798, %v7106
    %v7108 = vpop.f32.mrf.mxu0
    %v7109 = vpop.f32.mrf.mxu0
    %v7110 = vadd.f32 %v5798, %v7109
    %v7111 = vpop.f32.mrf.mxu0
    %7112 = vmatprep.mubr.bf16.mxu0 %v2127
    %7113 = vmatmul.mubr.bf16.gmra.mxu0 %v2006
    %v7114 = vpop.f32.mrf.mxu0
    %v7115 = vadd.f32 %v5798, %v7114
    %v7116 = vpop.f32.mrf.mxu0
    %v7117 = vpop.f32.mrf.mxu0
    %v7118 = vadd.f32 %v5798, %v7117
    %v7119 = vpop.f32.mrf.mxu0
    %7120 = vmatprep.mubr.bf16.mxu0 %v2135
    %7121 = vmatmul.mubr.bf16.gmra.mxu0 %v2007
    %v7122 = vpop.f32.mrf.mxu0
    %v7123 = vadd.f32 %v5798, %v7122
    %v7124 = vpop.f32.mrf.mxu0
    %v7125 = vpop.f32.mrf.mxu0
    %v7126 = vadd.f32 %v5798, %v7125
    %v7127 = vpop.f32.mrf.mxu0
    %7128 = vmatprep.mubr.bf16.mxu0 %v2143
    %7129 = vmatmul.mubr.bf16.gmra.mxu0 %v2008
    %v7130 = vpop.f32.mrf.mxu0
    %v7131 = vadd.f32 %v5798, %v7130
    %v7132 = vpop.f32.mrf.mxu0
    %v7133 = vpop.f32.mrf.mxu0
    %v7134 = vadd.f32 %v5798, %v7133
    %v7135 = vpop.f32.mrf.mxu0
    %7136 = vmatprep.mubr.bf16.mxu0 %v2151
    %7137 = vmatmul.mubr.bf16.gmra.mxu0 %v2009
    %v7138 = vpop.f32.mrf.mxu0
    %v7139 = vadd.f32 %v5798, %v7138
    %v7140 = vpop.f32.mrf.mxu0
    %v7141 = vpop.f32.mrf.mxu0
    %v7142 = vadd.f32 %v5798, %v7141
    %v7143 = vpop.f32.mrf.mxu0
    %7144 = vmatprep.mubr.bf16.mxu0 %v2159
    %7145 = vmatmul.mubr.bf16.gmra.mxu0 %v2010
    %v7146 = vpop.f32.mrf.mxu0
    %v7147 = vadd.f32 %v5798, %v7146
    %v7148 = vpop.f32.mrf.mxu0
    %v7149 = vpop.f32.mrf.mxu0
    %v7150 = vadd.f32 %v5798, %v7149
    %v7151 = vpop.f32.mrf.mxu0
    %7152 = vmatprep.mubr.bf16.mxu0 %v2167
    %7153 = vmatmul.mubr.bf16.gmra.mxu0 %v2011
    %v7154 = vpop.f32.mrf.mxu0
    %v7155 = vadd.f32 %v5798, %v7154
    %v7156 = vpop.f32.mrf.mxu0
    %v7157 = vpop.f32.mrf.mxu0
    %v7158 = vadd.f32 %v5798, %v7157
    %v7159 = vpop.f32.mrf.mxu0
    %7160 = vmatprep.mubr.bf16.mxu0 %v2175
    %7161 = vmatmul.mubr.bf16.gmra.mxu0 %v2012
    %v7162 = vpop.f32.mrf.mxu0
    %v7163 = vadd.f32 %v5798, %v7162
    %v7164 = vpop.f32.mrf.mxu0
    %v7165 = vpop.f32.mrf.mxu0
    %v7166 = vadd.f32 %v5798, %v7165
    %v7167 = vpop.f32.mrf.mxu0
    %7168 = vmatprep.mubr.bf16.mxu0 %v2183
    %7169 = vmatmul.mubr.bf16.gmra.mxu0 %v2013
    %v7170 = vpop.f32.mrf.mxu0
    %v7171 = vadd.f32 %v5798, %v7170
    %v7172 = vpop.f32.mrf.mxu0
    %v7173 = vpop.f32.mrf.mxu0
    %v7174 = vadd.f32 %v5798, %v7173
    %v7175 = vpop.f32.mrf.mxu0
    %7176 = vdwg.mxu0
    %7177 = vmatprep.subr.bf16.mxu0 0
    %7178 = vmatpush1.bf16.msra.mxu0 %v6623
    %7179 = vmatprep.subr.bf16.mxu0 0
    %7180 = vmatpush1.bf16.msra.mxu0 %v6622
    %7181 = vmatprep.subr.bf16.mxu0 0
    %7182 = vmatpush1.bf16.msra.mxu0 %v6621
    %7183 = vmatprep.subr.bf16.mxu0 0
    %7184 = vmatpush1.bf16.msra.mxu0 %v6620
    %7185 = vmatprep.subr.bf16.mxu0 0
    %7186 = vmatpush1.bf16.msra.mxu0 %v6619
    %7187 = vmatprep.subr.bf16.mxu0 0
    %7188 = vmatpush1.bf16.msra.mxu0 %v6618
    %7189 = vmatprep.subr.bf16.mxu0 0
    %7190 = vmatpush1.bf16.msra.mxu0 %v6617
    %7191 = vmatprep.subr.bf16.mxu0 0
    %7192 = vmatpush1.bf16.msra.mxu0 %v6616
    %7193 = vmatprep.subr.bf16.mxu0 0
    %7194 = vmatpush2.bf16.msra.mxu0 %v6631
    %7195 = vmatprep.subr.bf16.mxu0 0
    %7196 = vmatpush2.bf16.msra.mxu0 %v6630
    %7197 = vmatprep.subr.bf16.mxu0 0
    %7198 = vmatpush2.bf16.msra.mxu0 %v6629
    %7199 = vmatprep.subr.bf16.mxu0 0
    %7200 = vmatpush2.bf16.msra.mxu0 %v6628
    %7201 = vmatprep.subr.bf16.mxu0 0
    %7202 = vmatpush2.bf16.msra.mxu0 %v6627
    %7203 = vmatprep.subr.bf16.mxu0 0
    %7204 = vmatpush2.bf16.msra.mxu0 %v6626
    %7205 = vmatprep.subr.bf16.mxu0 0
    %7206 = vmatpush2.bf16.msra.mxu0 %v6625
    %7207 = vmatprep.subr.bf16.mxu0 0
    %7208 = vmatpush2.bf16.msra.mxu0 %v6624
    %7209 = vmatprep.mubr.bf16.mxu0 %v2276
    %7210 = vmatmul.mubr.bf16.gmra.mxu0 %v2208
    %v7211 = vpop.f32.mrf.mxu0
    %v7212 = vadd.f32 %v7035, %v7211
    %v7213 = vpop.f32.mrf.mxu0
    %v7214 = vpop.f32.mrf.mxu0
    %v7215 = vadd.f32 %v7038, %v7214
    %v7216 = vpop.f32.mrf.mxu0
    %7217 = vmatprep.mubr.bf16.mxu0 %v2280
    %7218 = vmatmul.mubr.bf16.gmra.mxu0 %v2210
    %v7219 = vpop.f32.mrf.mxu0
    %v7220 = vadd.f32 %v7043, %v7219
    %v7221 = vpop.f32.mrf.mxu0
    %v7222 = vpop.f32.mrf.mxu0
    %v7223 = vadd.f32 %v7046, %v7222
    %v7224 = vpop.f32.mrf.mxu0
    %7225 = vmatprep.mubr.bf16.mxu0 %v2284
    %7226 = vmatmul.mubr.bf16.gmra.mxu0 %v2212
    %v7227 = vpop.f32.mrf.mxu0
    %v7228 = vadd.f32 %v7051, %v7227
    %v7229 = vpop.f32.mrf.mxu0
    %v7230 = vpop.f32.mrf.mxu0
    %v7231 = vadd.f32 %v7054, %v7230
    %v7232 = vpop.f32.mrf.mxu0
    %7233 = vmatprep.mubr.bf16.mxu0 %v2288
    %7234 = vmatmul.mubr.bf16.gmra.mxu0 %v2214
    %v7235 = vpop.f32.mrf.mxu0
    %v7236 = vadd.f32 %v7059, %v7235
    %v7237 = vpop.f32.mrf.mxu0
    %v7238 = vpop.f32.mrf.mxu0
    %v7239 = vadd.f32 %v7062, %v7238
    %v7240 = vpop.f32.mrf.mxu0
    %7241 = vmatprep.mubr.bf16.mxu0 %v2292
    %7242 = vmatmul.mubr.bf16.gmra.mxu0 %v2216
    %v7243 = vpop.f32.mrf.mxu0
    %v7244 = vadd.f32 %v7067, %v7243
    %v7245 = vpop.f32.mrf.mxu0
    %v7246 = vpop.f32.mrf.mxu0
    %v7247 = vadd.f32 %v7070, %v7246
    %v7248 = vpop.f32.mrf.mxu0
    %7249 = vmatprep.mubr.bf16.mxu0 %v2296
    %7250 = vmatmul.mubr.bf16.gmra.mxu0 %v2218
    %v7251 = vpop.f32.mrf.mxu0
    %v7252 = vadd.f32 %v7075, %v7251
    %v7253 = vpop.f32.mrf.mxu0
    %v7254 = vpop.f32.mrf.mxu0
    %v7255 = vadd.f32 %v7078, %v7254
    %v7256 = vpop.f32.mrf.mxu0
    %7257 = vmatprep.mubr.bf16.mxu0 %v2300
    %7258 = vmatmul.mubr.bf16.gmra.mxu0 %v2220
    %v7259 = vpop.f32.mrf.mxu0
    %v7260 = vadd.f32 %v7083, %v7259
    %v7261 = vpop.f32.mrf.mxu0
    %v7262 = vpop.f32.mrf.mxu0
    %v7263 = vadd.f32 %v7086, %v7262
    %v7264 = vpop.f32.mrf.mxu0
    %7265 = vmatprep.mubr.bf16.mxu0 %v2304
    %7266 = vmatmul.mubr.bf16.gmra.mxu0 %v2222
    %v7267 = vpop.f32.mrf.mxu0
    %v7268 = vadd.f32 %v7091, %v7267
    %v7269 = vpop.f32.mrf.mxu0
    %v7270 = vpop.f32.mrf.mxu0
    %v7271 = vadd.f32 %v7094, %v7270
    %v7272 = vpop.f32.mrf.mxu0
    %7273 = vmatprep.mubr.bf16.mxu0 %v2308
    %7274 = vmatmul.mubr.bf16.gmra.mxu0 %v2224
    %v7275 = vpop.f32.mrf.mxu0
    %v7276 = vadd.f32 %v7099, %v7275
    %v7277 = vpop.f32.mrf.mxu0
    %v7278 = vpop.f32.mrf.mxu0
    %v7279 = vadd.f32 %v7102, %v7278
    %v7280 = vpop.f32.mrf.mxu0
    %7281 = vmatprep.mubr.bf16.mxu0 %v2312
    %7282 = vmatmul.mubr.bf16.gmra.mxu0 %v2226
    %v7283 = vpop.f32.mrf.mxu0
    %v7284 = vadd.f32 %v7107, %v7283
    %v7285 = vpop.f32.mrf.mxu0
    %v7286 = vpop.f32.mrf.mxu0
    %v7287 = vadd.f32 %v7110, %v7286
    %v7288 = vpop.f32.mrf.mxu0
    %7289 = vmatprep.mubr.bf16.mxu0 %v2316
    %7290 = vmatmul.mubr.bf16.gmra.mxu0 %v2228
    %v7291 = vpop.f32.mrf.mxu0
    %v7292 = vadd.f32 %v7115, %v7291
    %v7293 = vpop.f32.mrf.mxu0
    %v7294 = vpop.f32.mrf.mxu0
    %v7295 = vadd.f32 %v7118, %v7294
    %v7296 = vpop.f32.mrf.mxu0
    %7297 = vmatprep.mubr.bf16.mxu0 %v2320
    %7298 = vmatmul.mubr.bf16.gmra.mxu0 %v2230
    %v7299 = vpop.f32.mrf.mxu0
    %v7300 = vadd.f32 %v7123, %v7299
    %v7301 = vpop.f32.mrf.mxu0
    %v7302 = vpop.f32.mrf.mxu0
    %v7303 = vadd.f32 %v7126, %v7302
    %v7304 = vpop.f32.mrf.mxu0
    %7305 = vmatprep.mubr.bf16.mxu0 %v2324
    %7306 = vmatmul.mubr.bf16.gmra.mxu0 %v2232
    %v7307 = vpop.f32.mrf.mxu0
    %v7308 = vadd.f32 %v7131, %v7307
    %v7309 = vpop.f32.mrf.mxu0
    %v7310 = vpop.f32.mrf.mxu0
    %v7311 = vadd.f32 %v7134, %v7310
    %v7312 = vpop.f32.mrf.mxu0
    %7313 = vmatprep.mubr.bf16.mxu0 %v2328
    %7314 = vmatmul.mubr.bf16.gmra.mxu0 %v2234
    %v7315 = vpop.f32.mrf.mxu0
    %v7316 = vadd.f32 %v7139, %v7315
    %v7317 = vpop.f32.mrf.mxu0
    %v7318 = vpop.f32.mrf.mxu0
    %v7319 = vadd.f32 %v7142, %v7318
    %v7320 = vpop.f32.mrf.mxu0
    %7321 = vmatprep.mubr.bf16.mxu0 %v2332
    %7322 = vmatmul.mubr.bf16.gmra.mxu0 %v2236
    %v7323 = vpop.f32.mrf.mxu0
    %v7324 = vadd.f32 %v7147, %v7323
    %v7325 = vpop.f32.mrf.mxu0
    %v7326 = vpop.f32.mrf.mxu0
    %v7327 = vadd.f32 %v7150, %v7326
    %v7328 = vpop.f32.mrf.mxu0
    %7329 = vmatprep.mubr.bf16.mxu0 %v2336
    %7330 = vmatmul.mubr.bf16.gmra.mxu0 %v2238
    %v7331 = vpop.f32.mrf.mxu0
    %v7332 = vadd.f32 %v7155, %v7331
    %v7333 = vpop.f32.mrf.mxu0
    %v7334 = vpop.f32.mrf.mxu0
    %v7335 = vadd.f32 %v7158, %v7334
    %v7336 = vpop.f32.mrf.mxu0
    %7337 = vmatprep.mubr.bf16.mxu0 %v2340
    %7338 = vmatmul.mubr.bf16.gmra.mxu0 %v2240
    %v7339 = vpop.f32.mrf.mxu0
    %v7340 = vadd.f32 %v7163, %v7339
    %v7341 = vpop.f32.mrf.mxu0
    %v7342 = vpop.f32.mrf.mxu0
    %v7343 = vadd.f32 %v7166, %v7342
    %v7344 = vpop.f32.mrf.mxu0
    %7345 = vmatprep.mubr.bf16.mxu0 %v2349
    %7346 = vmatmul.mubr.bf16.gmra.mxu0 %v2242
    %v7347 = vpop.f32.mrf.mxu0
    %v7348 = vadd.f32 %v7171, %v7347
    %v7349 = vpop.f32.mrf.mxu0
    %v7350 = vpop.f32.mrf.mxu0
    %v7351 = vadd.f32 %v7174, %v7350
    %v7352 = vpop.f32.mrf.mxu0
    %7353 = vdwg.mxu0
    %7354 = vmatprep.subr.bf16.mxu0 0
    %7355 = vmatpush1.bf16.msra.mxu0 %v6639
    %7356 = vmatprep.subr.bf16.mxu0 0
    %7357 = vmatpush1.bf16.msra.mxu0 %v6638
    %7358 = vmatprep.subr.bf16.mxu0 0
    %7359 = vmatpush1.bf16.msra.mxu0 %v6637
    %7360 = vmatprep.subr.bf16.mxu0 0
    %7361 = vmatpush1.bf16.msra.mxu0 %v6636
    %7362 = vmatprep.subr.bf16.mxu0 0
    %7363 = vmatpush1.bf16.msra.mxu0 %v6635
    %7364 = vmatprep.subr.bf16.mxu0 0
    %7365 = vmatpush1.bf16.msra.mxu0 %v6634
    %7366 = vmatprep.subr.bf16.mxu0 0
    %7367 = vmatpush1.bf16.msra.mxu0 %v6633
    %7368 = vmatprep.subr.bf16.mxu0 0
    %7369 = vmatpush1.bf16.msra.mxu0 %v6632
    %7370 = vmatprep.subr.bf16.mxu0 0
    %7371 = vmatpush2.bf16.msra.mxu0 %v6647
    %7372 = vmatprep.subr.bf16.mxu0 0
    %7373 = vmatpush2.bf16.msra.mxu0 %v6646
    %7374 = vmatprep.subr.bf16.mxu0 0
    %7375 = vmatpush2.bf16.msra.mxu0 %v6645
    %7376 = vmatprep.subr.bf16.mxu0 0
    %7377 = vmatpush2.bf16.msra.mxu0 %v6644
    %7378 = vmatprep.subr.bf16.mxu0 0
    %7379 = vmatpush2.bf16.msra.mxu0 %v6643
    %7380 = vmatprep.subr.bf16.mxu0 0
    %7381 = vmatpush2.bf16.msra.mxu0 %v6642
    %7382 = vmatprep.subr.bf16.mxu0 0
    %7383 = vmatpush2.bf16.msra.mxu0 %v6641
    %7384 = vmatprep.subr.bf16.mxu0 0
    %7385 = vmatpush2.bf16.msra.mxu0 %v6640
    %7386 = vmatprep.mubr.bf16.mxu0 %v2454
    %7387 = vmatmul.mubr.bf16.gmra.mxu0 %v2374
    %v7388 = vpop.f32.mrf.mxu0
    %v7389 = vadd.f32 %v7212, %v7388
    %v7390 = vpop.f32.mrf.mxu0
    %v7391 = vpop.f32.mrf.mxu0
    %v7392 = vadd.f32 %v7215, %v7391
    %v7393 = vpop.f32.mrf.mxu0
    %7394 = vmatprep.mubr.bf16.mxu0 %v2456
    %7395 = vmatmul.mubr.bf16.gmra.mxu0 %v2376
    %v7396 = vpop.f32.mrf.mxu0
    %v7397 = vadd.f32 %v7220, %v7396
    %v7398 = vpop.f32.mrf.mxu0
    %v7399 = vpop.f32.mrf.mxu0
    %v7400 = vadd.f32 %v7223, %v7399
    %v7401 = vpop.f32.mrf.mxu0
    %7402 = vmatprep.mubr.bf16.mxu0 %v2458
    %7403 = vmatmul.mubr.bf16.gmra.mxu0 %v2378
    %v7404 = vpop.f32.mrf.mxu0
    %v7405 = vadd.f32 %v7228, %v7404
    %v7406 = vpop.f32.mrf.mxu0
    %v7407 = vpop.f32.mrf.mxu0
    %v7408 = vadd.f32 %v7231, %v7407
    %v7409 = vpop.f32.mrf.mxu0
    %7410 = vmatprep.mubr.bf16.mxu0 %v2460
    %7411 = vmatmul.mubr.bf16.gmra.mxu0 %v2380
    %v7412 = vpop.f32.mrf.mxu0
    %v7413 = vadd.f32 %v7236, %v7412
    %v7414 = vpop.f32.mrf.mxu0
    %v7415 = vpop.f32.mrf.mxu0
    %v7416 = vadd.f32 %v7239, %v7415
    %v7417 = vpop.f32.mrf.mxu0
    %7418 = vmatprep.mubr.bf16.mxu0 %v2462
    %7419 = vmatmul.mubr.bf16.gmra.mxu0 %v2382
    %v7420 = vpop.f32.mrf.mxu0
    %v7421 = vadd.f32 %v7244, %v7420
    %v7422 = vpop.f32.mrf.mxu0
    %v7423 = vpop.f32.mrf.mxu0
    %v7424 = vadd.f32 %v7247, %v7423
    %v7425 = vpop.f32.mrf.mxu0
    %7426 = vmatprep.mubr.bf16.mxu0 %v2464
    %7427 = vmatmul.mubr.bf16.gmra.mxu0 %v2384
    %v7428 = vpop.f32.mrf.mxu0
    %v7429 = vadd.f32 %v7252, %v7428
    %v7430 = vpop.f32.mrf.mxu0
    %v7431 = vpop.f32.mrf.mxu0
    %v7432 = vadd.f32 %v7255, %v7431
    %v7433 = vpop.f32.mrf.mxu0
    %7434 = vmatprep.mubr.bf16.mxu0 %v2466
    %7435 = vmatmul.mubr.bf16.gmra.mxu0 %v2386
    %v7436 = vpop.f32.mrf.mxu0
    %v7437 = vadd.f32 %v7260, %v7436
    %v7438 = vpop.f32.mrf.mxu0
    %v7439 = vpop.f32.mrf.mxu0
    %v7440 = vadd.f32 %v7263, %v7439
    %v7441 = vpop.f32.mrf.mxu0
    %7442 = vmatprep.mubr.bf16.mxu0 %v2468
    %7443 = vmatmul.mubr.bf16.gmra.mxu0 %v2388
    %v7444 = vpop.f32.mrf.mxu0
    %v7445 = vadd.f32 %v7268, %v7444
    %v7446 = vpop.f32.mrf.mxu0
    %v7447 = vpop.f32.mrf.mxu0
    %v7448 = vadd.f32 %v7271, %v7447
    %v7449 = vpop.f32.mrf.mxu0
    %7450 = vmatprep.mubr.bf16.mxu0 %v2470
    %7451 = vmatmul.mubr.bf16.gmra.mxu0 %v2390
    %v7452 = vpop.f32.mrf.mxu0
    %v7453 = vadd.f32 %v7276, %v7452
    %v7454 = vpop.f32.mrf.mxu0
    %v7455 = vpop.f32.mrf.mxu0
    %v7456 = vadd.f32 %v7279, %v7455
    %v7457 = vpop.f32.mrf.mxu0
    %7458 = vmatprep.mubr.bf16.mxu0 %v2472
    %7459 = vmatmul.mubr.bf16.gmra.mxu0 %v2392
    %v7460 = vpop.f32.mrf.mxu0
    %v7461 = vadd.f32 %v7284, %v7460
    %v7462 = vpop.f32.mrf.mxu0
    %v7463 = vpop.f32.mrf.mxu0
    %v7464 = vadd.f32 %v7287, %v7463
    %v7465 = vpop.f32.mrf.mxu0
    %7466 = vmatprep.mubr.bf16.mxu0 %v2474
    %7467 = vmatmul.mubr.bf16.gmra.mxu0 %v2394
    %v7468 = vpop.f32.mrf.mxu0
    %v7469 = vadd.f32 %v7292, %v7468
    %v7470 = vpop.f32.mrf.mxu0
    %v7471 = vpop.f32.mrf.mxu0
    %v7472 = vadd.f32 %v7295, %v7471
    %v7473 = vpop.f32.mrf.mxu0
    %7474 = vmatprep.mubr.bf16.mxu0 %v2476
    %7475 = vmatmul.mubr.bf16.gmra.mxu0 %v2396
    %v7476 = vpop.f32.mrf.mxu0
    %v7477 = vadd.f32 %v7300, %v7476
    %v7478 = vpop.f32.mrf.mxu0
    %v7479 = vpop.f32.mrf.mxu0
    %v7480 = vadd.f32 %v7303, %v7479
    %v7481 = vpop.f32.mrf.mxu0
    %7482 = vmatprep.mubr.bf16.mxu0 %v2478
    %7483 = vmatmul.mubr.bf16.gmra.mxu0 %v2398
    %v7484 = vpop.f32.mrf.mxu0
    %v7485 = vadd.f32 %v7308, %v7484
    %v7486 = vpop.f32.mrf.mxu0
    %v7487 = vpop.f32.mrf.mxu0
    %v7488 = vadd.f32 %v7311, %v7487
    %v7489 = vpop.f32.mrf.mxu0
    %7490 = vmatprep.mubr.bf16.mxu0 %v2480
    %7491 = vmatmul.mubr.bf16.gmra.mxu0 %v2400
    %v7492 = vpop.f32.mrf.mxu0
    %v7493 = vadd.f32 %v7316, %v7492
    %v7494 = vpop.f32.mrf.mxu0
    %v7495 = vpop.f32.mrf.mxu0
    %v7496 = vadd.f32 %v7319, %v7495
    %v7497 = vpop.f32.mrf.mxu0
    %7498 = vmatprep.mubr.bf16.mxu0 %v2482
    %7499 = vmatmul.mubr.bf16.gmra.mxu0 %v2402
    %v7500 = vpop.f32.mrf.mxu0
    %v7501 = vadd.f32 %v7324, %v7500
    %v7502 = vpop.f32.mrf.mxu0
    %v7503 = vpop.f32.mrf.mxu0
    %v7504 = vadd.f32 %v7327, %v7503
    %v7505 = vpop.f32.mrf.mxu0
    %7506 = vmatprep.mubr.bf16.mxu0 %v2484
    %7507 = vmatmul.mubr.bf16.gmra.mxu0 %v2404
    %v7508 = vpop.f32.mrf.mxu0
    %v7509 = vadd.f32 %v7332, %v7508
    %v7510 = vpop.f32.mrf.mxu0
    %v7511 = vpop.f32.mrf.mxu0
    %v7512 = vadd.f32 %v7335, %v7511
    %v7513 = vpop.f32.mrf.mxu0
    %7514 = vmatprep.mubr.bf16.mxu0 %v2486
    %7515 = vmatmul.mubr.bf16.gmra.mxu0 %v2406
    %v7516 = vpop.f32.mrf.mxu0
    %v7517 = vadd.f32 %v7340, %v7516
    %v7518 = vpop.f32.mrf.mxu0
    %v7519 = vpop.f32.mrf.mxu0
    %v7520 = vadd.f32 %v7343, %v7519
    %v7521 = vpop.f32.mrf.mxu0
    %7522 = vmatprep.mubr.bf16.mxu0 %v2488
    %7523 = vmatmul.mubr.bf16.gmra.mxu0 %v2408
    %v7524 = vpop.f32.mrf.mxu0
    %v7525 = vadd.f32 %v7348, %v7524
    %v7526 = vpop.f32.mrf.mxu0
    %v7527 = vpop.f32.mrf.mxu0
    %v7528 = vadd.f32 %v7351, %v7527
    %v7529 = vpop.f32.mrf.mxu0
    %7530 = vdwg.mxu0
    %7531 = vmatprep.subr.bf16.mxu0 0
    %7532 = vmatpush1.bf16.msra.mxu0 %v6655
    %7533 = vmatprep.subr.bf16.mxu0 0
    %7534 = vmatpush1.bf16.msra.mxu0 %v6654
    %7535 = vmatprep.subr.bf16.mxu0 0
    %7536 = vmatpush1.bf16.msra.mxu0 %v6653
    %7537 = vmatprep.subr.bf16.mxu0 0
    %7538 = vmatpush1.bf16.msra.mxu0 %v6652
    %7539 = vmatprep.subr.bf16.mxu0 0
    %7540 = vmatpush1.bf16.msra.mxu0 %v6651
    %7541 = vmatprep.subr.bf16.mxu0 0
    %7542 = vmatpush1.bf16.msra.mxu0 %v6650
    %7543 = vmatprep.subr.bf16.mxu0 0
    %7544 = vmatpush1.bf16.msra.mxu0 %v6649
    %7545 = vmatprep.subr.bf16.mxu0 0
    %7546 = vmatpush1.bf16.msra.mxu0 %v6648
    %7547 = vmatprep.subr.bf16.mxu0 0
    %7548 = vmatpush2.bf16.msra.mxu0 %v6663
    %7549 = vmatprep.subr.bf16.mxu0 0
    %7550 = vmatpush2.bf16.msra.mxu0 %v6662
    %7551 = vmatprep.subr.bf16.mxu0 0
    %7552 = vmatpush2.bf16.msra.mxu0 %v6661
    %7553 = vmatprep.subr.bf16.mxu0 0
    %7554 = vmatpush2.bf16.msra.mxu0 %v6660
    %7555 = vmatprep.subr.bf16.mxu0 0
    %7556 = vmatpush2.bf16.msra.mxu0 %v6659
    %7557 = vmatprep.subr.bf16.mxu0 0
    %7558 = vmatpush2.bf16.msra.mxu0 %v6658
    %7559 = vmatprep.subr.bf16.mxu0 0
    %7560 = vmatpush2.bf16.msra.mxu0 %v6657
    %7561 = vmatprep.subr.bf16.mxu0 0
    %7562 = vmatpush2.bf16.msra.mxu0 %v6656
    %7563 = vmatprep.mubr.bf16.mxu0 %v2705
    %7564 = vmatmul.mubr.bf16.gmra.mxu0 %v2527
    %v7565 = vpop.f32.mrf.mxu0
    %v7566 = vadd.f32 %v7389, %v7565
    %v7567 = vpop.f32.mrf.mxu0
    %v7568 = vpop.f32.mrf.mxu0
    %v7569 = vadd.f32 %v7392, %v7568
    %v7570 = vpop.f32.mrf.mxu0
    %7571 = vmatprep.mubr.bf16.mxu0 %v2707
    %7572 = vmatmul.mubr.bf16.gmra.mxu0 %v2536
    %v7573 = vpop.f32.mrf.mxu0
    %v7574 = vadd.f32 %v7397, %v7573
    %v7575 = vpop.f32.mrf.mxu0
    %v7576 = vpop.f32.mrf.mxu0
    %v7577 = vadd.f32 %v7400, %v7576
    %v7578 = vpop.f32.mrf.mxu0
    %7579 = vmatprep.mubr.bf16.mxu0 %v2709
    %7580 = vmatmul.mubr.bf16.gmra.mxu0 %v2545
    %v7581 = vpop.f32.mrf.mxu0
    %v7582 = vadd.f32 %v7405, %v7581
    %v7583 = vpop.f32.mrf.mxu0
    %v7584 = vpop.f32.mrf.mxu0
    %v7585 = vadd.f32 %v7408, %v7584
    %v7586 = vpop.f32.mrf.mxu0
    %7587 = vmatprep.mubr.bf16.mxu0 %v2711
    %7588 = vmatmul.mubr.bf16.gmra.mxu0 %v2554
    %v7589 = vpop.f32.mrf.mxu0
    %v7590 = vadd.f32 %v7413, %v7589
    %v7591 = vpop.f32.mrf.mxu0
    %v7592 = vpop.f32.mrf.mxu0
    %v7593 = vadd.f32 %v7416, %v7592
    %v7594 = vpop.f32.mrf.mxu0
    %7595 = vmatprep.mubr.bf16.mxu0 %v2713
    %7596 = vmatmul.mubr.bf16.gmra.mxu0 %v2563
    %v7597 = vpop.f32.mrf.mxu0
    %v7598 = vadd.f32 %v7421, %v7597
    %v7599 = vpop.f32.mrf.mxu0
    %v7600 = vpop.f32.mrf.mxu0
    %v7601 = vadd.f32 %v7424, %v7600
    %v7602 = vpop.f32.mrf.mxu0
    %7603 = vmatprep.mubr.bf16.mxu0 %v2715
    %7604 = vmatmul.mubr.bf16.gmra.mxu0 %v2572
    %v7605 = vpop.f32.mrf.mxu0
    %v7606 = vadd.f32 %v7429, %v7605
    %v7607 = vpop.f32.mrf.mxu0
    %v7608 = vpop.f32.mrf.mxu0
    %v7609 = vadd.f32 %v7432, %v7608
    %v7610 = vpop.f32.mrf.mxu0
    %7611 = vmatprep.mubr.bf16.mxu0 %v2717
    %7612 = vmatmul.mubr.bf16.gmra.mxu0 %v2581
    %v7613 = vpop.f32.mrf.mxu0
    %v7614 = vadd.f32 %v7437, %v7613
    %v7615 = vpop.f32.mrf.mxu0
    %v7616 = vpop.f32.mrf.mxu0
    %v7617 = vadd.f32 %v7440, %v7616
    %v7618 = vpop.f32.mrf.mxu0
    %7619 = vmatprep.mubr.bf16.mxu0 %v2719
    %7620 = vmatmul.mubr.bf16.gmra.mxu0 %v2590
    %v7621 = vpop.f32.mrf.mxu0
    %v7622 = vadd.f32 %v7445, %v7621
    %v7623 = vpop.f32.mrf.mxu0
    %v7624 = vpop.f32.mrf.mxu0
    %v7625 = vadd.f32 %v7448, %v7624
    %v7626 = vpop.f32.mrf.mxu0
    %7627 = vmatprep.mubr.bf16.mxu0 %v2721
    %7628 = vmatmul.mubr.bf16.gmra.mxu0 %v2599
    %v7629 = vpop.f32.mrf.mxu0
    %v7630 = vadd.f32 %v7453, %v7629
    %v7631 = vpop.f32.mrf.mxu0
    %v7632 = vpop.f32.mrf.mxu0
    %v7633 = vadd.f32 %v7456, %v7632
    %v7634 = vpop.f32.mrf.mxu0
    %7635 = vmatprep.mubr.bf16.mxu0 %v2723
    %7636 = vmatmul.mubr.bf16.gmra.mxu0 %v2608
    %v7637 = vpop.f32.mrf.mxu0
    %v7638 = vadd.f32 %v7461, %v7637
    %v7639 = vpop.f32.mrf.mxu0
    %v7640 = vpop.f32.mrf.mxu0
    %v7641 = vadd.f32 %v7464, %v7640
    %v7642 = vpop.f32.mrf.mxu0
    %7643 = vmatprep.mubr.bf16.mxu0 %v2725
    %7644 = vmatmul.mubr.bf16.gmra.mxu0 %v2617
    %v7645 = vpop.f32.mrf.mxu0
    %v7646 = vadd.f32 %v7469, %v7645
    %v7647 = vpop.f32.mrf.mxu0
    %v7648 = vpop.f32.mrf.mxu0
    %v7649 = vadd.f32 %v7472, %v7648
    %v7650 = vpop.f32.mrf.mxu0
    %7651 = vmatprep.mubr.bf16.mxu0 %v2727
    %7652 = vmatmul.mubr.bf16.gmra.mxu0 %v2626
    %v7653 = vpop.f32.mrf.mxu0
    %v7654 = vadd.f32 %v7477, %v7653
    %v7655 = vpop.f32.mrf.mxu0
    %v7656 = vpop.f32.mrf.mxu0
    %v7657 = vadd.f32 %v7480, %v7656
    %v7658 = vpop.f32.mrf.mxu0
    %7659 = vmatprep.mubr.bf16.mxu0 %v2729
    %7660 = vmatmul.mubr.bf16.gmra.mxu0 %v2635
    %v7661 = vpop.f32.mrf.mxu0
    %v7662 = vadd.f32 %v7485, %v7661
    %v7663 = vpop.f32.mrf.mxu0
    %v7664 = vpop.f32.mrf.mxu0
    %v7665 = vadd.f32 %v7488, %v7664
    %v7666 = vpop.f32.mrf.mxu0
    %7667 = vmatprep.mubr.bf16.mxu0 %v2731
    %7668 = vmatmul.mubr.bf16.gmra.mxu0 %v2644
    %v7669 = vpop.f32.mrf.mxu0
    %v7670 = vadd.f32 %v7493, %v7669
    %v7671 = vpop.f32.mrf.mxu0
    %v7672 = vpop.f32.mrf.mxu0
    %v7673 = vadd.f32 %v7496, %v7672
    %v7674 = vpop.f32.mrf.mxu0
    %7675 = vmatprep.mubr.bf16.mxu0 %v2733
    %7676 = vmatmul.mubr.bf16.gmra.mxu0 %v2653
    %v7677 = vpop.f32.mrf.mxu0
    %v7678 = vadd.f32 %v7501, %v7677
    %v7679 = vpop.f32.mrf.mxu0
    %v7680 = vpop.f32.mrf.mxu0
    %v7681 = vadd.f32 %v7504, %v7680
    %v7682 = vpop.f32.mrf.mxu0
    %7683 = vmatprep.mubr.bf16.mxu0 %v2735
    %7684 = vmatmul.mubr.bf16.gmra.mxu0 %v2662
    %v7685 = vpop.f32.mrf.mxu0
    %v7686 = vadd.f32 %v7509, %v7685
    %v7687 = vpop.f32.mrf.mxu0
    %v7688 = vpop.f32.mrf.mxu0
    %v7689 = vadd.f32 %v7512, %v7688
    %v7690 = vpop.f32.mrf.mxu0
    %7691 = vmatprep.mubr.bf16.mxu0 %v2737
    %7692 = vmatmul.mubr.bf16.gmra.mxu0 %v2671
    %v7693 = vpop.f32.mrf.mxu0
    %v7694 = vadd.f32 %v7517, %v7693
    %v7695 = vpop.f32.mrf.mxu0
    %v7696 = vpop.f32.mrf.mxu0
    %v7697 = vadd.f32 %v7520, %v7696
    %v7698 = vpop.f32.mrf.mxu0
    %7699 = vmatprep.mubr.bf16.mxu0 %v2739
    %7700 = vmatmul.mubr.bf16.gmra.mxu0 %v2680
    %v7701 = vpop.f32.mrf.mxu0
    %v7702 = vadd.f32 %v7525, %v7701
    %v7703 = vpop.f32.mrf.mxu0
    %v7704 = vpop.f32.mrf.mxu0
    %v7705 = vadd.f32 %v7528, %v7704
    %v7706 = vpop.f32.mrf.mxu0
    %7707 = vdwg.mxu0
    %7708 = vmatprep.subr.bf16.mxu0 0
    %7709 = vmatpush1.bf16.msra.mxu0 %v6671
    %7710 = vmatprep.subr.bf16.mxu0 0
    %7711 = vmatpush1.bf16.msra.mxu0 %v6670
    %7712 = vmatprep.subr.bf16.mxu0 0
    %7713 = vmatpush1.bf16.msra.mxu0 %v6669
    %7714 = vmatprep.subr.bf16.mxu0 0
    %7715 = vmatpush1.bf16.msra.mxu0 %v6668
    %7716 = vmatprep.subr.bf16.mxu0 0
    %7717 = vmatpush1.bf16.msra.mxu0 %v6667
    %7718 = vmatprep.subr.bf16.mxu0 0
    %7719 = vmatpush1.bf16.msra.mxu0 %v6666
    %7720 = vmatprep.subr.bf16.mxu0 0
    %7721 = vmatpush1.bf16.msra.mxu0 %v6665
    %7722 = vmatprep.subr.bf16.mxu0 0
    %7723 = vmatpush1.bf16.msra.mxu0 %v6664
    %7724 = vmatprep.subr.bf16.mxu0 0
    %7725 = vmatpush2.bf16.msra.mxu0 %v6679
    %7726 = vmatprep.subr.bf16.mxu0 0
    %7727 = vmatpush2.bf16.msra.mxu0 %v6678
    %7728 = vmatprep.subr.bf16.mxu0 0
    %7729 = vmatpush2.bf16.msra.mxu0 %v6677
    %7730 = vmatprep.subr.bf16.mxu0 0
    %7731 = vmatpush2.bf16.msra.mxu0 %v6676
    %7732 = vmatprep.subr.bf16.mxu0 0
    %7733 = vmatpush2.bf16.msra.mxu0 %v6675
    %7734 = vmatprep.subr.bf16.mxu0 0
    %7735 = vmatpush2.bf16.msra.mxu0 %v6674
    %7736 = vmatprep.subr.bf16.mxu0 0
    %7737 = vmatpush2.bf16.msra.mxu0 %v6673
    %7738 = vmatprep.subr.bf16.mxu0 0
    %7739 = vmatpush2.bf16.msra.mxu0 %v6672
    %7740 = vmatprep.mubr.bf16.mxu0 %v1997
    %7741 = vmatmul.mubr.bf16.gmra.mxu0 %v2773
    %v7742 = vpop.f32.mrf.mxu0
    %v7743 = vadd.f32 %v7566, %v7742
    %v7744 = vpop.f32.mrf.mxu0
    %v7745 = vpop.f32.mrf.mxu0
    %v7746 = vadd.f32 %v7569, %v7745
    %v7747 = vpop.f32.mrf.mxu0
    %7748 = vmatprep.mubr.bf16.mxu0 %v1998
    %7749 = vmatmul.mubr.bf16.gmra.mxu0 %v2777
    %v7750 = vpop.f32.mrf.mxu0
    %v7751 = vadd.f32 %v7574, %v7750
    %v7752 = vpop.f32.mrf.mxu0
    %v7753 = vpop.f32.mrf.mxu0
    %v7754 = vadd.f32 %v7577, %v7753
    %v7755 = vpop.f32.mrf.mxu0
    %7756 = vmatprep.mubr.bf16.mxu0 %v1999
    %7757 = vmatmul.mubr.bf16.gmra.mxu0 %v2781
    %v7758 = vpop.f32.mrf.mxu0
    %v7759 = vadd.f32 %v7582, %v7758
    %v7760 = vpop.f32.mrf.mxu0
    %v7761 = vpop.f32.mrf.mxu0
    %v7762 = vadd.f32 %v7585, %v7761
    %v7763 = vpop.f32.mrf.mxu0
    %7764 = vmatprep.mubr.bf16.mxu0 %v2000
    %7765 = vmatmul.mubr.bf16.gmra.mxu0 %v2785
    %v7766 = vpop.f32.mrf.mxu0
    %v7767 = vadd.f32 %v7590, %v7766
    %v7768 = vpop.f32.mrf.mxu0
    %v7769 = vpop.f32.mrf.mxu0
    %v7770 = vadd.f32 %v7593, %v7769
    %v7771 = vpop.f32.mrf.mxu0
    %7772 = vmatprep.mubr.bf16.mxu0 %v2001
    %7773 = vmatmul.mubr.bf16.gmra.mxu0 %v2789
    %v7774 = vpop.f32.mrf.mxu0
    %v7775 = vadd.f32 %v7598, %v7774
    %v7776 = vpop.f32.mrf.mxu0
    %v7777 = vpop.f32.mrf.mxu0
    %v7778 = vadd.f32 %v7601, %v7777
    %v7779 = vpop.f32.mrf.mxu0
    %7780 = vmatprep.mubr.bf16.mxu0 %v2002
    %7781 = vmatmul.mubr.bf16.gmra.mxu0 %v2793
    %v7782 = vpop.f32.mrf.mxu0
    %v7783 = vadd.f32 %v7606, %v7782
    %v7784 = vpop.f32.mrf.mxu0
    %v7785 = vpop.f32.mrf.mxu0
    %v7786 = vadd.f32 %v7609, %v7785
    %v7787 = vpop.f32.mrf.mxu0
    %7788 = vmatprep.mubr.bf16.mxu0 %v2003
    %7789 = vmatmul.mubr.bf16.gmra.mxu0 %v2797
    %v7790 = vpop.f32.mrf.mxu0
    %v7791 = vadd.f32 %v7614, %v7790
    %v7792 = vpop.f32.mrf.mxu0
    %v7793 = vpop.f32.mrf.mxu0
    %v7794 = vadd.f32 %v7617, %v7793
    %v7795 = vpop.f32.mrf.mxu0
    %7796 = vmatprep.mubr.bf16.mxu0 %v2004
    %7797 = vmatmul.mubr.bf16.gmra.mxu0 %v2801
    %v7798 = vpop.f32.mrf.mxu0
    %v7799 = vadd.f32 %v7622, %v7798
    %v7800 = vpop.f32.mrf.mxu0
    %v7801 = vpop.f32.mrf.mxu0
    %v7802 = vadd.f32 %v7625, %v7801
    %v7803 = vpop.f32.mrf.mxu0
    %7804 = vmatprep.mubr.bf16.mxu0 %v2005
    %7805 = vmatmul.mubr.bf16.gmra.mxu0 %v2805
    %v7806 = vpop.f32.mrf.mxu0
    %v7807 = vadd.f32 %v7630, %v7806
    %v7808 = vpop.f32.mrf.mxu0
    %v7809 = vpop.f32.mrf.mxu0
    %v7810 = vadd.f32 %v7633, %v7809
    %v7811 = vpop.f32.mrf.mxu0
    %7812 = vmatprep.mubr.bf16.mxu0 %v2006
    %7813 = vmatmul.mubr.bf16.gmra.mxu0 %v2809
    %v7814 = vpop.f32.mrf.mxu0
    %v7815 = vadd.f32 %v7638, %v7814
    %v7816 = vpop.f32.mrf.mxu0
    %v7817 = vpop.f32.mrf.mxu0
    %v7818 = vadd.f32 %v7641, %v7817
    %v7819 = vpop.f32.mrf.mxu0
    %7820 = vmatprep.mubr.bf16.mxu0 %v2007
    %7821 = vmatmul.mubr.bf16.gmra.mxu0 %v2813
    %v7822 = vpop.f32.mrf.mxu0
    %v7823 = vadd.f32 %v7646, %v7822
    %v7824 = vpop.f32.mrf.mxu0
    %v7825 = vpop.f32.mrf.mxu0
    %v7826 = vadd.f32 %v7649, %v7825
    %v7827 = vpop.f32.mrf.mxu0
    %7828 = vmatprep.mubr.bf16.mxu0 %v2008
    %7829 = vmatmul.mubr.bf16.gmra.mxu0 %v2817
    %v7830 = vpop.f32.mrf.mxu0
    %v7831 = vadd.f32 %v7654, %v7830
    %v7832 = vpop.f32.mrf.mxu0
    %v7833 = vpop.f32.mrf.mxu0
    %v7834 = vadd.f32 %v7657, %v7833
    %v7835 = vpop.f32.mrf.mxu0
    %7836 = vmatprep.mubr.bf16.mxu0 %v2009
    %7837 = vmatmul.mubr.bf16.gmra.mxu0 %v2821
    %v7838 = vpop.f32.mrf.mxu0
    %v7839 = vadd.f32 %v7662, %v7838
    %v7840 = vpop.f32.mrf.mxu0
    %v7841 = vpop.f32.mrf.mxu0
    %v7842 = vadd.f32 %v7665, %v7841
    %v7843 = vpop.f32.mrf.mxu0
    %7844 = vmatprep.mubr.bf16.mxu0 %v2010
    %7845 = vmatmul.mubr.bf16.gmra.mxu0 %v2825
    %v7846 = vpop.f32.mrf.mxu0
    %v7847 = vadd.f32 %v7670, %v7846
    %v7848 = vpop.f32.mrf.mxu0
    %v7849 = vpop.f32.mrf.mxu0
    %v7850 = vadd.f32 %v7673, %v7849
    %v7851 = vpop.f32.mrf.mxu0
    %7852 = vmatprep.mubr.bf16.mxu0 %v2011
    %7853 = vmatmul.mubr.bf16.gmra.mxu0 %v2829
    %v7854 = vpop.f32.mrf.mxu0
    %v7855 = vadd.f32 %v7678, %v7854
    %v7856 = vpop.f32.mrf.mxu0
    %v7857 = vpop.f32.mrf.mxu0
    %v7858 = vadd.f32 %v7681, %v7857
    %v7859 = vpop.f32.mrf.mxu0
    %7860 = vmatprep.mubr.bf16.mxu0 %v2012
    %7861 = vmatmul.mubr.bf16.gmra.mxu0 %v2833
    %v7862 = vpop.f32.mrf.mxu0
    %v7863 = vadd.f32 %v7686, %v7862
    %v7864 = vpop.f32.mrf.mxu0
    %v7865 = vpop.f32.mrf.mxu0
    %v7866 = vadd.f32 %v7689, %v7865
    %v7867 = vpop.f32.mrf.mxu0
    %7868 = vmatprep.mubr.bf16.mxu0 %v2013
    %7869 = vmatmul.mubr.bf16.gmra.mxu0 %v2837
    %v7870 = vpop.f32.mrf.mxu0
    %v7871 = vadd.f32 %v7694, %v7870
    %v7872 = vpop.f32.mrf.mxu0
    %v7873 = vpop.f32.mrf.mxu0
    %v7874 = vadd.f32 %v7697, %v7873
    %v7875 = vpop.f32.mrf.mxu0
    %7876 = vmatprep.mubr.bf16.mxu0 %v2865
    %7877 = vmatmul.mubr.bf16.gmra.mxu0 %v2846
    %v7878 = vpop.f32.mrf.mxu0
    %v7879 = vadd.f32 %v7702, %v7878
    %v7880 = vpop.f32.mrf.mxu0
    %v7881 = vpop.f32.mrf.mxu0
    %v7882 = vadd.f32 %v7705, %v7881
    %v7883 = vpop.f32.mrf.mxu0
    %7884 = vdwg.mxu0
    %7885 = vmatprep.subr.bf16.mxu0 0
    %7886 = vmatpush1.bf16.msra.mxu0 %v6687
    %7887 = vmatprep.subr.bf16.mxu0 0
    %7888 = vmatpush1.bf16.msra.mxu0 %v6686
    %7889 = vmatprep.subr.bf16.mxu0 0
    %7890 = vmatpush1.bf16.msra.mxu0 %v6685
    %7891 = vmatprep.subr.bf16.mxu0 0
    %7892 = vmatpush1.bf16.msra.mxu0 %v6684
    %7893 = vmatprep.subr.bf16.mxu0 0
    %7894 = vmatpush1.bf16.msra.mxu0 %v6683
    %7895 = vmatprep.subr.bf16.mxu0 0
    %7896 = vmatpush1.bf16.msra.mxu0 %v6682
    %7897 = vmatprep.subr.bf16.mxu0 0
    %7898 = vmatpush1.bf16.msra.mxu0 %v6681
    %7899 = vmatprep.subr.bf16.mxu0 0
    %7900 = vmatpush1.bf16.msra.mxu0 %v6680
    %7901 = vmatprep.subr.bf16.mxu0 0
    %7902 = vmatpush2.bf16.msra.mxu0 %v6695
    %7903 = vmatprep.subr.bf16.mxu0 0
    %7904 = vmatpush2.bf16.msra.mxu0 %v6694
    %7905 = vmatprep.subr.bf16.mxu0 0
    %7906 = vmatpush2.bf16.msra.mxu0 %v6693
    %7907 = vmatprep.subr.bf16.mxu0 0
    %7908 = vmatpush2.bf16.msra.mxu0 %v6692
    %7909 = vmatprep.subr.bf16.mxu0 0
    %7910 = vmatpush2.bf16.msra.mxu0 %v6691
    %7911 = vmatprep.subr.bf16.mxu0 0
    %7912 = vmatpush2.bf16.msra.mxu0 %v6690
    %7913 = vmatprep.subr.bf16.mxu0 0
    %7914 = vmatpush2.bf16.msra.mxu0 %v6689
    %7915 = vmatprep.subr.bf16.mxu0 0
    %7916 = vmatpush2.bf16.msra.mxu0 %v6688
    %7917 = vmatprep.mubr.bf16.mxu0 %v2894
    %7918 = vmatmul.mubr.bf16.gmra.mxu0 %v2434
    %v7919 = vpop.f32.mrf.mxu0
    %v7920 = vadd.f32 %v7743, %v7919
    %v7921 = vpop.f32.mrf.mxu0
    %v7922 = vpop.f32.mrf.mxu0
    %v7923 = vadd.f32 %v7746, %v7922
    %v7924 = vpop.f32.mrf.mxu0
    %7925 = vmatprep.mubr.bf16.mxu0 %v2897
    %7926 = vmatmul.mubr.bf16.gmra.mxu0 %v2435
    %v7927 = vpop.f32.mrf.mxu0
    %v7928 = vadd.f32 %v7751, %v7927
    %v7929 = vpop.f32.mrf.mxu0
    %v7930 = vpop.f32.mrf.mxu0
    %v7931 = vadd.f32 %v7754, %v7930
    %v7932 = vpop.f32.mrf.mxu0
    %7933 = vmatprep.mubr.bf16.mxu0 %v2900
    %7934 = vmatmul.mubr.bf16.gmra.mxu0 %v2436
    %v7935 = vpop.f32.mrf.mxu0
    %v7936 = vadd.f32 %v7759, %v7935
    %v7937 = vpop.f32.mrf.mxu0
    %v7938 = vpop.f32.mrf.mxu0
    %v7939 = vadd.f32 %v7762, %v7938
    %v7940 = vpop.f32.mrf.mxu0
    %7941 = vmatprep.mubr.bf16.mxu0 %v2903
    %7942 = vmatmul.mubr.bf16.gmra.mxu0 %v2437
    %v7943 = vpop.f32.mrf.mxu0
    %v7944 = vadd.f32 %v7767, %v7943
    %v7945 = vpop.f32.mrf.mxu0
    %v7946 = vpop.f32.mrf.mxu0
    %v7947 = vadd.f32 %v7770, %v7946
    %v7948 = vpop.f32.mrf.mxu0
    %7949 = vmatprep.mubr.bf16.mxu0 %v2906
    %7950 = vmatmul.mubr.bf16.gmra.mxu0 %v2438
    %v7951 = vpop.f32.mrf.mxu0
    %v7952 = vadd.f32 %v7775, %v7951
    %v7953 = vpop.f32.mrf.mxu0
    %v7954 = vpop.f32.mrf.mxu0
    %v7955 = vadd.f32 %v7778, %v7954
    %v7956 = vpop.f32.mrf.mxu0
    %7957 = vmatprep.mubr.bf16.mxu0 %v2909
    %7958 = vmatmul.mubr.bf16.gmra.mxu0 %v2439
    %v7959 = vpop.f32.mrf.mxu0
    %v7960 = vadd.f32 %v7783, %v7959
    %v7961 = vpop.f32.mrf.mxu0
    %v7962 = vpop.f32.mrf.mxu0
    %v7963 = vadd.f32 %v7786, %v7962
    %v7964 = vpop.f32.mrf.mxu0
    %7965 = vmatprep.mubr.bf16.mxu0 %v2912
    %7966 = vmatmul.mubr.bf16.gmra.mxu0 %v2440
    %v7967 = vpop.f32.mrf.mxu0
    %v7968 = vadd.f32 %v7791, %v7967
    %v7969 = vpop.f32.mrf.mxu0
    %v7970 = vpop.f32.mrf.mxu0
    %v7971 = vadd.f32 %v7794, %v7970
    %v7972 = vpop.f32.mrf.mxu0
    %7973 = vmatprep.mubr.bf16.mxu0 %v2915
    %7974 = vmatmul.mubr.bf16.gmra.mxu0 %v2441
    %v7975 = vpop.f32.mrf.mxu0
    %v7976 = vadd.f32 %v7799, %v7975
    %v7977 = vpop.f32.mrf.mxu0
    %v7978 = vpop.f32.mrf.mxu0
    %v7979 = vadd.f32 %v7802, %v7978
    %v7980 = vpop.f32.mrf.mxu0
    %7981 = vmatprep.mubr.bf16.mxu0 %v2918
    %7982 = vmatmul.mubr.bf16.gmra.mxu0 %v2442
    %v7983 = vpop.f32.mrf.mxu0
    %v7984 = vadd.f32 %v7807, %v7983
    %v7985 = vpop.f32.mrf.mxu0
    %v7986 = vpop.f32.mrf.mxu0
    %v7987 = vadd.f32 %v7810, %v7986
    %v7988 = vpop.f32.mrf.mxu0
    %7989 = vmatprep.mubr.bf16.mxu0 %v2921
    %7990 = vmatmul.mubr.bf16.gmra.mxu0 %v2443
    %v7991 = vpop.f32.mrf.mxu0
    %v7992 = vadd.f32 %v7815, %v7991
    %v7993 = vpop.f32.mrf.mxu0
    %v7994 = vpop.f32.mrf.mxu0
    %v7995 = vadd.f32 %v7818, %v7994
    %v7996 = vpop.f32.mrf.mxu0
    %7997 = vmatprep.mubr.bf16.mxu0 %v2924
    %7998 = vmatmul.mubr.bf16.gmra.mxu0 %v2444
    %v7999 = vpop.f32.mrf.mxu0
    %v8000 = vadd.f32 %v7823, %v7999
    %v8001 = vpop.f32.mrf.mxu0
    %v8002 = vpop.f32.mrf.mxu0
    %v8003 = vadd.f32 %v7826, %v8002
    %v8004 = vpop.f32.mrf.mxu0
    %8005 = vmatprep.mubr.bf16.mxu0 %v2927
    %8006 = vmatmul.mubr.bf16.gmra.mxu0 %v2445
    %v8007 = vpop.f32.mrf.mxu0
    %v8008 = vadd.f32 %v7831, %v8007
    %v8009 = vpop.f32.mrf.mxu0
    %v8010 = vpop.f32.mrf.mxu0
    %v8011 = vadd.f32 %v7834, %v8010
    %v8012 = vpop.f32.mrf.mxu0
    %8013 = vmatprep.mubr.bf16.mxu0 %v2930
    %8014 = vmatmul.mubr.bf16.gmra.mxu0 %v2446
    %v8015 = vpop.f32.mrf.mxu0
    %v8016 = vadd.f32 %v7839, %v8015
    %v8017 = vpop.f32.mrf.mxu0
    %v8018 = vpop.f32.mrf.mxu0
    %v8019 = vadd.f32 %v7842, %v8018
    %v8020 = vpop.f32.mrf.mxu0
    %8021 = vmatprep.mubr.bf16.mxu0 %v2933
    %8022 = vmatmul.mubr.bf16.gmra.mxu0 %v2447
    %v8023 = vpop.f32.mrf.mxu0
    %v8024 = vadd.f32 %v7847, %v8023
    %v8025 = vpop.f32.mrf.mxu0
    %v8026 = vpop.f32.mrf.mxu0
    %v8027 = vadd.f32 %v7850, %v8026
    %v8028 = vpop.f32.mrf.mxu0
    %8029 = vmatprep.mubr.bf16.mxu0 %v2936
    %8030 = vmatmul.mubr.bf16.gmra.mxu0 %v2448
    %v8031 = vpop.f32.mrf.mxu0
    %v8032 = vadd.f32 %v7855, %v8031
    %v8033 = vpop.f32.mrf.mxu0
    %v8034 = vpop.f32.mrf.mxu0
    %v8035 = vadd.f32 %v7858, %v8034
    %v8036 = vpop.f32.mrf.mxu0
    %8037 = vmatprep.mubr.bf16.mxu0 %v2939
    %8038 = vmatmul.mubr.bf16.gmra.mxu0 %v2449
    %v8039 = vpop.f32.mrf.mxu0
    %v8040 = vadd.f32 %v7863, %v8039
    %v8041 = vpop.f32.mrf.mxu0
    %v8042 = vpop.f32.mrf.mxu0
    %v8043 = vadd.f32 %v7866, %v8042
    %v8044 = vpop.f32.mrf.mxu0
    %8045 = vmatprep.mubr.bf16.mxu0 %v2945
    %8046 = vmatmul.mubr.bf16.gmra.mxu0 %v2450
    %v8047 = vpop.f32.mrf.mxu0
    %v8048 = vadd.f32 %v7871, %v8047
    %v8049 = vpop.f32.mrf.mxu0
    %v8050 = vpop.f32.mrf.mxu0
    %v8051 = vadd.f32 %v7874, %v8050
    %v8052 = vpop.f32.mrf.mxu0
    %8053 = vmatprep.mubr.bf16.mxu0 %v2953
    %8054 = vmatmul.mubr.bf16.gmra.mxu0 %v2869
    %v8055 = vpop.f32.mrf.mxu0
    %v8056 = vadd.f32 %v7879, %v8055
    %v8057 = vpop.f32.mrf.mxu0
    %v8058 = vpop.f32.mrf.mxu0
    %v8059 = vadd.f32 %v7882, %v8058
    %v8060 = vpop.f32.mrf.mxu0
    %8061 = vdwg.mxu0
    %8062 = vmatprep.subr.bf16.mxu0 0
    %8063 = vmatpush1.bf16.msra.mxu0 %v6703
    %8064 = vmatprep.subr.bf16.mxu0 0
    %8065 = vmatpush1.bf16.msra.mxu0 %v6702
    %8066 = vmatprep.subr.bf16.mxu0 0
    %8067 = vmatpush1.bf16.msra.mxu0 %v6701
    %8068 = vmatprep.subr.bf16.mxu0 0
    %8069 = vmatpush1.bf16.msra.mxu0 %v6700
    %8070 = vmatprep.subr.bf16.mxu0 0
    %8071 = vmatpush1.bf16.msra.mxu0 %v6699
    %8072 = vmatprep.subr.bf16.mxu0 0
    %8073 = vmatpush1.bf16.msra.mxu0 %v6698
    %8074 = vmatprep.subr.bf16.mxu0 0
    %8075 = vmatpush1.bf16.msra.mxu0 %v6697
    %8076 = vmatprep.subr.bf16.mxu0 0
    %8077 = vmatpush1.bf16.msra.mxu0 %v6696
    %8078 = vmatprep.subr.bf16.mxu0 0
    %8079 = vmatpush2.bf16.msra.mxu0 %v6711
    %8080 = vmatprep.subr.bf16.mxu0 0
    %8081 = vmatpush2.bf16.msra.mxu0 %v6710
    %8082 = vmatprep.subr.bf16.mxu0 0
    %8083 = vmatpush2.bf16.msra.mxu0 %v6709
    %8084 = vmatprep.subr.bf16.mxu0 0
    %8085 = vmatpush2.bf16.msra.mxu0 %v6708
    %8086 = vmatprep.subr.bf16.mxu0 0
    %8087 = vmatpush2.bf16.msra.mxu0 %v6707
    %8088 = vmatprep.subr.bf16.mxu0 0
    %8089 = vmatpush2.bf16.msra.mxu0 %v6706
    %8090 = vmatprep.subr.bf16.mxu0 0
    %8091 = vmatpush2.bf16.msra.mxu0 %v6705
    %8092 = vmatprep.subr.bf16.mxu0 0
    %8093 = vmatpush2.bf16.msra.mxu0 %v6704
    %8094 = vmatprep.mubr.bf16.mxu0 %v3044
    %8095 = vmatmul.mubr.bf16.gmra.mxu0 %v2977
    %v8096 = vpop.f32.mrf.mxu0
    %v8097 = vadd.f32 %v7920, %v8096
    %v8098 = vpop.f32.mrf.mxu0
    %v8099 = vpop.f32.mrf.mxu0
    %v8100 = vadd.f32 %v7923, %v8099
    %v8101 = vpop.f32.mrf.mxu0
    %8102 = vmatprep.mubr.bf16.mxu0 %v3048
    %8103 = vmatmul.mubr.bf16.gmra.mxu0 %v2979
    %v8104 = vpop.f32.mrf.mxu0
    %v8105 = vadd.f32 %v7928, %v8104
    %v8106 = vpop.f32.mrf.mxu0
    %v8107 = vpop.f32.mrf.mxu0
    %v8108 = vadd.f32 %v7931, %v8107
    %v8109 = vpop.f32.mrf.mxu0
    %8110 = vmatprep.mubr.bf16.mxu0 %v3052
    %8111 = vmatmul.mubr.bf16.gmra.mxu0 %v2981
    %v8112 = vpop.f32.mrf.mxu0
    %v8113 = vadd.f32 %v7936, %v8112
    %v8114 = vpop.f32.mrf.mxu0
    %v8115 = vpop.f32.mrf.mxu0
    %v8116 = vadd.f32 %v7939, %v8115
    %v8117 = vpop.f32.mrf.mxu0
    %8118 = vmatprep.mubr.bf16.mxu0 %v3056
    %8119 = vmatmul.mubr.bf16.gmra.mxu0 %v2983
    %v8120 = vpop.f32.mrf.mxu0
    %v8121 = vadd.f32 %v7944, %v8120
    %v8122 = vpop.f32.mrf.mxu0
    %v8123 = vpop.f32.mrf.mxu0
    %v8124 = vadd.f32 %v7947, %v8123
    %v8125 = vpop.f32.mrf.mxu0
    %8126 = vmatprep.mubr.bf16.mxu0 %v3060
    %8127 = vmatmul.mubr.bf16.gmra.mxu0 %v2985
    %v8128 = vpop.f32.mrf.mxu0
    %v8129 = vadd.f32 %v7952, %v8128
    %v8130 = vpop.f32.mrf.mxu0
    %v8131 = vpop.f32.mrf.mxu0
    %v8132 = vadd.f32 %v7955, %v8131
    %v8133 = vpop.f32.mrf.mxu0
    %8134 = vmatprep.mubr.bf16.mxu0 %v3064
    %8135 = vmatmul.mubr.bf16.gmra.mxu0 %v2987
    %v8136 = vpop.f32.mrf.mxu0
    %v8137 = vadd.f32 %v7960, %v8136
    %v8138 = vpop.f32.mrf.mxu0
    %v8139 = vpop.f32.mrf.mxu0
    %v8140 = vadd.f32 %v7963, %v8139
    %v8141 = vpop.f32.mrf.mxu0
    %8142 = vmatprep.mubr.bf16.mxu0 %v3068
    %8143 = vmatmul.mubr.bf16.gmra.mxu0 %v2989
    %v8144 = vpop.f32.mrf.mxu0
    %v8145 = vadd.f32 %v7968, %v8144
    %v8146 = vpop.f32.mrf.mxu0
    %v8147 = vpop.f32.mrf.mxu0
    %v8148 = vadd.f32 %v7971, %v8147
    %v8149 = vpop.f32.mrf.mxu0
    %8150 = vmatprep.mubr.bf16.mxu0 %v3072
    %8151 = vmatmul.mubr.bf16.gmra.mxu0 %v2991
    %v8152 = vpop.f32.mrf.mxu0
    %v8153 = vadd.f32 %v7976, %v8152
    %v8154 = vpop.f32.mrf.mxu0
    %v8155 = vpop.f32.mrf.mxu0
    %v8156 = vadd.f32 %v7979, %v8155
    %v8157 = vpop.f32.mrf.mxu0
    %8158 = vmatprep.mubr.bf16.mxu0 %v3076
    %8159 = vmatmul.mubr.bf16.gmra.mxu0 %v2993
    %v8160 = vpop.f32.mrf.mxu0
    %v8161 = vadd.f32 %v7984, %v8160
    %v8162 = vpop.f32.mrf.mxu0
    %v8163 = vpop.f32.mrf.mxu0
    %v8164 = vadd.f32 %v7987, %v8163
    %v8165 = vpop.f32.mrf.mxu0
    %8166 = vmatprep.mubr.bf16.mxu0 %v3080
    %8167 = vmatmul.mubr.bf16.gmra.mxu0 %v2995
    %v8168 = vpop.f32.mrf.mxu0
    %v8169 = vadd.f32 %v7992, %v8168
    %v8170 = vpop.f32.mrf.mxu0
    %v8171 = vpop.f32.mrf.mxu0
    %v8172 = vadd.f32 %v7995, %v8171
    %v8173 = vpop.f32.mrf.mxu0
    %8174 = vmatprep.mubr.bf16.mxu0 %v3084
    %8175 = vmatmul.mubr.bf16.gmra.mxu0 %v2997
    %v8176 = vpop.f32.mrf.mxu0
    %v8177 = vadd.f32 %v8000, %v8176
    %v8178 = vpop.f32.mrf.mxu0
    %v8179 = vpop.f32.mrf.mxu0
    %v8180 = vadd.f32 %v8003, %v8179
    %v8181 = vpop.f32.mrf.mxu0
    %8182 = vmatprep.mubr.bf16.mxu0 %v3088
    %8183 = vmatmul.mubr.bf16.gmra.mxu0 %v2999
    %v8184 = vpop.f32.mrf.mxu0
    %v8185 = vadd.f32 %v8008, %v8184
    %v8186 = vpop.f32.mrf.mxu0
    %v8187 = vpop.f32.mrf.mxu0
    %v8188 = vadd.f32 %v8011, %v8187
    %v8189 = vpop.f32.mrf.mxu0
    %8190 = vmatprep.mubr.bf16.mxu0 %v3092
    %8191 = vmatmul.mubr.bf16.gmra.mxu0 %v3001
    %v8192 = vpop.f32.mrf.mxu0
    %v8193 = vadd.f32 %v8016, %v8192
    %v8194 = vpop.f32.mrf.mxu0
    %v8195 = vpop.f32.mrf.mxu0
    %v8196 = vadd.f32 %v8019, %v8195
    %v8197 = vpop.f32.mrf.mxu0
    %8198 = vmatprep.mubr.bf16.mxu0 %v3096
    %8199 = vmatmul.mubr.bf16.gmra.mxu0 %v3003
    %v8200 = vpop.f32.mrf.mxu0
    %v8201 = vadd.f32 %v8024, %v8200
    %v8202 = vpop.f32.mrf.mxu0
    %v8203 = vpop.f32.mrf.mxu0
    %v8204 = vadd.f32 %v8027, %v8203
    %v8205 = vpop.f32.mrf.mxu0
    %8206 = vmatprep.mubr.bf16.mxu0 %v3100
    %8207 = vmatmul.mubr.bf16.gmra.mxu0 %v3005
    %v8208 = vpop.f32.mrf.mxu0
    %v8209 = vadd.f32 %v8032, %v8208
    %v8210 = vpop.f32.mrf.mxu0
    %v8211 = vpop.f32.mrf.mxu0
    %v8212 = vadd.f32 %v8035, %v8211
    %v8213 = vpop.f32.mrf.mxu0
    %8214 = vmatprep.mubr.bf16.mxu0 %v3104
    %8215 = vmatmul.mubr.bf16.gmra.mxu0 %v3007
    %v8216 = vpop.f32.mrf.mxu0
    %v8217 = vadd.f32 %v8040, %v8216
    %v8218 = vpop.f32.mrf.mxu0
    %v8219 = vpop.f32.mrf.mxu0
    %v8220 = vadd.f32 %v8043, %v8219
    %v8221 = vpop.f32.mrf.mxu0
    %8222 = vmatprep.mubr.bf16.mxu0 %v3108
    %8223 = vmatmul.mubr.bf16.gmra.mxu0 %v3009
    %v8224 = vpop.f32.mrf.mxu0
    %v8225 = vadd.f32 %v8048, %v8224
    %v8226 = vpop.f32.mrf.mxu0
    %v8227 = vpop.f32.mrf.mxu0
    %v8228 = vadd.f32 %v8051, %v8227
    %v8229 = vpop.f32.mrf.mxu0
    %8230 = vmatprep.mubr.bf16.mxu0 %v3117
    %8231 = vmatmul.mubr.bf16.gmra.mxu0 %v3011
    %v8232 = vpop.f32.mrf.mxu0
    %v8233 = vadd.f32 %v8056, %v8232
    %v8234 = vpop.f32.mrf.mxu0
    %v8235 = vpop.f32.mrf.mxu0
    %v8236 = vadd.f32 %v8059, %v8235
    %v8237 = vpop.f32.mrf.mxu0
    %8238 = vdwg.mxu0
    %8239 = vmatprep.subr.bf16.mxu0 0
    %8240 = vmatpush1.bf16.msra.mxu0 %v6719
    %8241 = vmatprep.subr.bf16.mxu0 0
    %8242 = vmatpush1.bf16.msra.mxu0 %v6718
    %8243 = vmatprep.subr.bf16.mxu0 0
    %8244 = vmatpush1.bf16.msra.mxu0 %v6717
    %8245 = vmatprep.subr.bf16.mxu0 0
    %8246 = vmatpush1.bf16.msra.mxu0 %v6716
    %8247 = vmatprep.subr.bf16.mxu0 0
    %8248 = vmatpush1.bf16.msra.mxu0 %v6715
    %8249 = vmatprep.subr.bf16.mxu0 0
    %8250 = vmatpush1.bf16.msra.mxu0 %v6714
    %8251 = vmatprep.subr.bf16.mxu0 0
    %8252 = vmatpush1.bf16.msra.mxu0 %v6713
    %8253 = vmatprep.subr.bf16.mxu0 0
    %8254 = vmatpush1.bf16.msra.mxu0 %v6712
    %8255 = vmatprep.subr.bf16.mxu0 0
    %8256 = vmatpush2.bf16.msra.mxu0 %v6727
    %8257 = vmatprep.subr.bf16.mxu0 0
    %8258 = vmatpush2.bf16.msra.mxu0 %v6726
    %8259 = vmatprep.subr.bf16.mxu0 0
    %8260 = vmatpush2.bf16.msra.mxu0 %v6725
    %8261 = vmatprep.subr.bf16.mxu0 0
    %8262 = vmatpush2.bf16.msra.mxu0 %v6724
    %8263 = vmatprep.subr.bf16.mxu0 0
    %8264 = vmatpush2.bf16.msra.mxu0 %v6723
    %8265 = vmatprep.subr.bf16.mxu0 0
    %8266 = vmatpush2.bf16.msra.mxu0 %v6722
    %8267 = vmatprep.subr.bf16.mxu0 0
    %8268 = vmatpush2.bf16.msra.mxu0 %v6721
    %8269 = vmatprep.subr.bf16.mxu0 0
    %8270 = vmatpush2.bf16.msra.mxu0 %v6720
    %8271 = vmatprep.mubr.bf16.mxu0 %v3158
    %8272 = vmatmul.mubr.bf16.gmra.mxu0 %v3140
    %v8273 = vpop.f32.mrf.mxu0
    %v8274 = vadd.f32 %v8097, %v8273
    %v8275 = vpop.f32.mrf.mxu0
    %v8276 = vpop.f32.mrf.mxu0
    %v8277 = vadd.f32 %v8100, %v8276
    %v8278 = vpop.f32.mrf.mxu0
    %8279 = vmatprep.mubr.bf16.mxu0 %v2380
    %8280 = vmatmul.mubr.bf16.gmra.mxu0 %v2458
    %v8281 = vpop.f32.mrf.mxu0
    %v8282 = vadd.f32 %v8105, %v8281
    %v8283 = vpop.f32.mrf.mxu0
    %v8284 = vpop.f32.mrf.mxu0
    %v8285 = vadd.f32 %v8108, %v8284
    %v8286 = vpop.f32.mrf.mxu0
    %8287 = vmatprep.mubr.bf16.mxu0 %v2382
    %8288 = vmatmul.mubr.bf16.gmra.mxu0 %v2460
    %v8289 = vpop.f32.mrf.mxu0
    %v8290 = vadd.f32 %v8113, %v8289
    %v8291 = vpop.f32.mrf.mxu0
    %v8292 = vpop.f32.mrf.mxu0
    %v8293 = vadd.f32 %v8116, %v8292
    %v8294 = vpop.f32.mrf.mxu0
    %8295 = vmatprep.mubr.bf16.mxu0 %v2384
    %8296 = vmatmul.mubr.bf16.gmra.mxu0 %v2462
    %v8297 = vpop.f32.mrf.mxu0
    %v8298 = vadd.f32 %v8121, %v8297
    %v8299 = vpop.f32.mrf.mxu0
    %v8300 = vpop.f32.mrf.mxu0
    %v8301 = vadd.f32 %v8124, %v8300
    %v8302 = vpop.f32.mrf.mxu0
    %8303 = vmatprep.mubr.bf16.mxu0 %v2386
    %8304 = vmatmul.mubr.bf16.gmra.mxu0 %v2464
    %v8305 = vpop.f32.mrf.mxu0
    %v8306 = vadd.f32 %v8129, %v8305
    %v8307 = vpop.f32.mrf.mxu0
    %v8308 = vpop.f32.mrf.mxu0
    %v8309 = vadd.f32 %v8132, %v8308
    %v8310 = vpop.f32.mrf.mxu0
    %8311 = vmatprep.mubr.bf16.mxu0 %v2388
    %8312 = vmatmul.mubr.bf16.gmra.mxu0 %v2466
    %v8313 = vpop.f32.mrf.mxu0
    %v8314 = vadd.f32 %v8137, %v8313
    %v8315 = vpop.f32.mrf.mxu0
    %v8316 = vpop.f32.mrf.mxu0
    %v8317 = vadd.f32 %v8140, %v8316
    %v8318 = vpop.f32.mrf.mxu0
    %8319 = vmatprep.mubr.bf16.mxu0 %v2390
    %8320 = vmatmul.mubr.bf16.gmra.mxu0 %v2468
    %v8321 = vpop.f32.mrf.mxu0
    %v8322 = vadd.f32 %v8145, %v8321
    %v8323 = vpop.f32.mrf.mxu0
    %v8324 = vpop.f32.mrf.mxu0
    %v8325 = vadd.f32 %v8148, %v8324
    %v8326 = vpop.f32.mrf.mxu0
    %8327 = vmatprep.mubr.bf16.mxu0 %v2392
    %8328 = vmatmul.mubr.bf16.gmra.mxu0 %v2470
    %v8329 = vpop.f32.mrf.mxu0
    %v8330 = vadd.f32 %v8153, %v8329
    %v8331 = vpop.f32.mrf.mxu0
    %v8332 = vpop.f32.mrf.mxu0
    %v8333 = vadd.f32 %v8156, %v8332
    %v8334 = vpop.f32.mrf.mxu0
    %8335 = vmatprep.mubr.bf16.mxu0 %v2394
    %8336 = vmatmul.mubr.bf16.gmra.mxu0 %v2472
    %v8337 = vpop.f32.mrf.mxu0
    %v8338 = vadd.f32 %v8161, %v8337
    %v8339 = vpop.f32.mrf.mxu0
    %v8340 = vpop.f32.mrf.mxu0
    %v8341 = vadd.f32 %v8164, %v8340
    %v8342 = vpop.f32.mrf.mxu0
    %8343 = vmatprep.mubr.bf16.mxu0 %v2396
    %8344 = vmatmul.mubr.bf16.gmra.mxu0 %v2474
    %v8345 = vpop.f32.mrf.mxu0
    %v8346 = vadd.f32 %v8169, %v8345
    %v8347 = vpop.f32.mrf.mxu0
    %v8348 = vpop.f32.mrf.mxu0
    %v8349 = vadd.f32 %v8172, %v8348
    %v8350 = vpop.f32.mrf.mxu0
    %8351 = vmatprep.mubr.bf16.mxu0 %v2398
    %8352 = vmatmul.mubr.bf16.gmra.mxu0 %v2476
    %v8353 = vpop.f32.mrf.mxu0
    %v8354 = vadd.f32 %v8177, %v8353
    %v8355 = vpop.f32.mrf.mxu0
    %v8356 = vpop.f32.mrf.mxu0
    %v8357 = vadd.f32 %v8180, %v8356
    %v8358 = vpop.f32.mrf.mxu0
    %8359 = vmatprep.mubr.bf16.mxu0 %v2400
    %8360 = vmatmul.mubr.bf16.gmra.mxu0 %v2478
    %v8361 = vpop.f32.mrf.mxu0
    %v8362 = vadd.f32 %v8185, %v8361
    %v8363 = vpop.f32.mrf.mxu0
    %v8364 = vpop.f32.mrf.mxu0
    %v8365 = vadd.f32 %v8188, %v8364
    %v8366 = vpop.f32.mrf.mxu0
    %8367 = vmatprep.mubr.bf16.mxu0 %v2402
    %8368 = vmatmul.mubr.bf16.gmra.mxu0 %v2480
    %v8369 = vpop.f32.mrf.mxu0
    %v8370 = vadd.f32 %v8193, %v8369
    %v8371 = vpop.f32.mrf.mxu0
    %v8372 = vpop.f32.mrf.mxu0
    %v8373 = vadd.f32 %v8196, %v8372
    %v8374 = vpop.f32.mrf.mxu0
    %8375 = vmatprep.mubr.bf16.mxu0 %v2404
    %8376 = vmatmul.mubr.bf16.gmra.mxu0 %v2482
    %v8377 = vpop.f32.mrf.mxu0
    %v8378 = vadd.f32 %v8201, %v8377
    %v8379 = vpop.f32.mrf.mxu0
    %v8380 = vpop.f32.mrf.mxu0
    %v8381 = vadd.f32 %v8204, %v8380
    %v8382 = vpop.f32.mrf.mxu0
    %8383 = vmatprep.mubr.bf16.mxu0 %v2406
    %8384 = vmatmul.mubr.bf16.gmra.mxu0 %v2484
    %v8385 = vpop.f32.mrf.mxu0
    %v8386 = vadd.f32 %v8209, %v8385
    %v8387 = vpop.f32.mrf.mxu0
    %v8388 = vpop.f32.mrf.mxu0
    %v8389 = vadd.f32 %v8212, %v8388
    %v8390 = vpop.f32.mrf.mxu0
    %8391 = vmatprep.mubr.bf16.mxu0 %v3160
    %8392 = vmatmul.mubr.bf16.gmra.mxu0 %v2486
    %v8393 = vpop.f32.mrf.mxu0
    %v8394 = vadd.f32 %v8217, %v8393
    %v8395 = vpop.f32.mrf.mxu0
    %v8396 = vpop.f32.mrf.mxu0
    %v8397 = vadd.f32 %v8220, %v8396
    %v8398 = vpop.f32.mrf.mxu0
    %8399 = vmatprep.mubr.bf16.mxu0 %v3162
    %8400 = vmatmul.mubr.bf16.gmra.mxu0 %v3142
    %v8401 = vpop.f32.mrf.mxu0
    %v8402 = vadd.f32 %v8225, %v8401
    %v8403 = vpop.f32.mrf.mxu0
    %v8404 = vpop.f32.mrf.mxu0
    %v8405 = vadd.f32 %v8228, %v8404
    %v8406 = vpop.f32.mrf.mxu0
    %8407 = vmatprep.mubr.bf16.mxu0 %v3164
    %8408 = vmatmul.mubr.bf16.gmra.mxu0 %v3144
    %v8409 = vpop.f32.mrf.mxu0
    %v8410 = vadd.f32 %v8233, %v8409
    %v8411 = vpop.f32.mrf.mxu0
    %v8412 = vpop.f32.mrf.mxu0
    %v8413 = vadd.f32 %v8236, %v8412
    %v8414 = vpop.f32.mrf.mxu0
    %8415 = vdwg.mxu0
    %8416 = vmatprep.subr.bf16.mxu0 0
    %8417 = vmatpush1.bf16.msra.mxu0 %v6735
    %8418 = vmatprep.subr.bf16.mxu0 0
    %8419 = vmatpush1.bf16.msra.mxu0 %v6734
    %8420 = vmatprep.subr.bf16.mxu0 0
    %8421 = vmatpush1.bf16.msra.mxu0 %v6733
    %8422 = vmatprep.subr.bf16.mxu0 0
    %8423 = vmatpush1.bf16.msra.mxu0 %v6732
    %8424 = vmatprep.subr.bf16.mxu0 0
    %8425 = vmatpush1.bf16.msra.mxu0 %v6731
    %8426 = vmatprep.subr.bf16.mxu0 0
    %8427 = vmatpush1.bf16.msra.mxu0 %v6730
    %8428 = vmatprep.subr.bf16.mxu0 0
    %8429 = vmatpush1.bf16.msra.mxu0 %v6729
    %8430 = vmatprep.subr.bf16.mxu0 0
    %8431 = vmatpush1.bf16.msra.mxu0 %v6728
    %8432 = vmatprep.subr.bf16.mxu0 0
    %8433 = vmatpush2.bf16.msra.mxu0 %v6743
    %8434 = vmatprep.subr.bf16.mxu0 0
    %8435 = vmatpush2.bf16.msra.mxu0 %v6742
    %8436 = vmatprep.subr.bf16.mxu0 0
    %8437 = vmatpush2.bf16.msra.mxu0 %v6741
    %8438 = vmatprep.subr.bf16.mxu0 0
    %8439 = vmatpush2.bf16.msra.mxu0 %v6740
    %8440 = vmatprep.subr.bf16.mxu0 0
    %8441 = vmatpush2.bf16.msra.mxu0 %v6739
    %8442 = vmatprep.subr.bf16.mxu0 0
    %8443 = vmatpush2.bf16.msra.mxu0 %v6738
    %8444 = vmatprep.subr.bf16.mxu0 0
    %8445 = vmatpush2.bf16.msra.mxu0 %v6737
    %8446 = vmatprep.subr.bf16.mxu0 0
    %8447 = vmatpush2.bf16.msra.mxu0 %v6736
    %8448 = vmatprep.mubr.bf16.mxu0 %v3819
    %8449 = vmatmul.mubr.bf16.gmra.mxu0 %v3802
    %v8450 = vpop.f32.mrf.mxu0
    %v8451 = vadd.f32 %v8274, %v8450
    %v8452 = vpop.f32.mrf.mxu0
    %v8453 = vpop.f32.mrf.mxu0
    %v8454 = vadd.f32 %v8277, %v8453
    %v8455 = vpop.f32.mrf.mxu0
    %8456 = vmatprep.mubr.bf16.mxu0 %v3951
    %8457 = vmatmul.mubr.bf16.gmra.mxu0 %v3942
    %v8458 = vpop.f32.mrf.mxu0
    %v8459 = vadd.f32 %v8282, %v8458
    %v8460 = vpop.f32.mrf.mxu0
    %v8461 = vpop.f32.mrf.mxu0
    %v8462 = vadd.f32 %v8285, %v8461
    %v8463 = vpop.f32.mrf.mxu0
    %8464 = vmatprep.mubr.bf16.mxu0 %v4027
    %8465 = vmatmul.mubr.bf16.gmra.mxu0 %v4018
    %v8466 = vpop.f32.mrf.mxu0
    %v8467 = vadd.f32 %v8290, %v8466
    %v8468 = vpop.f32.mrf.mxu0
    %v8469 = vpop.f32.mrf.mxu0
    %v8470 = vadd.f32 %v8293, %v8469
    %v8471 = vpop.f32.mrf.mxu0
    %8472 = vmatprep.mubr.bf16.mxu0 %v4103
    %8473 = vmatmul.mubr.bf16.gmra.mxu0 %v4094
    %v8474 = vpop.f32.mrf.mxu0
    %v8475 = vadd.f32 %v8298, %v8474
    %v8476 = vpop.f32.mrf.mxu0
    %v8477 = vpop.f32.mrf.mxu0
    %v8478 = vadd.f32 %v8301, %v8477
    %v8479 = vpop.f32.mrf.mxu0
    %8480 = vmatprep.mubr.bf16.mxu0 %v4179
    %8481 = vmatmul.mubr.bf16.gmra.mxu0 %v4170
    %v8482 = vpop.f32.mrf.mxu0
    %v8483 = vadd.f32 %v8306, %v8482
    %v8484 = vpop.f32.mrf.mxu0
    %v8485 = vpop.f32.mrf.mxu0
    %v8486 = vadd.f32 %v8309, %v8485
    %v8487 = vpop.f32.mrf.mxu0
    %8488 = vmatprep.mubr.bf16.mxu0 %v4255
    %8489 = vmatmul.mubr.bf16.gmra.mxu0 %v4246
    %v8490 = vpop.f32.mrf.mxu0
    %v8491 = vadd.f32 %v8314, %v8490
    %v8492 = vpop.f32.mrf.mxu0
    %v8493 = vpop.f32.mrf.mxu0
    %v8494 = vadd.f32 %v8317, %v8493
    %v8495 = vpop.f32.mrf.mxu0
    %8496 = vmatprep.mubr.bf16.mxu0 %v4331
    %8497 = vmatmul.mubr.bf16.gmra.mxu0 %v4322
    %v8498 = vpop.f32.mrf.mxu0
    %v8499 = vadd.f32 %v8322, %v8498
    %v8500 = vpop.f32.mrf.mxu0
    %v8501 = vpop.f32.mrf.mxu0
    %v8502 = vadd.f32 %v8325, %v8501
    %v8503 = vpop.f32.mrf.mxu0
    %8504 = vmatprep.mubr.bf16.mxu0 %v4407
    %8505 = vmatmul.mubr.bf16.gmra.mxu0 %v4398
    %v8506 = vpop.f32.mrf.mxu0
    %v8507 = vadd.f32 %v8330, %v8506
    %v8508 = vpop.f32.mrf.mxu0
    %v8509 = vpop.f32.mrf.mxu0
    %v8510 = vadd.f32 %v8333, %v8509
    %v8511 = vpop.f32.mrf.mxu0
    %8512 = vmatprep.mubr.bf16.mxu0 %v4483
    %8513 = vmatmul.mubr.bf16.gmra.mxu0 %v4474
    %v8514 = vpop.f32.mrf.mxu0
    %v8515 = vadd.f32 %v8338, %v8514
    %v8516 = vpop.f32.mrf.mxu0
    %v8517 = vpop.f32.mrf.mxu0
    %v8518 = vadd.f32 %v8341, %v8517
    %v8519 = vpop.f32.mrf.mxu0
    %8520 = vmatprep.mubr.bf16.mxu0 %v4559
    %8521 = vmatmul.mubr.bf16.gmra.mxu0 %v4550
    %v8522 = vpop.f32.mrf.mxu0
    %v8523 = vadd.f32 %v8346, %v8522
    %v8524 = vpop.f32.mrf.mxu0
    %v8525 = vpop.f32.mrf.mxu0
    %v8526 = vadd.f32 %v8349, %v8525
    %v8527 = vpop.f32.mrf.mxu0
    %8528 = vmatprep.mubr.bf16.mxu0 %v4635
    %8529 = vmatmul.mubr.bf16.gmra.mxu0 %v4626
    %v8530 = vpop.f32.mrf.mxu0
    %v8531 = vadd.f32 %v8354, %v8530
    %v8532 = vpop.f32.mrf.mxu0
    %v8533 = vpop.f32.mrf.mxu0
    %v8534 = vadd.f32 %v8357, %v8533
    %v8535 = vpop.f32.mrf.mxu0
    %8536 = vmatprep.mubr.bf16.mxu0 %v4711
    %8537 = vmatmul.mubr.bf16.gmra.mxu0 %v4702
    %v8538 = vpop.f32.mrf.mxu0
    %v8539 = vadd.f32 %v8362, %v8538
    %v8540 = vpop.f32.mrf.mxu0
    %v8541 = vpop.f32.mrf.mxu0
    %v8542 = vadd.f32 %v8365, %v8541
    %v8543 = vpop.f32.mrf.mxu0
    %8544 = vmatprep.mubr.bf16.mxu0 %v4787
    %8545 = vmatmul.mubr.bf16.gmra.mxu0 %v4778
    %v8546 = vpop.f32.mrf.mxu0
    %v8547 = vadd.f32 %v8370, %v8546
    %v8548 = vpop.f32.mrf.mxu0
    %v8549 = vpop.f32.mrf.mxu0
    %v8550 = vadd.f32 %v8373, %v8549
    %v8551 = vpop.f32.mrf.mxu0
    %8552 = vmatprep.mubr.bf16.mxu0 %v4863
    %8553 = vmatmul.mubr.bf16.gmra.mxu0 %v4854
    %v8554 = vpop.f32.mrf.mxu0
    %v8555 = vadd.f32 %v8378, %v8554
    %v8556 = vpop.f32.mrf.mxu0
    %v8557 = vpop.f32.mrf.mxu0
    %v8558 = vadd.f32 %v8381, %v8557
    %v8559 = vpop.f32.mrf.mxu0
    %8560 = vmatprep.mubr.bf16.mxu0 %v4939
    %8561 = vmatmul.mubr.bf16.gmra.mxu0 %v4930
    %v8562 = vpop.f32.mrf.mxu0
    %v8563 = vadd.f32 %v8386, %v8562
    %v8564 = vpop.f32.mrf.mxu0
    %v8565 = vpop.f32.mrf.mxu0
    %v8566 = vadd.f32 %v8389, %v8565
    %v8567 = vpop.f32.mrf.mxu0
    %8568 = vmatprep.mubr.bf16.mxu0 %v5015
    %8569 = vmatmul.mubr.bf16.gmra.mxu0 %v5006
    %v8570 = vpop.f32.mrf.mxu0
    %v8571 = vadd.f32 %v8394, %v8570
    %v8572 = vpop.f32.mrf.mxu0
    %v8573 = vpop.f32.mrf.mxu0
    %v8574 = vadd.f32 %v8397, %v8573
    %v8575 = vpop.f32.mrf.mxu0
    %8576 = vmatprep.mubr.bf16.mxu0 %v5091
    %8577 = vmatmul.mubr.bf16.gmra.mxu0 %v5082
    %v8578 = vpop.f32.mrf.mxu0
    %v8579 = vadd.f32 %v8402, %v8578
    %v8580 = vpop.f32.mrf.mxu0
    %v8581 = vpop.f32.mrf.mxu0
    %v8582 = vadd.f32 %v8405, %v8581
    %v8583 = vpop.f32.mrf.mxu0
    %8584 = vmatprep.mubr.bf16.mxu0 %v5167
    %8585 = vmatmul.mubr.bf16.gmra.mxu0 %v5158
    %v8586 = vpop.f32.mrf.mxu0
    %v8587 = vadd.f32 %v8410, %v8586
    %v8588 = vpop.f32.mrf.mxu0
    %v8589 = vpop.f32.mrf.mxu0
    %v8590 = vadd.f32 %v8413, %v8589
    %v8591 = vpop.f32.mrf.mxu0
    %8592 = vdwg.mxu0
    %8593 = vmatprep.subr.bf16.mxu0 0
    %8594 = vmatpush1.bf16.msra.mxu0 %v6751
    %8595 = vmatprep.subr.bf16.mxu0 0
    %8596 = vmatpush1.bf16.msra.mxu0 %v6750
    %8597 = vmatprep.subr.bf16.mxu0 0
    %8598 = vmatpush1.bf16.msra.mxu0 %v6749
    %8599 = vmatprep.subr.bf16.mxu0 0
    %8600 = vmatpush1.bf16.msra.mxu0 %v6748
    %8601 = vmatprep.subr.bf16.mxu0 0
    %8602 = vmatpush1.bf16.msra.mxu0 %v6747
    %8603 = vmatprep.subr.bf16.mxu0 0
    %8604 = vmatpush1.bf16.msra.mxu0 %v6746
    %8605 = vmatprep.subr.bf16.mxu0 0
    %8606 = vmatpush1.bf16.msra.mxu0 %v6745
    %8607 = vmatprep.subr.bf16.mxu0 0
    %8608 = vmatpush1.bf16.msra.mxu0 %v6744
    %8609 = vmatprep.subr.bf16.mxu0 0
    %8610 = vmatpush2.bf16.msra.mxu0 %v6759
    %8611 = vmatprep.subr.bf16.mxu0 0
    %8612 = vmatpush2.bf16.msra.mxu0 %v6758
    %8613 = vmatprep.subr.bf16.mxu0 0
    %8614 = vmatpush2.bf16.msra.mxu0 %v6757
    %8615 = vmatprep.subr.bf16.mxu0 0
    %8616 = vmatpush2.bf16.msra.mxu0 %v6756
    %8617 = vmatprep.subr.bf16.mxu0 0
    %8618 = vmatpush2.bf16.msra.mxu0 %v6755
    %8619 = vmatprep.subr.bf16.mxu0 0
    %8620 = vmatpush2.bf16.msra.mxu0 %v6754
    %8621 = vmatprep.subr.bf16.mxu0 0
    %8622 = vmatpush2.bf16.msra.mxu0 %v6753
    %8623 = vmatprep.subr.bf16.mxu0 0
    %8624 = vmatpush2.bf16.msra.mxu0 %v6752
    %8625 = vmatprep.mubr.bf16.mxu0 %v3853
    %8626 = vmatmul.mubr.bf16.gmra.mxu0 %v3836
    %v8627 = vpop.f32.mrf.mxu0
    %v8628 = vadd.f32 %v8451, %v8627
    %v8629 = vpop.f32.mrf.mxu0
    %v8630 = vpop.f32.mrf.mxu0
    %v8631 = vadd.f32 %v8454, %v8630
    %v8632 = vpop.f32.mrf.mxu0
    %8633 = vmatprep.mubr.bf16.mxu0 %v3969
    %8634 = vmatmul.mubr.bf16.gmra.mxu0 %v3960
    %v8635 = vpop.f32.mrf.mxu0
    %v8636 = vadd.f32 %v8459, %v8635
    %v8637 = vpop.f32.mrf.mxu0
    %v8638 = vpop.f32.mrf.mxu0
    %v8639 = vadd.f32 %v8462, %v8638
    %v8640 = vpop.f32.mrf.mxu0
    %8641 = vmatprep.mubr.bf16.mxu0 %v4045
    %8642 = vmatmul.mubr.bf16.gmra.mxu0 %v4036
    %v8643 = vpop.f32.mrf.mxu0
    %v8644 = vadd.f32 %v8467, %v8643
    %v8645 = vpop.f32.mrf.mxu0
    %v8646 = vpop.f32.mrf.mxu0
    %v8647 = vadd.f32 %v8470, %v8646
    %v8648 = vpop.f32.mrf.mxu0
    %8649 = vmatprep.mubr.bf16.mxu0 %v4121
    %8650 = vmatmul.mubr.bf16.gmra.mxu0 %v4112
    %v8651 = vpop.f32.mrf.mxu0
    %v8652 = vadd.f32 %v8475, %v8651
    %v8653 = vpop.f32.mrf.mxu0
    %v8654 = vpop.f32.mrf.mxu0
    %v8655 = vadd.f32 %v8478, %v8654
    %v8656 = vpop.f32.mrf.mxu0
    %8657 = vmatprep.mubr.bf16.mxu0 %v4197
    %8658 = vmatmul.mubr.bf16.gmra.mxu0 %v4188
    %v8659 = vpop.f32.mrf.mxu0
    %v8660 = vadd.f32 %v8483, %v8659
    %v8661 = vpop.f32.mrf.mxu0
    %v8662 = vpop.f32.mrf.mxu0
    %v8663 = vadd.f32 %v8486, %v8662
    %v8664 = vpop.f32.mrf.mxu0
    %8665 = vmatprep.mubr.bf16.mxu0 %v4273
    %8666 = vmatmul.mubr.bf16.gmra.mxu0 %v4264
    %v8667 = vpop.f32.mrf.mxu0
    %v8668 = vadd.f32 %v8491, %v8667
    %v8669 = vpop.f32.mrf.mxu0
    %v8670 = vpop.f32.mrf.mxu0
    %v8671 = vadd.f32 %v8494, %v8670
    %v8672 = vpop.f32.mrf.mxu0
    %8673 = vmatprep.mubr.bf16.mxu0 %v4349
    %8674 = vmatmul.mubr.bf16.gmra.mxu0 %v4340
    %v8675 = vpop.f32.mrf.mxu0
    %v8676 = vadd.f32 %v8499, %v8675
    %v8677 = vpop.f32.mrf.mxu0
    %v8678 = vpop.f32.mrf.mxu0
    %v8679 = vadd.f32 %v8502, %v8678
    %v8680 = vpop.f32.mrf.mxu0
    %8681 = vmatprep.mubr.bf16.mxu0 %v4425
    %8682 = vmatmul.mubr.bf16.gmra.mxu0 %v4416
    %v8683 = vpop.f32.mrf.mxu0
    %v8684 = vadd.f32 %v8507, %v8683
    %v8685 = vpop.f32.mrf.mxu0
    %v8686 = vpop.f32.mrf.mxu0
    %v8687 = vadd.f32 %v8510, %v8686
    %v8688 = vpop.f32.mrf.mxu0
    %8689 = vmatprep.mubr.bf16.mxu0 %v4501
    %8690 = vmatmul.mubr.bf16.gmra.mxu0 %v4492
    %v8691 = vpop.f32.mrf.mxu0
    %v8692 = vadd.f32 %v8515, %v8691
    %v8693 = vpop.f32.mrf.mxu0
    %v8694 = vpop.f32.mrf.mxu0
    %v8695 = vadd.f32 %v8518, %v8694
    %v8696 = vpop.f32.mrf.mxu0
    %8697 = vmatprep.mubr.bf16.mxu0 %v4577
    %8698 = vmatmul.mubr.bf16.gmra.mxu0 %v4568
    %v8699 = vpop.f32.mrf.mxu0
    %v8700 = vadd.f32 %v8523, %v8699
    %v8701 = vpop.f32.mrf.mxu0
    %v8702 = vpop.f32.mrf.mxu0
    %v8703 = vadd.f32 %v8526, %v8702
    %v8704 = vpop.f32.mrf.mxu0
    %8705 = vmatprep.mubr.bf16.mxu0 %v4653
    %8706 = vmatmul.mubr.bf16.gmra.mxu0 %v4644
    %v8707 = vpop.f32.mrf.mxu0
    %v8708 = vadd.f32 %v8531, %v8707
    %v8709 = vpop.f32.mrf.mxu0
    %v8710 = vpop.f32.mrf.mxu0
    %v8711 = vadd.f32 %v8534, %v8710
    %v8712 = vpop.f32.mrf.mxu0
    %8713 = vmatprep.mubr.bf16.mxu0 %v4729
    %8714 = vmatmul.mubr.bf16.gmra.mxu0 %v4720
    %v8715 = vpop.f32.mrf.mxu0
    %v8716 = vadd.f32 %v8539, %v8715
    %v8717 = vpop.f32.mrf.mxu0
    %v8718 = vpop.f32.mrf.mxu0
    %v8719 = vadd.f32 %v8542, %v8718
    %v8720 = vpop.f32.mrf.mxu0
    %8721 = vmatprep.mubr.bf16.mxu0 %v4805
    %8722 = vmatmul.mubr.bf16.gmra.mxu0 %v4796
    %v8723 = vpop.f32.mrf.mxu0
    %v8724 = vadd.f32 %v8547, %v8723
    %v8725 = vpop.f32.mrf.mxu0
    %v8726 = vpop.f32.mrf.mxu0
    %v8727 = vadd.f32 %v8550, %v8726
    %v8728 = vpop.f32.mrf.mxu0
    %8729 = vmatprep.mubr.bf16.mxu0 %v4881
    %8730 = vmatmul.mubr.bf16.gmra.mxu0 %v4872
    %v8731 = vpop.f32.mrf.mxu0
    %v8732 = vadd.f32 %v8555, %v8731
    %v8733 = vpop.f32.mrf.mxu0
    %v8734 = vpop.f32.mrf.mxu0
    %v8735 = vadd.f32 %v8558, %v8734
    %v8736 = vpop.f32.mrf.mxu0
    %8737 = vmatprep.mubr.bf16.mxu0 %v4957
    %8738 = vmatmul.mubr.bf16.gmra.mxu0 %v4948
    %v8739 = vpop.f32.mrf.mxu0
    %v8740 = vadd.f32 %v8563, %v8739
    %v8741 = vpop.f32.mrf.mxu0
    %v8742 = vpop.f32.mrf.mxu0
    %v8743 = vadd.f32 %v8566, %v8742
    %v8744 = vpop.f32.mrf.mxu0
    %8745 = vmatprep.mubr.bf16.mxu0 %v5033
    %8746 = vmatmul.mubr.bf16.gmra.mxu0 %v5024
    %v8747 = vpop.f32.mrf.mxu0
    %v8748 = vadd.f32 %v8571, %v8747
    %v8749 = vpop.f32.mrf.mxu0
    %v8750 = vpop.f32.mrf.mxu0
    %v8751 = vadd.f32 %v8574, %v8750
    %v8752 = vpop.f32.mrf.mxu0
    %8753 = vmatprep.mubr.bf16.mxu0 %v5109
    %8754 = vmatmul.mubr.bf16.gmra.mxu0 %v5100
    %v8755 = vpop.f32.mrf.mxu0
    %v8756 = vadd.f32 %v8579, %v8755
    %v8757 = vpop.f32.mrf.mxu0
    %v8758 = vpop.f32.mrf.mxu0
    %v8759 = vadd.f32 %v8582, %v8758
    %v8760 = vpop.f32.mrf.mxu0
    %8761 = vmatprep.mubr.bf16.mxu0 %v5185
    %8762 = vmatmul.mubr.bf16.gmra.mxu0 %v5176
    %v8763 = vpop.f32.mrf.mxu0
    %v8764 = vadd.f32 %v8587, %v8763
    %v8765 = vpop.f32.mrf.mxu0
    %v8766 = vpop.f32.mrf.mxu0
    %v8767 = vadd.f32 %v8590, %v8766
    %v8768 = vpop.f32.mrf.mxu0
    %8769 = vdwg.mxu0
    %8770 = vmatprep.subr.bf16.mxu0 0
    %8771 = vmatpush1.bf16.msra.mxu0 %v6767
    %8772 = vmatprep.subr.bf16.mxu0 0
    %8773 = vmatpush1.bf16.msra.mxu0 %v6766
    %8774 = vmatprep.subr.bf16.mxu0 0
    %8775 = vmatpush1.bf16.msra.mxu0 %v6765
    %8776 = vmatprep.subr.bf16.mxu0 0
    %8777 = vmatpush1.bf16.msra.mxu0 %v6764
    %8778 = vmatprep.subr.bf16.mxu0 0
    %8779 = vmatpush1.bf16.msra.mxu0 %v6763
    %8780 = vmatprep.subr.bf16.mxu0 0
    %8781 = vmatpush1.bf16.msra.mxu0 %v6762
    %8782 = vmatprep.subr.bf16.mxu0 0
    %8783 = vmatpush1.bf16.msra.mxu0 %v6761
    %8784 = vmatprep.subr.bf16.mxu0 0
    %8785 = vmatpush1.bf16.msra.mxu0 %v6760
    %8786 = vmatprep.subr.bf16.mxu0 0
    %8787 = vmatpush2.bf16.msra.mxu0 %v6775
    %8788 = vmatprep.subr.bf16.mxu0 0
    %8789 = vmatpush2.bf16.msra.mxu0 %v6774
    %8790 = vmatprep.subr.bf16.mxu0 0
    %8791 = vmatpush2.bf16.msra.mxu0 %v6773
    %8792 = vmatprep.subr.bf16.mxu0 0
    %8793 = vmatpush2.bf16.msra.mxu0 %v6772
    %8794 = vmatprep.subr.bf16.mxu0 0
    %8795 = vmatpush2.bf16.msra.mxu0 %v6771
    %8796 = vmatprep.subr.bf16.mxu0 0
    %8797 = vmatpush2.bf16.msra.mxu0 %v6770
    %8798 = vmatprep.subr.bf16.mxu0 0
    %8799 = vmatpush2.bf16.msra.mxu0 %v6769
    %8800 = vmatprep.subr.bf16.mxu0 0
    %8801 = vmatpush2.bf16.msra.mxu0 %v6768
    %8802 = vmatprep.mubr.bf16.mxu0 %v3887
    %8803 = vmatmul.mubr.bf16.gmra.mxu0 %v3870
    %v8804 = vpop.f32.mrf.mxu0
    %v8805 = vadd.f32 %v8628, %v8804
    %v8806 = vpop.f32.mrf.mxu0
    %v8807 = vpop.f32.mrf.mxu0
    %v8808 = vadd.f32 %v8631, %v8807
    %v8809 = vpop.f32.mrf.mxu0
    %8810 = vmatprep.mubr.bf16.mxu0 %v3987
    %8811 = vmatmul.mubr.bf16.gmra.mxu0 %v3978
    %v8812 = vpop.f32.mrf.mxu0
    %v8813 = vadd.f32 %v8636, %v8812
    %v8814 = vpop.f32.mrf.mxu0
    %v8815 = vpop.f32.mrf.mxu0
    %v8816 = vadd.f32 %v8639, %v8815
    %v8817 = vpop.f32.mrf.mxu0
    %8818 = vmatprep.mubr.bf16.mxu0 %v4063
    %8819 = vmatmul.mubr.bf16.gmra.mxu0 %v4054
    %v8820 = vpop.f32.mrf.mxu0
    %v8821 = vadd.f32 %v8644, %v8820
    %v8822 = vpop.f32.mrf.mxu0
    %v8823 = vpop.f32.mrf.mxu0
    %v8824 = vadd.f32 %v8647, %v8823
    %v8825 = vpop.f32.mrf.mxu0
    %8826 = vmatprep.mubr.bf16.mxu0 %v4139
    %8827 = vmatmul.mubr.bf16.gmra.mxu0 %v4130
    %v8828 = vpop.f32.mrf.mxu0
    %v8829 = vadd.f32 %v8652, %v8828
    %v8830 = vpop.f32.mrf.mxu0
    %v8831 = vpop.f32.mrf.mxu0
    %v8832 = vadd.f32 %v8655, %v8831
    %v8833 = vpop.f32.mrf.mxu0
    %8834 = vmatprep.mubr.bf16.mxu0 %v4215
    %8835 = vmatmul.mubr.bf16.gmra.mxu0 %v4206
    %v8836 = vpop.f32.mrf.mxu0
    %v8837 = vadd.f32 %v8660, %v8836
    %v8838 = vpop.f32.mrf.mxu0
    %v8839 = vpop.f32.mrf.mxu0
    %v8840 = vadd.f32 %v8663, %v8839
    %v8841 = vpop.f32.mrf.mxu0
    %8842 = vmatprep.mubr.bf16.mxu0 %v4291
    %8843 = vmatmul.mubr.bf16.gmra.mxu0 %v4282
    %v8844 = vpop.f32.mrf.mxu0
    %v8845 = vadd.f32 %v8668, %v8844
    %v8846 = vpop.f32.mrf.mxu0
    %v8847 = vpop.f32.mrf.mxu0
    %v8848 = vadd.f32 %v8671, %v8847
    %v8849 = vpop.f32.mrf.mxu0
    %8850 = vmatprep.mubr.bf16.mxu0 %v4367
    %8851 = vmatmul.mubr.bf16.gmra.mxu0 %v4358
    %v8852 = vpop.f32.mrf.mxu0
    %v8853 = vadd.f32 %v8676, %v8852
    %v8854 = vpop.f32.mrf.mxu0
    %v8855 = vpop.f32.mrf.mxu0
    %v8856 = vadd.f32 %v8679, %v8855
    %v8857 = vpop.f32.mrf.mxu0
    %8858 = vmatprep.mubr.bf16.mxu0 %v4443
    %8859 = vmatmul.mubr.bf16.gmra.mxu0 %v4434
    %v8860 = vpop.f32.mrf.mxu0
    %v8861 = vadd.f32 %v8684, %v8860
    %v8862 = vpop.f32.mrf.mxu0
    %v8863 = vpop.f32.mrf.mxu0
    %v8864 = vadd.f32 %v8687, %v8863
    %v8865 = vpop.f32.mrf.mxu0
    %8866 = vmatprep.mubr.bf16.mxu0 %v4519
    %8867 = vmatmul.mubr.bf16.gmra.mxu0 %v4510
    %v8868 = vpop.f32.mrf.mxu0
    %v8869 = vadd.f32 %v8692, %v8868
    %v8870 = vpop.f32.mrf.mxu0
    %v8871 = vpop.f32.mrf.mxu0
    %v8872 = vadd.f32 %v8695, %v8871
    %v8873 = vpop.f32.mrf.mxu0
    %8874 = vmatprep.mubr.bf16.mxu0 %v4595
    %8875 = vmatmul.mubr.bf16.gmra.mxu0 %v4586
    %v8876 = vpop.f32.mrf.mxu0
    %v8877 = vadd.f32 %v8700, %v8876
    %v8878 = vpop.f32.mrf.mxu0
    %v8879 = vpop.f32.mrf.mxu0
    %v8880 = vadd.f32 %v8703, %v8879
    %v8881 = vpop.f32.mrf.mxu0
    %8882 = vmatprep.mubr.bf16.mxu0 %v4671
    %8883 = vmatmul.mubr.bf16.gmra.mxu0 %v4662
    %v8884 = vpop.f32.mrf.mxu0
    %v8885 = vadd.f32 %v8708, %v8884
    %v8886 = vpop.f32.mrf.mxu0
    %v8887 = vpop.f32.mrf.mxu0
    %v8888 = vadd.f32 %v8711, %v8887
    %v8889 = vpop.f32.mrf.mxu0
    %8890 = vmatprep.mubr.bf16.mxu0 %v4747
    %8891 = vmatmul.mubr.bf16.gmra.mxu0 %v4738
    %v8892 = vpop.f32.mrf.mxu0
    %v8893 = vadd.f32 %v8716, %v8892
    %v8894 = vpop.f32.mrf.mxu0
    %v8895 = vpop.f32.mrf.mxu0
    %v8896 = vadd.f32 %v8719, %v8895
    %v8897 = vpop.f32.mrf.mxu0
    %8898 = vmatprep.mubr.bf16.mxu0 %v4823
    %8899 = vmatmul.mubr.bf16.gmra.mxu0 %v4814
    %v8900 = vpop.f32.mrf.mxu0
    %v8901 = vadd.f32 %v8724, %v8900
    %v8902 = vpop.f32.mrf.mxu0
    %v8903 = vpop.f32.mrf.mxu0
    %v8904 = vadd.f32 %v8727, %v8903
    %v8905 = vpop.f32.mrf.mxu0
    %8906 = vmatprep.mubr.bf16.mxu0 %v4899
    %8907 = vmatmul.mubr.bf16.gmra.mxu0 %v4890
    %v8908 = vpop.f32.mrf.mxu0
    %v8909 = vadd.f32 %v8732, %v8908
    %v8910 = vpop.f32.mrf.mxu0
    %v8911 = vpop.f32.mrf.mxu0
    %v8912 = vadd.f32 %v8735, %v8911
    %v8913 = vpop.f32.mrf.mxu0
    %8914 = vmatprep.mubr.bf16.mxu0 %v4975
    %8915 = vmatmul.mubr.bf16.gmra.mxu0 %v4966
    %v8916 = vpop.f32.mrf.mxu0
    %v8917 = vadd.f32 %v8740, %v8916
    %v8918 = vpop.f32.mrf.mxu0
    %v8919 = vpop.f32.mrf.mxu0
    %v8920 = vadd.f32 %v8743, %v8919
    %v8921 = vpop.f32.mrf.mxu0
    %8922 = vmatprep.mubr.bf16.mxu0 %v5051
    %8923 = vmatmul.mubr.bf16.gmra.mxu0 %v5042
    %v8924 = vpop.f32.mrf.mxu0
    %v8925 = vadd.f32 %v8748, %v8924
    %v8926 = vpop.f32.mrf.mxu0
    %v8927 = vpop.f32.mrf.mxu0
    %v8928 = vadd.f32 %v8751, %v8927
    %v8929 = vpop.f32.mrf.mxu0
    %8930 = vmatprep.mubr.bf16.mxu0 %v5127
    %8931 = vmatmul.mubr.bf16.gmra.mxu0 %v5118
    %v8932 = vpop.f32.mrf.mxu0
    %v8933 = vadd.f32 %v8756, %v8932
    %v8934 = vpop.f32.mrf.mxu0
    %v8935 = vpop.f32.mrf.mxu0
    %v8936 = vadd.f32 %v8759, %v8935
    %v8937 = vpop.f32.mrf.mxu0
    %8938 = vmatprep.mubr.bf16.mxu0 %v5203
    %8939 = vmatmul.mubr.bf16.gmra.mxu0 %v5194
    %v8940 = vpop.f32.mrf.mxu0
    %v8941 = vadd.f32 %v8764, %v8940
    %v8942 = vpop.f32.mrf.mxu0
    %v8943 = vpop.f32.mrf.mxu0
    %v8944 = vadd.f32 %v8767, %v8943
    %v8945 = vpop.f32.mrf.mxu0
    %8946 = vdwg.mxu0
    %8947 = vmatprep.subr.bf16.mxu0 0
    %8948 = vmatpush1.bf16.msra.mxu0 %v6783
    %8949 = vmatprep.subr.bf16.mxu0 0
    %8950 = vmatpush1.bf16.msra.mxu0 %v6782
    %8951 = vmatprep.subr.bf16.mxu0 0
    %8952 = vmatpush1.bf16.msra.mxu0 %v6781
    %8953 = vmatprep.subr.bf16.mxu0 0
    %8954 = vmatpush1.bf16.msra.mxu0 %v6780
    %8955 = vmatprep.subr.bf16.mxu0 0
    %8956 = vmatpush1.bf16.msra.mxu0 %v6779
    %8957 = vmatprep.subr.bf16.mxu0 0
    %8958 = vmatpush1.bf16.msra.mxu0 %v6778
    %8959 = vmatprep.subr.bf16.mxu0 0
    %8960 = vmatpush1.bf16.msra.mxu0 %v6777
    %8961 = vmatprep.subr.bf16.mxu0 0
    %8962 = vmatpush1.bf16.msra.mxu0 %v6776
    %8963 = vmatprep.subr.bf16.mxu0 0
    %8964 = vmatpush2.bf16.msra.mxu0 %v6791
    %8965 = vmatprep.subr.bf16.mxu0 0
    %8966 = vmatpush2.bf16.msra.mxu0 %v6790
    %8967 = vmatprep.subr.bf16.mxu0 0
    %8968 = vmatpush2.bf16.msra.mxu0 %v6789
    %8969 = vmatprep.subr.bf16.mxu0 0
    %8970 = vmatpush2.bf16.msra.mxu0 %v6788
    %8971 = vmatprep.subr.bf16.mxu0 0
    %8972 = vmatpush2.bf16.msra.mxu0 %v6787
    %8973 = vmatprep.subr.bf16.mxu0 0
    %8974 = vmatpush2.bf16.msra.mxu0 %v6786
    %8975 = vmatprep.subr.bf16.mxu0 0
    %8976 = vmatpush2.bf16.msra.mxu0 %v6785
    %8977 = vmatprep.subr.bf16.mxu0 0
    %8978 = vmatpush2.bf16.msra.mxu0 %v6784
    %8979 = vmatprep.mubr.bf16.mxu0 %v3921
    %8980 = vmatmul.mubr.bf16.gmra.mxu0 %v3904
    %v8981 = vpop.f32.mrf.mxu0
    %v8982 = vadd.f32 %v8805, %v8981
    %v8983 = vpop.f32.mrf.mxu0
    %v8984 = vpop.f32.mrf.mxu0
    %v8985 = vadd.f32 %v8808, %v8984
    %v8986 = vpop.f32.mrf.mxu0
    %8987 = vmatprep.mubr.bf16.mxu0 %v4005
    %8988 = vmatmul.mubr.bf16.gmra.mxu0 %v3996
    %v8989 = vpop.f32.mrf.mxu0
    %v8990 = vadd.f32 %v8813, %v8989
    %v8991 = vpop.f32.mrf.mxu0
    %v8992 = vpop.f32.mrf.mxu0
    %v8993 = vadd.f32 %v8816, %v8992
    %v8994 = vpop.f32.mrf.mxu0
    %8995 = vmatprep.mubr.bf16.mxu0 %v4081
    %8996 = vmatmul.mubr.bf16.gmra.mxu0 %v4072
    %v8997 = vpop.f32.mrf.mxu0
    %v8998 = vadd.f32 %v8821, %v8997
    %v8999 = vpop.f32.mrf.mxu0
    %v9000 = vpop.f32.mrf.mxu0
    %v9001 = vadd.f32 %v8824, %v9000
    %v9002 = vpop.f32.mrf.mxu0
    %9003 = vmatprep.mubr.bf16.mxu0 %v4157
    %9004 = vmatmul.mubr.bf16.gmra.mxu0 %v4148
    %v9005 = vpop.f32.mrf.mxu0
    %v9006 = vadd.f32 %v8829, %v9005
    %v9007 = vpop.f32.mrf.mxu0
    %v9008 = vpop.f32.mrf.mxu0
    %v9009 = vadd.f32 %v8832, %v9008
    %v9010 = vpop.f32.mrf.mxu0
    %9011 = vmatprep.mubr.bf16.mxu0 %v4233
    %9012 = vmatmul.mubr.bf16.gmra.mxu0 %v4224
    %v9013 = vpop.f32.mrf.mxu0
    %v9014 = vadd.f32 %v8837, %v9013
    %v9015 = vpop.f32.mrf.mxu0
    %v9016 = vpop.f32.mrf.mxu0
    %v9017 = vadd.f32 %v8840, %v9016
    %v9018 = vpop.f32.mrf.mxu0
    %9019 = vmatprep.mubr.bf16.mxu0 %v4309
    %9020 = vmatmul.mubr.bf16.gmra.mxu0 %v4300
    %v9021 = vpop.f32.mrf.mxu0
    %v9022 = vadd.f32 %v8845, %v9021
    %v9023 = vpop.f32.mrf.mxu0
    %v9024 = vpop.f32.mrf.mxu0
    %v9025 = vadd.f32 %v8848, %v9024
    %v9026 = vpop.f32.mrf.mxu0
    %9027 = vmatprep.mubr.bf16.mxu0 %v4385
    %9028 = vmatmul.mubr.bf16.gmra.mxu0 %v4376
    %v9029 = vpop.f32.mrf.mxu0
    %v9030 = vadd.f32 %v8853, %v9029
    %v9031 = vpop.f32.mrf.mxu0
    %v9032 = vpop.f32.mrf.mxu0
    %v9033 = vadd.f32 %v8856, %v9032
    %v9034 = vpop.f32.mrf.mxu0
    %9035 = vmatprep.mubr.bf16.mxu0 %v4461
    %9036 = vmatmul.mubr.bf16.gmra.mxu0 %v4452
    %v9037 = vpop.f32.mrf.mxu0
    %v9038 = vadd.f32 %v8861, %v9037
    %v9039 = vpop.f32.mrf.mxu0
    %v9040 = vpop.f32.mrf.mxu0
    %v9041 = vadd.f32 %v8864, %v9040
    %v9042 = vpop.f32.mrf.mxu0
    %9043 = vmatprep.mubr.bf16.mxu0 %v4537
    %9044 = vmatmul.mubr.bf16.gmra.mxu0 %v4528
    %v9045 = vpop.f32.mrf.mxu0
    %v9046 = vadd.f32 %v8869, %v9045
    %v9047 = vpop.f32.mrf.mxu0
    %v9048 = vpop.f32.mrf.mxu0
    %v9049 = vadd.f32 %v8872, %v9048
    %v9050 = vpop.f32.mrf.mxu0
    %9051 = vmatprep.mubr.bf16.mxu0 %v4613
    %9052 = vmatmul.mubr.bf16.gmra.mxu0 %v4604
    %v9053 = vpop.f32.mrf.mxu0
    %v9054 = vadd.f32 %v8877, %v9053
    %v9055 = vpop.f32.mrf.mxu0
    %v9056 = vpop.f32.mrf.mxu0
    %v9057 = vadd.f32 %v8880, %v9056
    %v9058 = vpop.f32.mrf.mxu0
    %9059 = vmatprep.mubr.bf16.mxu0 %v4689
    %9060 = vmatmul.mubr.bf16.gmra.mxu0 %v4680
    %v9061 = vpop.f32.mrf.mxu0
    %v9062 = vadd.f32 %v8885, %v9061
    %v9063 = vpop.f32.mrf.mxu0
    %v9064 = vpop.f32.mrf.mxu0
    %v9065 = vadd.f32 %v8888, %v9064
    %v9066 = vpop.f32.mrf.mxu0
    %9067 = vmatprep.mubr.bf16.mxu0 %v4765
    %9068 = vmatmul.mubr.bf16.gmra.mxu0 %v4756
    %v9069 = vpop.f32.mrf.mxu0
    %v9070 = vadd.f32 %v8893, %v9069
    %v9071 = vpop.f32.mrf.mxu0
    %v9072 = vpop.f32.mrf.mxu0
    %v9073 = vadd.f32 %v8896, %v9072
    %v9074 = vpop.f32.mrf.mxu0
    %9075 = vmatprep.mubr.bf16.mxu0 %v4841
    %9076 = vmatmul.mubr.bf16.gmra.mxu0 %v4832
    %v9077 = vpop.f32.mrf.mxu0
    %v9078 = vadd.f32 %v8901, %v9077
    %v9079 = vpop.f32.mrf.mxu0
    %v9080 = vpop.f32.mrf.mxu0
    %v9081 = vadd.f32 %v8904, %v9080
    %v9082 = vpop.f32.mrf.mxu0
    %9083 = vmatprep.mubr.bf16.mxu0 %v4917
    %9084 = vmatmul.mubr.bf16.gmra.mxu0 %v4908
    %v9085 = vpop.f32.mrf.mxu0
    %v9086 = vadd.f32 %v8909, %v9085
    %v9087 = vpop.f32.mrf.mxu0
    %v9088 = vpop.f32.mrf.mxu0
    %v9089 = vadd.f32 %v8912, %v9088
    %v9090 = vpop.f32.mrf.mxu0
    %9091 = vmatprep.mubr.bf16.mxu0 %v4993
    %9092 = vmatmul.mubr.bf16.gmra.mxu0 %v4984
    %v9093 = vpop.f32.mrf.mxu0
    %v9094 = vadd.f32 %v8917, %v9093
    %v9095 = vpop.f32.mrf.mxu0
    %v9096 = vpop.f32.mrf.mxu0
    %v9097 = vadd.f32 %v8920, %v9096
    %v9098 = vpop.f32.mrf.mxu0
    %9099 = vmatprep.mubr.bf16.mxu0 %v5069
    %9100 = vmatmul.mubr.bf16.gmra.mxu0 %v5060
    %v9101 = vpop.f32.mrf.mxu0
    %v9102 = vadd.f32 %v8925, %v9101
    %v9103 = vpop.f32.mrf.mxu0
    %v9104 = vpop.f32.mrf.mxu0
    %v9105 = vadd.f32 %v8928, %v9104
    %v9106 = vpop.f32.mrf.mxu0
    %9107 = vmatprep.mubr.bf16.mxu0 %v5145
    %9108 = vmatmul.mubr.bf16.gmra.mxu0 %v5136
    %v9109 = vpop.f32.mrf.mxu0
    %v9110 = vadd.f32 %v8933, %v9109
    %v9111 = vpop.f32.mrf.mxu0
    %v9112 = vpop.f32.mrf.mxu0
    %v9113 = vadd.f32 %v8936, %v9112
    %v9114 = vpop.f32.mrf.mxu0
    %9115 = vmatprep.mubr.bf16.mxu0 %v5221
    %9116 = vmatmul.mubr.bf16.gmra.mxu0 %v5212
    %v9117 = vpop.f32.mrf.mxu0
    %v9118 = vadd.f32 %v8941, %v9117
    %v9119 = vpop.f32.mrf.mxu0
    %v9120 = vpop.f32.mrf.mxu0
    %v9121 = vadd.f32 %v8944, %v9120
    %v9122 = vpop.f32.mrf.mxu0
    %9123 = vdwg.mxu0
    %9124 = vmatprep.subr.bf16.mxu0 0
    %9125 = vmatpush1.bf16.msra.mxu0 %v6799
    %9126 = vmatprep.subr.bf16.mxu0 0
    %9127 = vmatpush1.bf16.msra.mxu0 %v6798
    %9128 = vmatprep.subr.bf16.mxu0 0
    %9129 = vmatpush1.bf16.msra.mxu0 %v6797
    %9130 = vmatprep.subr.bf16.mxu0 0
    %9131 = vmatpush1.bf16.msra.mxu0 %v6796
    %9132 = vmatprep.subr.bf16.mxu0 0
    %9133 = vmatpush1.bf16.msra.mxu0 %v6795
    %9134 = vmatprep.subr.bf16.mxu0 0
    %9135 = vmatpush1.bf16.msra.mxu0 %v6794
    %9136 = vmatprep.subr.bf16.mxu0 0
    %9137 = vmatpush1.bf16.msra.mxu0 %v6793
    %9138 = vmatprep.subr.bf16.mxu0 0
    %9139 = vmatpush1.bf16.msra.mxu0 %v6792
    %9140 = vmatprep.subr.bf16.mxu0 0
    %9141 = vmatpush2.bf16.msra.mxu0 0
    %9142 = vmatprep.subr.bf16.mxu0 0
    %9143 = vmatpush2.bf16.msra.mxu0 0
    %9144 = vmatprep.subr.bf16.mxu0 0
    %9145 = vmatpush2.bf16.msra.mxu0 0
    %9146 = vmatprep.subr.bf16.mxu0 0
    %9147 = vmatpush2.bf16.msra.mxu0 0
    %9148 = vmatprep.subr.bf16.mxu0 0
    %9149 = vmatpush2.bf16.msra.mxu0 0
    %9150 = vmatprep.subr.bf16.mxu0 0
    %9151 = vmatpush2.bf16.msra.mxu0 0
    %9152 = vmatprep.subr.bf16.mxu0 0
    %9153 = vmatpush2.bf16.msra.mxu0 0
    %9154 = vmatprep.subr.bf16.mxu0 0
    %9155 = vmatpush2.bf16.msra.mxu0 0
    %9156 = vmatprep.mubr.bf16.mxu0 0
    %9157 = vmatmul.mubr.bf16.gmra.mxu0 %v3938
    %v9158 = vpop.f32.mrf.mxu0
    %v9159 = vadd.f32 %v8982, %v9158
    %v9160 = vpop.f32.mrf.mxu0
    %v9161 = vpop.f32.mrf.mxu0
    %v9162 = vadd.f32 %v8985, %v9161
    %v9163 = vpop.f32.mrf.mxu0
    %9164 = vmatprep.mubr.bf16.mxu0 0
    %9165 = vmatmul.mubr.bf16.gmra.mxu0 %v4014
    %v9166 = vpop.f32.mrf.mxu0
    %v9167 = vadd.f32 %v8990, %v9166
    %v9168 = vpop.f32.mrf.mxu0
    %v9169 = vpop.f32.mrf.mxu0
    %v9170 = vadd.f32 %v8993, %v9169
    %v9171 = vpop.f32.mrf.mxu0
    %9172 = vmatprep.mubr.bf16.mxu0 0
    %9173 = vmatmul.mubr.bf16.gmra.mxu0 %v4090
    %v9174 = vpop.f32.mrf.mxu0
    %v9175 = vadd.f32 %v8998, %v9174
    %v9176 = vpop.f32.mrf.mxu0
    %v9177 = vpop.f32.mrf.mxu0
    %v9178 = vadd.f32 %v9001, %v9177
    %v9179 = vpop.f32.mrf.mxu0
    %9180 = vmatprep.mubr.bf16.mxu0 0
    %9181 = vmatmul.mubr.bf16.gmra.mxu0 %v4166
    %v9182 = vpop.f32.mrf.mxu0
    %v9183 = vadd.f32 %v9006, %v9182
    %v9184 = vpop.f32.mrf.mxu0
    %v9185 = vpop.f32.mrf.mxu0
    %v9186 = vadd.f32 %v9009, %v9185
    %v9187 = vpop.f32.mrf.mxu0
    %9188 = vmatprep.mubr.bf16.mxu0 0
    %9189 = vmatmul.mubr.bf16.gmra.mxu0 %v4242
    %v9190 = vpop.f32.mrf.mxu0
    %v9191 = vadd.f32 %v9014, %v9190
    %v9192 = vpop.f32.mrf.mxu0
    %v9193 = vpop.f32.mrf.mxu0
    %v9194 = vadd.f32 %v9017, %v9193
    %v9195 = vpop.f32.mrf.mxu0
    %9196 = vmatprep.mubr.bf16.mxu0 0
    %9197 = vmatmul.mubr.bf16.gmra.mxu0 %v4318
    %v9198 = vpop.f32.mrf.mxu0
    %v9199 = vadd.f32 %v9022, %v9198
    %v9200 = vpop.f32.mrf.mxu0
    %v9201 = vpop.f32.mrf.mxu0
    %v9202 = vadd.f32 %v9025, %v9201
    %v9203 = vpop.f32.mrf.mxu0
    %9204 = vmatprep.mubr.bf16.mxu0 0
    %9205 = vmatmul.mubr.bf16.gmra.mxu0 %v4394
    %v9206 = vpop.f32.mrf.mxu0
    %v9207 = vadd.f32 %v9030, %v9206
    %v9208 = vpop.f32.mrf.mxu0
    %v9209 = vpop.f32.mrf.mxu0
    %v9210 = vadd.f32 %v9033, %v9209
    %v9211 = vpop.f32.mrf.mxu0
    %9212 = vmatprep.mubr.bf16.mxu0 0
    %9213 = vmatmul.mubr.bf16.gmra.mxu0 %v4470
    %v9214 = vpop.f32.mrf.mxu0
    %v9215 = vadd.f32 %v9038, %v9214
    %v9216 = vpop.f32.mrf.mxu0
    %v9217 = vpop.f32.mrf.mxu0
    %v9218 = vadd.f32 %v9041, %v9217
    %v9219 = vpop.f32.mrf.mxu0
    %9220 = vmatprep.mubr.bf16.mxu0 0
    %9221 = vmatmul.mubr.bf16.gmra.mxu0 %v4546
    %v9222 = vpop.f32.mrf.mxu0
    %v9223 = vadd.f32 %v9046, %v9222
    %v9224 = vpop.f32.mrf.mxu0
    %v9225 = vpop.f32.mrf.mxu0
    %v9226 = vadd.f32 %v9049, %v9225
    %v9227 = vpop.f32.mrf.mxu0
    %9228 = vmatprep.mubr.bf16.mxu0 0
    %9229 = vmatmul.mubr.bf16.gmra.mxu0 %v4622
    %v9230 = vpop.f32.mrf.mxu0
    %v9231 = vadd.f32 %v9054, %v9230
    %v9232 = vpop.f32.mrf.mxu0
    %v9233 = vpop.f32.mrf.mxu0
    %v9234 = vadd.f32 %v9057, %v9233
    %v9235 = vpop.f32.mrf.mxu0
    %9236 = vmatprep.mubr.bf16.mxu0 0
    %9237 = vmatmul.mubr.bf16.gmra.mxu0 %v4698
    %v9238 = vpop.f32.mrf.mxu0
    %v9239 = vadd.f32 %v9062, %v9238
    %v9240 = vpop.f32.mrf.mxu0
    %v9241 = vpop.f32.mrf.mxu0
    %v9242 = vadd.f32 %v9065, %v9241
    %v9243 = vpop.f32.mrf.mxu0
    %9244 = vmatprep.mubr.bf16.mxu0 0
    %9245 = vmatmul.mubr.bf16.gmra.mxu0 %v4774
    %v9246 = vpop.f32.mrf.mxu0
    %v9247 = vadd.f32 %v9070, %v9246
    %v9248 = vpop.f32.mrf.mxu0
    %v9249 = vpop.f32.mrf.mxu0
    %v9250 = vadd.f32 %v9073, %v9249
    %v9251 = vpop.f32.mrf.mxu0
    %9252 = vmatprep.mubr.bf16.mxu0 0
    %9253 = vmatmul.mubr.bf16.gmra.mxu0 %v4850
    %v9254 = vpop.f32.mrf.mxu0
    %v9255 = vadd.f32 %v9078, %v9254
    %v9256 = vpop.f32.mrf.mxu0
    %v9257 = vpop.f32.mrf.mxu0
    %v9258 = vadd.f32 %v9081, %v9257
    %v9259 = vpop.f32.mrf.mxu0
    %9260 = vmatprep.mubr.bf16.mxu0 0
    %9261 = vmatmul.mubr.bf16.gmra.mxu0 %v4926
    %v9262 = vpop.f32.mrf.mxu0
    %v9263 = vadd.f32 %v9086, %v9262
    %v9264 = vpop.f32.mrf.mxu0
    %v9265 = vpop.f32.mrf.mxu0
    %v9266 = vadd.f32 %v9089, %v9265
    %v9267 = vpop.f32.mrf.mxu0
    %9268 = vmatprep.mubr.bf16.mxu0 0
    %9269 = vmatmul.mubr.bf16.gmra.mxu0 %v5002
    %v9270 = vpop.f32.mrf.mxu0
    %v9271 = vadd.f32 %v9094, %v9270
    %v9272 = vpop.f32.mrf.mxu0
    %v9273 = vpop.f32.mrf.mxu0
    %v9274 = vadd.f32 %v9097, %v9273
    %v9275 = vpop.f32.mrf.mxu0
    %9276 = vmatprep.mubr.bf16.mxu0 0
    %9277 = vmatmul.mubr.bf16.gmra.mxu0 %v5078
    %v9278 = vpop.f32.mrf.mxu0
    %v9279 = vadd.f32 %v9102, %v9278
    %v9280 = vpop.f32.mrf.mxu0
    %v9281 = vpop.f32.mrf.mxu0
    %v9282 = vadd.f32 %v9105, %v9281
    %v9283 = vpop.f32.mrf.mxu0
    %9284 = vmatprep.mubr.bf16.mxu0 0
    %9285 = vmatmul.mubr.bf16.gmra.mxu0 %v5154
    %v9286 = vpop.f32.mrf.mxu0
    %v9287 = vadd.f32 %v9110, %v9286
    %v9288 = vpop.f32.mrf.mxu0
    %v9289 = vpop.f32.mrf.mxu0
    %v9290 = vadd.f32 %v9113, %v9289
    %v9291 = vpop.f32.mrf.mxu0
    %9292 = vmatprep.mubr.bf16.mxu0 0
    %9293 = vmatmul.mubr.bf16.gmra.mxu0 %v5230
    %v9294 = vpop.f32.mrf.mxu0
    %v9295 = vadd.f32 %v9118, %v9294
    %v9296 = vpop.f32.mrf.mxu0
    %v9297 = vpop.f32.mrf.mxu0
    %v9298 = vadd.f32 %v9121, %v9297
    %v9299 = vpop.f32.mrf.mxu0
    %9300 = vdwg.mxu0
    %v9301 = vmax.f32 %v9159, 0.0
    %v9302 = vmax.f32 %v9162, 0.0
    %v9303 = vmax.f32 %v9167, 0.0
    %v9304 = vmax.f32 %v9170, 0.0
    %v9305 = vmax.f32 %v9175, 0.0
    %v9306 = vmax.f32 %v9178, 0.0
    %v9307 = vmax.f32 %v9183, 0.0
    %v9308 = vmax.f32 %v9186, 0.0
    %v9309 = vmax.f32 %v9191, 0.0
    %v9310 = vmax.f32 %v9194, 0.0
    %v9311 = vmax.f32 %v9199, 0.0
    %v9312 = vmax.f32 %v9202, 0.0
    %v9313 = vmax.f32 %v9207, 0.0
    %v9314 = vmax.f32 %v9210, 0.0
    %v9315 = vmax.f32 %v9215, 0.0
    %v9316 = vmax.f32 %v9218, 0.0
    %v9317 = vmax.f32 %v9223, 0.0
    %v9318 = vmax.f32 %v9226, 0.0
    %v9319 = vmax.f32 %v9231, 0.0
    %v9320 = vmax.f32 %v9234, 0.0
    %v9321 = vmax.f32 %v9239, 0.0
    %v9322 = vmax.f32 %v9242, 0.0
    %v9323 = vmax.f32 %v9247, 0.0
    %v9324 = vmax.f32 %v9250, 0.0
    %v9325 = vmax.f32 %v9255, 0.0
    %v9326 = vmax.f32 %v9258, 0.0
    %v9327 = vmax.f32 %v9263, 0.0
    %v9328 = vmax.f32 %v9266, 0.0
    %v9329 = vmax.f32 %v9271, 0.0
    %v9330 = vmax.f32 %v9274, 0.0
    %v9331 = vmax.f32 %v9279, 0.0
    %v9332 = vmax.f32 %v9282, 0.0
    %v9333 = vmax.f32 %v9287, 0.0
    %v9334 = vmax.f32 %v9290, 0.0
    %v9335 = vmax.f32 %v9295, 0.0
    %v9336 = vmax.f32 %v9298, 0.0
    %9337 = vst [vmem:[#allocation3] sm:$0xff] %v9301
    %9338 = vst [vmem:[#allocation3 + $0x8] sm:$0xff] %v9302
    %9339 = vst [vmem:[#allocation3 + $0x10] sm:$0xff] %v9303
    %9340 = vst [vmem:[#allocation3 + $0x18] sm:$0xff] %v9304
    %9341 = vst [vmem:[#allocation3 + $0x20] sm:$0xff] %v9305
    %9342 = vst [vmem:[#allocation3 + $0x28] sm:$0xff] %v9306
    %9343 = vst [vmem:[#allocation3 + $0x30] sm:$0xff] %v9307
    %9344 = vst [vmem:[#allocation3 + $0x38] sm:$0xff] %v9308
    %9345 = vst [vmem:[#allocation3 + $0x40] sm:$0xff] %v9309
    %9346 = vst [vmem:[#allocation3 + $0x48] sm:$0xff] %v9310
    %9347 = vst [vmem:[#allocation3 + $0x50] sm:$0xff] %v9311
    %9348 = vst [vmem:[#allocation3 + $0x58] sm:$0xff] %v9312
    %9349 = vst [vmem:[#allocation3 + $0x60] sm:$0xff] %v9313
    %9350 = vst [vmem:[#allocation3 + $0x68] sm:$0xff] %v9314
    %9351 = vst [vmem:[#allocation3 + $0x70] sm:$0xff] %v9315
    %9352 = vst [vmem:[#allocation3 + $0x78] sm:$0xff] %v9316
    %9353 = vst [vmem:[#allocation3 + $0x80] sm:$0xff] %v9317
    %9354 = vst [vmem:[#allocation3 + $0x88] sm:$0xff] %v9318
    %9355 = vst [vmem:[#allocation3 + $0x90] sm:$0xff] %v9319
    %9356 = vst [vmem:[#allocation3 + $0x98] sm:$0xff] %v9320
    %9357 = vst [vmem:[#allocation3 + $0xa0] sm:$0xff] %v9321
    %9358 = vst [vmem:[#allocation3 + $0xa8] sm:$0xff] %v9322
    %9359 = vst [vmem:[#allocation3 + $0xb0] sm:$0xff] %v9323
    %9360 = vst [vmem:[#allocation3 + $0xb8] sm:$0xff] %v9324
    %9361 = vst [vmem:[#allocation3 + $0xc0] sm:$0xff] %v9325
    %9362 = vst [vmem:[#allocation3 + $0xc8] sm:$0xff] %v9326
    %9363 = vst [vmem:[#allocation3 + $0xd0] sm:$0xff] %v9327
    %9364 = vst [vmem:[#allocation3 + $0xd8] sm:$0xff] %v9328
    %9365 = vst [vmem:[#allocation3 + $0xe0] sm:$0xff] %v9329
    %9366 = vst [vmem:[#allocation3 + $0xe8] sm:$0xff] %v9330
    %9367 = vst [vmem:[#allocation3 + $0xf0] sm:$0xff] %v9331
    %9368 = vst [vmem:[#allocation3 + $0xf8] sm:$0xff] %v9332
    %9369 = vst [vmem:[#allocation3 + $0x100] sm:$0xff] %v9333
    %9370 = vst [vmem:[#allocation3 + $0x108] sm:$0xff] %v9334
    %9371 = vst [vmem:[#allocation3 + $0x110] sm:$0xff] %v9335
    %9372 = vst [vmem:[#allocation3 + $0x118] sm:$0xff] %v9336
    %v9373 = vld [vmem:[#allocation3] ss:$144 sm:$0x3]
    %s9374 = scalar_lea.vmem [#allocation3], 1
    %v9375 = vld [vmem:[%s9374] ss:$144 sm:$0x3]
    %v9376 = vmax.f32 %v9373, %v9375
    %s9377 = scalar_lea.vmem [#allocation3], 12
    %v9378 = vld [vmem:[%s9377] ss:$144 sm:$0x3]
    %s9379 = scalar_lea.vmem [#allocation3], 13
    %v9380 = vld [vmem:[%s9379] ss:$144 sm:$0x3]
    %v9381 = vmax.f32 %v9378, %v9380
    %v9382 = vmax.f32 %v9376, %v9381
    %v9383 = vpack.c.bf16 %v9382, %v9382
    %9384 = vst [vmem:[#allocation4] sm:$0x1] %v9383
    %s9385 = scalar_lea.vmem [#allocation3], 2
    %v9386 = vld [vmem:[%s9385] ss:$144 sm:$0x3]
    %s9387 = scalar_lea.vmem [#allocation3], 3
    %v9388 = vld [vmem:[%s9387] ss:$144 sm:$0x3]
    %v9389 = vmax.f32 %v9386, %v9388
    %s9390 = scalar_lea.vmem [#allocation3], 14
    %v9391 = vld [vmem:[%s9390] ss:$144 sm:$0x3]
    %s9392 = scalar_lea.vmem [#allocation3], 15
    %v9393 = vld [vmem:[%s9392] ss:$144 sm:$0x3]
    %v9394 = vmax.f32 %v9391, %v9393
    %v9395 = vmax.f32 %v9389, %v9394
    %v9396 = vpack.c.bf16 %v9395, %v9395
    %9397 = vst [vmem:[#allocation4 + $0x1] sm:$0x1] %v9396
    %s9398 = scalar_lea.vmem [#allocation3], 4
    %v9399 = vld [vmem:[%s9398] ss:$144 sm:$0x3]
    %s9400 = scalar_lea.vmem [#allocation3], 5
    %v9401 = vld [vmem:[%s9400] ss:$144 sm:$0x3]
    %v9402 = vmax.f32 %v9399, %v9401
    %s9403 = scalar_lea.vmem [#allocation3], 16
    %v9404 = vld [vmem:[%s9403] ss:$144 sm:$0x3]
    %s9405 = scalar_lea.vmem [#allocation3], 17
    %v9406 = vld [vmem:[%s9405] ss:$144 sm:$0x3]
    %v9407 = vmax.f32 %v9404, %v9406
    %v9408 = vmax.f32 %v9402, %v9407
    %v9409 = vpack.c.bf16 %v9408, %v9408
    %9410 = vst [vmem:[#allocation4 + $0x2] sm:$0x1] %v9409
    %s9411 = scalar_lea.vmem [#allocation3], 6
    %v9412 = vld [vmem:[%s9411] ss:$144 sm:$0x3]
    %s9413 = scalar_lea.vmem [#allocation3], 7
    %v9414 = vld [vmem:[%s9413] ss:$144 sm:$0x3]
    %v9415 = vmax.f32 %v9412, %v9414
    %s9416 = scalar_lea.vmem [#allocation3], 18
    %v9417 = vld [vmem:[%s9416] ss:$144 sm:$0x3]
    %s9418 = scalar_lea.vmem [#allocation3], 19
    %v9419 = vld [vmem:[%s9418] ss:$144 sm:$0x3]
    %v9420 = vmax.f32 %v9417, %v9419
    %v9421 = vmax.f32 %v9415, %v9420
    %v9422 = vpack.c.bf16 %v9421, %v9421
    %9423 = vst [vmem:[#allocation4 + $0x3] sm:$0x1] %v9422
    %s9424 = scalar_lea.vmem [#allocation3], 24
    %v9425 = vld [vmem:[%s9424] ss:$144 sm:$0x3]
    %s9426 = scalar_lea.vmem [#allocation3], 25
    %v9427 = vld [vmem:[%s9426] ss:$144 sm:$0x3]
    %v9428 = vmax.f32 %v9425, %v9427
    %s9429 = scalar_lea.vmem [#allocation3], 36
    %v9430 = vld [vmem:[%s9429] ss:$144 sm:$0x3]
    %s9431 = scalar_lea.vmem [#allocation3], 37
    %v9432 = vld [vmem:[%s9431] ss:$144 sm:$0x3]
    %v9433 = vmax.f32 %v9430, %v9432
    %v9434 = vmax.f32 %v9428, %v9433
    %v9435 = vpack.c.bf16 %v9434, %v9434
    %9436 = vst [vmem:[#allocation4 + $0x4] sm:$0x1] %v9435
    %s9437 = scalar_lea.vmem [#allocation3], 26
    %v9438 = vld [vmem:[%s9437] ss:$144 sm:$0x3]
    %s9439 = scalar_lea.vmem [#allocation3], 27
    %v9440 = vld [vmem:[%s9439] ss:$144 sm:$0x3]
    %v9441 = vmax.f32 %v9438, %v9440
    %s9442 = scalar_lea.vmem [#allocation3], 38
    %v9443 = vld [vmem:[%s9442] ss:$144 sm:$0x3]
    %s9444 = scalar_lea.vmem [#allocation3], 39
    %v9445 = vld [vmem:[%s9444] ss:$144 sm:$0x3]
    %v9446 = vmax.f32 %v9443, %v9445
    %v9447 = vmax.f32 %v9441, %v9446
    %v9448 = vpack.c.bf16 %v9447, %v9447
    %9449 = vst [vmem:[#allocation4 + $0x5] sm:$0x1] %v9448
    %s9450 = scalar_lea.vmem [#allocation3], 28
    %v9451 = vld [vmem:[%s9450] ss:$144 sm:$0x3]
    %s9452 = scalar_lea.vmem [#allocation3], 29
    %v9453 = vld [vmem:[%s9452] ss:$144 sm:$0x3]
    %v9454 = vmax.f32 %v9451, %v9453
    %s9455 = scalar_lea.vmem [#allocation3], 40
    %v9456 = vld [vmem:[%s9455] ss:$144 sm:$0x3]
    %s9457 = scalar_lea.vmem [#allocation3], 41
    %v9458 = vld [vmem:[%s9457] ss:$144 sm:$0x3]
    %v9459 = vmax.f32 %v9456, %v9458
    %v9460 = vmax.f32 %v9454, %v9459
    %v9461 = vpack.c.bf16 %v9460, %v9460
    %9462 = vst [vmem:[#allocation4 + $0x6] sm:$0x1] %v9461
    %s9463 = scalar_lea.vmem [#allocation3], 30
    %v9464 = vld [vmem:[%s9463] ss:$144 sm:$0x3]
    %s9465 = scalar_lea.vmem [#allocation3], 31
    %v9466 = vld [vmem:[%s9465] ss:$144 sm:$0x3]
    %v9467 = vmax.f32 %v9464, %v9466
    %s9468 = scalar_lea.vmem [#allocation3], 42
    %v9469 = vld [vmem:[%s9468] ss:$144 sm:$0x3]
    %s9470 = scalar_lea.vmem [#allocation3], 43
    %v9471 = vld [vmem:[%s9470] ss:$144 sm:$0x3]
    %v9472 = vmax.f32 %v9469, %v9471
    %v9473 = vmax.f32 %v9467, %v9472
    %v9474 = vpack.c.bf16 %v9473, %v9473
    %9475 = vst [vmem:[#allocation4 + $0x7] sm:$0x1] %v9474
    %s9476 = scalar_lea.vmem [#allocation3], 48
    %v9477 = vld [vmem:[%s9476] ss:$144 sm:$0x3]
    %s9478 = scalar_lea.vmem [#allocation3], 49
    %v9479 = vld [vmem:[%s9478] ss:$144 sm:$0x3]
    %v9480 = vmax.f32 %v9477, %v9479
    %s9481 = scalar_lea.vmem [#allocation3], 60
    %v9482 = vld [vmem:[%s9481] ss:$144 sm:$0x3]
    %s9483 = scalar_lea.vmem [#allocation3], 61
    %v9484 = vld [vmem:[%s9483] ss:$144 sm:$0x3]
    %v9485 = vmax.f32 %v9482, %v9484
    %v9486 = vmax.f32 %v9480, %v9485
    %v9487 = vpack.c.bf16 %v9486, %v9486
    %9488 = vst [vmem:[#allocation4 + $0x8] sm:$0x1] %v9487
    %s9489 = scalar_lea.vmem [#allocation3], 50
    %v9490 = vld [vmem:[%s9489] ss:$144 sm:$0x3]
    %s9491 = scalar_lea.vmem [#allocation3], 51
    %v9492 = vld [vmem:[%s9491] ss:$144 sm:$0x3]
    %v9493 = vmax.f32 %v9490, %v9492
    %s9494 = scalar_lea.vmem [#allocation3], 62
    %v9495 = vld [vmem:[%s9494] ss:$144 sm:$0x3]
    %s9496 = scalar_lea.vmem [#allocation3], 63
    %v9497 = vld [vmem:[%s9496] ss:$144 sm:$0x3]
    %v9498 = vmax.f32 %v9495, %v9497
    %v9499 = vmax.f32 %v9493, %v9498
    %v9500 = vpack.c.bf16 %v9499, %v9499
    %9501 = vst [vmem:[#allocation4 + $0x9] sm:$0x1] %v9500
    %s9502 = scalar_lea.vmem [#allocation3], 52
    %v9503 = vld [vmem:[%s9502] ss:$144 sm:$0x3]
    %s9504 = scalar_lea.vmem [#allocation3], 53
    %v9505 = vld [vmem:[%s9504] ss:$144 sm:$0x3]
    %v9506 = vmax.f32 %v9503, %v9505
    %s9507 = scalar_lea.vmem [#allocation3], 64
    %v9508 = vld [vmem:[%s9507] ss:$144 sm:$0x3]
    %s9509 = scalar_lea.vmem [#allocation3], 65
    %v9510 = vld [vmem:[%s9509] ss:$144 sm:$0x3]
    %v9511 = vmax.f32 %v9508, %v9510
    %v9512 = vmax.f32 %v9506, %v9511
    %v9513 = vpack.c.bf16 %v9512, %v9512
    %9514 = vst [vmem:[#allocation4 + $0xa] sm:$0x1] %v9513
    %s9515 = scalar_lea.vmem [#allocation3], 54
    %v9516 = vld [vmem:[%s9515] ss:$144 sm:$0x3]
    %s9517 = scalar_lea.vmem [#allocation3], 55
    %v9518 = vld [vmem:[%s9517] ss:$144 sm:$0x3]
    %v9519 = vmax.f32 %v9516, %v9518
    %s9520 = scalar_lea.vmem [#allocation3], 66
    %v9521 = vld [vmem:[%s9520] ss:$144 sm:$0x3]
    %s9522 = scalar_lea.vmem [#allocation3], 67
    %v9523 = vld [vmem:[%s9522] ss:$144 sm:$0x3]
    %v9524 = vmax.f32 %v9521, %v9523
    %v9525 = vmax.f32 %v9519, %v9524
    %v9526 = vpack.c.bf16 %v9525, %v9525
    %9527 = vst [vmem:[#allocation4 + $0xb] sm:$0x1] %v9526
    %s9528 = scalar_lea.vmem [#allocation3], 72
    %v9529 = vld [vmem:[%s9528] ss:$144 sm:$0x3]
    %s9530 = scalar_lea.vmem [#allocation3], 73
    %v9531 = vld [vmem:[%s9530] ss:$144 sm:$0x3]
    %v9532 = vmax.f32 %v9529, %v9531
    %s9533 = scalar_lea.vmem [#allocation3], 84
    %v9534 = vld [vmem:[%s9533] ss:$144 sm:$0x3]
    %s9535 = scalar_lea.vmem [#allocation3], 85
    %v9536 = vld [vmem:[%s9535] ss:$144 sm:$0x3]
    %v9537 = vmax.f32 %v9534, %v9536
    %v9538 = vmax.f32 %v9532, %v9537
    %v9539 = vpack.c.bf16 %v9538, %v9538
    %9540 = vst [vmem:[#allocation4 + $0xc] sm:$0x1] %v9539
    %s9541 = scalar_lea.vmem [#allocation3], 74
    %v9542 = vld [vmem:[%s9541] ss:$144 sm:$0x3]
    %s9543 = scalar_lea.vmem [#allocation3], 75
    %v9544 = vld [vmem:[%s9543] ss:$144 sm:$0x3]
    %v9545 = vmax.f32 %v9542, %v9544
    %s9546 = scalar_lea.vmem [#allocation3], 86
    %v9547 = vld [vmem:[%s9546] ss:$144 sm:$0x3]
    %s9548 = scalar_lea.vmem [#allocation3], 87
    %v9549 = vld [vmem:[%s9548] ss:$144 sm:$0x3]
    %v9550 = vmax.f32 %v9547, %v9549
    %v9551 = vmax.f32 %v9545, %v9550
    %v9552 = vpack.c.bf16 %v9551, %v9551
    %9553 = vst [vmem:[#allocation4 + $0xd] sm:$0x1] %v9552
    %s9554 = scalar_lea.vmem [#allocation3], 76
    %v9555 = vld [vmem:[%s9554] ss:$144 sm:$0x3]
    %s9556 = scalar_lea.vmem [#allocation3], 77
    %v9557 = vld [vmem:[%s9556] ss:$144 sm:$0x3]
    %v9558 = vmax.f32 %v9555, %v9557
    %s9559 = scalar_lea.vmem [#allocation3], 88
    %v9560 = vld [vmem:[%s9559] ss:$144 sm:$0x3]
    %s9561 = scalar_lea.vmem [#allocation3], 89
    %v9562 = vld [vmem:[%s9561] ss:$144 sm:$0x3]
    %v9563 = vmax.f32 %v9560, %v9562
    %v9564 = vmax.f32 %v9558, %v9563
    %v9565 = vpack.c.bf16 %v9564, %v9564
    %9566 = vst [vmem:[#allocation4 + $0xe] sm:$0x1] %v9565
    %s9567 = scalar_lea.vmem [#allocation3], 78
    %v9568 = vld [vmem:[%s9567] ss:$144 sm:$0x3]
    %s9569 = scalar_lea.vmem [#allocation3], 79
    %v9570 = vld [vmem:[%s9569] ss:$144 sm:$0x3]
    %v9571 = vmax.f32 %v9568, %v9570
    %s9572 = scalar_lea.vmem [#allocation3], 90
    %v9573 = vld [vmem:[%s9572] ss:$144 sm:$0x3]
    %s9574 = scalar_lea.vmem [#allocation3], 91
    %v9575 = vld [vmem:[%s9574] ss:$144 sm:$0x3]
    %v9576 = vmax.f32 %v9573, %v9575
    %v9577 = vmax.f32 %v9571, %v9576
    %v9578 = vpack.c.bf16 %v9577, %v9577
    %9579 = vst [vmem:[#allocation4 + $0xf] sm:$0x1] %v9578
    %v9580 = vld [vmem:[#allocation4] sm:$0xff]
    %v9581 = vld [vmem:[#allocation4 + $0x8] sm:$0xff]
    %v9582 = vld [vmem:[%s5] sm:$0xff]
    %v9583 = vld [vmem:[%s5 + $0x8] sm:$0xff]
    %v9584 = vld [vmem:[%s5 + $0x10] sm:$0xff]
    %v9585 = vld [vmem:[%s5 + $0x18] sm:$0xff]
    %v9586 = vld [vmem:[%s5 + $0x20] sm:$0xff]
    %v9587 = vld [vmem:[%s5 + $0x28] sm:$0xff]
    %v9588 = vld [vmem:[%s5 + $0x30] sm:$0xff]
    %v9589 = vld [vmem:[%s5 + $0x38] sm:$0xff]
    %v9590 = vld [vmem:[%s5 + $0x40] sm:$0xff]
    %v9591 = vld [vmem:[%s5 + $0x48] sm:$0xff]
    %v9592 = vld [vmem:[%s5 + $0x50] sm:$0xff]
    %v9593 = vld [vmem:[%s5 + $0x58] sm:$0xff]
    %v9594 = vld [vmem:[%s5 + $0x60] sm:$0xff]
    %v9595 = vld [vmem:[%s5 + $0x68] sm:$0xff]
    %v9596 = vld [vmem:[%s5 + $0x70] sm:$0xff]
    %v9597 = vld [vmem:[%s5 + $0x78] sm:$0xff]
    %v9598 = vld [vmem:[%s5 + $0x80] sm:$0xff]
    %v9599 = vld [vmem:[%s5 + $0x88] sm:$0xff]
    %v9600 = vld [vmem:[%s5 + $0x90] sm:$0xff]
    %v9601 = vld [vmem:[%s5 + $0x98] sm:$0xff]
    %v9602 = vld [vmem:[%s5 + $0xa0] sm:$0xff]
    %v9603 = vld [vmem:[%s5 + $0xa8] sm:$0xff]
    %v9604 = vld [vmem:[%s5 + $0xb0] sm:$0xff]
    %v9605 = vld [vmem:[%s5 + $0xb8] sm:$0xff]
    %v9606 = vld [vmem:[%s5 + $0xc0] sm:$0xff]
    %v9607 = vld [vmem:[%s5 + $0xc8] sm:$0xff]
    %v9608 = vld [vmem:[%s5 + $0xd0] sm:$0xff]
    %v9609 = vld [vmem:[%s5 + $0xd8] sm:$0xff]
    %v9610 = vld [vmem:[%s5 + $0xe0] sm:$0xff]
    %v9611 = vld [vmem:[%s5 + $0xe8] sm:$0xff]
    %v9612 = vld [vmem:[%s5 + $0xf0] sm:$0xff]
    %v9613 = vld [vmem:[%s5 + $0xf8] sm:$0xff]
    %v9614 = vld [vmem:[%s5 + $0x100] sm:$0xff]
    %v9615 = vld [vmem:[%s5 + $0x108] sm:$0xff]
    %v9616 = vld [vmem:[%s5 + $0x110] sm:$0xff]
    %v9617 = vld [vmem:[%s5 + $0x118] sm:$0xff]
    %v9618 = vld [vmem:[%s5 + $0x120] sm:$0xff]
    %v9619 = vld [vmem:[%s5 + $0x128] sm:$0xff]
    %v9620 = vld [vmem:[%s5 + $0x130] sm:$0xff]
    %v9621 = vld [vmem:[%s5 + $0x138] sm:$0xff]
    %v9622 = vld [vmem:[%s5 + $0x140] sm:$0xff]
    %v9623 = vld [vmem:[%s5 + $0x148] sm:$0xff]
    %v9624 = vld [vmem:[%s5 + $0x150] sm:$0xff]
    %v9625 = vld [vmem:[%s5 + $0x158] sm:$0xff]
    %v9626 = vld [vmem:[%s5 + $0x160] sm:$0xff]
    %v9627 = vld [vmem:[%s5 + $0x168] sm:$0xff]
    %v9628 = vld [vmem:[%s5 + $0x170] sm:$0xff]
    %v9629 = vld [vmem:[%s5 + $0x178] sm:$0xff]
    %v9630 = vld [vmem:[%s5 + $0x180] sm:$0xff]
    %v9631 = vld [vmem:[%s5 + $0x188] sm:$0xff]
    %v9632 = vld [vmem:[%s5 + $0x190] sm:$0xff]
    %v9633 = vld [vmem:[%s5 + $0x198] sm:$0xff]
    %v9634 = vld [vmem:[%s5 + $0x1a0] sm:$0xff]
    %v9635 = vld [vmem:[%s5 + $0x1a8] sm:$0xff]
    %v9636 = vld [vmem:[%s5 + $0x1b0] sm:$0xff]
    %v9637 = vld [vmem:[%s5 + $0x1b8] sm:$0xff]
    %v9638 = vld [vmem:[%s5 + $0x1c0] sm:$0xff]
    %v9639 = vld [vmem:[%s5 + $0x1c8] sm:$0xff]
    %v9640 = vld [vmem:[%s5 + $0x1d0] sm:$0xff]
    %v9641 = vld [vmem:[%s5 + $0x1d8] sm:$0xff]
    %v9642 = vld [vmem:[%s5 + $0x1e0] sm:$0xff]
    %v9643 = vld [vmem:[%s5 + $0x1e8] sm:$0xff]
    %v9644 = vld [vmem:[%s5 + $0x1f0] sm:$0xff]
    %v9645 = vld [vmem:[%s5 + $0x1f8] sm:$0xff]
    %v9646 = vld [vmem:[%s5 + $0x200] sm:$0xff]
    %v9647 = vld [vmem:[%s5 + $0x208] sm:$0xff]
    %v9648 = vld [vmem:[%s5 + $0x210] sm:$0xff]
    %v9649 = vld [vmem:[%s5 + $0x218] sm:$0xff]
    %v9650 = vld [vmem:[%s5 + $0x220] sm:$0xff]
    %v9651 = vld [vmem:[%s5 + $0x228] sm:$0xff]
    %v9652 = vld [vmem:[%s5 + $0x230] sm:$0xff]
    %v9653 = vld [vmem:[%s5 + $0x238] sm:$0xff]
    %v9654 = vld [vmem:[%s5 + $0x240] sm:$0xff]
    %v9655 = vld [vmem:[%s5 + $0x248] sm:$0xff]
    %v9656 = vld [vmem:[%s5 + $0x250] sm:$0xff]
    %v9657 = vld [vmem:[%s5 + $0x258] sm:$0xff]
    %v9658 = vld [vmem:[%s5 + $0x260] sm:$0xff]
    %v9659 = vld [vmem:[%s5 + $0x268] sm:$0xff]
    %v9660 = vld [vmem:[%s5 + $0x270] sm:$0xff]
    %v9661 = vld [vmem:[%s5 + $0x278] sm:$0xff]
    %v9662 = vld [vmem:[%s5 + $0x280] sm:$0xff]
    %v9663 = vld [vmem:[%s5 + $0x288] sm:$0xff]
    %v9664 = vld [vmem:[%s5 + $0x290] sm:$0xff]
    %v9665 = vld [vmem:[%s5 + $0x298] sm:$0xff]
    %v9666 = vld [vmem:[%s5 + $0x2a0] sm:$0xff]
    %v9667 = vld [vmem:[%s5 + $0x2a8] sm:$0xff]
    %v9668 = vld [vmem:[%s5 + $0x2b0] sm:$0xff]
    %v9669 = vld [vmem:[%s5 + $0x2b8] sm:$0xff]
    %v9670 = vld [vmem:[%s5 + $0x2c0] sm:$0xff]
    %v9671 = vld [vmem:[%s5 + $0x2c8] sm:$0xff]
    %v9672 = vld [vmem:[%s5 + $0x2d0] sm:$0xff]
    %v9673 = vld [vmem:[%s5 + $0x2d8] sm:$0xff]
    %v9674 = vld [vmem:[%s5 + $0x2e0] sm:$0xff]
    %v9675 = vld [vmem:[%s5 + $0x2e8] sm:$0xff]
    %v9676 = vld [vmem:[%s5 + $0x2f0] sm:$0xff]
    %v9677 = vld [vmem:[%s5 + $0x2f8] sm:$0xff]
    %v9678 = vld [vmem:[%s5 + $0x300] sm:$0xff]
    %v9679 = vld [vmem:[%s5 + $0x308] sm:$0xff]
    %v9680 = vld [vmem:[%s5 + $0x310] sm:$0xff]
    %v9681 = vld [vmem:[%s5 + $0x318] sm:$0xff]
    %v9682 = vld [vmem:[%s5 + $0x320] sm:$0xff]
    %v9683 = vld [vmem:[%s5 + $0x328] sm:$0xff]
    %v9684 = vld [vmem:[%s5 + $0x330] sm:$0xff]
    %v9685 = vld [vmem:[%s5 + $0x338] sm:$0xff]
    %v9686 = vld [vmem:[%s5 + $0x340] sm:$0xff]
    %v9687 = vld [vmem:[%s5 + $0x348] sm:$0xff]
    %v9688 = vld [vmem:[%s5 + $0x350] sm:$0xff]
    %v9689 = vld [vmem:[%s5 + $0x358] sm:$0xff]
    %v9690 = vld [vmem:[%s5 + $0x360] sm:$0xff]
    %v9691 = vld [vmem:[%s5 + $0x368] sm:$0xff]
    %v9692 = vld [vmem:[%s5 + $0x370] sm:$0xff]
    %v9693 = vld [vmem:[%s5 + $0x378] sm:$0xff]
    %v9694 = vld [vmem:[%s5 + $0x380] sm:$0xff]
    %v9695 = vld [vmem:[%s5 + $0x388] sm:$0xff]
    %v9696 = vld [vmem:[%s5 + $0x390] sm:$0xff]
    %v9697 = vld [vmem:[%s5 + $0x398] sm:$0xff]
    %v9698 = vld [vmem:[%s5 + $0x3a0] sm:$0xff]
    %v9699 = vld [vmem:[%s5 + $0x3a8] sm:$0xff]
    %v9700 = vld [vmem:[%s5 + $0x3b0] sm:$0xff]
    %v9701 = vld [vmem:[%s5 + $0x3b8] sm:$0xff]
    %v9702 = vld [vmem:[%s5 + $0x3c0] sm:$0xff]
    %v9703 = vld [vmem:[%s5 + $0x3c8] sm:$0xff]
    %v9704 = vld [vmem:[%s5 + $0x3d0] sm:$0xff]
    %v9705 = vld [vmem:[%s5 + $0x3d8] sm:$0xff]
    %v9706 = vld [vmem:[%s5 + $0x3e0] sm:$0xff]
    %v9707 = vld [vmem:[%s5 + $0x3e8] sm:$0xff]
    %v9708 = vld [vmem:[%s5 + $0x3f0] sm:$0xff]
    %v9709 = vld [vmem:[%s5 + $0x3f8] sm:$0xff]
    %v9710 = vld [vmem:[%s5 + $0x400] sm:$0xff]
    %v9711 = vld [vmem:[%s5 + $0x408] sm:$0xff]
    %v9712 = vld [vmem:[%s5 + $0x410] sm:$0xff]
    %v9713 = vld [vmem:[%s5 + $0x418] sm:$0xff]
    %v9714 = vld [vmem:[%s5 + $0x420] sm:$0xff]
    %v9715 = vld [vmem:[%s5 + $0x428] sm:$0xff]
    %v9716 = vld [vmem:[%s5 + $0x430] sm:$0xff]
    %v9717 = vld [vmem:[%s5 + $0x438] sm:$0xff]
    %v9718 = vld [vmem:[%s5 + $0x440] sm:$0xff]
    %v9719 = vld [vmem:[%s5 + $0x448] sm:$0xff]
    %v9720 = vld [vmem:[%s5 + $0x450] sm:$0xff]
    %v9721 = vld [vmem:[%s5 + $0x458] sm:$0xff]
    %v9722 = vld [vmem:[%s5 + $0x460] sm:$0xff]
    %v9723 = vld [vmem:[%s5 + $0x468] sm:$0xff]
    %v9724 = vld [vmem:[%s5 + $0x470] sm:$0xff]
    %v9725 = vld [vmem:[%s5 + $0x478] sm:$0xff]
    %v9726 = vld [vmem:[%s5 + $0x480] sm:$0xff]
    %v9727 = vld [vmem:[%s5 + $0x488] sm:$0xff]
    %v9728 = vld [vmem:[%s5 + $0x490] sm:$0xff]
    %v9729 = vld [vmem:[%s5 + $0x498] sm:$0xff]
    %v9730 = vld [vmem:[%s5 + $0x4a0] sm:$0xff]
    %v9731 = vld [vmem:[%s5 + $0x4a8] sm:$0xff]
    %v9732 = vld [vmem:[%s5 + $0x4b0] sm:$0xff]
    %v9733 = vld [vmem:[%s5 + $0x4b8] sm:$0xff]
    %v9734 = vld [vmem:[%s5 + $0x4c0] sm:$0xff]
    %v9735 = vld [vmem:[%s5 + $0x4c8] sm:$0xff]
    %v9736 = vld [vmem:[%s5 + $0x4d0] sm:$0xff]
    %v9737 = vld [vmem:[%s5 + $0x4d8] sm:$0xff]
    %v9738 = vld [vmem:[%s5 + $0x4e0] sm:$0xff]
    %v9739 = vld [vmem:[%s5 + $0x4e8] sm:$0xff]
    %v9740 = vld [vmem:[%s5 + $0x4f0] sm:$0xff]
    %v9741 = vld [vmem:[%s5 + $0x4f8] sm:$0xff]
    %v9742 = vld [vmem:[%s5 + $0x500] sm:$0xff]
    %v9743 = vld [vmem:[%s5 + $0x508] sm:$0xff]
    %v9744 = vld [vmem:[%s5 + $0x510] sm:$0xff]
    %v9745 = vld [vmem:[%s5 + $0x518] sm:$0xff]
    %v9746 = vld [vmem:[%s5 + $0x520] sm:$0xff]
    %v9747 = vld [vmem:[%s5 + $0x528] sm:$0xff]
    %v9748 = vld [vmem:[%s5 + $0x530] sm:$0xff]
    %v9749 = vld [vmem:[%s5 + $0x538] sm:$0xff]
    %v9750 = vld [vmem:[%s5 + $0x540] sm:$0xff]
    %v9751 = vld [vmem:[%s5 + $0x548] sm:$0xff]
    %v9752 = vld [vmem:[%s5 + $0x550] sm:$0xff]
    %v9753 = vld [vmem:[%s5 + $0x558] sm:$0xff]
    %v9754 = vld [vmem:[%s5 + $0x560] sm:$0xff]
    %v9755 = vld [vmem:[%s5 + $0x568] sm:$0xff]
    %v9756 = vld [vmem:[%s5 + $0x570] sm:$0xff]
    %v9757 = vld [vmem:[%s5 + $0x578] sm:$0xff]
    %v9758 = vld [vmem:[%s5 + $0x580] sm:$0xff]
    %v9759 = vld [vmem:[%s5 + $0x588] sm:$0xff]
    %v9760 = vld [vmem:[%s5 + $0x590] sm:$0xff]
    %v9761 = vld [vmem:[%s5 + $0x598] sm:$0xff]
    %v9762 = vld [vmem:[%s5 + $0x5a0] sm:$0xff]
    %v9763 = vld [vmem:[%s5 + $0x5a8] sm:$0xff]
    %v9764 = vld [vmem:[%s5 + $0x5b0] sm:$0xff]
    %v9765 = vld [vmem:[%s5 + $0x5b8] sm:$0xff]
    %v9766 = vld [vmem:[%s5 + $0x5c0] sm:$0xff]
    %v9767 = vld [vmem:[%s5 + $0x5c8] sm:$0xff]
    %v9768 = vld [vmem:[%s5 + $0x5d0] sm:$0xff]
    %v9769 = vld [vmem:[%s5 + $0x5d8] sm:$0xff]
    %v9770 = vld [vmem:[%s5 + $0x5e0] sm:$0xff]
    %v9771 = vld [vmem:[%s5 + $0x5e8] sm:$0xff]
    %v9772 = vld [vmem:[%s5 + $0x5f0] sm:$0xff]
    %v9773 = vld [vmem:[%s5 + $0x5f8] sm:$0xff]
    %v9774 = vld [vmem:[%s5 + $0x600] sm:$0xff]
    %v9775 = vld [vmem:[%s5 + $0x608] sm:$0xff]
    %v9776 = vld [vmem:[%s5 + $0x610] sm:$0xff]
    %v9777 = vld [vmem:[%s5 + $0x618] sm:$0xff]
    %v9778 = vld [vmem:[%s5 + $0x620] sm:$0xff]
    %v9779 = vld [vmem:[%s5 + $0x628] sm:$0xff]
    %v9780 = vld [vmem:[%s5 + $0x630] sm:$0xff]
    %v9781 = vld [vmem:[%s5 + $0x638] sm:$0xff]
    %v9782 = vld [vmem:[%s5 + $0x640] sm:$0xff]
    %v9783 = vld [vmem:[%s5 + $0x648] sm:$0xff]
    %v9784 = vld [vmem:[%s5 + $0x650] sm:$0xff]
    %v9785 = vld [vmem:[%s5 + $0x658] sm:$0xff]
    %v9786 = vld [vmem:[%s5 + $0x660] sm:$0xff]
    %v9787 = vld [vmem:[%s5 + $0x668] sm:$0xff]
    %v9788 = vld [vmem:[%s5 + $0x670] sm:$0xff]
    %v9789 = vld [vmem:[%s5 + $0x678] sm:$0xff]
    %v9790 = vld [vmem:[%s5 + $0x680] sm:$0xff]
    %v9791 = vld [vmem:[%s5 + $0x688] sm:$0xff]
    %v9792 = vld [vmem:[%s5 + $0x690] sm:$0xff]
    %v9793 = vld [vmem:[%s5 + $0x698] sm:$0xff]
    %v9794 = vld [vmem:[%s5 + $0x6a0] sm:$0xff]
    %v9795 = vld [vmem:[%s5 + $0x6a8] sm:$0xff]
    %v9796 = vld [vmem:[%s5 + $0x6b0] sm:$0xff]
    %v9797 = vld [vmem:[%s5 + $0x6b8] sm:$0xff]
    %v9798 = vld [vmem:[%s5 + $0x6c0] sm:$0xff]
    %v9799 = vld [vmem:[%s5 + $0x6c8] sm:$0xff]
    %v9800 = vld [vmem:[%s5 + $0x6d0] sm:$0xff]
    %v9801 = vld [vmem:[%s5 + $0x6d8] sm:$0xff]
    %v9802 = vld [vmem:[%s5 + $0x6e0] sm:$0xff]
    %v9803 = vld [vmem:[%s5 + $0x6e8] sm:$0xff]
    %v9804 = vld [vmem:[%s5 + $0x6f0] sm:$0xff]
    %v9805 = vld [vmem:[%s5 + $0x6f8] sm:$0xff]
    %v9806 = vld [vmem:[%s5 + $0x700] sm:$0xff]
    %v9807 = vld [vmem:[%s5 + $0x708] sm:$0xff]
    %v9808 = vld [vmem:[%s5 + $0x710] sm:$0xff]
    %v9809 = vld [vmem:[%s5 + $0x718] sm:$0xff]
    %v9810 = vld [vmem:[%s5 + $0x720] sm:$0xff]
    %v9811 = vld [vmem:[%s5 + $0x728] sm:$0xff]
    %v9812 = vld [vmem:[%s5 + $0x730] sm:$0xff]
    %v9813 = vld [vmem:[%s5 + $0x738] sm:$0xff]
    %v9814 = vld [vmem:[%s5 + $0x740] sm:$0xff]
    %v9815 = vld [vmem:[%s5 + $0x748] sm:$0xff]
    %v9816 = vld [vmem:[%s5 + $0x750] sm:$0xff]
    %v9817 = vld [vmem:[%s5 + $0x758] sm:$0xff]
    %v9818 = vld [vmem:[%s5 + $0x760] sm:$0xff]
    %v9819 = vld [vmem:[%s5 + $0x768] sm:$0xff]
    %v9820 = vld [vmem:[%s5 + $0x770] sm:$0xff]
    %v9821 = vld [vmem:[%s5 + $0x778] sm:$0xff]
    %v9822 = vld [vmem:[%s5 + $0x780] sm:$0xff]
    %v9823 = vld [vmem:[%s5 + $0x788] sm:$0xff]
    %v9824 = vld [vmem:[%s5 + $0x790] sm:$0xff]
    %v9825 = vld [vmem:[%s5 + $0x798] sm:$0xff]
    %v9826 = vld [vmem:[%s5 + $0x7a0] sm:$0xff]
    %v9827 = vld [vmem:[%s5 + $0x7a8] sm:$0xff]
    %v9828 = vld [vmem:[%s5 + $0x7b0] sm:$0xff]
    %v9829 = vld [vmem:[%s5 + $0x7b8] sm:$0xff]
    %v9830 = vld [vmem:[%s5 + $0x7c0] sm:$0xff]
    %v9831 = vld [vmem:[%s5 + $0x7c8] sm:$0xff]
    %v9832 = vld [vmem:[%s5 + $0x7d0] sm:$0xff]
    %v9833 = vld [vmem:[%s5 + $0x7d8] sm:$0xff]
    %v9834 = vld [vmem:[%s5 + $0x7e0] sm:$0xff]
    %v9835 = vld [vmem:[%s5 + $0x7e8] sm:$0xff]
    %v9836 = vld [vmem:[%s5 + $0x7f0] sm:$0xff]
    %v9837 = vld [vmem:[%s5 + $0x7f8] sm:$0xff]
    %v9838 = vld [vmem:[%s5 + $0x800] sm:$0xff]
    %v9839 = vld [vmem:[%s5 + $0x808] sm:$0xff]
    %v9840 = vld [vmem:[%s5 + $0x810] sm:$0xff]
    %v9841 = vld [vmem:[%s5 + $0x818] sm:$0xff]
    %v9842 = vld [vmem:[%s5 + $0x820] sm:$0xff]
    %v9843 = vld [vmem:[%s5 + $0x828] sm:$0xff]
    %v9844 = vld [vmem:[%s5 + $0x830] sm:$0xff]
    %v9845 = vld [vmem:[%s5 + $0x838] sm:$0xff]
    %v9846 = vld [vmem:[%s5 + $0x840] sm:$0xff]
    %v9847 = vld [vmem:[%s5 + $0x848] sm:$0xff]
    %v9848 = vld [vmem:[%s5 + $0x850] sm:$0xff]
    %v9849 = vld [vmem:[%s5 + $0x858] sm:$0xff]
    %v9850 = vld [vmem:[%s5 + $0x860] sm:$0xff]
    %v9851 = vld [vmem:[%s5 + $0x868] sm:$0xff]
    %v9852 = vld [vmem:[%s5 + $0x870] sm:$0xff]
    %v9853 = vld [vmem:[%s5 + $0x878] sm:$0xff]
    %v9854 = vld [vmem:[%s5 + $0x880] sm:$0xff]
    %v9855 = vld [vmem:[%s5 + $0x888] sm:$0xff]
    %v9856 = vld [vmem:[%s5 + $0x890] sm:$0xff]
    %v9857 = vld [vmem:[%s5 + $0x898] sm:$0xff]
    %v9858 = vld [vmem:[%s5 + $0x8a0] sm:$0xff]
    %v9859 = vld [vmem:[%s5 + $0x8a8] sm:$0xff]
    %v9860 = vld [vmem:[%s5 + $0x8b0] sm:$0xff]
    %v9861 = vld [vmem:[%s5 + $0x8b8] sm:$0xff]
    %v9862 = vld [vmem:[%s5 + $0x8c0] sm:$0xff]
    %v9863 = vld [vmem:[%s5 + $0x8c8] sm:$0xff]
    %v9864 = vld [vmem:[%s5 + $0x8d0] sm:$0xff]
    %v9865 = vld [vmem:[%s5 + $0x8d8] sm:$0xff]
    %v9866 = vld [vmem:[%s5 + $0x8e0] sm:$0xff]
    %v9867 = vld [vmem:[%s5 + $0x8e8] sm:$0xff]
    %v9868 = vld [vmem:[%s5 + $0x8f0] sm:$0xff]
    %v9869 = vld [vmem:[%s5 + $0x8f8] sm:$0xff]
    %v9870 = vld [vmem:[%s5 + $0x900] sm:$0xff]
    %v9871 = vld [vmem:[%s5 + $0x908] sm:$0xff]
    %v9872 = vld [vmem:[%s5 + $0x910] sm:$0xff]
    %v9873 = vld [vmem:[%s5 + $0x918] sm:$0xff]
    %v9874 = vld [vmem:[%s5 + $0x920] sm:$0xff]
    %v9875 = vld [vmem:[%s5 + $0x928] sm:$0xff]
    %v9876 = vld [vmem:[%s5 + $0x930] sm:$0xff]
    %v9877 = vld [vmem:[%s5 + $0x938] sm:$0xff]
    %v9878 = vld [vmem:[%s5 + $0x940] sm:$0xff]
    %v9879 = vld [vmem:[%s5 + $0x948] sm:$0xff]
    %v9880 = vld [vmem:[%s5 + $0x950] sm:$0xff]
    %v9881 = vld [vmem:[%s5 + $0x958] sm:$0xff]
    %v9882 = vld [vmem:[%s5 + $0x960] sm:$0xff]
    %v9883 = vld [vmem:[%s5 + $0x968] sm:$0xff]
    %v9884 = vld [vmem:[%s5 + $0x970] sm:$0xff]
    %v9885 = vld [vmem:[%s5 + $0x978] sm:$0xff]
    %v9886 = vld [vmem:[%s5 + $0x980] sm:$0xff]
    %v9887 = vld [vmem:[%s5 + $0x988] sm:$0xff]
    %v9888 = vld [vmem:[%s5 + $0x990] sm:$0xff]
    %v9889 = vld [vmem:[%s5 + $0x998] sm:$0xff]
    %v9890 = vld [vmem:[%s5 + $0x9a0] sm:$0xff]
    %v9891 = vld [vmem:[%s5 + $0x9a8] sm:$0xff]
    %v9892 = vld [vmem:[%s5 + $0x9b0] sm:$0xff]
    %v9893 = vld [vmem:[%s5 + $0x9b8] sm:$0xff]
    %v9894 = vld [vmem:[%s5 + $0x9c0] sm:$0xff]
    %v9895 = vld [vmem:[%s5 + $0x9c8] sm:$0xff]
    %v9896 = vld [vmem:[%s5 + $0x9d0] sm:$0xff]
    %v9897 = vld [vmem:[%s5 + $0x9d8] sm:$0xff]
    %v9898 = vld [vmem:[%s5 + $0x9e0] sm:$0xff]
    %v9899 = vld [vmem:[%s5 + $0x9e8] sm:$0xff]
    %v9900 = vld [vmem:[%s5 + $0x9f0] sm:$0xff]
    %v9901 = vld [vmem:[%s5 + $0x9f8] sm:$0xff]
    %v9902 = vld [vmem:[%s5 + $0xa00] sm:$0xff]
    %v9903 = vld [vmem:[%s5 + $0xa08] sm:$0xff]
    %v9904 = vld [vmem:[%s5 + $0xa10] sm:$0xff]
    %v9905 = vld [vmem:[%s5 + $0xa18] sm:$0xff]
    %v9906 = vld [vmem:[%s5 + $0xa20] sm:$0xff]
    %v9907 = vld [vmem:[%s5 + $0xa28] sm:$0xff]
    %v9908 = vld [vmem:[%s5 + $0xa30] sm:$0xff]
    %v9909 = vld [vmem:[%s5 + $0xa38] sm:$0xff]
    %v9910 = vld [vmem:[%s5 + $0xa40] sm:$0xff]
    %v9911 = vld [vmem:[%s5 + $0xa48] sm:$0xff]
    %v9912 = vld [vmem:[%s5 + $0xa50] sm:$0xff]
    %v9913 = vld [vmem:[%s5 + $0xa58] sm:$0xff]
    %v9914 = vld [vmem:[%s5 + $0xa60] sm:$0xff]
    %v9915 = vld [vmem:[%s5 + $0xa68] sm:$0xff]
    %v9916 = vld [vmem:[%s5 + $0xa70] sm:$0xff]
    %v9917 = vld [vmem:[%s5 + $0xa78] sm:$0xff]
    %v9918 = vld [vmem:[%s5 + $0xa80] sm:$0xff]
    %v9919 = vld [vmem:[%s5 + $0xa88] sm:$0xff]
    %v9920 = vld [vmem:[%s5 + $0xa90] sm:$0xff]
    %v9921 = vld [vmem:[%s5 + $0xa98] sm:$0xff]
    %v9922 = vld [vmem:[%s5 + $0xaa0] sm:$0xff]
    %v9923 = vld [vmem:[%s5 + $0xaa8] sm:$0xff]
    %v9924 = vld [vmem:[%s5 + $0xab0] sm:$0xff]
    %v9925 = vld [vmem:[%s5 + $0xab8] sm:$0xff]
    %v9926 = vld [vmem:[%s5 + $0xac0] sm:$0xff]
    %v9927 = vld [vmem:[%s5 + $0xac8] sm:$0xff]
    %v9928 = vld [vmem:[%s5 + $0xad0] sm:$0xff]
    %v9929 = vld [vmem:[%s5 + $0xad8] sm:$0xff]
    %v9930 = vld [vmem:[%s5 + $0xae0] sm:$0xff]
    %v9931 = vld [vmem:[%s5 + $0xae8] sm:$0xff]
    %v9932 = vld [vmem:[%s5 + $0xaf0] sm:$0xff]
    %v9933 = vld [vmem:[%s5 + $0xaf8] sm:$0xff]
    %v9934 = vld [vmem:[%s5 + $0xb00] sm:$0xff]
    %v9935 = vld [vmem:[%s5 + $0xb08] sm:$0xff]
    %v9936 = vld [vmem:[%s5 + $0xb10] sm:$0xff]
    %v9937 = vld [vmem:[%s5 + $0xb18] sm:$0xff]
    %v9938 = vld [vmem:[%s5 + $0xb20] sm:$0xff]
    %v9939 = vld [vmem:[%s5 + $0xb28] sm:$0xff]
    %v9940 = vld [vmem:[%s5 + $0xb30] sm:$0xff]
    %v9941 = vld [vmem:[%s5 + $0xb38] sm:$0xff]
    %v9942 = vld [vmem:[%s5 + $0xb40] sm:$0xff]
    %v9943 = vld [vmem:[%s5 + $0xb48] sm:$0xff]
    %v9944 = vld [vmem:[%s5 + $0xb50] sm:$0xff]
    %v9945 = vld [vmem:[%s5 + $0xb58] sm:$0xff]
    %v9946 = vld [vmem:[%s5 + $0xb60] sm:$0xff]
    %v9947 = vld [vmem:[%s5 + $0xb68] sm:$0xff]
    %v9948 = vld [vmem:[%s5 + $0xb70] sm:$0xff]
    %v9949 = vld [vmem:[%s5 + $0xb78] sm:$0xff]
    %v9950 = vld [vmem:[%s5 + $0xb80] sm:$0xff]
    %v9951 = vld [vmem:[%s5 + $0xb88] sm:$0xff]
    %v9952 = vld [vmem:[%s5 + $0xb90] sm:$0xff]
    %v9953 = vld [vmem:[%s5 + $0xb98] sm:$0xff]
    %v9954 = vld [vmem:[%s5 + $0xba0] sm:$0xff]
    %v9955 = vld [vmem:[%s5 + $0xba8] sm:$0xff]
    %v9956 = vld [vmem:[%s5 + $0xbb0] sm:$0xff]
    %v9957 = vld [vmem:[%s5 + $0xbb8] sm:$0xff]
    %v9958 = vld [vmem:[%s5 + $0xbc0] sm:$0xff]
    %v9959 = vld [vmem:[%s5 + $0xbc8] sm:$0xff]
    %v9960 = vld [vmem:[%s5 + $0xbd0] sm:$0xff]
    %v9961 = vld [vmem:[%s5 + $0xbd8] sm:$0xff]
    %v9962 = vld [vmem:[%s5 + $0xbe0] sm:$0xff]
    %v9963 = vld [vmem:[%s5 + $0xbe8] sm:$0xff]
    %v9964 = vld [vmem:[%s5 + $0xbf0] sm:$0xff]
    %v9965 = vld [vmem:[%s5 + $0xbf8] sm:$0xff]
    %v9966 = vld [vmem:[%s5 + $0xc00] sm:$0xff]
    %v9967 = vld [vmem:[%s5 + $0xc08] sm:$0xff]
    %v9968 = vld [vmem:[%s5 + $0xc10] sm:$0xff]
    %v9969 = vld [vmem:[%s5 + $0xc18] sm:$0xff]
    %v9970 = vld [vmem:[%s5 + $0xc20] sm:$0xff]
    %v9971 = vld [vmem:[%s5 + $0xc28] sm:$0xff]
    %v9972 = vld [vmem:[%s5 + $0xc30] sm:$0xff]
    %v9973 = vld [vmem:[%s5 + $0xc38] sm:$0xff]
    %v9974 = vld [vmem:[%s5 + $0xc40] sm:$0xff]
    %v9975 = vld [vmem:[%s5 + $0xc48] sm:$0xff]
    %v9976 = vld [vmem:[%s5 + $0xc50] sm:$0xff]
    %v9977 = vld [vmem:[%s5 + $0xc58] sm:$0xff]
    %v9978 = vld [vmem:[%s5 + $0xc60] sm:$0xff]
    %v9979 = vld [vmem:[%s5 + $0xc68] sm:$0xff]
    %v9980 = vld [vmem:[%s5 + $0xc70] sm:$0xff]
    %v9981 = vld [vmem:[%s5 + $0xc78] sm:$0xff]
    %v9982 = vld [vmem:[%s5 + $0xc80] sm:$0xff]
    %v9983 = vld [vmem:[%s5 + $0xc88] sm:$0xff]
    %v9984 = vld [vmem:[%s5 + $0xc90] sm:$0xff]
    %v9985 = vld [vmem:[%s5 + $0xc98] sm:$0xff]
    %v9986 = vld [vmem:[%s5 + $0xca0] sm:$0xff]
    %v9987 = vld [vmem:[%s5 + $0xca8] sm:$0xff]
    %v9988 = vld [vmem:[%s5 + $0xcb0] sm:$0xff]
    %v9989 = vld [vmem:[%s5 + $0xcb8] sm:$0xff]
    %v9990 = vld [vmem:[%s5 + $0xcc0] sm:$0xff]
    %v9991 = vld [vmem:[%s5 + $0xcc8] sm:$0xff]
    %v9992 = vld [vmem:[%s5 + $0xcd0] sm:$0xff]
    %v9993 = vld [vmem:[%s5 + $0xcd8] sm:$0xff]
    %v9994 = vld [vmem:[%s5 + $0xce0] sm:$0xff]
    %v9995 = vld [vmem:[%s5 + $0xce8] sm:$0xff]
    %v9996 = vld [vmem:[%s5 + $0xcf0] sm:$0xff]
    %v9997 = vld [vmem:[%s5 + $0xcf8] sm:$0xff]
    %v9998 = vld [vmem:[%s5 + $0xd00] sm:$0xff]
    %v9999 = vld [vmem:[%s5 + $0xd08] sm:$0xff]
    %v10000 = vld [vmem:[%s5 + $0xd10] sm:$0xff]
    %v10001 = vld [vmem:[%s5 + $0xd18] sm:$0xff]
    %v10002 = vld [vmem:[%s5 + $0xd20] sm:$0xff]
    %v10003 = vld [vmem:[%s5 + $0xd28] sm:$0xff]
    %v10004 = vld [vmem:[%s5 + $0xd30] sm:$0xff]
    %v10005 = vld [vmem:[%s5 + $0xd38] sm:$0xff]
    %v10006 = vld [vmem:[%s5 + $0xd40] sm:$0xff]
    %v10007 = vld [vmem:[%s5 + $0xd48] sm:$0xff]
    %v10008 = vld [vmem:[%s5 + $0xd50] sm:$0xff]
    %v10009 = vld [vmem:[%s5 + $0xd58] sm:$0xff]
    %v10010 = vld [vmem:[%s5 + $0xd60] sm:$0xff]
    %v10011 = vld [vmem:[%s5 + $0xd68] sm:$0xff]
    %v10012 = vld [vmem:[%s5 + $0xd70] sm:$0xff]
    %v10013 = vld [vmem:[%s5 + $0xd78] sm:$0xff]
    %v10014 = vld [vmem:[%s5 + $0xd80] sm:$0xff]
    %v10015 = vld [vmem:[%s5 + $0xd88] sm:$0xff]
    %v10016 = vld [vmem:[%s5 + $0xd90] sm:$0xff]
    %v10017 = vld [vmem:[%s5 + $0xd98] sm:$0xff]
    %v10018 = vld [vmem:[%s5 + $0xda0] sm:$0xff]
    %v10019 = vld [vmem:[%s5 + $0xda8] sm:$0xff]
    %v10020 = vld [vmem:[%s5 + $0xdb0] sm:$0xff]
    %v10021 = vld [vmem:[%s5 + $0xdb8] sm:$0xff]
    %v10022 = vld [vmem:[%s5 + $0xdc0] sm:$0xff]
    %v10023 = vld [vmem:[%s5 + $0xdc8] sm:$0xff]
    %v10024 = vld [vmem:[%s5 + $0xdd0] sm:$0xff]
    %v10025 = vld [vmem:[%s5 + $0xdd8] sm:$0xff]
    %v10026 = vld [vmem:[%s5 + $0xde0] sm:$0xff]
    %v10027 = vld [vmem:[%s5 + $0xde8] sm:$0xff]
    %v10028 = vld [vmem:[%s5 + $0xdf0] sm:$0xff]
    %v10029 = vld [vmem:[%s5 + $0xdf8] sm:$0xff]
    %v10030 = vld [vmem:[%s5 + $0xe00] sm:$0xff]
    %v10031 = vld [vmem:[%s5 + $0xe08] sm:$0xff]
    %v10032 = vld [vmem:[%s5 + $0xe10] sm:$0xff]
    %v10033 = vld [vmem:[%s5 + $0xe18] sm:$0xff]
    %v10034 = vld [vmem:[%s5 + $0xe20] sm:$0xff]
    %v10035 = vld [vmem:[%s5 + $0xe28] sm:$0xff]
    %v10036 = vld [vmem:[%s5 + $0xe30] sm:$0xff]
    %v10037 = vld [vmem:[%s5 + $0xe38] sm:$0xff]
    %v10038 = vld [vmem:[%s5 + $0xe40] sm:$0xff]
    %v10039 = vld [vmem:[%s5 + $0xe48] sm:$0xff]
    %v10040 = vld [vmem:[%s5 + $0xe50] sm:$0xff]
    %v10041 = vld [vmem:[%s5 + $0xe58] sm:$0xff]
    %v10042 = vld [vmem:[%s5 + $0xe60] sm:$0xff]
    %v10043 = vld [vmem:[%s5 + $0xe68] sm:$0xff]
    %v10044 = vld [vmem:[%s5 + $0xe70] sm:$0xff]
    %v10045 = vld [vmem:[%s5 + $0xe78] sm:$0xff]
    %v10046 = vld [vmem:[%s5 + $0xe80] sm:$0xff]
    %v10047 = vld [vmem:[%s5 + $0xe88] sm:$0xff]
    %v10048 = vld [vmem:[%s5 + $0xe90] sm:$0xff]
    %v10049 = vld [vmem:[%s5 + $0xe98] sm:$0xff]
    %v10050 = vld [vmem:[%s5 + $0xea0] sm:$0xff]
    %v10051 = vld [vmem:[%s5 + $0xea8] sm:$0xff]
    %v10052 = vld [vmem:[%s5 + $0xeb0] sm:$0xff]
    %v10053 = vld [vmem:[%s5 + $0xeb8] sm:$0xff]
    %v10054 = vld [vmem:[%s5 + $0xec0] sm:$0xff]
    %v10055 = vld [vmem:[%s5 + $0xec8] sm:$0xff]
    %v10056 = vld [vmem:[%s5 + $0xed0] sm:$0xff]
    %v10057 = vld [vmem:[%s5 + $0xed8] sm:$0xff]
    %v10058 = vld [vmem:[%s5 + $0xee0] sm:$0xff]
    %v10059 = vld [vmem:[%s5 + $0xee8] sm:$0xff]
    %v10060 = vld [vmem:[%s5 + $0xef0] sm:$0xff]
    %v10061 = vld [vmem:[%s5 + $0xef8] sm:$0xff]
    %v10062 = vld [vmem:[%s5 + $0xf00] sm:$0xff]
    %v10063 = vld [vmem:[%s5 + $0xf08] sm:$0xff]
    %v10064 = vld [vmem:[%s5 + $0xf10] sm:$0xff]
    %v10065 = vld [vmem:[%s5 + $0xf18] sm:$0xff]
    %v10066 = vld [vmem:[%s5 + $0xf20] sm:$0xff]
    %v10067 = vld [vmem:[%s5 + $0xf28] sm:$0xff]
    %v10068 = vld [vmem:[%s5 + $0xf30] sm:$0xff]
    %v10069 = vld [vmem:[%s5 + $0xf38] sm:$0xff]
    %v10070 = vld [vmem:[%s5 + $0xf40] sm:$0xff]
    %v10071 = vld [vmem:[%s5 + $0xf48] sm:$0xff]
    %v10072 = vld [vmem:[%s5 + $0xf50] sm:$0xff]
    %v10073 = vld [vmem:[%s5 + $0xf58] sm:$0xff]
    %v10074 = vld [vmem:[%s5 + $0xf60] sm:$0xff]
    %v10075 = vld [vmem:[%s5 + $0xf68] sm:$0xff]
    %v10076 = vld [vmem:[%s5 + $0xf70] sm:$0xff]
    %v10077 = vld [vmem:[%s5 + $0xf78] sm:$0xff]
    %v10078 = vld [vmem:[%s5 + $0xf80] sm:$0xff]
    %v10079 = vld [vmem:[%s5 + $0xf88] sm:$0xff]
    %v10080 = vld [vmem:[%s5 + $0xf90] sm:$0xff]
    %v10081 = vld [vmem:[%s5 + $0xf98] sm:$0xff]
    %v10082 = vld [vmem:[%s5 + $0xfa0] sm:$0xff]
    %v10083 = vld [vmem:[%s5 + $0xfa8] sm:$0xff]
    %v10084 = vld [vmem:[%s5 + $0xfb0] sm:$0xff]
    %v10085 = vld [vmem:[%s5 + $0xfb8] sm:$0xff]
    %v10086 = vld [vmem:[%s5 + $0xfc0] sm:$0xff]
    %v10087 = vld [vmem:[%s5 + $0xfc8] sm:$0xff]
    %v10088 = vld [vmem:[%s5 + $0xfd0] sm:$0xff]
    %v10089 = vld [vmem:[%s5 + $0xfd8] sm:$0xff]
    %v10090 = vld [vmem:[%s5 + $0xfe0] sm:$0xff]
    %v10091 = vld [vmem:[%s5 + $0xfe8] sm:$0xff]
    %v10092 = vld [vmem:[%s5 + $0xff0] sm:$0xff]
    %v10093 = vld [vmem:[%s5 + $0xff8] sm:$0xff]
    %v10094 = vld [vmem:[%s6] sm:$0xf]
    %v10096 = vlaneseq
    %v10097 = vshrl.u32 %v10096, 7
    %v10098 = vsub.s32 0, %v10097
    %v10099 = vrot.slane %v10094, %v10098
    %v10100 = vlaneseq
    %v10101 = vshrl.u32 %v10100, 7
    %v10102 = vsub.s32 1, %v10101
    %v10103 = vrot.slane %v10094, %v10102
    %v10104 = vlaneseq
    %v10105 = vshrl.u32 %v10104, 7
    %v10106 = vsub.s32 2, %v10105
    %v10107 = vrot.slane %v10094, %v10106
    %v10108 = vlaneseq
    %v10109 = vshrl.u32 %v10108, 7
    %v10110 = vsub.s32 3, %v10109
    %v10111 = vrot.slane %v10094, %v10110
    %v10118 = vcombine.high %v9580, %v9580
    %v10120 = vunpack.c.l.s4 1966171168
    %v10121 = vunpack.c.0.s8 %v10120
    %v10122 = vlaneseq
    %v10123 = vshrl.u32 %v10122, 7
    %v10124 = vsub.s32 %v10121, %v10123
    %v10125 = vrot.slane %v9580, %v10124
    %v10127 = vunpack.c.l.s4 1966171168
    %v10128 = vunpack.c.0.s8 %v10127
    %v10129 = vlaneseq
    %v10130 = vshrl.u32 %v10129, 7
    %v10131 = vsub.s32 %v10128, %v10130
    %v10132 = vrot.slane %v10118, %v10131
    %v10133 = vcombine.high %v10125, %v10125
    %v10134 = vcombine.high %v10132, %v10132
    %v10136 = vunpack.c.l.s4 1966171168
    %v10137 = vunpack.c.0.s8 %v10136
    %v10138 = vlaneseq
    %v10139 = vshrl.u32 %v10138, 7
    %v10140 = vsub.s32 %v10137, %v10139
    %v10141 = vrot.slane %v10125, %v10140
    %v10143 = vunpack.c.l.s4 1966171168
    %v10144 = vunpack.c.0.s8 %v10143
    %v10145 = vlaneseq
    %v10146 = vshrl.u32 %v10145, 7
    %v10147 = vsub.s32 %v10144, %v10146
    %v10148 = vrot.slane %v10132, %v10147
    %v10150 = vunpack.c.l.s4 1966171168
    %v10151 = vunpack.c.0.s8 %v10150
    %v10152 = vlaneseq
    %v10153 = vshrl.u32 %v10152, 7
    %v10154 = vsub.s32 %v10151, %v10153
    %v10155 = vrot.slane %v10133, %v10154
    %v10157 = vunpack.c.l.s4 1966171168
    %v10158 = vunpack.c.0.s8 %v10157
    %v10159 = vlaneseq
    %v10160 = vshrl.u32 %v10159, 7
    %v10161 = vsub.s32 %v10158, %v10160
    %v10162 = vrot.slane %v10134, %v10161
    %v10163 = vcombine.high %v10141, %v10141
    %v10164 = vcombine.high %v10148, %v10148
    %v10165 = vcombine.high %v10155, %v10155
    %v10166 = vcombine.high %v10162, %v10162
    %v10167 = vcombine.high %v9581, %v9581
    %v10169 = vunpack.c.l.s4 1966171168
    %v10170 = vunpack.c.0.s8 %v10169
    %v10171 = vlaneseq
    %v10172 = vshrl.u32 %v10171, 7
    %v10173 = vsub.s32 %v10170, %v10172
    %v10174 = vrot.slane %v9581, %v10173
    %v10176 = vunpack.c.l.s4 1966171168
    %v10177 = vunpack.c.0.s8 %v10176
    %v10178 = vlaneseq
    %v10179 = vshrl.u32 %v10178, 7
    %v10180 = vsub.s32 %v10177, %v10179
    %v10181 = vrot.slane %v10167, %v10180
    %v10182 = vcombine.high %v10174, %v10174
    %v10183 = vcombine.high %v10181, %v10181
    %v10185 = vunpack.c.l.s4 1966171168
    %v10186 = vunpack.c.0.s8 %v10185
    %v10187 = vlaneseq
    %v10188 = vshrl.u32 %v10187, 7
    %v10189 = vsub.s32 %v10186, %v10188
    %v10190 = vrot.slane %v10174, %v10189
    %v10192 = vunpack.c.l.s4 1966171168
    %v10193 = vunpack.c.0.s8 %v10192
    %v10194 = vlaneseq
    %v10195 = vshrl.u32 %v10194, 7
    %v10196 = vsub.s32 %v10193, %v10195
    %v10197 = vrot.slane %v10181, %v10196
    %v10199 = vunpack.c.l.s4 1966171168
    %v10200 = vunpack.c.0.s8 %v10199
    %v10201 = vlaneseq
    %v10202 = vshrl.u32 %v10201, 7
    %v10203 = vsub.s32 %v10200, %v10202
    %v10204 = vrot.slane %v10182, %v10203
    %v10206 = vunpack.c.l.s4 1966171168
    %v10207 = vunpack.c.0.s8 %v10206
    %v10208 = vlaneseq
    %v10209 = vshrl.u32 %v10208, 7
    %v10210 = vsub.s32 %v10207, %v10209
    %v10211 = vrot.slane %v10183, %v10210
    %v10212 = vcombine.high %v10190, %v10190
    %v10213 = vcombine.high %v10197, %v10197
    %v10214 = vcombine.high %v10204, %v10204
    %v10215 = vcombine.high %v10211, %v10211
    %v10744 = vunpack.c.l.b16 %v9582
    %v10745 = vunpack.c.h.b16 %v9582
    %v10746 = vunpack.c.l.b16 %v9583
    %v10747 = vunpack.c.h.b16 %v9583
    %v10748 = vunpack.c.l.b16 %v9584
    %v10749 = vunpack.c.h.b16 %v9584
    %v10750 = vunpack.c.l.b16 %v9585
    %v10751 = vunpack.c.h.b16 %v9585
    %v10752 = vunpack.c.l.b16 %v9586
    %v10753 = vunpack.c.h.b16 %v9586
    %v10754 = vunpack.c.l.b16 %v9587
    %v10755 = vunpack.c.h.b16 %v9587
    %v10756 = vunpack.c.l.b16 %v9588
    %v10757 = vunpack.c.h.b16 %v9588
    %v10758 = vunpack.c.l.b16 %v9589
    %v10759 = vunpack.c.h.b16 %v9589
    %v10760 = vunpack.c.l.b16 %v9590
    %v10761 = vunpack.c.h.b16 %v9590
    %v10762 = vunpack.c.l.b16 %v9591
    %v10763 = vunpack.c.h.b16 %v9591
    %v10764 = vunpack.c.l.b16 %v9592
    %v10765 = vunpack.c.h.b16 %v9592
    %v10766 = vunpack.c.l.b16 %v9593
    %v10767 = vunpack.c.h.b16 %v9593
    %v10768 = vunpack.c.l.b16 %v9594
    %v10769 = vunpack.c.h.b16 %v9594
    %v10770 = vunpack.c.l.b16 %v9595
    %v10771 = vunpack.c.h.b16 %v9595
    %v10772 = vunpack.c.l.b16 %v9596
    %v10773 = vunpack.c.h.b16 %v9596
    %v10774 = vunpack.c.l.b16 %v9597
    %v10775 = vunpack.c.h.b16 %v9597
    %v10776 = vunpack.c.l.b16 %v9598
    %v10777 = vunpack.c.h.b16 %v9598
    %v10778 = vunpack.c.l.b16 %v9599
    %v10779 = vunpack.c.h.b16 %v9599
    %v10780 = vunpack.c.l.b16 %v9600
    %v10781 = vunpack.c.h.b16 %v9600
    %v10782 = vunpack.c.l.b16 %v9601
    %v10783 = vunpack.c.h.b16 %v9601
    %v10784 = vunpack.c.l.b16 %v9602
    %v10785 = vunpack.c.h.b16 %v9602
    %v10786 = vunpack.c.l.b16 %v9603
    %v10787 = vunpack.c.h.b16 %v9603
    %v10788 = vunpack.c.l.b16 %v9604
    %v10789 = vunpack.c.h.b16 %v9604
    %v10790 = vunpack.c.l.b16 %v9605
    %v10791 = vunpack.c.h.b16 %v9605
    %v10792 = vunpack.c.l.b16 %v9606
    %v10793 = vunpack.c.h.b16 %v9606
    %v10794 = vunpack.c.l.b16 %v9607
    %v10795 = vunpack.c.h.b16 %v9607
    %v10796 = vunpack.c.l.b16 %v9608
    %v10797 = vunpack.c.h.b16 %v9608
    %v10798 = vunpack.c.l.b16 %v9609
    %v10799 = vunpack.c.h.b16 %v9609
    %v10800 = vunpack.c.l.b16 %v9610
    %v10801 = vunpack.c.h.b16 %v9610
    %v10802 = vunpack.c.l.b16 %v9611
    %v10803 = vunpack.c.h.b16 %v9611
    %v10804 = vunpack.c.l.b16 %v9612
    %v10805 = vunpack.c.h.b16 %v9612
    %v10806 = vunpack.c.l.b16 %v9613
    %v10807 = vunpack.c.h.b16 %v9613
    %v10808 = vunpack.c.l.b16 %v9614
    %v10809 = vunpack.c.h.b16 %v9614
    %v10810 = vunpack.c.l.b16 %v9615
    %v10811 = vunpack.c.h.b16 %v9615
    %v10812 = vunpack.c.l.b16 %v9616
    %v10813 = vunpack.c.h.b16 %v9616
    %v10814 = vunpack.c.l.b16 %v9617
    %v10815 = vunpack.c.h.b16 %v9617
    %v10816 = vunpack.c.l.b16 %v9618
    %v10817 = vunpack.c.h.b16 %v9618
    %v10818 = vunpack.c.l.b16 %v9619
    %v10819 = vunpack.c.h.b16 %v9619
    %v10820 = vunpack.c.l.b16 %v9620
    %v10821 = vunpack.c.h.b16 %v9620
    %v10822 = vunpack.c.l.b16 %v9621
    %v10823 = vunpack.c.h.b16 %v9621
    %v10824 = vunpack.c.l.b16 %v9622
    %v10825 = vunpack.c.h.b16 %v9622
    %v10826 = vunpack.c.l.b16 %v9623
    %v10827 = vunpack.c.h.b16 %v9623
    %v10828 = vunpack.c.l.b16 %v9624
    %v10829 = vunpack.c.h.b16 %v9624
    %v10830 = vunpack.c.l.b16 %v9625
    %v10831 = vunpack.c.h.b16 %v9625
    %v10832 = vunpack.c.l.b16 %v9626
    %v10833 = vunpack.c.h.b16 %v9626
    %v10834 = vunpack.c.l.b16 %v9627
    %v10835 = vunpack.c.h.b16 %v9627
    %v10836 = vunpack.c.l.b16 %v9628
    %v10837 = vunpack.c.h.b16 %v9628
    %v10838 = vunpack.c.l.b16 %v9629
    %v10839 = vunpack.c.h.b16 %v9629
    %v10840 = vunpack.c.l.b16 %v9630
    %v10841 = vunpack.c.h.b16 %v9630
    %v10842 = vunpack.c.l.b16 %v9631
    %v10843 = vunpack.c.h.b16 %v9631
    %v10844 = vunpack.c.l.b16 %v9632
    %v10845 = vunpack.c.h.b16 %v9632
    %v10846 = vunpack.c.l.b16 %v9633
    %v10847 = vunpack.c.h.b16 %v9633
    %v10848 = vunpack.c.l.b16 %v9634
    %v10849 = vunpack.c.h.b16 %v9634
    %v10850 = vunpack.c.l.b16 %v9635
    %v10851 = vunpack.c.h.b16 %v9635
    %v10852 = vunpack.c.l.b16 %v9636
    %v10853 = vunpack.c.h.b16 %v9636
    %v10854 = vunpack.c.l.b16 %v9637
    %v10855 = vunpack.c.h.b16 %v9637
    %v10856 = vunpack.c.l.b16 %v9638
    %v10857 = vunpack.c.h.b16 %v9638
    %v10858 = vunpack.c.l.b16 %v9639
    %v10859 = vunpack.c.h.b16 %v9639
    %v10860 = vunpack.c.l.b16 %v9640
    %v10861 = vunpack.c.h.b16 %v9640
    %v10862 = vunpack.c.l.b16 %v9641
    %v10863 = vunpack.c.h.b16 %v9641
    %v10864 = vunpack.c.l.b16 %v9642
    %v10865 = vunpack.c.h.b16 %v9642
    %v10866 = vunpack.c.l.b16 %v9643
    %v10867 = vunpack.c.h.b16 %v9643
    %v10868 = vunpack.c.l.b16 %v9644
    %v10869 = vunpack.c.h.b16 %v9644
    %v10870 = vunpack.c.l.b16 %v9645
    %v10871 = vunpack.c.h.b16 %v9645
    %v10872 = vunpack.c.l.b16 %v9646
    %v10873 = vunpack.c.h.b16 %v9646
    %v10874 = vunpack.c.l.b16 %v9647
    %v10875 = vunpack.c.h.b16 %v9647
    %v10876 = vunpack.c.l.b16 %v9648
    %v10877 = vunpack.c.h.b16 %v9648
    %v10878 = vunpack.c.l.b16 %v9649
    %v10879 = vunpack.c.h.b16 %v9649
    %v10880 = vunpack.c.l.b16 %v9650
    %v10881 = vunpack.c.h.b16 %v9650
    %v10882 = vunpack.c.l.b16 %v9651
    %v10883 = vunpack.c.h.b16 %v9651
    %v10884 = vunpack.c.l.b16 %v9652
    %v10885 = vunpack.c.h.b16 %v9652
    %v10886 = vunpack.c.l.b16 %v9653
    %v10887 = vunpack.c.h.b16 %v9653
    %v10888 = vunpack.c.l.b16 %v9654
    %v10889 = vunpack.c.h.b16 %v9654
    %v10890 = vunpack.c.l.b16 %v9655
    %v10891 = vunpack.c.h.b16 %v9655
    %v10892 = vunpack.c.l.b16 %v9656
    %v10893 = vunpack.c.h.b16 %v9656
    %v10894 = vunpack.c.l.b16 %v9657
    %v10895 = vunpack.c.h.b16 %v9657
    %v10896 = vunpack.c.l.b16 %v9658
    %v10897 = vunpack.c.h.b16 %v9658
    %v10898 = vunpack.c.l.b16 %v9659
    %v10899 = vunpack.c.h.b16 %v9659
    %v10900 = vunpack.c.l.b16 %v9660
    %v10901 = vunpack.c.h.b16 %v9660
    %v10902 = vunpack.c.l.b16 %v9661
    %v10903 = vunpack.c.h.b16 %v9661
    %v10904 = vunpack.c.l.b16 %v9662
    %v10905 = vunpack.c.h.b16 %v9662
    %v10906 = vunpack.c.l.b16 %v9663
    %v10907 = vunpack.c.h.b16 %v9663
    %v10908 = vunpack.c.l.b16 %v9664
    %v10909 = vunpack.c.h.b16 %v9664
    %v10910 = vunpack.c.l.b16 %v9665
    %v10911 = vunpack.c.h.b16 %v9665
    %v10912 = vunpack.c.l.b16 %v9666
    %v10913 = vunpack.c.h.b16 %v9666
    %v10914 = vunpack.c.l.b16 %v9667
    %v10915 = vunpack.c.h.b16 %v9667
    %v10916 = vunpack.c.l.b16 %v9668
    %v10917 = vunpack.c.h.b16 %v9668
    %v10918 = vunpack.c.l.b16 %v9669
    %v10919 = vunpack.c.h.b16 %v9669
    %v10920 = vunpack.c.l.b16 %v9670
    %v10921 = vunpack.c.h.b16 %v9670
    %v10922 = vunpack.c.l.b16 %v9671
    %v10923 = vunpack.c.h.b16 %v9671
    %v10924 = vunpack.c.l.b16 %v9672
    %v10925 = vunpack.c.h.b16 %v9672
    %v10926 = vunpack.c.l.b16 %v9673
    %v10927 = vunpack.c.h.b16 %v9673
    %v10928 = vunpack.c.l.b16 %v9674
    %v10929 = vunpack.c.h.b16 %v9674
    %v10930 = vunpack.c.l.b16 %v9675
    %v10931 = vunpack.c.h.b16 %v9675
    %v10932 = vunpack.c.l.b16 %v9676
    %v10933 = vunpack.c.h.b16 %v9676
    %v10934 = vunpack.c.l.b16 %v9677
    %v10935 = vunpack.c.h.b16 %v9677
    %v10936 = vunpack.c.l.b16 %v9678
    %v10937 = vunpack.c.h.b16 %v9678
    %v10938 = vunpack.c.l.b16 %v9679
    %v10939 = vunpack.c.h.b16 %v9679
    %v10940 = vunpack.c.l.b16 %v9680
    %v10941 = vunpack.c.h.b16 %v9680
    %v10942 = vunpack.c.l.b16 %v9681
    %v10943 = vunpack.c.h.b16 %v9681
    %v10944 = vunpack.c.l.b16 %v9682
    %v10945 = vunpack.c.h.b16 %v9682
    %v10946 = vunpack.c.l.b16 %v9683
    %v10947 = vunpack.c.h.b16 %v9683
    %v10948 = vunpack.c.l.b16 %v9684
    %v10949 = vunpack.c.h.b16 %v9684
    %v10950 = vunpack.c.l.b16 %v9685
    %v10951 = vunpack.c.h.b16 %v9685
    %v10952 = vunpack.c.l.b16 %v9686
    %v10953 = vunpack.c.h.b16 %v9686
    %v10954 = vunpack.c.l.b16 %v9687
    %v10955 = vunpack.c.h.b16 %v9687
    %v10956 = vunpack.c.l.b16 %v9688
    %v10957 = vunpack.c.h.b16 %v9688
    %v10958 = vunpack.c.l.b16 %v9689
    %v10959 = vunpack.c.h.b16 %v9689
    %v10960 = vunpack.c.l.b16 %v9690
    %v10961 = vunpack.c.h.b16 %v9690
    %v10962 = vunpack.c.l.b16 %v9691
    %v10963 = vunpack.c.h.b16 %v9691
    %v10964 = vunpack.c.l.b16 %v9692
    %v10965 = vunpack.c.h.b16 %v9692
    %v10966 = vunpack.c.l.b16 %v9693
    %v10967 = vunpack.c.h.b16 %v9693
    %v10968 = vunpack.c.l.b16 %v9694
    %v10969 = vunpack.c.h.b16 %v9694
    %v10970 = vunpack.c.l.b16 %v9695
    %v10971 = vunpack.c.h.b16 %v9695
    %v10972 = vunpack.c.l.b16 %v9696
    %v10973 = vunpack.c.h.b16 %v9696
    %v10974 = vunpack.c.l.b16 %v9697
    %v10975 = vunpack.c.h.b16 %v9697
    %v10976 = vunpack.c.l.b16 %v9698
    %v10977 = vunpack.c.h.b16 %v9698
    %v10978 = vunpack.c.l.b16 %v9699
    %v10979 = vunpack.c.h.b16 %v9699
    %v10980 = vunpack.c.l.b16 %v9700
    %v10981 = vunpack.c.h.b16 %v9700
    %v10982 = vunpack.c.l.b16 %v9701
    %v10983 = vunpack.c.h.b16 %v9701
    %v10984 = vunpack.c.l.b16 %v9702
    %v10985 = vunpack.c.h.b16 %v9702
    %v10986 = vunpack.c.l.b16 %v9703
    %v10987 = vunpack.c.h.b16 %v9703
    %v10988 = vunpack.c.l.b16 %v9704
    %v10989 = vunpack.c.h.b16 %v9704
    %v10990 = vunpack.c.l.b16 %v9705
    %v10991 = vunpack.c.h.b16 %v9705
    %v10992 = vunpack.c.l.b16 %v9706
    %v10993 = vunpack.c.h.b16 %v9706
    %v10994 = vunpack.c.l.b16 %v9707
    %v10995 = vunpack.c.h.b16 %v9707
    %v10996 = vunpack.c.l.b16 %v9708
    %v10997 = vunpack.c.h.b16 %v9708
    %v10998 = vunpack.c.l.b16 %v9709
    %v10999 = vunpack.c.h.b16 %v9709
    %v11000 = vunpack.c.l.b16 %v9710
    %v11001 = vunpack.c.h.b16 %v9710
    %v11002 = vunpack.c.l.b16 %v9711
    %v11003 = vunpack.c.h.b16 %v9711
    %v11004 = vunpack.c.l.b16 %v9712
    %v11005 = vunpack.c.h.b16 %v9712
    %v11006 = vunpack.c.l.b16 %v9713
    %v11007 = vunpack.c.h.b16 %v9713
    %v11008 = vunpack.c.l.b16 %v9714
    %v11009 = vunpack.c.h.b16 %v9714
    %v11010 = vunpack.c.l.b16 %v9715
    %v11011 = vunpack.c.h.b16 %v9715
    %v11012 = vunpack.c.l.b16 %v9716
    %v11013 = vunpack.c.h.b16 %v9716
    %v11014 = vunpack.c.l.b16 %v9717
    %v11015 = vunpack.c.h.b16 %v9717
    %v11016 = vunpack.c.l.b16 %v9718
    %v11017 = vunpack.c.h.b16 %v9718
    %v11018 = vunpack.c.l.b16 %v9719
    %v11019 = vunpack.c.h.b16 %v9719
    %v11020 = vunpack.c.l.b16 %v9720
    %v11021 = vunpack.c.h.b16 %v9720
    %v11022 = vunpack.c.l.b16 %v9721
    %v11023 = vunpack.c.h.b16 %v9721
    %v11024 = vunpack.c.l.b16 %v9722
    %v11025 = vunpack.c.h.b16 %v9722
    %v11026 = vunpack.c.l.b16 %v9723
    %v11027 = vunpack.c.h.b16 %v9723
    %v11028 = vunpack.c.l.b16 %v9724
    %v11029 = vunpack.c.h.b16 %v9724
    %v11030 = vunpack.c.l.b16 %v9725
    %v11031 = vunpack.c.h.b16 %v9725
    %v11032 = vunpack.c.l.b16 %v9726
    %v11033 = vunpack.c.h.b16 %v9726
    %v11034 = vunpack.c.l.b16 %v9727
    %v11035 = vunpack.c.h.b16 %v9727
    %v11036 = vunpack.c.l.b16 %v9728
    %v11037 = vunpack.c.h.b16 %v9728
    %v11038 = vunpack.c.l.b16 %v9729
    %v11039 = vunpack.c.h.b16 %v9729
    %v11040 = vunpack.c.l.b16 %v9730
    %v11041 = vunpack.c.h.b16 %v9730
    %v11042 = vunpack.c.l.b16 %v9731
    %v11043 = vunpack.c.h.b16 %v9731
    %v11044 = vunpack.c.l.b16 %v9732
    %v11045 = vunpack.c.h.b16 %v9732
    %v11046 = vunpack.c.l.b16 %v9733
    %v11047 = vunpack.c.h.b16 %v9733
    %v11048 = vunpack.c.l.b16 %v9734
    %v11049 = vunpack.c.h.b16 %v9734
    %v11050 = vunpack.c.l.b16 %v9735
    %v11051 = vunpack.c.h.b16 %v9735
    %v11052 = vunpack.c.l.b16 %v9736
    %v11053 = vunpack.c.h.b16 %v9736
    %v11054 = vunpack.c.l.b16 %v9737
    %v11055 = vunpack.c.h.b16 %v9737
    %v11056 = vunpack.c.l.b16 %v9738
    %v11057 = vunpack.c.h.b16 %v9738
    %v11058 = vunpack.c.l.b16 %v9739
    %v11059 = vunpack.c.h.b16 %v9739
    %v11060 = vunpack.c.l.b16 %v9740
    %v11061 = vunpack.c.h.b16 %v9740
    %v11062 = vunpack.c.l.b16 %v9741
    %v11063 = vunpack.c.h.b16 %v9741
    %v11064 = vunpack.c.l.b16 %v9742
    %v11065 = vunpack.c.h.b16 %v9742
    %v11066 = vunpack.c.l.b16 %v9743
    %v11067 = vunpack.c.h.b16 %v9743
    %v11068 = vunpack.c.l.b16 %v9744
    %v11069 = vunpack.c.h.b16 %v9744
    %v11070 = vunpack.c.l.b16 %v9745
    %v11071 = vunpack.c.h.b16 %v9745
    %v11072 = vunpack.c.l.b16 %v9746
    %v11073 = vunpack.c.h.b16 %v9746
    %v11074 = vunpack.c.l.b16 %v9747
    %v11075 = vunpack.c.h.b16 %v9747
    %v11076 = vunpack.c.l.b16 %v9748
    %v11077 = vunpack.c.h.b16 %v9748
    %v11078 = vunpack.c.l.b16 %v9749
    %v11079 = vunpack.c.h.b16 %v9749
    %v11080 = vunpack.c.l.b16 %v9750
    %v11081 = vunpack.c.h.b16 %v9750
    %v11082 = vunpack.c.l.b16 %v9751
    %v11083 = vunpack.c.h.b16 %v9751
    %v11084 = vunpack.c.l.b16 %v9752
    %v11085 = vunpack.c.h.b16 %v9752
    %v11086 = vunpack.c.l.b16 %v9753
    %v11087 = vunpack.c.h.b16 %v9753
    %v11088 = vunpack.c.l.b16 %v9754
    %v11089 = vunpack.c.h.b16 %v9754
    %v11090 = vunpack.c.l.b16 %v9755
    %v11091 = vunpack.c.h.b16 %v9755
    %v11092 = vunpack.c.l.b16 %v9756
    %v11093 = vunpack.c.h.b16 %v9756
    %v11094 = vunpack.c.l.b16 %v9757
    %v11095 = vunpack.c.h.b16 %v9757
    %v11096 = vunpack.c.l.b16 %v9758
    %v11097 = vunpack.c.h.b16 %v9758
    %v11098 = vunpack.c.l.b16 %v9759
    %v11099 = vunpack.c.h.b16 %v9759
    %v11100 = vunpack.c.l.b16 %v9760
    %v11101 = vunpack.c.h.b16 %v9760
    %v11102 = vunpack.c.l.b16 %v9761
    %v11103 = vunpack.c.h.b16 %v9761
    %v11104 = vunpack.c.l.b16 %v9762
    %v11105 = vunpack.c.h.b16 %v9762
    %v11106 = vunpack.c.l.b16 %v9763
    %v11107 = vunpack.c.h.b16 %v9763
    %v11108 = vunpack.c.l.b16 %v9764
    %v11109 = vunpack.c.h.b16 %v9764
    %v11110 = vunpack.c.l.b16 %v9765
    %v11111 = vunpack.c.h.b16 %v9765
    %v11112 = vunpack.c.l.b16 %v9766
    %v11113 = vunpack.c.h.b16 %v9766
    %v11114 = vunpack.c.l.b16 %v9767
    %v11115 = vunpack.c.h.b16 %v9767
    %v11116 = vunpack.c.l.b16 %v9768
    %v11117 = vunpack.c.h.b16 %v9768
    %v11118 = vunpack.c.l.b16 %v9769
    %v11119 = vunpack.c.h.b16 %v9769
    %v11120 = vunpack.c.l.b16 %v9770
    %v11121 = vunpack.c.h.b16 %v9770
    %v11122 = vunpack.c.l.b16 %v9771
    %v11123 = vunpack.c.h.b16 %v9771
    %v11124 = vunpack.c.l.b16 %v9772
    %v11125 = vunpack.c.h.b16 %v9772
    %v11126 = vunpack.c.l.b16 %v9773
    %v11127 = vunpack.c.h.b16 %v9773
    %v11128 = vunpack.c.l.b16 %v9774
    %v11129 = vunpack.c.h.b16 %v9774
    %v11130 = vunpack.c.l.b16 %v9775
    %v11131 = vunpack.c.h.b16 %v9775
    %v11132 = vunpack.c.l.b16 %v9776
    %v11133 = vunpack.c.h.b16 %v9776
    %v11134 = vunpack.c.l.b16 %v9777
    %v11135 = vunpack.c.h.b16 %v9777
    %v11136 = vunpack.c.l.b16 %v9778
    %v11137 = vunpack.c.h.b16 %v9778
    %v11138 = vunpack.c.l.b16 %v9779
    %v11139 = vunpack.c.h.b16 %v9779
    %v11140 = vunpack.c.l.b16 %v9780
    %v11141 = vunpack.c.h.b16 %v9780
    %v11142 = vunpack.c.l.b16 %v9781
    %v11143 = vunpack.c.h.b16 %v9781
    %v11144 = vunpack.c.l.b16 %v9782
    %v11145 = vunpack.c.h.b16 %v9782
    %v11146 = vunpack.c.l.b16 %v9783
    %v11147 = vunpack.c.h.b16 %v9783
    %v11148 = vunpack.c.l.b16 %v9784
    %v11149 = vunpack.c.h.b16 %v9784
    %v11150 = vunpack.c.l.b16 %v9785
    %v11151 = vunpack.c.h.b16 %v9785
    %v11152 = vunpack.c.l.b16 %v9786
    %v11153 = vunpack.c.h.b16 %v9786
    %v11154 = vunpack.c.l.b16 %v9787
    %v11155 = vunpack.c.h.b16 %v9787
    %v11156 = vunpack.c.l.b16 %v9788
    %v11157 = vunpack.c.h.b16 %v9788
    %v11158 = vunpack.c.l.b16 %v9789
    %v11159 = vunpack.c.h.b16 %v9789
    %v11160 = vunpack.c.l.b16 %v9790
    %v11161 = vunpack.c.h.b16 %v9790
    %v11162 = vunpack.c.l.b16 %v9791
    %v11163 = vunpack.c.h.b16 %v9791
    %v11164 = vunpack.c.l.b16 %v9792
    %v11165 = vunpack.c.h.b16 %v9792
    %v11166 = vunpack.c.l.b16 %v9793
    %v11167 = vunpack.c.h.b16 %v9793
    %v11168 = vunpack.c.l.b16 %v9794
    %v11169 = vunpack.c.h.b16 %v9794
    %v11170 = vunpack.c.l.b16 %v9795
    %v11171 = vunpack.c.h.b16 %v9795
    %v11172 = vunpack.c.l.b16 %v9796
    %v11173 = vunpack.c.h.b16 %v9796
    %v11174 = vunpack.c.l.b16 %v9797
    %v11175 = vunpack.c.h.b16 %v9797
    %v11176 = vunpack.c.l.b16 %v9798
    %v11177 = vunpack.c.h.b16 %v9798
    %v11178 = vunpack.c.l.b16 %v9799
    %v11179 = vunpack.c.h.b16 %v9799
    %v11180 = vunpack.c.l.b16 %v9800
    %v11181 = vunpack.c.h.b16 %v9800
    %v11182 = vunpack.c.l.b16 %v9801
    %v11183 = vunpack.c.h.b16 %v9801
    %v11184 = vunpack.c.l.b16 %v9802
    %v11185 = vunpack.c.h.b16 %v9802
    %v11186 = vunpack.c.l.b16 %v9803
    %v11187 = vunpack.c.h.b16 %v9803
    %v11188 = vunpack.c.l.b16 %v9804
    %v11189 = vunpack.c.h.b16 %v9804
    %v11190 = vunpack.c.l.b16 %v9805
    %v11191 = vunpack.c.h.b16 %v9805
    %v11192 = vunpack.c.l.b16 %v9806
    %v11193 = vunpack.c.h.b16 %v9806
    %v11194 = vunpack.c.l.b16 %v9807
    %v11195 = vunpack.c.h.b16 %v9807
    %v11196 = vunpack.c.l.b16 %v9808
    %v11197 = vunpack.c.h.b16 %v9808
    %v11198 = vunpack.c.l.b16 %v9809
    %v11199 = vunpack.c.h.b16 %v9809
    %v11200 = vunpack.c.l.b16 %v9810
    %v11201 = vunpack.c.h.b16 %v9810
    %v11202 = vunpack.c.l.b16 %v9811
    %v11203 = vunpack.c.h.b16 %v9811
    %v11204 = vunpack.c.l.b16 %v9812
    %v11205 = vunpack.c.h.b16 %v9812
    %v11206 = vunpack.c.l.b16 %v9813
    %v11207 = vunpack.c.h.b16 %v9813
    %v11208 = vunpack.c.l.b16 %v9814
    %v11209 = vunpack.c.h.b16 %v9814
    %v11210 = vunpack.c.l.b16 %v9815
    %v11211 = vunpack.c.h.b16 %v9815
    %v11212 = vunpack.c.l.b16 %v9816
    %v11213 = vunpack.c.h.b16 %v9816
    %v11214 = vunpack.c.l.b16 %v9817
    %v11215 = vunpack.c.h.b16 %v9817
    %v11216 = vunpack.c.l.b16 %v9818
    %v11217 = vunpack.c.h.b16 %v9818
    %v11218 = vunpack.c.l.b16 %v9819
    %v11219 = vunpack.c.h.b16 %v9819
    %v11220 = vunpack.c.l.b16 %v9820
    %v11221 = vunpack.c.h.b16 %v9820
    %v11222 = vunpack.c.l.b16 %v9821
    %v11223 = vunpack.c.h.b16 %v9821
    %v11224 = vunpack.c.l.b16 %v9822
    %v11225 = vunpack.c.h.b16 %v9822
    %v11226 = vunpack.c.l.b16 %v9823
    %v11227 = vunpack.c.h.b16 %v9823
    %v11228 = vunpack.c.l.b16 %v9824
    %v11229 = vunpack.c.h.b16 %v9824
    %v11230 = vunpack.c.l.b16 %v9825
    %v11231 = vunpack.c.h.b16 %v9825
    %v11232 = vunpack.c.l.b16 %v9826
    %v11233 = vunpack.c.h.b16 %v9826
    %v11234 = vunpack.c.l.b16 %v9827
    %v11235 = vunpack.c.h.b16 %v9827
    %v11236 = vunpack.c.l.b16 %v9828
    %v11237 = vunpack.c.h.b16 %v9828
    %v11238 = vunpack.c.l.b16 %v9829
    %v11239 = vunpack.c.h.b16 %v9829
    %v11240 = vunpack.c.l.b16 %v9830
    %v11241 = vunpack.c.h.b16 %v9830
    %v11242 = vunpack.c.l.b16 %v9831
    %v11243 = vunpack.c.h.b16 %v9831
    %v11244 = vunpack.c.l.b16 %v9832
    %v11245 = vunpack.c.h.b16 %v9832
    %v11246 = vunpack.c.l.b16 %v9833
    %v11247 = vunpack.c.h.b16 %v9833
    %v11248 = vunpack.c.l.b16 %v9834
    %v11249 = vunpack.c.h.b16 %v9834
    %v11250 = vunpack.c.l.b16 %v9835
    %v11251 = vunpack.c.h.b16 %v9835
    %v11252 = vunpack.c.l.b16 %v9836
    %v11253 = vunpack.c.h.b16 %v9836
    %v11254 = vunpack.c.l.b16 %v9837
    %v11255 = vunpack.c.h.b16 %v9837
    %v11256 = vunpack.c.l.b16 %v9838
    %v11257 = vunpack.c.h.b16 %v9838
    %v11258 = vunpack.c.l.b16 %v9839
    %v11259 = vunpack.c.h.b16 %v9839
    %v11260 = vunpack.c.l.b16 %v9840
    %v11261 = vunpack.c.h.b16 %v9840
    %v11262 = vunpack.c.l.b16 %v9841
    %v11263 = vunpack.c.h.b16 %v9841
    %v11264 = vunpack.c.l.b16 %v9842
    %v11265 = vunpack.c.h.b16 %v9842
    %v11266 = vunpack.c.l.b16 %v9843
    %v11267 = vunpack.c.h.b16 %v9843
    %v11268 = vunpack.c.l.b16 %v9844
    %v11269 = vunpack.c.h.b16 %v9844
    %v11270 = vunpack.c.l.b16 %v9845
    %v11271 = vunpack.c.h.b16 %v9845
    %v11272 = vunpack.c.l.b16 %v9846
    %v11273 = vunpack.c.h.b16 %v9846
    %v11274 = vunpack.c.l.b16 %v9847
    %v11275 = vunpack.c.h.b16 %v9847
    %v11276 = vunpack.c.l.b16 %v9848
    %v11277 = vunpack.c.h.b16 %v9848
    %v11278 = vunpack.c.l.b16 %v9849
    %v11279 = vunpack.c.h.b16 %v9849
    %v11280 = vunpack.c.l.b16 %v9850
    %v11281 = vunpack.c.h.b16 %v9850
    %v11282 = vunpack.c.l.b16 %v9851
    %v11283 = vunpack.c.h.b16 %v9851
    %v11284 = vunpack.c.l.b16 %v9852
    %v11285 = vunpack.c.h.b16 %v9852
    %v11286 = vunpack.c.l.b16 %v9853
    %v11287 = vunpack.c.h.b16 %v9853
    %v11288 = vunpack.c.l.b16 %v9854
    %v11289 = vunpack.c.h.b16 %v9854
    %v11290 = vunpack.c.l.b16 %v9855
    %v11291 = vunpack.c.h.b16 %v9855
    %v11292 = vunpack.c.l.b16 %v9856
    %v11293 = vunpack.c.h.b16 %v9856
    %v11294 = vunpack.c.l.b16 %v9857
    %v11295 = vunpack.c.h.b16 %v9857
    %v11296 = vunpack.c.l.b16 %v9858
    %v11297 = vunpack.c.h.b16 %v9858
    %v11298 = vunpack.c.l.b16 %v9859
    %v11299 = vunpack.c.h.b16 %v9859
    %v11300 = vunpack.c.l.b16 %v9860
    %v11301 = vunpack.c.h.b16 %v9860
    %v11302 = vunpack.c.l.b16 %v9861
    %v11303 = vunpack.c.h.b16 %v9861
    %v11304 = vunpack.c.l.b16 %v9862
    %v11305 = vunpack.c.h.b16 %v9862
    %v11306 = vunpack.c.l.b16 %v9863
    %v11307 = vunpack.c.h.b16 %v9863
    %v11308 = vunpack.c.l.b16 %v9864
    %v11309 = vunpack.c.h.b16 %v9864
    %v11310 = vunpack.c.l.b16 %v9865
    %v11311 = vunpack.c.h.b16 %v9865
    %v11312 = vunpack.c.l.b16 %v9866
    %v11313 = vunpack.c.h.b16 %v9866
    %v11314 = vunpack.c.l.b16 %v9867
    %v11315 = vunpack.c.h.b16 %v9867
    %v11316 = vunpack.c.l.b16 %v9868
    %v11317 = vunpack.c.h.b16 %v9868
    %v11318 = vunpack.c.l.b16 %v9869
    %v11319 = vunpack.c.h.b16 %v9869
    %v11320 = vunpack.c.l.b16 %v9870
    %v11321 = vunpack.c.h.b16 %v9870
    %v11322 = vunpack.c.l.b16 %v9871
    %v11323 = vunpack.c.h.b16 %v9871
    %v11324 = vunpack.c.l.b16 %v9872
    %v11325 = vunpack.c.h.b16 %v9872
    %v11326 = vunpack.c.l.b16 %v9873
    %v11327 = vunpack.c.h.b16 %v9873
    %v11328 = vunpack.c.l.b16 %v9874
    %v11329 = vunpack.c.h.b16 %v9874
    %v11330 = vunpack.c.l.b16 %v9875
    %v11331 = vunpack.c.h.b16 %v9875
    %v11332 = vunpack.c.l.b16 %v9876
    %v11333 = vunpack.c.h.b16 %v9876
    %v11334 = vunpack.c.l.b16 %v9877
    %v11335 = vunpack.c.h.b16 %v9877
    %v11336 = vunpack.c.l.b16 %v9878
    %v11337 = vunpack.c.h.b16 %v9878
    %v11338 = vunpack.c.l.b16 %v9879
    %v11339 = vunpack.c.h.b16 %v9879
    %v11340 = vunpack.c.l.b16 %v9880
    %v11341 = vunpack.c.h.b16 %v9880
    %v11342 = vunpack.c.l.b16 %v9881
    %v11343 = vunpack.c.h.b16 %v9881
    %v11344 = vunpack.c.l.b16 %v9882
    %v11345 = vunpack.c.h.b16 %v9882
    %v11346 = vunpack.c.l.b16 %v9883
    %v11347 = vunpack.c.h.b16 %v9883
    %v11348 = vunpack.c.l.b16 %v9884
    %v11349 = vunpack.c.h.b16 %v9884
    %v11350 = vunpack.c.l.b16 %v9885
    %v11351 = vunpack.c.h.b16 %v9885
    %v11352 = vunpack.c.l.b16 %v9886
    %v11353 = vunpack.c.h.b16 %v9886
    %v11354 = vunpack.c.l.b16 %v9887
    %v11355 = vunpack.c.h.b16 %v9887
    %v11356 = vunpack.c.l.b16 %v9888
    %v11357 = vunpack.c.h.b16 %v9888
    %v11358 = vunpack.c.l.b16 %v9889
    %v11359 = vunpack.c.h.b16 %v9889
    %v11360 = vunpack.c.l.b16 %v9890
    %v11361 = vunpack.c.h.b16 %v9890
    %v11362 = vunpack.c.l.b16 %v9891
    %v11363 = vunpack.c.h.b16 %v9891
    %v11364 = vunpack.c.l.b16 %v9892
    %v11365 = vunpack.c.h.b16 %v9892
    %v11366 = vunpack.c.l.b16 %v9893
    %v11367 = vunpack.c.h.b16 %v9893
    %v11368 = vunpack.c.l.b16 %v9894
    %v11369 = vunpack.c.h.b16 %v9894
    %v11370 = vunpack.c.l.b16 %v9895
    %v11371 = vunpack.c.h.b16 %v9895
    %v11372 = vunpack.c.l.b16 %v9896
    %v11373 = vunpack.c.h.b16 %v9896
    %v11374 = vunpack.c.l.b16 %v9897
    %v11375 = vunpack.c.h.b16 %v9897
    %v11376 = vunpack.c.l.b16 %v9898
    %v11377 = vunpack.c.h.b16 %v9898
    %v11378 = vunpack.c.l.b16 %v9899
    %v11379 = vunpack.c.h.b16 %v9899
    %v11380 = vunpack.c.l.b16 %v9900
    %v11381 = vunpack.c.h.b16 %v9900
    %v11382 = vunpack.c.l.b16 %v9901
    %v11383 = vunpack.c.h.b16 %v9901
    %v11384 = vunpack.c.l.b16 %v9902
    %v11385 = vunpack.c.h.b16 %v9902
    %v11386 = vunpack.c.l.b16 %v9903
    %v11387 = vunpack.c.h.b16 %v9903
    %v11388 = vunpack.c.l.b16 %v9904
    %v11389 = vunpack.c.h.b16 %v9904
    %v11390 = vunpack.c.l.b16 %v9905
    %v11391 = vunpack.c.h.b16 %v9905
    %v11392 = vunpack.c.l.b16 %v9906
    %v11393 = vunpack.c.h.b16 %v9906
    %v11394 = vunpack.c.l.b16 %v9907
    %v11395 = vunpack.c.h.b16 %v9907
    %v11396 = vunpack.c.l.b16 %v9908
    %v11397 = vunpack.c.h.b16 %v9908
    %v11398 = vunpack.c.l.b16 %v9909
    %v11399 = vunpack.c.h.b16 %v9909
    %v11400 = vunpack.c.l.b16 %v9910
    %v11401 = vunpack.c.h.b16 %v9910
    %v11402 = vunpack.c.l.b16 %v9911
    %v11403 = vunpack.c.h.b16 %v9911
    %v11404 = vunpack.c.l.b16 %v9912
    %v11405 = vunpack.c.h.b16 %v9912
    %v11406 = vunpack.c.l.b16 %v9913
    %v11407 = vunpack.c.h.b16 %v9913
    %v11408 = vunpack.c.l.b16 %v9914
    %v11409 = vunpack.c.h.b16 %v9914
    %v11410 = vunpack.c.l.b16 %v9915
    %v11411 = vunpack.c.h.b16 %v9915
    %v11412 = vunpack.c.l.b16 %v9916
    %v11413 = vunpack.c.h.b16 %v9916
    %v11414 = vunpack.c.l.b16 %v9917
    %v11415 = vunpack.c.h.b16 %v9917
    %v11416 = vunpack.c.l.b16 %v9918
    %v11417 = vunpack.c.h.b16 %v9918
    %v11418 = vunpack.c.l.b16 %v9919
    %v11419 = vunpack.c.h.b16 %v9919
    %v11420 = vunpack.c.l.b16 %v9920
    %v11421 = vunpack.c.h.b16 %v9920
    %v11422 = vunpack.c.l.b16 %v9921
    %v11423 = vunpack.c.h.b16 %v9921
    %v11424 = vunpack.c.l.b16 %v9922
    %v11425 = vunpack.c.h.b16 %v9922
    %v11426 = vunpack.c.l.b16 %v9923
    %v11427 = vunpack.c.h.b16 %v9923
    %v11428 = vunpack.c.l.b16 %v9924
    %v11429 = vunpack.c.h.b16 %v9924
    %v11430 = vunpack.c.l.b16 %v9925
    %v11431 = vunpack.c.h.b16 %v9925
    %v11432 = vunpack.c.l.b16 %v9926
    %v11433 = vunpack.c.h.b16 %v9926
    %v11434 = vunpack.c.l.b16 %v9927
    %v11435 = vunpack.c.h.b16 %v9927
    %v11436 = vunpack.c.l.b16 %v9928
    %v11437 = vunpack.c.h.b16 %v9928
    %v11438 = vunpack.c.l.b16 %v9929
    %v11439 = vunpack.c.h.b16 %v9929
    %v11440 = vunpack.c.l.b16 %v9930
    %v11441 = vunpack.c.h.b16 %v9930
    %v11442 = vunpack.c.l.b16 %v9931
    %v11443 = vunpack.c.h.b16 %v9931
    %v11444 = vunpack.c.l.b16 %v9932
    %v11445 = vunpack.c.h.b16 %v9932
    %v11446 = vunpack.c.l.b16 %v9933
    %v11447 = vunpack.c.h.b16 %v9933
    %v11448 = vunpack.c.l.b16 %v9934
    %v11449 = vunpack.c.h.b16 %v9934
    %v11450 = vunpack.c.l.b16 %v9935
    %v11451 = vunpack.c.h.b16 %v9935
    %v11452 = vunpack.c.l.b16 %v9936
    %v11453 = vunpack.c.h.b16 %v9936
    %v11454 = vunpack.c.l.b16 %v9937
    %v11455 = vunpack.c.h.b16 %v9937
    %v11456 = vunpack.c.l.b16 %v9938
    %v11457 = vunpack.c.h.b16 %v9938
    %v11458 = vunpack.c.l.b16 %v9939
    %v11459 = vunpack.c.h.b16 %v9939
    %v11460 = vunpack.c.l.b16 %v9940
    %v11461 = vunpack.c.h.b16 %v9940
    %v11462 = vunpack.c.l.b16 %v9941
    %v11463 = vunpack.c.h.b16 %v9941
    %v11464 = vunpack.c.l.b16 %v9942
    %v11465 = vunpack.c.h.b16 %v9942
    %v11466 = vunpack.c.l.b16 %v9943
    %v11467 = vunpack.c.h.b16 %v9943
    %v11468 = vunpack.c.l.b16 %v9944
    %v11469 = vunpack.c.h.b16 %v9944
    %v11470 = vunpack.c.l.b16 %v9945
    %v11471 = vunpack.c.h.b16 %v9945
    %v11472 = vunpack.c.l.b16 %v9946
    %v11473 = vunpack.c.h.b16 %v9946
    %v11474 = vunpack.c.l.b16 %v9947
    %v11475 = vunpack.c.h.b16 %v9947
    %v11476 = vunpack.c.l.b16 %v9948
    %v11477 = vunpack.c.h.b16 %v9948
    %v11478 = vunpack.c.l.b16 %v9949
    %v11479 = vunpack.c.h.b16 %v9949
    %v11480 = vunpack.c.l.b16 %v9950
    %v11481 = vunpack.c.h.b16 %v9950
    %v11482 = vunpack.c.l.b16 %v9951
    %v11483 = vunpack.c.h.b16 %v9951
    %v11484 = vunpack.c.l.b16 %v9952
    %v11485 = vunpack.c.h.b16 %v9952
    %v11486 = vunpack.c.l.b16 %v9953
    %v11487 = vunpack.c.h.b16 %v9953
    %v11488 = vunpack.c.l.b16 %v9954
    %v11489 = vunpack.c.h.b16 %v9954
    %v11490 = vunpack.c.l.b16 %v9955
    %v11491 = vunpack.c.h.b16 %v9955
    %v11492 = vunpack.c.l.b16 %v9956
    %v11493 = vunpack.c.h.b16 %v9956
    %v11494 = vunpack.c.l.b16 %v9957
    %v11495 = vunpack.c.h.b16 %v9957
    %v11496 = vunpack.c.l.b16 %v9958
    %v11497 = vunpack.c.h.b16 %v9958
    %v11498 = vunpack.c.l.b16 %v9959
    %v11499 = vunpack.c.h.b16 %v9959
    %v11500 = vunpack.c.l.b16 %v9960
    %v11501 = vunpack.c.h.b16 %v9960
    %v11502 = vunpack.c.l.b16 %v9961
    %v11503 = vunpack.c.h.b16 %v9961
    %v11504 = vunpack.c.l.b16 %v9962
    %v11505 = vunpack.c.h.b16 %v9962
    %v11506 = vunpack.c.l.b16 %v9963
    %v11507 = vunpack.c.h.b16 %v9963
    %v11508 = vunpack.c.l.b16 %v9964
    %v11509 = vunpack.c.h.b16 %v9964
    %v11510 = vunpack.c.l.b16 %v9965
    %v11511 = vunpack.c.h.b16 %v9965
    %v11512 = vunpack.c.l.b16 %v9966
    %v11513 = vunpack.c.h.b16 %v9966
    %v11514 = vunpack.c.l.b16 %v9967
    %v11515 = vunpack.c.h.b16 %v9967
    %v11516 = vunpack.c.l.b16 %v9968
    %v11517 = vunpack.c.h.b16 %v9968
    %v11518 = vunpack.c.l.b16 %v9969
    %v11519 = vunpack.c.h.b16 %v9969
    %v11520 = vunpack.c.l.b16 %v9970
    %v11521 = vunpack.c.h.b16 %v9970
    %v11522 = vunpack.c.l.b16 %v9971
    %v11523 = vunpack.c.h.b16 %v9971
    %v11524 = vunpack.c.l.b16 %v9972
    %v11525 = vunpack.c.h.b16 %v9972
    %v11526 = vunpack.c.l.b16 %v9973
    %v11527 = vunpack.c.h.b16 %v9973
    %v11528 = vunpack.c.l.b16 %v9974
    %v11529 = vunpack.c.h.b16 %v9974
    %v11530 = vunpack.c.l.b16 %v9975
    %v11531 = vunpack.c.h.b16 %v9975
    %v11532 = vunpack.c.l.b16 %v9976
    %v11533 = vunpack.c.h.b16 %v9976
    %v11534 = vunpack.c.l.b16 %v9977
    %v11535 = vunpack.c.h.b16 %v9977
    %v11536 = vunpack.c.l.b16 %v9978
    %v11537 = vunpack.c.h.b16 %v9978
    %v11538 = vunpack.c.l.b16 %v9979
    %v11539 = vunpack.c.h.b16 %v9979
    %v11540 = vunpack.c.l.b16 %v9980
    %v11541 = vunpack.c.h.b16 %v9980
    %v11542 = vunpack.c.l.b16 %v9981
    %v11543 = vunpack.c.h.b16 %v9981
    %v11544 = vunpack.c.l.b16 %v9982
    %v11545 = vunpack.c.h.b16 %v9982
    %v11546 = vunpack.c.l.b16 %v9983
    %v11547 = vunpack.c.h.b16 %v9983
    %v11548 = vunpack.c.l.b16 %v9984
    %v11549 = vunpack.c.h.b16 %v9984
    %v11550 = vunpack.c.l.b16 %v9985
    %v11551 = vunpack.c.h.b16 %v9985
    %v11552 = vunpack.c.l.b16 %v9986
    %v11553 = vunpack.c.h.b16 %v9986
    %v11554 = vunpack.c.l.b16 %v9987
    %v11555 = vunpack.c.h.b16 %v9987
    %v11556 = vunpack.c.l.b16 %v9988
    %v11557 = vunpack.c.h.b16 %v9988
    %v11558 = vunpack.c.l.b16 %v9989
    %v11559 = vunpack.c.h.b16 %v9989
    %v11560 = vunpack.c.l.b16 %v9990
    %v11561 = vunpack.c.h.b16 %v9990
    %v11562 = vunpack.c.l.b16 %v9991
    %v11563 = vunpack.c.h.b16 %v9991
    %v11564 = vunpack.c.l.b16 %v9992
    %v11565 = vunpack.c.h.b16 %v9992
    %v11566 = vunpack.c.l.b16 %v9993
    %v11567 = vunpack.c.h.b16 %v9993
    %v11568 = vunpack.c.l.b16 %v9994
    %v11569 = vunpack.c.h.b16 %v9994
    %v11570 = vunpack.c.l.b16 %v9995
    %v11571 = vunpack.c.h.b16 %v9995
    %v11572 = vunpack.c.l.b16 %v9996
    %v11573 = vunpack.c.h.b16 %v9996
    %v11574 = vunpack.c.l.b16 %v9997
    %v11575 = vunpack.c.h.b16 %v9997
    %v11576 = vunpack.c.l.b16 %v9998
    %v11577 = vunpack.c.h.b16 %v9998
    %v11578 = vunpack.c.l.b16 %v9999
    %v11579 = vunpack.c.h.b16 %v9999
    %v11580 = vunpack.c.l.b16 %v10000
    %v11581 = vunpack.c.h.b16 %v10000
    %v11582 = vunpack.c.l.b16 %v10001
    %v11583 = vunpack.c.h.b16 %v10001
    %v11584 = vunpack.c.l.b16 %v10002
    %v11585 = vunpack.c.h.b16 %v10002
    %v11586 = vunpack.c.l.b16 %v10003
    %v11587 = vunpack.c.h.b16 %v10003
    %v11588 = vunpack.c.l.b16 %v10004
    %v11589 = vunpack.c.h.b16 %v10004
    %v11590 = vunpack.c.l.b16 %v10005
    %v11591 = vunpack.c.h.b16 %v10005
    %v11592 = vunpack.c.l.b16 %v10006
    %v11593 = vunpack.c.h.b16 %v10006
    %v11594 = vunpack.c.l.b16 %v10007
    %v11595 = vunpack.c.h.b16 %v10007
    %v11596 = vunpack.c.l.b16 %v10008
    %v11597 = vunpack.c.h.b16 %v10008
    %v11598 = vunpack.c.l.b16 %v10009
    %v11599 = vunpack.c.h.b16 %v10009
    %v11600 = vunpack.c.l.b16 %v10010
    %v11601 = vunpack.c.h.b16 %v10010
    %v11602 = vunpack.c.l.b16 %v10011
    %v11603 = vunpack.c.h.b16 %v10011
    %v11604 = vunpack.c.l.b16 %v10012
    %v11605 = vunpack.c.h.b16 %v10012
    %v11606 = vunpack.c.l.b16 %v10013
    %v11607 = vunpack.c.h.b16 %v10013
    %v11608 = vunpack.c.l.b16 %v10014
    %v11609 = vunpack.c.h.b16 %v10014
    %v11610 = vunpack.c.l.b16 %v10015
    %v11611 = vunpack.c.h.b16 %v10015
    %v11612 = vunpack.c.l.b16 %v10016
    %v11613 = vunpack.c.h.b16 %v10016
    %v11614 = vunpack.c.l.b16 %v10017
    %v11615 = vunpack.c.h.b16 %v10017
    %v11616 = vunpack.c.l.b16 %v10018
    %v11617 = vunpack.c.h.b16 %v10018
    %v11618 = vunpack.c.l.b16 %v10019
    %v11619 = vunpack.c.h.b16 %v10019
    %v11620 = vunpack.c.l.b16 %v10020
    %v11621 = vunpack.c.h.b16 %v10020
    %v11622 = vunpack.c.l.b16 %v10021
    %v11623 = vunpack.c.h.b16 %v10021
    %v11624 = vunpack.c.l.b16 %v10022
    %v11625 = vunpack.c.h.b16 %v10022
    %v11626 = vunpack.c.l.b16 %v10023
    %v11627 = vunpack.c.h.b16 %v10023
    %v11628 = vunpack.c.l.b16 %v10024
    %v11629 = vunpack.c.h.b16 %v10024
    %v11630 = vunpack.c.l.b16 %v10025
    %v11631 = vunpack.c.h.b16 %v10025
    %v11632 = vunpack.c.l.b16 %v10026
    %v11633 = vunpack.c.h.b16 %v10026
    %v11634 = vunpack.c.l.b16 %v10027
    %v11635 = vunpack.c.h.b16 %v10027
    %v11636 = vunpack.c.l.b16 %v10028
    %v11637 = vunpack.c.h.b16 %v10028
    %v11638 = vunpack.c.l.b16 %v10029
    %v11639 = vunpack.c.h.b16 %v10029
    %v11640 = vunpack.c.l.b16 %v10030
    %v11641 = vunpack.c.h.b16 %v10030
    %v11642 = vunpack.c.l.b16 %v10031
    %v11643 = vunpack.c.h.b16 %v10031
    %v11644 = vunpack.c.l.b16 %v10032
    %v11645 = vunpack.c.h.b16 %v10032
    %v11646 = vunpack.c.l.b16 %v10033
    %v11647 = vunpack.c.h.b16 %v10033
    %v11648 = vunpack.c.l.b16 %v10034
    %v11649 = vunpack.c.h.b16 %v10034
    %v11650 = vunpack.c.l.b16 %v10035
    %v11651 = vunpack.c.h.b16 %v10035
    %v11652 = vunpack.c.l.b16 %v10036
    %v11653 = vunpack.c.h.b16 %v10036
    %v11654 = vunpack.c.l.b16 %v10037
    %v11655 = vunpack.c.h.b16 %v10037
    %v11656 = vunpack.c.l.b16 %v10038
    %v11657 = vunpack.c.h.b16 %v10038
    %v11658 = vunpack.c.l.b16 %v10039
    %v11659 = vunpack.c.h.b16 %v10039
    %v11660 = vunpack.c.l.b16 %v10040
    %v11661 = vunpack.c.h.b16 %v10040
    %v11662 = vunpack.c.l.b16 %v10041
    %v11663 = vunpack.c.h.b16 %v10041
    %v11664 = vunpack.c.l.b16 %v10042
    %v11665 = vunpack.c.h.b16 %v10042
    %v11666 = vunpack.c.l.b16 %v10043
    %v11667 = vunpack.c.h.b16 %v10043
    %v11668 = vunpack.c.l.b16 %v10044
    %v11669 = vunpack.c.h.b16 %v10044
    %v11670 = vunpack.c.l.b16 %v10045
    %v11671 = vunpack.c.h.b16 %v10045
    %v11672 = vunpack.c.l.b16 %v10046
    %v11673 = vunpack.c.h.b16 %v10046
    %v11674 = vunpack.c.l.b16 %v10047
    %v11675 = vunpack.c.h.b16 %v10047
    %v11676 = vunpack.c.l.b16 %v10048
    %v11677 = vunpack.c.h.b16 %v10048
    %v11678 = vunpack.c.l.b16 %v10049
    %v11679 = vunpack.c.h.b16 %v10049
    %v11680 = vunpack.c.l.b16 %v10050
    %v11681 = vunpack.c.h.b16 %v10050
    %v11682 = vunpack.c.l.b16 %v10051
    %v11683 = vunpack.c.h.b16 %v10051
    %v11684 = vunpack.c.l.b16 %v10052
    %v11685 = vunpack.c.h.b16 %v10052
    %v11686 = vunpack.c.l.b16 %v10053
    %v11687 = vunpack.c.h.b16 %v10053
    %v11688 = vunpack.c.l.b16 %v10054
    %v11689 = vunpack.c.h.b16 %v10054
    %v11690 = vunpack.c.l.b16 %v10055
    %v11691 = vunpack.c.h.b16 %v10055
    %v11692 = vunpack.c.l.b16 %v10056
    %v11693 = vunpack.c.h.b16 %v10056
    %v11694 = vunpack.c.l.b16 %v10057
    %v11695 = vunpack.c.h.b16 %v10057
    %v11696 = vunpack.c.l.b16 %v10058
    %v11697 = vunpack.c.h.b16 %v10058
    %v11698 = vunpack.c.l.b16 %v10059
    %v11699 = vunpack.c.h.b16 %v10059
    %v11700 = vunpack.c.l.b16 %v10060
    %v11701 = vunpack.c.h.b16 %v10060
    %v11702 = vunpack.c.l.b16 %v10061
    %v11703 = vunpack.c.h.b16 %v10061
    %v11704 = vunpack.c.l.b16 %v10062
    %v11705 = vunpack.c.h.b16 %v10062
    %v11706 = vunpack.c.l.b16 %v10063
    %v11707 = vunpack.c.h.b16 %v10063
    %v11708 = vunpack.c.l.b16 %v10064
    %v11709 = vunpack.c.h.b16 %v10064
    %v11710 = vunpack.c.l.b16 %v10065
    %v11711 = vunpack.c.h.b16 %v10065
    %v11712 = vunpack.c.l.b16 %v10066
    %v11713 = vunpack.c.h.b16 %v10066
    %v11714 = vunpack.c.l.b16 %v10067
    %v11715 = vunpack.c.h.b16 %v10067
    %v11716 = vunpack.c.l.b16 %v10068
    %v11717 = vunpack.c.h.b16 %v10068
    %v11718 = vunpack.c.l.b16 %v10069
    %v11719 = vunpack.c.h.b16 %v10069
    %v11720 = vunpack.c.l.b16 %v10070
    %v11721 = vunpack.c.h.b16 %v10070
    %v11722 = vunpack.c.l.b16 %v10071
    %v11723 = vunpack.c.h.b16 %v10071
    %v11724 = vunpack.c.l.b16 %v10072
    %v11725 = vunpack.c.h.b16 %v10072
    %v11726 = vunpack.c.l.b16 %v10073
    %v11727 = vunpack.c.h.b16 %v10073
    %v11728 = vunpack.c.l.b16 %v10074
    %v11729 = vunpack.c.h.b16 %v10074
    %v11730 = vunpack.c.l.b16 %v10075
    %v11731 = vunpack.c.h.b16 %v10075
    %v11732 = vunpack.c.l.b16 %v10076
    %v11733 = vunpack.c.h.b16 %v10076
    %v11734 = vunpack.c.l.b16 %v10077
    %v11735 = vunpack.c.h.b16 %v10077
    %v11736 = vunpack.c.l.b16 %v10078
    %v11737 = vunpack.c.h.b16 %v10078
    %v11738 = vunpack.c.l.b16 %v10079
    %v11739 = vunpack.c.h.b16 %v10079
    %v11740 = vunpack.c.l.b16 %v10080
    %v11741 = vunpack.c.h.b16 %v10080
    %v11742 = vunpack.c.l.b16 %v10081
    %v11743 = vunpack.c.h.b16 %v10081
    %v11744 = vunpack.c.l.b16 %v10082
    %v11745 = vunpack.c.h.b16 %v10082
    %v11746 = vunpack.c.l.b16 %v10083
    %v11747 = vunpack.c.h.b16 %v10083
    %v11748 = vunpack.c.l.b16 %v10084
    %v11749 = vunpack.c.h.b16 %v10084
    %v11750 = vunpack.c.l.b16 %v10085
    %v11751 = vunpack.c.h.b16 %v10085
    %v11752 = vunpack.c.l.b16 %v10086
    %v11753 = vunpack.c.h.b16 %v10086
    %v11754 = vunpack.c.l.b16 %v10087
    %v11755 = vunpack.c.h.b16 %v10087
    %v11756 = vunpack.c.l.b16 %v10088
    %v11757 = vunpack.c.h.b16 %v10088
    %v11758 = vunpack.c.l.b16 %v10089
    %v11759 = vunpack.c.h.b16 %v10089
    %v11760 = vunpack.c.l.b16 %v10090
    %v11761 = vunpack.c.h.b16 %v10090
    %v11762 = vunpack.c.l.b16 %v10091
    %v11763 = vunpack.c.h.b16 %v10091
    %v11764 = vunpack.c.l.b16 %v10092
    %v11765 = vunpack.c.h.b16 %v10092
    %v11766 = vunpack.c.l.b16 %v10093
    %v11767 = vunpack.c.h.b16 %v10093
    %v11768 = vpack.c.b16 %v10748, %v10744
    %v11769 = vpack.c.b16 %v10749, %v10745
    %v11770 = vpack.c.b16 %v10750, %v10746
    %v11771 = vpack.c.b16 %v10751, %v10747
    %v11772 = vpack.c.b16 %v10756, %v10752
    %v11773 = vpack.c.b16 %v10757, %v10753
    %v11774 = vpack.c.b16 %v10758, %v10754
    %v11775 = vpack.c.b16 %v10759, %v10755
    %v11776 = vpack.c.b16 %v10764, %v10760
    %v11777 = vpack.c.b16 %v10765, %v10761
    %v11778 = vpack.c.b16 %v10766, %v10762
    %v11779 = vpack.c.b16 %v10767, %v10763
    %v11780 = vpack.c.b16 %v10772, %v10768
    %v11781 = vpack.c.b16 %v10773, %v10769
    %v11782 = vpack.c.b16 %v10774, %v10770
    %v11783 = vpack.c.b16 %v10775, %v10771
    %v11784 = vpack.c.b16 %v10780, %v10776
    %v11785 = vpack.c.b16 %v10781, %v10777
    %v11786 = vpack.c.b16 %v10782, %v10778
    %v11787 = vpack.c.b16 %v10783, %v10779
    %v11788 = vpack.c.b16 %v10788, %v10784
    %v11789 = vpack.c.b16 %v10789, %v10785
    %v11790 = vpack.c.b16 %v10790, %v10786
    %v11791 = vpack.c.b16 %v10791, %v10787
    %v11792 = vpack.c.b16 %v10796, %v10792
    %v11793 = vpack.c.b16 %v10797, %v10793
    %v11794 = vpack.c.b16 %v10798, %v10794
    %v11795 = vpack.c.b16 %v10799, %v10795
    %v11796 = vpack.c.b16 %v10804, %v10800
    %v11797 = vpack.c.b16 %v10805, %v10801
    %v11798 = vpack.c.b16 %v10806, %v10802
    %v11799 = vpack.c.b16 %v10807, %v10803
    %v11800 = vpack.c.b16 %v10812, %v10808
    %v11801 = vpack.c.b16 %v10813, %v10809
    %v11802 = vpack.c.b16 %v10814, %v10810
    %v11803 = vpack.c.b16 %v10815, %v10811
    %v11804 = vpack.c.b16 %v10820, %v10816
    %v11805 = vpack.c.b16 %v10821, %v10817
    %v11806 = vpack.c.b16 %v10822, %v10818
    %v11807 = vpack.c.b16 %v10823, %v10819
    %v11808 = vpack.c.b16 %v10828, %v10824
    %v11809 = vpack.c.b16 %v10829, %v10825
    %v11810 = vpack.c.b16 %v10830, %v10826
    %v11811 = vpack.c.b16 %v10831, %v10827
    %v11812 = vpack.c.b16 %v10836, %v10832
    %v11813 = vpack.c.b16 %v10837, %v10833
    %v11814 = vpack.c.b16 %v10838, %v10834
    %v11815 = vpack.c.b16 %v10839, %v10835
    %v11816 = vpack.c.b16 %v10844, %v10840
    %v11817 = vpack.c.b16 %v10845, %v10841
    %v11818 = vpack.c.b16 %v10846, %v10842
    %v11819 = vpack.c.b16 %v10847, %v10843
    %v11820 = vpack.c.b16 %v10852, %v10848
    %v11821 = vpack.c.b16 %v10853, %v10849
    %v11822 = vpack.c.b16 %v10854, %v10850
    %v11823 = vpack.c.b16 %v10855, %v10851
    %v11824 = vpack.c.b16 %v10860, %v10856
    %v11825 = vpack.c.b16 %v10861, %v10857
    %v11826 = vpack.c.b16 %v10862, %v10858
    %v11827 = vpack.c.b16 %v10863, %v10859
    %v11828 = vpack.c.b16 %v10868, %v10864
    %v11829 = vpack.c.b16 %v10869, %v10865
    %v11830 = vpack.c.b16 %v10870, %v10866
    %v11831 = vpack.c.b16 %v10871, %v10867
    %v11832 = vpack.c.b16 %v10876, %v10872
    %v11833 = vpack.c.b16 %v10877, %v10873
    %v11834 = vpack.c.b16 %v10878, %v10874
    %v11835 = vpack.c.b16 %v10879, %v10875
    %v11836 = vpack.c.b16 %v10884, %v10880
    %v11837 = vpack.c.b16 %v10885, %v10881
    %v11838 = vpack.c.b16 %v10886, %v10882
    %v11839 = vpack.c.b16 %v10887, %v10883
    %v11840 = vpack.c.b16 %v10892, %v10888
    %v11841 = vpack.c.b16 %v10893, %v10889
    %v11842 = vpack.c.b16 %v10894, %v10890
    %v11843 = vpack.c.b16 %v10895, %v10891
    %v11844 = vpack.c.b16 %v10900, %v10896
    %v11845 = vpack.c.b16 %v10901, %v10897
    %v11846 = vpack.c.b16 %v10902, %v10898
    %v11847 = vpack.c.b16 %v10903, %v10899
    %v11848 = vpack.c.b16 %v10908, %v10904
    %v11849 = vpack.c.b16 %v10909, %v10905
    %v11850 = vpack.c.b16 %v10910, %v10906
    %v11851 = vpack.c.b16 %v10911, %v10907
    %v11852 = vpack.c.b16 %v10916, %v10912
    %v11853 = vpack.c.b16 %v10917, %v10913
    %v11854 = vpack.c.b16 %v10918, %v10914
    %v11855 = vpack.c.b16 %v10919, %v10915
    %v11856 = vpack.c.b16 %v10924, %v10920
    %v11857 = vpack.c.b16 %v10925, %v10921
    %v11858 = vpack.c.b16 %v10926, %v10922
    %v11859 = vpack.c.b16 %v10927, %v10923
    %v11860 = vpack.c.b16 %v10932, %v10928
    %v11861 = vpack.c.b16 %v10933, %v10929
    %v11862 = vpack.c.b16 %v10934, %v10930
    %v11863 = vpack.c.b16 %v10935, %v10931
    %v11864 = vpack.c.b16 %v10940, %v10936
    %v11865 = vpack.c.b16 %v10941, %v10937
    %v11866 = vpack.c.b16 %v10942, %v10938
    %v11867 = vpack.c.b16 %v10943, %v10939
    %v11868 = vpack.c.b16 %v10948, %v10944
    %v11869 = vpack.c.b16 %v10949, %v10945
    %v11870 = vpack.c.b16 %v10950, %v10946
    %v11871 = vpack.c.b16 %v10951, %v10947
    %v11872 = vpack.c.b16 %v10956, %v10952
    %v11873 = vpack.c.b16 %v10957, %v10953
    %v11874 = vpack.c.b16 %v10958, %v10954
    %v11875 = vpack.c.b16 %v10959, %v10955
    %v11876 = vpack.c.b16 %v10964, %v10960
    %v11877 = vpack.c.b16 %v10965, %v10961
    %v11878 = vpack.c.b16 %v10966, %v10962
    %v11879 = vpack.c.b16 %v10967, %v10963
    %v11880 = vpack.c.b16 %v10972, %v10968
    %v11881 = vpack.c.b16 %v10973, %v10969
    %v11882 = vpack.c.b16 %v10974, %v10970
    %v11883 = vpack.c.b16 %v10975, %v10971
    %v11884 = vpack.c.b16 %v10980, %v10976
    %v11885 = vpack.c.b16 %v10981, %v10977
    %v11886 = vpack.c.b16 %v10982, %v10978
    %v11887 = vpack.c.b16 %v10983, %v10979
    %v11888 = vpack.c.b16 %v10988, %v10984
    %v11889 = vpack.c.b16 %v10989, %v10985
    %v11890 = vpack.c.b16 %v10990, %v10986
    %v11891 = vpack.c.b16 %v10991, %v10987
    %v11892 = vpack.c.b16 %v10996, %v10992
    %v11893 = vpack.c.b16 %v10997, %v10993
    %v11894 = vpack.c.b16 %v10998, %v10994
    %v11895 = vpack.c.b16 %v10999, %v10995
    %v11896 = vpack.c.b16 %v11004, %v11000
    %v11897 = vpack.c.b16 %v11005, %v11001
    %v11898 = vpack.c.b16 %v11006, %v11002
    %v11899 = vpack.c.b16 %v11007, %v11003
    %v11900 = vpack.c.b16 %v11012, %v11008
    %v11901 = vpack.c.b16 %v11013, %v11009
    %v11902 = vpack.c.b16 %v11014, %v11010
    %v11903 = vpack.c.b16 %v11015, %v11011
    %v11904 = vpack.c.b16 %v11020, %v11016
    %v11905 = vpack.c.b16 %v11021, %v11017
    %v11906 = vpack.c.b16 %v11022, %v11018
    %v11907 = vpack.c.b16 %v11023, %v11019
    %v11908 = vpack.c.b16 %v11028, %v11024
    %v11909 = vpack.c.b16 %v11029, %v11025
    %v11910 = vpack.c.b16 %v11030, %v11026
    %v11911 = vpack.c.b16 %v11031, %v11027
    %v11912 = vpack.c.b16 %v11036, %v11032
    %v11913 = vpack.c.b16 %v11037, %v11033
    %v11914 = vpack.c.b16 %v11038, %v11034
    %v11915 = vpack.c.b16 %v11039, %v11035
    %v11916 = vpack.c.b16 %v11044, %v11040
    %v11917 = vpack.c.b16 %v11045, %v11041
    %v11918 = vpack.c.b16 %v11046, %v11042
    %v11919 = vpack.c.b16 %v11047, %v11043
    %v11920 = vpack.c.b16 %v11052, %v11048
    %v11921 = vpack.c.b16 %v11053, %v11049
    %v11922 = vpack.c.b16 %v11054, %v11050
    %v11923 = vpack.c.b16 %v11055, %v11051
    %v11924 = vpack.c.b16 %v11060, %v11056
    %v11925 = vpack.c.b16 %v11061, %v11057
    %v11926 = vpack.c.b16 %v11062, %v11058
    %v11927 = vpack.c.b16 %v11063, %v11059
    %v11928 = vpack.c.b16 %v11068, %v11064
    %v11929 = vpack.c.b16 %v11069, %v11065
    %v11930 = vpack.c.b16 %v11070, %v11066
    %v11931 = vpack.c.b16 %v11071, %v11067
    %v11932 = vpack.c.b16 %v11076, %v11072
    %v11933 = vpack.c.b16 %v11077, %v11073
    %v11934 = vpack.c.b16 %v11078, %v11074
    %v11935 = vpack.c.b16 %v11079, %v11075
    %v11936 = vpack.c.b16 %v11084, %v11080
    %v11937 = vpack.c.b16 %v11085, %v11081
    %v11938 = vpack.c.b16 %v11086, %v11082
    %v11939 = vpack.c.b16 %v11087, %v11083
    %v11940 = vpack.c.b16 %v11092, %v11088
    %v11941 = vpack.c.b16 %v11093, %v11089
    %v11942 = vpack.c.b16 %v11094, %v11090
    %v11943 = vpack.c.b16 %v11095, %v11091
    %v11944 = vpack.c.b16 %v11100, %v11096
    %v11945 = vpack.c.b16 %v11101, %v11097
    %v11946 = vpack.c.b16 %v11102, %v11098
    %v11947 = vpack.c.b16 %v11103, %v11099
    %v11948 = vpack.c.b16 %v11108, %v11104
    %v11949 = vpack.c.b16 %v11109, %v11105
    %v11950 = vpack.c.b16 %v11110, %v11106
    %v11951 = vpack.c.b16 %v11111, %v11107
    %v11952 = vpack.c.b16 %v11116, %v11112
    %v11953 = vpack.c.b16 %v11117, %v11113
    %v11954 = vpack.c.b16 %v11118, %v11114
    %v11955 = vpack.c.b16 %v11119, %v11115
    %v11956 = vpack.c.b16 %v11124, %v11120
    %v11957 = vpack.c.b16 %v11125, %v11121
    %v11958 = vpack.c.b16 %v11126, %v11122
    %v11959 = vpack.c.b16 %v11127, %v11123
    %v11960 = vpack.c.b16 %v11132, %v11128
    %v11961 = vpack.c.b16 %v11133, %v11129
    %v11962 = vpack.c.b16 %v11134, %v11130
    %v11963 = vpack.c.b16 %v11135, %v11131
    %v11964 = vpack.c.b16 %v11140, %v11136
    %v11965 = vpack.c.b16 %v11141, %v11137
    %v11966 = vpack.c.b16 %v11142, %v11138
    %v11967 = vpack.c.b16 %v11143, %v11139
    %v11968 = vpack.c.b16 %v11148, %v11144
    %v11969 = vpack.c.b16 %v11149, %v11145
    %v11970 = vpack.c.b16 %v11150, %v11146
    %v11971 = vpack.c.b16 %v11151, %v11147
    %v11972 = vpack.c.b16 %v11156, %v11152
    %v11973 = vpack.c.b16 %v11157, %v11153
    %v11974 = vpack.c.b16 %v11158, %v11154
    %v11975 = vpack.c.b16 %v11159, %v11155
    %v11976 = vpack.c.b16 %v11164, %v11160
    %v11977 = vpack.c.b16 %v11165, %v11161
    %v11978 = vpack.c.b16 %v11166, %v11162
    %v11979 = vpack.c.b16 %v11167, %v11163
    %v11980 = vpack.c.b16 %v11172, %v11168
    %v11981 = vpack.c.b16 %v11173, %v11169
    %v11982 = vpack.c.b16 %v11174, %v11170
    %v11983 = vpack.c.b16 %v11175, %v11171
    %v11984 = vpack.c.b16 %v11180, %v11176
    %v11985 = vpack.c.b16 %v11181, %v11177
    %v11986 = vpack.c.b16 %v11182, %v11178
    %v11987 = vpack.c.b16 %v11183, %v11179
    %v11988 = vpack.c.b16 %v11188, %v11184
    %v11989 = vpack.c.b16 %v11189, %v11185
    %v11990 = vpack.c.b16 %v11190, %v11186
    %v11991 = vpack.c.b16 %v11191, %v11187
    %v11992 = vpack.c.b16 %v11196, %v11192
    %v11993 = vpack.c.b16 %v11197, %v11193
    %v11994 = vpack.c.b16 %v11198, %v11194
    %v11995 = vpack.c.b16 %v11199, %v11195
    %v11996 = vpack.c.b16 %v11204, %v11200
    %v11997 = vpack.c.b16 %v11205, %v11201
    %v11998 = vpack.c.b16 %v11206, %v11202
    %v11999 = vpack.c.b16 %v11207, %v11203
    %v12000 = vpack.c.b16 %v11212, %v11208
    %v12001 = vpack.c.b16 %v11213, %v11209
    %v12002 = vpack.c.b16 %v11214, %v11210
    %v12003 = vpack.c.b16 %v11215, %v11211
    %v12004 = vpack.c.b16 %v11220, %v11216
    %v12005 = vpack.c.b16 %v11221, %v11217
    %v12006 = vpack.c.b16 %v11222, %v11218
    %v12007 = vpack.c.b16 %v11223, %v11219
    %v12008 = vpack.c.b16 %v11228, %v11224
    %v12009 = vpack.c.b16 %v11229, %v11225
    %v12010 = vpack.c.b16 %v11230, %v11226
    %v12011 = vpack.c.b16 %v11231, %v11227
    %v12012 = vpack.c.b16 %v11236, %v11232
    %v12013 = vpack.c.b16 %v11237, %v11233
    %v12014 = vpack.c.b16 %v11238, %v11234
    %v12015 = vpack.c.b16 %v11239, %v11235
    %v12016 = vpack.c.b16 %v11244, %v11240
    %v12017 = vpack.c.b16 %v11245, %v11241
    %v12018 = vpack.c.b16 %v11246, %v11242
    %v12019 = vpack.c.b16 %v11247, %v11243
    %v12020 = vpack.c.b16 %v11252, %v11248
    %v12021 = vpack.c.b16 %v11253, %v11249
    %v12022 = vpack.c.b16 %v11254, %v11250
    %v12023 = vpack.c.b16 %v11255, %v11251
    %v12024 = vpack.c.b16 %v11260, %v11256
    %v12025 = vpack.c.b16 %v11261, %v11257
    %v12026 = vpack.c.b16 %v11262, %v11258
    %v12027 = vpack.c.b16 %v11263, %v11259
    %v12028 = vpack.c.b16 %v11268, %v11264
    %v12029 = vpack.c.b16 %v11269, %v11265
    %v12030 = vpack.c.b16 %v11270, %v11266
    %v12031 = vpack.c.b16 %v11271, %v11267
    %v12032 = vpack.c.b16 %v11276, %v11272
    %v12033 = vpack.c.b16 %v11277, %v11273
    %v12034 = vpack.c.b16 %v11278, %v11274
    %v12035 = vpack.c.b16 %v11279, %v11275
    %v12036 = vpack.c.b16 %v11284, %v11280
    %v12037 = vpack.c.b16 %v11285, %v11281
    %v12038 = vpack.c.b16 %v11286, %v11282
    %v12039 = vpack.c.b16 %v11287, %v11283
    %v12040 = vpack.c.b16 %v11292, %v11288
    %v12041 = vpack.c.b16 %v11293, %v11289
    %v12042 = vpack.c.b16 %v11294, %v11290
    %v12043 = vpack.c.b16 %v11295, %v11291
    %v12044 = vpack.c.b16 %v11300, %v11296
    %v12045 = vpack.c.b16 %v11301, %v11297
    %v12046 = vpack.c.b16 %v11302, %v11298
    %v12047 = vpack.c.b16 %v11303, %v11299
    %v12048 = vpack.c.b16 %v11308, %v11304
    %v12049 = vpack.c.b16 %v11309, %v11305
    %v12050 = vpack.c.b16 %v11310, %v11306
    %v12051 = vpack.c.b16 %v11311, %v11307
    %v12052 = vpack.c.b16 %v11316, %v11312
    %v12053 = vpack.c.b16 %v11317, %v11313
    %v12054 = vpack.c.b16 %v11318, %v11314
    %v12055 = vpack.c.b16 %v11319, %v11315
    %v12056 = vpack.c.b16 %v11324, %v11320
    %v12057 = vpack.c.b16 %v11325, %v11321
    %v12058 = vpack.c.b16 %v11326, %v11322
    %v12059 = vpack.c.b16 %v11327, %v11323
    %v12060 = vpack.c.b16 %v11332, %v11328
    %v12061 = vpack.c.b16 %v11333, %v11329
    %v12062 = vpack.c.b16 %v11334, %v11330
    %v12063 = vpack.c.b16 %v11335, %v11331
    %v12064 = vpack.c.b16 %v11340, %v11336
    %v12065 = vpack.c.b16 %v11341, %v11337
    %v12066 = vpack.c.b16 %v11342, %v11338
    %v12067 = vpack.c.b16 %v11343, %v11339
    %v12068 = vpack.c.b16 %v11348, %v11344
    %v12069 = vpack.c.b16 %v11349, %v11345
    %v12070 = vpack.c.b16 %v11350, %v11346
    %v12071 = vpack.c.b16 %v11351, %v11347
    %v12072 = vpack.c.b16 %v11356, %v11352
    %v12073 = vpack.c.b16 %v11357, %v11353
    %v12074 = vpack.c.b16 %v11358, %v11354
    %v12075 = vpack.c.b16 %v11359, %v11355
    %v12076 = vpack.c.b16 %v11364, %v11360
    %v12077 = vpack.c.b16 %v11365, %v11361
    %v12078 = vpack.c.b16 %v11366, %v11362
    %v12079 = vpack.c.b16 %v11367, %v11363
    %v12080 = vpack.c.b16 %v11372, %v11368
    %v12081 = vpack.c.b16 %v11373, %v11369
    %v12082 = vpack.c.b16 %v11374, %v11370
    %v12083 = vpack.c.b16 %v11375, %v11371
    %v12084 = vpack.c.b16 %v11380, %v11376
    %v12085 = vpack.c.b16 %v11381, %v11377
    %v12086 = vpack.c.b16 %v11382, %v11378
    %v12087 = vpack.c.b16 %v11383, %v11379
    %v12088 = vpack.c.b16 %v11388, %v11384
    %v12089 = vpack.c.b16 %v11389, %v11385
    %v12090 = vpack.c.b16 %v11390, %v11386
    %v12091 = vpack.c.b16 %v11391, %v11387
    %v12092 = vpack.c.b16 %v11396, %v11392
    %v12093 = vpack.c.b16 %v11397, %v11393
    %v12094 = vpack.c.b16 %v11398, %v11394
    %v12095 = vpack.c.b16 %v11399, %v11395
    %v12096 = vpack.c.b16 %v11404, %v11400
    %v12097 = vpack.c.b16 %v11405, %v11401
    %v12098 = vpack.c.b16 %v11406, %v11402
    %v12099 = vpack.c.b16 %v11407, %v11403
    %v12100 = vpack.c.b16 %v11412, %v11408
    %v12101 = vpack.c.b16 %v11413, %v11409
    %v12102 = vpack.c.b16 %v11414, %v11410
    %v12103 = vpack.c.b16 %v11415, %v11411
    %v12104 = vpack.c.b16 %v11420, %v11416
    %v12105 = vpack.c.b16 %v11421, %v11417
    %v12106 = vpack.c.b16 %v11422, %v11418
    %v12107 = vpack.c.b16 %v11423, %v11419
    %v12108 = vpack.c.b16 %v11428, %v11424
    %v12109 = vpack.c.b16 %v11429, %v11425
    %v12110 = vpack.c.b16 %v11430, %v11426
    %v12111 = vpack.c.b16 %v11431, %v11427
    %v12112 = vpack.c.b16 %v11436, %v11432
    %v12113 = vpack.c.b16 %v11437, %v11433
    %v12114 = vpack.c.b16 %v11438, %v11434
    %v12115 = vpack.c.b16 %v11439, %v11435
    %v12116 = vpack.c.b16 %v11444, %v11440
    %v12117 = vpack.c.b16 %v11445, %v11441
    %v12118 = vpack.c.b16 %v11446, %v11442
    %v12119 = vpack.c.b16 %v11447, %v11443
    %v12120 = vpack.c.b16 %v11452, %v11448
    %v12121 = vpack.c.b16 %v11453, %v11449
    %v12122 = vpack.c.b16 %v11454, %v11450
    %v12123 = vpack.c.b16 %v11455, %v11451
    %v12124 = vpack.c.b16 %v11460, %v11456
    %v12125 = vpack.c.b16 %v11461, %v11457
    %v12126 = vpack.c.b16 %v11462, %v11458
    %v12127 = vpack.c.b16 %v11463, %v11459
    %v12128 = vpack.c.b16 %v11468, %v11464
    %v12129 = vpack.c.b16 %v11469, %v11465
    %v12130 = vpack.c.b16 %v11470, %v11466
    %v12131 = vpack.c.b16 %v11471, %v11467
    %v12132 = vpack.c.b16 %v11476, %v11472
    %v12133 = vpack.c.b16 %v11477, %v11473
    %v12134 = vpack.c.b16 %v11478, %v11474
    %v12135 = vpack.c.b16 %v11479, %v11475
    %v12136 = vpack.c.b16 %v11484, %v11480
    %v12137 = vpack.c.b16 %v11485, %v11481
    %v12138 = vpack.c.b16 %v11486, %v11482
    %v12139 = vpack.c.b16 %v11487, %v11483
    %v12140 = vpack.c.b16 %v11492, %v11488
    %v12141 = vpack.c.b16 %v11493, %v11489
    %v12142 = vpack.c.b16 %v11494, %v11490
    %v12143 = vpack.c.b16 %v11495, %v11491
    %v12144 = vpack.c.b16 %v11500, %v11496
    %v12145 = vpack.c.b16 %v11501, %v11497
    %v12146 = vpack.c.b16 %v11502, %v11498
    %v12147 = vpack.c.b16 %v11503, %v11499
    %v12148 = vpack.c.b16 %v11508, %v11504
    %v12149 = vpack.c.b16 %v11509, %v11505
    %v12150 = vpack.c.b16 %v11510, %v11506
    %v12151 = vpack.c.b16 %v11511, %v11507
    %v12152 = vpack.c.b16 %v11516, %v11512
    %v12153 = vpack.c.b16 %v11517, %v11513
    %v12154 = vpack.c.b16 %v11518, %v11514
    %v12155 = vpack.c.b16 %v11519, %v11515
    %v12156 = vpack.c.b16 %v11524, %v11520
    %v12157 = vpack.c.b16 %v11525, %v11521
    %v12158 = vpack.c.b16 %v11526, %v11522
    %v12159 = vpack.c.b16 %v11527, %v11523
    %v12160 = vpack.c.b16 %v11532, %v11528
    %v12161 = vpack.c.b16 %v11533, %v11529
    %v12162 = vpack.c.b16 %v11534, %v11530
    %v12163 = vpack.c.b16 %v11535, %v11531
    %v12164 = vpack.c.b16 %v11540, %v11536
    %v12165 = vpack.c.b16 %v11541, %v11537
    %v12166 = vpack.c.b16 %v11542, %v11538
    %v12167 = vpack.c.b16 %v11543, %v11539
    %v12168 = vpack.c.b16 %v11548, %v11544
    %v12169 = vpack.c.b16 %v11549, %v11545
    %v12170 = vpack.c.b16 %v11550, %v11546
    %v12171 = vpack.c.b16 %v11551, %v11547
    %v12172 = vpack.c.b16 %v11556, %v11552
    %v12173 = vpack.c.b16 %v11557, %v11553
    %v12174 = vpack.c.b16 %v11558, %v11554
    %v12175 = vpack.c.b16 %v11559, %v11555
    %v12176 = vpack.c.b16 %v11564, %v11560
    %v12177 = vpack.c.b16 %v11565, %v11561
    %v12178 = vpack.c.b16 %v11566, %v11562
    %v12179 = vpack.c.b16 %v11567, %v11563
    %v12180 = vpack.c.b16 %v11572, %v11568
    %v12181 = vpack.c.b16 %v11573, %v11569
    %v12182 = vpack.c.b16 %v11574, %v11570
    %v12183 = vpack.c.b16 %v11575, %v11571
    %v12184 = vpack.c.b16 %v11580, %v11576
    %v12185 = vpack.c.b16 %v11581, %v11577
    %v12186 = vpack.c.b16 %v11582, %v11578
    %v12187 = vpack.c.b16 %v11583, %v11579
    %v12188 = vpack.c.b16 %v11588, %v11584
    %v12189 = vpack.c.b16 %v11589, %v11585
    %v12190 = vpack.c.b16 %v11590, %v11586
    %v12191 = vpack.c.b16 %v11591, %v11587
    %v12192 = vpack.c.b16 %v11596, %v11592
    %v12193 = vpack.c.b16 %v11597, %v11593
    %v12194 = vpack.c.b16 %v11598, %v11594
    %v12195 = vpack.c.b16 %v11599, %v11595
    %v12196 = vpack.c.b16 %v11604, %v11600
    %v12197 = vpack.c.b16 %v11605, %v11601
    %v12198 = vpack.c.b16 %v11606, %v11602
    %v12199 = vpack.c.b16 %v11607, %v11603
    %v12200 = vpack.c.b16 %v11612, %v11608
    %v12201 = vpack.c.b16 %v11613, %v11609
    %v12202 = vpack.c.b16 %v11614, %v11610
    %v12203 = vpack.c.b16 %v11615, %v11611
    %v12204 = vpack.c.b16 %v11620, %v11616
    %v12205 = vpack.c.b16 %v11621, %v11617
    %v12206 = vpack.c.b16 %v11622, %v11618
    %v12207 = vpack.c.b16 %v11623, %v11619
    %v12208 = vpack.c.b16 %v11628, %v11624
    %v12209 = vpack.c.b16 %v11629, %v11625
    %v12210 = vpack.c.b16 %v11630, %v11626
    %v12211 = vpack.c.b16 %v11631, %v11627
    %v12212 = vpack.c.b16 %v11636, %v11632
    %v12213 = vpack.c.b16 %v11637, %v11633
    %v12214 = vpack.c.b16 %v11638, %v11634
    %v12215 = vpack.c.b16 %v11639, %v11635
    %v12216 = vpack.c.b16 %v11644, %v11640
    %v12217 = vpack.c.b16 %v11645, %v11641
    %v12218 = vpack.c.b16 %v11646, %v11642
    %v12219 = vpack.c.b16 %v11647, %v11643
    %v12220 = vpack.c.b16 %v11652, %v11648
    %v12221 = vpack.c.b16 %v11653, %v11649
    %v12222 = vpack.c.b16 %v11654, %v11650
    %v12223 = vpack.c.b16 %v11655, %v11651
    %v12224 = vpack.c.b16 %v11660, %v11656
    %v12225 = vpack.c.b16 %v11661, %v11657
    %v12226 = vpack.c.b16 %v11662, %v11658
    %v12227 = vpack.c.b16 %v11663, %v11659
    %v12228 = vpack.c.b16 %v11668, %v11664
    %v12229 = vpack.c.b16 %v11669, %v11665
    %v12230 = vpack.c.b16 %v11670, %v11666
    %v12231 = vpack.c.b16 %v11671, %v11667
    %v12232 = vpack.c.b16 %v11676, %v11672
    %v12233 = vpack.c.b16 %v11677, %v11673
    %v12234 = vpack.c.b16 %v11678, %v11674
    %v12235 = vpack.c.b16 %v11679, %v11675
    %v12236 = vpack.c.b16 %v11684, %v11680
    %v12237 = vpack.c.b16 %v11685, %v11681
    %v12238 = vpack.c.b16 %v11686, %v11682
    %v12239 = vpack.c.b16 %v11687, %v11683
    %v12240 = vpack.c.b16 %v11692, %v11688
    %v12241 = vpack.c.b16 %v11693, %v11689
    %v12242 = vpack.c.b16 %v11694, %v11690
    %v12243 = vpack.c.b16 %v11695, %v11691
    %v12244 = vpack.c.b16 %v11700, %v11696
    %v12245 = vpack.c.b16 %v11701, %v11697
    %v12246 = vpack.c.b16 %v11702, %v11698
    %v12247 = vpack.c.b16 %v11703, %v11699
    %v12248 = vpack.c.b16 %v11708, %v11704
    %v12249 = vpack.c.b16 %v11709, %v11705
    %v12250 = vpack.c.b16 %v11710, %v11706
    %v12251 = vpack.c.b16 %v11711, %v11707
    %v12252 = vpack.c.b16 %v11716, %v11712
    %v12253 = vpack.c.b16 %v11717, %v11713
    %v12254 = vpack.c.b16 %v11718, %v11714
    %v12255 = vpack.c.b16 %v11719, %v11715
    %v12256 = vpack.c.b16 %v11724, %v11720
    %v12257 = vpack.c.b16 %v11725, %v11721
    %v12258 = vpack.c.b16 %v11726, %v11722
    %v12259 = vpack.c.b16 %v11727, %v11723
    %v12260 = vpack.c.b16 %v11732, %v11728
    %v12261 = vpack.c.b16 %v11733, %v11729
    %v12262 = vpack.c.b16 %v11734, %v11730
    %v12263 = vpack.c.b16 %v11735, %v11731
    %v12264 = vpack.c.b16 %v11740, %v11736
    %v12265 = vpack.c.b16 %v11741, %v11737
    %v12266 = vpack.c.b16 %v11742, %v11738
    %v12267 = vpack.c.b16 %v11743, %v11739
    %v12268 = vpack.c.b16 %v11748, %v11744
    %v12269 = vpack.c.b16 %v11749, %v11745
    %v12270 = vpack.c.b16 %v11750, %v11746
    %v12271 = vpack.c.b16 %v11751, %v11747
    %v12272 = vpack.c.b16 %v11756, %v11752
    %v12273 = vpack.c.b16 %v11757, %v11753
    %v12274 = vpack.c.b16 %v11758, %v11754
    %v12275 = vpack.c.b16 %v11759, %v11755
    %v12276 = vpack.c.b16 %v11764, %v11760
    %v12277 = vpack.c.b16 %v11765, %v11761
    %v12278 = vpack.c.b16 %v11766, %v11762
    %v12279 = vpack.c.b16 %v11767, %v11763
    %12792 = vmatprep.subr.bf16.mxu0 %v11797
    %12793 = vmatpush1.bf16.msra.mxu0 %v11796
    %12794 = vmatprep.subr.bf16.mxu0 %v11793
    %12795 = vmatpush1.bf16.msra.mxu0 %v11792
    %12796 = vmatprep.subr.bf16.mxu0 %v11789
    %12797 = vmatpush1.bf16.msra.mxu0 %v11788
    %12798 = vmatprep.subr.bf16.mxu0 %v11785
    %12799 = vmatpush1.bf16.msra.mxu0 %v11784
    %12800 = vmatprep.subr.bf16.mxu0 %v11781
    %12801 = vmatpush1.bf16.msra.mxu0 %v11780
    %12802 = vmatprep.subr.bf16.mxu0 %v11777
    %12803 = vmatpush1.bf16.msra.mxu0 %v11776
    %12804 = vmatprep.subr.bf16.mxu0 %v11773
    %12805 = vmatpush1.bf16.msra.mxu0 %v11772
    %12806 = vmatprep.subr.bf16.mxu0 %v11769
    %12807 = vmatpush1.bf16.msra.mxu0 %v11768
    %12808 = vmatprep.subr.bf16.mxu0 %v11829
    %12809 = vmatpush2.bf16.msra.mxu0 %v11828
    %12810 = vmatprep.subr.bf16.mxu0 %v11825
    %12811 = vmatpush2.bf16.msra.mxu0 %v11824
    %12812 = vmatprep.subr.bf16.mxu0 %v11821
    %12813 = vmatpush2.bf16.msra.mxu0 %v11820
    %12814 = vmatprep.subr.bf16.mxu0 %v11817
    %12815 = vmatpush2.bf16.msra.mxu0 %v11816
    %12816 = vmatprep.subr.bf16.mxu0 %v11813
    %12817 = vmatpush2.bf16.msra.mxu0 %v11812
    %12818 = vmatprep.subr.bf16.mxu0 %v11809
    %12819 = vmatpush2.bf16.msra.mxu0 %v11808
    %12820 = vmatprep.subr.bf16.mxu0 %v11805
    %12821 = vmatpush2.bf16.msra.mxu0 %v11804
    %12822 = vmatprep.subr.bf16.mxu0 %v11801
    %12823 = vmatpush2.bf16.msra.mxu0 %v11800
    %12824 = vmatprep.mubr.bf16.mxu0 %v10155
    %12825 = vmatmul.mubr.bf16.gmra.mxu0 %v10141
    %v12826 = vpop.f32.mrf.mxu0
    %v12827 = vadd.f32 %v10099, %v12826
    %v12828 = vpop.f32.mrf.mxu0
    %v12829 = vadd.f32 %v10103, %v12828
    %v12830 = vpop.f32.mrf.mxu0
    %v12831 = vpop.f32.mrf.mxu0
    %12832 = vdwg.mxu0
    %12833 = vmatprep.subr.bf16.mxu0 %v11861
    %12834 = vmatpush1.bf16.msra.mxu0 %v11860
    %12835 = vmatprep.subr.bf16.mxu0 %v11857
    %12836 = vmatpush1.bf16.msra.mxu0 %v11856
    %12837 = vmatprep.subr.bf16.mxu0 %v11853
    %12838 = vmatpush1.bf16.msra.mxu0 %v11852
    %12839 = vmatprep.subr.bf16.mxu0 %v11849
    %12840 = vmatpush1.bf16.msra.mxu0 %v11848
    %12841 = vmatprep.subr.bf16.mxu0 %v11845
    %12842 = vmatpush1.bf16.msra.mxu0 %v11844
    %12843 = vmatprep.subr.bf16.mxu0 %v11841
    %12844 = vmatpush1.bf16.msra.mxu0 %v11840
    %12845 = vmatprep.subr.bf16.mxu0 %v11837
    %12846 = vmatpush1.bf16.msra.mxu0 %v11836
    %12847 = vmatprep.subr.bf16.mxu0 %v11833
    %12848 = vmatpush1.bf16.msra.mxu0 %v11832
    %12849 = vmatprep.subr.bf16.mxu0 %v11893
    %12850 = vmatpush2.bf16.msra.mxu0 %v11892
    %12851 = vmatprep.subr.bf16.mxu0 %v11889
    %12852 = vmatpush2.bf16.msra.mxu0 %v11888
    %12853 = vmatprep.subr.bf16.mxu0 %v11885
    %12854 = vmatpush2.bf16.msra.mxu0 %v11884
    %12855 = vmatprep.subr.bf16.mxu0 %v11881
    %12856 = vmatpush2.bf16.msra.mxu0 %v11880
    %12857 = vmatprep.subr.bf16.mxu0 %v11877
    %12858 = vmatpush2.bf16.msra.mxu0 %v11876
    %12859 = vmatprep.subr.bf16.mxu0 %v11873
    %12860 = vmatpush2.bf16.msra.mxu0 %v11872
    %12861 = vmatprep.subr.bf16.mxu0 %v11869
    %12862 = vmatpush2.bf16.msra.mxu0 %v11868
    %12863 = vmatprep.subr.bf16.mxu0 %v11865
    %12864 = vmatpush2.bf16.msra.mxu0 %v11864
    %12865 = vmatprep.mubr.bf16.mxu0 %v10165
    %12866 = vmatmul.mubr.bf16.gmra.mxu0 %v10163
    %v12867 = vpop.f32.mrf.mxu0
    %v12868 = vadd.f32 %v12827, %v12867
    %v12869 = vpop.f32.mrf.mxu0
    %v12870 = vadd.f32 %v12829, %v12869
    %v12871 = vpop.f32.mrf.mxu0
    %v12872 = vpop.f32.mrf.mxu0
    %12873 = vdwg.mxu0
    %12874 = vmatprep.subr.bf16.mxu0 %v11925
    %12875 = vmatpush1.bf16.msra.mxu0 %v11924
    %12876 = vmatprep.subr.bf16.mxu0 %v11921
    %12877 = vmatpush1.bf16.msra.mxu0 %v11920
    %12878 = vmatprep.subr.bf16.mxu0 %v11917
    %12879 = vmatpush1.bf16.msra.mxu0 %v11916
    %12880 = vmatprep.subr.bf16.mxu0 %v11913
    %12881 = vmatpush1.bf16.msra.mxu0 %v11912
    %12882 = vmatprep.subr.bf16.mxu0 %v11909
    %12883 = vmatpush1.bf16.msra.mxu0 %v11908
    %12884 = vmatprep.subr.bf16.mxu0 %v11905
    %12885 = vmatpush1.bf16.msra.mxu0 %v11904
    %12886 = vmatprep.subr.bf16.mxu0 %v11901
    %12887 = vmatpush1.bf16.msra.mxu0 %v11900
    %12888 = vmatprep.subr.bf16.mxu0 %v11897
    %12889 = vmatpush1.bf16.msra.mxu0 %v11896
    %12890 = vmatprep.subr.bf16.mxu0 %v11957
    %12891 = vmatpush2.bf16.msra.mxu0 %v11956
    %12892 = vmatprep.subr.bf16.mxu0 %v11953
    %12893 = vmatpush2.bf16.msra.mxu0 %v11952
    %12894 = vmatprep.subr.bf16.mxu0 %v11949
    %12895 = vmatpush2.bf16.msra.mxu0 %v11948
    %12896 = vmatprep.subr.bf16.mxu0 %v11945
    %12897 = vmatpush2.bf16.msra.mxu0 %v11944
    %12898 = vmatprep.subr.bf16.mxu0 %v11941
    %12899 = vmatpush2.bf16.msra.mxu0 %v11940
    %12900 = vmatprep.subr.bf16.mxu0 %v11937
    %12901 = vmatpush2.bf16.msra.mxu0 %v11936
    %12902 = vmatprep.subr.bf16.mxu0 %v11933
    %12903 = vmatpush2.bf16.msra.mxu0 %v11932
    %12904 = vmatprep.subr.bf16.mxu0 %v11929
    %12905 = vmatpush2.bf16.msra.mxu0 %v11928
    %12906 = vmatprep.mubr.bf16.mxu0 %v10162
    %12907 = vmatmul.mubr.bf16.gmra.mxu0 %v10148
    %v12908 = vpop.f32.mrf.mxu0
    %v12909 = vadd.f32 %v12868, %v12908
    %v12910 = vpop.f32.mrf.mxu0
    %v12911 = vadd.f32 %v12870, %v12910
    %v12912 = vpop.f32.mrf.mxu0
    %v12913 = vpop.f32.mrf.mxu0
    %12914 = vdwg.mxu0
    %12915 = vmatprep.subr.bf16.mxu0 %v11989
    %12916 = vmatpush1.bf16.msra.mxu0 %v11988
    %12917 = vmatprep.subr.bf16.mxu0 %v11985
    %12918 = vmatpush1.bf16.msra.mxu0 %v11984
    %12919 = vmatprep.subr.bf16.mxu0 %v11981
    %12920 = vmatpush1.bf16.msra.mxu0 %v11980
    %12921 = vmatprep.subr.bf16.mxu0 %v11977
    %12922 = vmatpush1.bf16.msra.mxu0 %v11976
    %12923 = vmatprep.subr.bf16.mxu0 %v11973
    %12924 = vmatpush1.bf16.msra.mxu0 %v11972
    %12925 = vmatprep.subr.bf16.mxu0 %v11969
    %12926 = vmatpush1.bf16.msra.mxu0 %v11968
    %12927 = vmatprep.subr.bf16.mxu0 %v11965
    %12928 = vmatpush1.bf16.msra.mxu0 %v11964
    %12929 = vmatprep.subr.bf16.mxu0 %v11961
    %12930 = vmatpush1.bf16.msra.mxu0 %v11960
    %12931 = vmatprep.subr.bf16.mxu0 %v12021
    %12932 = vmatpush2.bf16.msra.mxu0 %v12020
    %12933 = vmatprep.subr.bf16.mxu0 %v12017
    %12934 = vmatpush2.bf16.msra.mxu0 %v12016
    %12935 = vmatprep.subr.bf16.mxu0 %v12013
    %12936 = vmatpush2.bf16.msra.mxu0 %v12012
    %12937 = vmatprep.subr.bf16.mxu0 %v12009
    %12938 = vmatpush2.bf16.msra.mxu0 %v12008
    %12939 = vmatprep.subr.bf16.mxu0 %v12005
    %12940 = vmatpush2.bf16.msra.mxu0 %v12004
    %12941 = vmatprep.subr.bf16.mxu0 %v12001
    %12942 = vmatpush2.bf16.msra.mxu0 %v12000
    %12943 = vmatprep.subr.bf16.mxu0 %v11997
    %12944 = vmatpush2.bf16.msra.mxu0 %v11996
    %12945 = vmatprep.subr.bf16.mxu0 %v11993
    %12946 = vmatpush2.bf16.msra.mxu0 %v11992
    %12947 = vmatprep.mubr.bf16.mxu0 %v10166
    %12948 = vmatmul.mubr.bf16.gmra.mxu0 %v10164
    %v12949 = vpop.f32.mrf.mxu0
    %v12950 = vadd.f32 %v12909, %v12949
    %v12951 = vpop.f32.mrf.mxu0
    %v12952 = vadd.f32 %v12911, %v12951
    %v12953 = vpop.f32.mrf.mxu0
    %v12954 = vpop.f32.mrf.mxu0
    %12955 = vdwg.mxu0
    %12956 = vmatprep.subr.bf16.mxu0 %v12053
    %12957 = vmatpush1.bf16.msra.mxu0 %v12052
    %12958 = vmatprep.subr.bf16.mxu0 %v12049
    %12959 = vmatpush1.bf16.msra.mxu0 %v12048
    %12960 = vmatprep.subr.bf16.mxu0 %v12045
    %12961 = vmatpush1.bf16.msra.mxu0 %v12044
    %12962 = vmatprep.subr.bf16.mxu0 %v12041
    %12963 = vmatpush1.bf16.msra.mxu0 %v12040
    %12964 = vmatprep.subr.bf16.mxu0 %v12037
    %12965 = vmatpush1.bf16.msra.mxu0 %v12036
    %12966 = vmatprep.subr.bf16.mxu0 %v12033
    %12967 = vmatpush1.bf16.msra.mxu0 %v12032
    %12968 = vmatprep.subr.bf16.mxu0 %v12029
    %12969 = vmatpush1.bf16.msra.mxu0 %v12028
    %12970 = vmatprep.subr.bf16.mxu0 %v12025
    %12971 = vmatpush1.bf16.msra.mxu0 %v12024
    %12972 = vmatprep.subr.bf16.mxu0 %v12085
    %12973 = vmatpush2.bf16.msra.mxu0 %v12084
    %12974 = vmatprep.subr.bf16.mxu0 %v12081
    %12975 = vmatpush2.bf16.msra.mxu0 %v12080
    %12976 = vmatprep.subr.bf16.mxu0 %v12077
    %12977 = vmatpush2.bf16.msra.mxu0 %v12076
    %12978 = vmatprep.subr.bf16.mxu0 %v12073
    %12979 = vmatpush2.bf16.msra.mxu0 %v12072
    %12980 = vmatprep.subr.bf16.mxu0 %v12069
    %12981 = vmatpush2.bf16.msra.mxu0 %v12068
    %12982 = vmatprep.subr.bf16.mxu0 %v12065
    %12983 = vmatpush2.bf16.msra.mxu0 %v12064
    %12984 = vmatprep.subr.bf16.mxu0 %v12061
    %12985 = vmatpush2.bf16.msra.mxu0 %v12060
    %12986 = vmatprep.subr.bf16.mxu0 %v12057
    %12987 = vmatpush2.bf16.msra.mxu0 %v12056
    %12988 = vmatprep.mubr.bf16.mxu0 %v10204
    %12989 = vmatmul.mubr.bf16.gmra.mxu0 %v10190
    %v12990 = vpop.f32.mrf.mxu0
    %v12991 = vadd.f32 %v12950, %v12990
    %v12992 = vpop.f32.mrf.mxu0
    %v12993 = vadd.f32 %v12952, %v12992
    %v12994 = vpop.f32.mrf.mxu0
    %v12995 = vpop.f32.mrf.mxu0
    %12996 = vdwg.mxu0
    %12997 = vmatprep.subr.bf16.mxu0 %v12117
    %12998 = vmatpush1.bf16.msra.mxu0 %v12116
    %12999 = vmatprep.subr.bf16.mxu0 %v12113
    %13000 = vmatpush1.bf16.msra.mxu0 %v12112
    %13001 = vmatprep.subr.bf16.mxu0 %v12109
    %13002 = vmatpush1.bf16.msra.mxu0 %v12108
    %13003 = vmatprep.subr.bf16.mxu0 %v12105
    %13004 = vmatpush1.bf16.msra.mxu0 %v12104
    %13005 = vmatprep.subr.bf16.mxu0 %v12101
    %13006 = vmatpush1.bf16.msra.mxu0 %v12100
    %13007 = vmatprep.subr.bf16.mxu0 %v12097
    %13008 = vmatpush1.bf16.msra.mxu0 %v12096
    %13009 = vmatprep.subr.bf16.mxu0 %v12093
    %13010 = vmatpush1.bf16.msra.mxu0 %v12092
    %13011 = vmatprep.subr.bf16.mxu0 %v12089
    %13012 = vmatpush1.bf16.msra.mxu0 %v12088
    %13013 = vmatprep.subr.bf16.mxu0 %v12149
    %13014 = vmatpush2.bf16.msra.mxu0 %v12148
    %13015 = vmatprep.subr.bf16.mxu0 %v12145
    %13016 = vmatpush2.bf16.msra.mxu0 %v12144
    %13017 = vmatprep.subr.bf16.mxu0 %v12141
    %13018 = vmatpush2.bf16.msra.mxu0 %v12140
    %13019 = vmatprep.subr.bf16.mxu0 %v12137
    %13020 = vmatpush2.bf16.msra.mxu0 %v12136
    %13021 = vmatprep.subr.bf16.mxu0 %v12133
    %13022 = vmatpush2.bf16.msra.mxu0 %v12132
    %13023 = vmatprep.subr.bf16.mxu0 %v12129
    %13024 = vmatpush2.bf16.msra.mxu0 %v12128
    %13025 = vmatprep.subr.bf16.mxu0 %v12125
    %13026 = vmatpush2.bf16.msra.mxu0 %v12124
    %13027 = vmatprep.subr.bf16.mxu0 %v12121
    %13028 = vmatpush2.bf16.msra.mxu0 %v12120
    %13029 = vmatprep.mubr.bf16.mxu0 %v10214
    %13030 = vmatmul.mubr.bf16.gmra.mxu0 %v10212
    %v13031 = vpop.f32.mrf.mxu0
    %v13032 = vadd.f32 %v12991, %v13031
    %v13033 = vpop.f32.mrf.mxu0
    %v13034 = vadd.f32 %v12993, %v13033
    %v13035 = vpop.f32.mrf.mxu0
    %v13036 = vpop.f32.mrf.mxu0
    %13037 = vdwg.mxu0
    %13038 = vmatprep.subr.bf16.mxu0 %v12181
    %13039 = vmatpush1.bf16.msra.mxu0 %v12180
    %13040 = vmatprep.subr.bf16.mxu0 %v12177
    %13041 = vmatpush1.bf16.msra.mxu0 %v12176
    %13042 = vmatprep.subr.bf16.mxu0 %v12173
    %13043 = vmatpush1.bf16.msra.mxu0 %v12172
    %13044 = vmatprep.subr.bf16.mxu0 %v12169
    %13045 = vmatpush1.bf16.msra.mxu0 %v12168
    %13046 = vmatprep.subr.bf16.mxu0 %v12165
    %13047 = vmatpush1.bf16.msra.mxu0 %v12164
    %13048 = vmatprep.subr.bf16.mxu0 %v12161
    %13049 = vmatpush1.bf16.msra.mxu0 %v12160
    %13050 = vmatprep.subr.bf16.mxu0 %v12157
    %13051 = vmatpush1.bf16.msra.mxu0 %v12156
    %13052 = vmatprep.subr.bf16.mxu0 %v12153
    %13053 = vmatpush1.bf16.msra.mxu0 %v12152
    %13054 = vmatprep.subr.bf16.mxu0 %v12213
    %13055 = vmatpush2.bf16.msra.mxu0 %v12212
    %13056 = vmatprep.subr.bf16.mxu0 %v12209
    %13057 = vmatpush2.bf16.msra.mxu0 %v12208
    %13058 = vmatprep.subr.bf16.mxu0 %v12205
    %13059 = vmatpush2.bf16.msra.mxu0 %v12204
    %13060 = vmatprep.subr.bf16.mxu0 %v12201
    %13061 = vmatpush2.bf16.msra.mxu0 %v12200
    %13062 = vmatprep.subr.bf16.mxu0 %v12197
    %13063 = vmatpush2.bf16.msra.mxu0 %v12196
    %13064 = vmatprep.subr.bf16.mxu0 %v12193
    %13065 = vmatpush2.bf16.msra.mxu0 %v12192
    %13066 = vmatprep.subr.bf16.mxu0 %v12189
    %13067 = vmatpush2.bf16.msra.mxu0 %v12188
    %13068 = vmatprep.subr.bf16.mxu0 %v12185
    %13069 = vmatpush2.bf16.msra.mxu0 %v12184
    %13070 = vmatprep.mubr.bf16.mxu0 %v10211
    %13071 = vmatmul.mubr.bf16.gmra.mxu0 %v10197
    %v13072 = vpop.f32.mrf.mxu0
    %v13073 = vadd.f32 %v13032, %v13072
    %v13074 = vpop.f32.mrf.mxu0
    %v13075 = vadd.f32 %v13034, %v13074
    %v13076 = vpop.f32.mrf.mxu0
    %v13077 = vpop.f32.mrf.mxu0
    %13078 = vdwg.mxu0
    %13079 = vmatprep.subr.bf16.mxu0 %v12245
    %13080 = vmatpush1.bf16.msra.mxu0 %v12244
    %13081 = vmatprep.subr.bf16.mxu0 %v12241
    %13082 = vmatpush1.bf16.msra.mxu0 %v12240
    %13083 = vmatprep.subr.bf16.mxu0 %v12237
    %13084 = vmatpush1.bf16.msra.mxu0 %v12236
    %13085 = vmatprep.subr.bf16.mxu0 %v12233
    %13086 = vmatpush1.bf16.msra.mxu0 %v12232
    %13087 = vmatprep.subr.bf16.mxu0 %v12229
    %13088 = vmatpush1.bf16.msra.mxu0 %v12228
    %13089 = vmatprep.subr.bf16.mxu0 %v12225
    %13090 = vmatpush1.bf16.msra.mxu0 %v12224
    %13091 = vmatprep.subr.bf16.mxu0 %v12221
    %13092 = vmatpush1.bf16.msra.mxu0 %v12220
    %13093 = vmatprep.subr.bf16.mxu0 %v12217
    %13094 = vmatpush1.bf16.msra.mxu0 %v12216
    %13095 = vmatprep.subr.bf16.mxu0 %v12277
    %13096 = vmatpush2.bf16.msra.mxu0 %v12276
    %13097 = vmatprep.subr.bf16.mxu0 %v12273
    %13098 = vmatpush2.bf16.msra.mxu0 %v12272
    %13099 = vmatprep.subr.bf16.mxu0 %v12269
    %13100 = vmatpush2.bf16.msra.mxu0 %v12268
    %13101 = vmatprep.subr.bf16.mxu0 %v12265
    %13102 = vmatpush2.bf16.msra.mxu0 %v12264
    %13103 = vmatprep.subr.bf16.mxu0 %v12261
    %13104 = vmatpush2.bf16.msra.mxu0 %v12260
    %13105 = vmatprep.subr.bf16.mxu0 %v12257
    %13106 = vmatpush2.bf16.msra.mxu0 %v12256
    %13107 = vmatprep.subr.bf16.mxu0 %v12253
    %13108 = vmatpush2.bf16.msra.mxu0 %v12252
    %13109 = vmatprep.subr.bf16.mxu0 %v12249
    %13110 = vmatpush2.bf16.msra.mxu0 %v12248
    %13111 = vmatprep.mubr.bf16.mxu0 %v10215
    %13112 = vmatmul.mubr.bf16.gmra.mxu0 %v10213
    %v13113 = vpop.f32.mrf.mxu0
    %v13114 = vadd.f32 %v13073, %v13113
    %v13115 = vpop.f32.mrf.mxu0
    %v13116 = vadd.f32 %v13075, %v13115
    %v13117 = vpop.f32.mrf.mxu0
    %v13118 = vpop.f32.mrf.mxu0
    %13119 = vdwg.mxu0
    %13120 = vmatprep.subr.bf16.mxu0 %v11799
    %13121 = vmatpush1.bf16.msra.mxu0 %v11798
    %13122 = vmatprep.subr.bf16.mxu0 %v11795
    %13123 = vmatpush1.bf16.msra.mxu0 %v11794
    %13124 = vmatprep.subr.bf16.mxu0 %v11791
    %13125 = vmatpush1.bf16.msra.mxu0 %v11790
    %13126 = vmatprep.subr.bf16.mxu0 %v11787
    %13127 = vmatpush1.bf16.msra.mxu0 %v11786
    %13128 = vmatprep.subr.bf16.mxu0 %v11783
    %13129 = vmatpush1.bf16.msra.mxu0 %v11782
    %13130 = vmatprep.subr.bf16.mxu0 %v11779
    %13131 = vmatpush1.bf16.msra.mxu0 %v11778
    %13132 = vmatprep.subr.bf16.mxu0 %v11775
    %13133 = vmatpush1.bf16.msra.mxu0 %v11774
    %13134 = vmatprep.subr.bf16.mxu0 %v11771
    %13135 = vmatpush1.bf16.msra.mxu0 %v11770
    %13136 = vmatprep.subr.bf16.mxu0 %v11831
    %13137 = vmatpush2.bf16.msra.mxu0 %v11830
    %13138 = vmatprep.subr.bf16.mxu0 %v11827
    %13139 = vmatpush2.bf16.msra.mxu0 %v11826
    %13140 = vmatprep.subr.bf16.mxu0 %v11823
    %13141 = vmatpush2.bf16.msra.mxu0 %v11822
    %13142 = vmatprep.subr.bf16.mxu0 %v11819
    %13143 = vmatpush2.bf16.msra.mxu0 %v11818
    %13144 = vmatprep.subr.bf16.mxu0 %v11815
    %13145 = vmatpush2.bf16.msra.mxu0 %v11814
    %13146 = vmatprep.subr.bf16.mxu0 %v11811
    %13147 = vmatpush2.bf16.msra.mxu0 %v11810
    %13148 = vmatprep.subr.bf16.mxu0 %v11807
    %13149 = vmatpush2.bf16.msra.mxu0 %v11806
    %13150 = vmatprep.subr.bf16.mxu0 %v11803
    %13151 = vmatpush2.bf16.msra.mxu0 %v11802
    %13152 = vmatprep.mubr.bf16.mxu0 %v10155
    %13153 = vmatmul.mubr.bf16.gmra.mxu0 %v10141
    %v13154 = vpop.f32.mrf.mxu0
    %v13155 = vadd.f32 %v10107, %v13154
    %v13156 = vpop.f32.mrf.mxu0
    %v13157 = vadd.f32 %v10111, %v13156
    %v13158 = vpop.f32.mrf.mxu0
    %v13159 = vpop.f32.mrf.mxu0
    %13160 = vdwg.mxu0
    %13161 = vmatprep.subr.bf16.mxu0 %v11863
    %13162 = vmatpush1.bf16.msra.mxu0 %v11862
    %13163 = vmatprep.subr.bf16.mxu0 %v11859
    %13164 = vmatpush1.bf16.msra.mxu0 %v11858
    %13165 = vmatprep.subr.bf16.mxu0 %v11855
    %13166 = vmatpush1.bf16.msra.mxu0 %v11854
    %13167 = vmatprep.subr.bf16.mxu0 %v11851
    %13168 = vmatpush1.bf16.msra.mxu0 %v11850
    %13169 = vmatprep.subr.bf16.mxu0 %v11847
    %13170 = vmatpush1.bf16.msra.mxu0 %v11846
    %13171 = vmatprep.subr.bf16.mxu0 %v11843
    %13172 = vmatpush1.bf16.msra.mxu0 %v11842
    %13173 = vmatprep.subr.bf16.mxu0 %v11839
    %13174 = vmatpush1.bf16.msra.mxu0 %v11838
    %13175 = vmatprep.subr.bf16.mxu0 %v11835
    %13176 = vmatpush1.bf16.msra.mxu0 %v11834
    %13177 = vmatprep.subr.bf16.mxu0 %v11895
    %13178 = vmatpush2.bf16.msra.mxu0 %v11894
    %13179 = vmatprep.subr.bf16.mxu0 %v11891
    %13180 = vmatpush2.bf16.msra.mxu0 %v11890
    %13181 = vmatprep.subr.bf16.mxu0 %v11887
    %13182 = vmatpush2.bf16.msra.mxu0 %v11886
    %13183 = vmatprep.subr.bf16.mxu0 %v11883
    %13184 = vmatpush2.bf16.msra.mxu0 %v11882
    %13185 = vmatprep.subr.bf16.mxu0 %v11879
    %13186 = vmatpush2.bf16.msra.mxu0 %v11878
    %13187 = vmatprep.subr.bf16.mxu0 %v11875
    %13188 = vmatpush2.bf16.msra.mxu0 %v11874
    %13189 = vmatprep.subr.bf16.mxu0 %v11871
    %13190 = vmatpush2.bf16.msra.mxu0 %v11870
    %13191 = vmatprep.subr.bf16.mxu0 %v11867
    %13192 = vmatpush2.bf16.msra.mxu0 %v11866
    %13193 = vmatprep.mubr.bf16.mxu0 %v10165
    %13194 = vmatmul.mubr.bf16.gmra.mxu0 %v10163
    %v13195 = vpop.f32.mrf.mxu0
    %v13196 = vadd.f32 %v13155, %v13195
    %v13197 = vpop.f32.mrf.mxu0
    %v13198 = vadd.f32 %v13157, %v13197
    %v13199 = vpop.f32.mrf.mxu0
    %v13200 = vpop.f32.mrf.mxu0
    %13201 = vdwg.mxu0
    %13202 = vmatprep.subr.bf16.mxu0 %v11927
    %13203 = vmatpush1.bf16.msra.mxu0 %v11926
    %13204 = vmatprep.subr.bf16.mxu0 %v11923
    %13205 = vmatpush1.bf16.msra.mxu0 %v11922
    %13206 = vmatprep.subr.bf16.mxu0 %v11919
    %13207 = vmatpush1.bf16.msra.mxu0 %v11918
    %13208 = vmatprep.subr.bf16.mxu0 %v11915
    %13209 = vmatpush1.bf16.msra.mxu0 %v11914
    %13210 = vmatprep.subr.bf16.mxu0 %v11911
    %13211 = vmatpush1.bf16.msra.mxu0 %v11910
    %13212 = vmatprep.subr.bf16.mxu0 %v11907
    %13213 = vmatpush1.bf16.msra.mxu0 %v11906
    %13214 = vmatprep.subr.bf16.mxu0 %v11903
    %13215 = vmatpush1.bf16.msra.mxu0 %v11902
    %13216 = vmatprep.subr.bf16.mxu0 %v11899
    %13217 = vmatpush1.bf16.msra.mxu0 %v11898
    %13218 = vmatprep.subr.bf16.mxu0 %v11959
    %13219 = vmatpush2.bf16.msra.mxu0 %v11958
    %13220 = vmatprep.subr.bf16.mxu0 %v11955
    %13221 = vmatpush2.bf16.msra.mxu0 %v11954
    %13222 = vmatprep.subr.bf16.mxu0 %v11951
    %13223 = vmatpush2.bf16.msra.mxu0 %v11950
    %13224 = vmatprep.subr.bf16.mxu0 %v11947
    %13225 = vmatpush2.bf16.msra.mxu0 %v11946
    %13226 = vmatprep.subr.bf16.mxu0 %v11943
    %13227 = vmatpush2.bf16.msra.mxu0 %v11942
    %13228 = vmatprep.subr.bf16.mxu0 %v11939
    %13229 = vmatpush2.bf16.msra.mxu0 %v11938
    %13230 = vmatprep.subr.bf16.mxu0 %v11935
    %13231 = vmatpush2.bf16.msra.mxu0 %v11934
    %13232 = vmatprep.subr.bf16.mxu0 %v11931
    %13233 = vmatpush2.bf16.msra.mxu0 %v11930
    %13234 = vmatprep.mubr.bf16.mxu0 %v10162
    %13235 = vmatmul.mubr.bf16.gmra.mxu0 %v10148
    %v13236 = vpop.f32.mrf.mxu0
    %v13237 = vadd.f32 %v13196, %v13236
    %v13238 = vpop.f32.mrf.mxu0
    %v13239 = vadd.f32 %v13198, %v13238
    %v13240 = vpop.f32.mrf.mxu0
    %v13241 = vpop.f32.mrf.mxu0
    %13242 = vdwg.mxu0
    %13243 = vmatprep.subr.bf16.mxu0 %v11991
    %13244 = vmatpush1.bf16.msra.mxu0 %v11990
    %13245 = vmatprep.subr.bf16.mxu0 %v11987
    %13246 = vmatpush1.bf16.msra.mxu0 %v11986
    %13247 = vmatprep.subr.bf16.mxu0 %v11983
    %13248 = vmatpush1.bf16.msra.mxu0 %v11982
    %13249 = vmatprep.subr.bf16.mxu0 %v11979
    %13250 = vmatpush1.bf16.msra.mxu0 %v11978
    %13251 = vmatprep.subr.bf16.mxu0 %v11975
    %13252 = vmatpush1.bf16.msra.mxu0 %v11974
    %13253 = vmatprep.subr.bf16.mxu0 %v11971
    %13254 = vmatpush1.bf16.msra.mxu0 %v11970
    %13255 = vmatprep.subr.bf16.mxu0 %v11967
    %13256 = vmatpush1.bf16.msra.mxu0 %v11966
    %13257 = vmatprep.subr.bf16.mxu0 %v11963
    %13258 = vmatpush1.bf16.msra.mxu0 %v11962
    %13259 = vmatprep.subr.bf16.mxu0 %v12023
    %13260 = vmatpush2.bf16.msra.mxu0 %v12022
    %13261 = vmatprep.subr.bf16.mxu0 %v12019
    %13262 = vmatpush2.bf16.msra.mxu0 %v12018
    %13263 = vmatprep.subr.bf16.mxu0 %v12015
    %13264 = vmatpush2.bf16.msra.mxu0 %v12014
    %13265 = vmatprep.subr.bf16.mxu0 %v12011
    %13266 = vmatpush2.bf16.msra.mxu0 %v12010
    %13267 = vmatprep.subr.bf16.mxu0 %v12007
    %13268 = vmatpush2.bf16.msra.mxu0 %v12006
    %13269 = vmatprep.subr.bf16.mxu0 %v12003
    %13270 = vmatpush2.bf16.msra.mxu0 %v12002
    %13271 = vmatprep.subr.bf16.mxu0 %v11999
    %13272 = vmatpush2.bf16.msra.mxu0 %v11998
    %13273 = vmatprep.subr.bf16.mxu0 %v11995
    %13274 = vmatpush2.bf16.msra.mxu0 %v11994
    %13275 = vmatprep.mubr.bf16.mxu0 %v10166
    %13276 = vmatmul.mubr.bf16.gmra.mxu0 %v10164
    %v13277 = vpop.f32.mrf.mxu0
    %v13278 = vadd.f32 %v13237, %v13277
    %v13279 = vpop.f32.mrf.mxu0
    %v13280 = vadd.f32 %v13239, %v13279
    %v13281 = vpop.f32.mrf.mxu0
    %v13282 = vpop.f32.mrf.mxu0
    %13283 = vdwg.mxu0
    %13284 = vmatprep.subr.bf16.mxu0 %v12055
    %13285 = vmatpush1.bf16.msra.mxu0 %v12054
    %13286 = vmatprep.subr.bf16.mxu0 %v12051
    %13287 = vmatpush1.bf16.msra.mxu0 %v12050
    %13288 = vmatprep.subr.bf16.mxu0 %v12047
    %13289 = vmatpush1.bf16.msra.mxu0 %v12046
    %13290 = vmatprep.subr.bf16.mxu0 %v12043
    %13291 = vmatpush1.bf16.msra.mxu0 %v12042
    %13292 = vmatprep.subr.bf16.mxu0 %v12039
    %13293 = vmatpush1.bf16.msra.mxu0 %v12038
    %13294 = vmatprep.subr.bf16.mxu0 %v12035
    %13295 = vmatpush1.bf16.msra.mxu0 %v12034
    %13296 = vmatprep.subr.bf16.mxu0 %v12031
    %13297 = vmatpush1.bf16.msra.mxu0 %v12030
    %13298 = vmatprep.subr.bf16.mxu0 %v12027
    %13299 = vmatpush1.bf16.msra.mxu0 %v12026
    %13300 = vmatprep.subr.bf16.mxu0 %v12087
    %13301 = vmatpush2.bf16.msra.mxu0 %v12086
    %13302 = vmatprep.subr.bf16.mxu0 %v12083
    %13303 = vmatpush2.bf16.msra.mxu0 %v12082
    %13304 = vmatprep.subr.bf16.mxu0 %v12079
    %13305 = vmatpush2.bf16.msra.mxu0 %v12078
    %13306 = vmatprep.subr.bf16.mxu0 %v12075
    %13307 = vmatpush2.bf16.msra.mxu0 %v12074
    %13308 = vmatprep.subr.bf16.mxu0 %v12071
    %13309 = vmatpush2.bf16.msra.mxu0 %v12070
    %13310 = vmatprep.subr.bf16.mxu0 %v12067
    %13311 = vmatpush2.bf16.msra.mxu0 %v12066
    %13312 = vmatprep.subr.bf16.mxu0 %v12063
    %13313 = vmatpush2.bf16.msra.mxu0 %v12062
    %13314 = vmatprep.subr.bf16.mxu0 %v12059
    %13315 = vmatpush2.bf16.msra.mxu0 %v12058
    %13316 = vmatprep.mubr.bf16.mxu0 %v10204
    %13317 = vmatmul.mubr.bf16.gmra.mxu0 %v10190
    %v13318 = vpop.f32.mrf.mxu0
    %v13319 = vadd.f32 %v13278, %v13318
    %v13320 = vpop.f32.mrf.mxu0
    %v13321 = vadd.f32 %v13280, %v13320
    %v13322 = vpop.f32.mrf.mxu0
    %v13323 = vpop.f32.mrf.mxu0
    %13324 = vdwg.mxu0
    %13325 = vmatprep.subr.bf16.mxu0 %v12119
    %13326 = vmatpush1.bf16.msra.mxu0 %v12118
    %13327 = vmatprep.subr.bf16.mxu0 %v12115
    %13328 = vmatpush1.bf16.msra.mxu0 %v12114
    %13329 = vmatprep.subr.bf16.mxu0 %v12111
    %13330 = vmatpush1.bf16.msra.mxu0 %v12110
    %13331 = vmatprep.subr.bf16.mxu0 %v12107
    %13332 = vmatpush1.bf16.msra.mxu0 %v12106
    %13333 = vmatprep.subr.bf16.mxu0 %v12103
    %13334 = vmatpush1.bf16.msra.mxu0 %v12102
    %13335 = vmatprep.subr.bf16.mxu0 %v12099
    %13336 = vmatpush1.bf16.msra.mxu0 %v12098
    %13337 = vmatprep.subr.bf16.mxu0 %v12095
    %13338 = vmatpush1.bf16.msra.mxu0 %v12094
    %13339 = vmatprep.subr.bf16.mxu0 %v12091
    %13340 = vmatpush1.bf16.msra.mxu0 %v12090
    %13341 = vmatprep.subr.bf16.mxu0 %v12151
    %13342 = vmatpush2.bf16.msra.mxu0 %v12150
    %13343 = vmatprep.subr.bf16.mxu0 %v12147
    %13344 = vmatpush2.bf16.msra.mxu0 %v12146
    %13345 = vmatprep.subr.bf16.mxu0 %v12143
    %13346 = vmatpush2.bf16.msra.mxu0 %v12142
    %13347 = vmatprep.subr.bf16.mxu0 %v12139
    %13348 = vmatpush2.bf16.msra.mxu0 %v12138
    %13349 = vmatprep.subr.bf16.mxu0 %v12135
    %13350 = vmatpush2.bf16.msra.mxu0 %v12134
    %13351 = vmatprep.subr.bf16.mxu0 %v12131
    %13352 = vmatpush2.bf16.msra.mxu0 %v12130
    %13353 = vmatprep.subr.bf16.mxu0 %v12127
    %13354 = vmatpush2.bf16.msra.mxu0 %v12126
    %13355 = vmatprep.subr.bf16.mxu0 %v12123
    %13356 = vmatpush2.bf16.msra.mxu0 %v12122
    %13357 = vmatprep.mubr.bf16.mxu0 %v10214
    %13358 = vmatmul.mubr.bf16.gmra.mxu0 %v10212
    %v13359 = vpop.f32.mrf.mxu0
    %v13360 = vadd.f32 %v13319, %v13359
    %v13361 = vpop.f32.mrf.mxu0
    %v13362 = vadd.f32 %v13321, %v13361
    %v13363 = vpop.f32.mrf.mxu0
    %v13364 = vpop.f32.mrf.mxu0
    %13365 = vdwg.mxu0
    %13366 = vmatprep.subr.bf16.mxu0 %v12183
    %13367 = vmatpush1.bf16.msra.mxu0 %v12182
    %13368 = vmatprep.subr.bf16.mxu0 %v12179
    %13369 = vmatpush1.bf16.msra.mxu0 %v12178
    %13370 = vmatprep.subr.bf16.mxu0 %v12175
    %13371 = vmatpush1.bf16.msra.mxu0 %v12174
    %13372 = vmatprep.subr.bf16.mxu0 %v12171
    %13373 = vmatpush1.bf16.msra.mxu0 %v12170
    %13374 = vmatprep.subr.bf16.mxu0 %v12167
    %13375 = vmatpush1.bf16.msra.mxu0 %v12166
    %13376 = vmatprep.subr.bf16.mxu0 %v12163
    %13377 = vmatpush1.bf16.msra.mxu0 %v12162
    %13378 = vmatprep.subr.bf16.mxu0 %v12159
    %13379 = vmatpush1.bf16.msra.mxu0 %v12158
    %13380 = vmatprep.subr.bf16.mxu0 %v12155
    %13381 = vmatpush1.bf16.msra.mxu0 %v12154
    %13382 = vmatprep.subr.bf16.mxu0 %v12215
    %13383 = vmatpush2.bf16.msra.mxu0 %v12214
    %13384 = vmatprep.subr.bf16.mxu0 %v12211
    %13385 = vmatpush2.bf16.msra.mxu0 %v12210
    %13386 = vmatprep.subr.bf16.mxu0 %v12207
    %13387 = vmatpush2.bf16.msra.mxu0 %v12206
    %13388 = vmatprep.subr.bf16.mxu0 %v12203
    %13389 = vmatpush2.bf16.msra.mxu0 %v12202
    %13390 = vmatprep.subr.bf16.mxu0 %v12199
    %13391 = vmatpush2.bf16.msra.mxu0 %v12198
    %13392 = vmatprep.subr.bf16.mxu0 %v12195
    %13393 = vmatpush2.bf16.msra.mxu0 %v12194
    %13394 = vmatprep.subr.bf16.mxu0 %v12191
    %13395 = vmatpush2.bf16.msra.mxu0 %v12190
    %13396 = vmatprep.subr.bf16.mxu0 %v12187
    %13397 = vmatpush2.bf16.msra.mxu0 %v12186
    %13398 = vmatprep.mubr.bf16.mxu0 %v10211
    %13399 = vmatmul.mubr.bf16.gmra.mxu0 %v10197
    %v13400 = vpop.f32.mrf.mxu0
    %v13401 = vadd.f32 %v13360, %v13400
    %v13402 = vpop.f32.mrf.mxu0
    %v13403 = vadd.f32 %v13362, %v13402
    %v13404 = vpop.f32.mrf.mxu0
    %v13405 = vpop.f32.mrf.mxu0
    %13406 = vdwg.mxu0
    %13407 = vmatprep.subr.bf16.mxu0 %v12247
    %13408 = vmatpush1.bf16.msra.mxu0 %v12246
    %13409 = vmatprep.subr.bf16.mxu0 %v12243
    %13410 = vmatpush1.bf16.msra.mxu0 %v12242
    %13411 = vmatprep.subr.bf16.mxu0 %v12239
    %13412 = vmatpush1.bf16.msra.mxu0 %v12238
    %13413 = vmatprep.subr.bf16.mxu0 %v12235
    %13414 = vmatpush1.bf16.msra.mxu0 %v12234
    %13415 = vmatprep.subr.bf16.mxu0 %v12231
    %13416 = vmatpush1.bf16.msra.mxu0 %v12230
    %13417 = vmatprep.subr.bf16.mxu0 %v12227
    %13418 = vmatpush1.bf16.msra.mxu0 %v12226
    %13419 = vmatprep.subr.bf16.mxu0 %v12223
    %13420 = vmatpush1.bf16.msra.mxu0 %v12222
    %13421 = vmatprep.subr.bf16.mxu0 %v12219
    %13422 = vmatpush1.bf16.msra.mxu0 %v12218
    %13423 = vmatprep.subr.bf16.mxu0 %v12279
    %13424 = vmatpush2.bf16.msra.mxu0 %v12278
    %13425 = vmatprep.subr.bf16.mxu0 %v12275
    %13426 = vmatpush2.bf16.msra.mxu0 %v12274
    %13427 = vmatprep.subr.bf16.mxu0 %v12271
    %13428 = vmatpush2.bf16.msra.mxu0 %v12270
    %13429 = vmatprep.subr.bf16.mxu0 %v12267
    %13430 = vmatpush2.bf16.msra.mxu0 %v12266
    %13431 = vmatprep.subr.bf16.mxu0 %v12263
    %13432 = vmatpush2.bf16.msra.mxu0 %v12262
    %13433 = vmatprep.subr.bf16.mxu0 %v12259
    %13434 = vmatpush2.bf16.msra.mxu0 %v12258
    %13435 = vmatprep.subr.bf16.mxu0 %v12255
    %13436 = vmatpush2.bf16.msra.mxu0 %v12254
    %13437 = vmatprep.subr.bf16.mxu0 %v12251
    %13438 = vmatpush2.bf16.msra.mxu0 %v12250
    %13439 = vmatprep.mubr.bf16.mxu0 %v10215
    %13440 = vmatmul.mubr.bf16.gmra.mxu0 %v10213
    %v13441 = vpop.f32.mrf.mxu0
    %v13442 = vadd.f32 %v13401, %v13441
    %v13443 = vpop.f32.mrf.mxu0
    %v13444 = vadd.f32 %v13403, %v13443
    %v13445 = vpop.f32.mrf.mxu0
    %v13446 = vpop.f32.mrf.mxu0
    %13447 = vdwg.mxu0
    %v13448 = vmax.f32 %v13114, 0.0
    %v13449 = vmax.f32 %v13116, 0.0
    %v13450 = vmax.f32 %v13442, 0.0
    %v13451 = vmax.f32 %v13444, 0.0
    %v13452 = vpack.c.bf16 %v13448, %v13448
    %v13453 = vpack.c.bf16 %v13449, %v13449
    %v13454 = vpack.c.bf16 %v13450, %v13450
    %v13455 = vpack.c.bf16 %v13451, %v13451
    %v13456 = vld [vmem:[%s7] sm:$0xf]
    %v13457 = vld [vmem:[%s7 + $0x4] sm:$0xf]
    %v13458 = vld [vmem:[%s7 + $0x8] sm:$0xf]
    %v13459 = vld [vmem:[%s7 + $0xc] sm:$0xf]
    %v13460 = vld [vmem:[%s7 + $0x10] sm:$0xf]
    %v13461 = vld [vmem:[%s7 + $0x14] sm:$0xf]
    %v13462 = vld [vmem:[%s7 + $0x18] sm:$0xf]
    %v13463 = vld [vmem:[%s7 + $0x1c] sm:$0xf]
    %v13464 = vld [vmem:[%s7 + $0x20] sm:$0xf]
    %v13465 = vld [vmem:[%s7 + $0x24] sm:$0xf]
    %v13466 = vld [vmem:[%s7 + $0x28] sm:$0xf]
    %v13467 = vld [vmem:[%s7 + $0x2c] sm:$0xf]
    %v13468 = vld [vmem:[%s7 + $0x30] sm:$0xf]
    %v13469 = vld [vmem:[%s7 + $0x34] sm:$0xf]
    %v13470 = vld [vmem:[%s7 + $0x38] sm:$0xf]
    %v13471 = vld [vmem:[%s7 + $0x3c] sm:$0xf]
    %v13472 = vld [vmem:[%s7 + $0x40] sm:$0xf]
    %v13473 = vld [vmem:[%s7 + $0x44] sm:$0xf]
    %v13474 = vld [vmem:[%s7 + $0x48] sm:$0xf]
    %v13475 = vld [vmem:[%s7 + $0x4c] sm:$0xf]
    %v13476 = vld [vmem:[%s7 + $0x50] sm:$0xf]
    %v13477 = vld [vmem:[%s7 + $0x54] sm:$0xf]
    %v13478 = vld [vmem:[%s7 + $0x58] sm:$0xf]
    %v13479 = vld [vmem:[%s7 + $0x5c] sm:$0xf]
    %v13480 = vld [vmem:[%s7 + $0x60] sm:$0xf]
    %v13481 = vld [vmem:[%s7 + $0x64] sm:$0xf]
    %v13482 = vld [vmem:[%s7 + $0x68] sm:$0xf]
    %v13483 = vld [vmem:[%s7 + $0x6c] sm:$0xf]
    %v13484 = vld [vmem:[%s7 + $0x70] sm:$0xf]
    %v13485 = vld [vmem:[%s7 + $0x74] sm:$0xf]
    %v13486 = vld [vmem:[%s7 + $0x78] sm:$0xf]
    %v13487 = vld [vmem:[%s7 + $0x7c] sm:$0xf]
    %v13488 = vld [vmem:[%s7 + $0x80] sm:$0xf]
    %v13489 = vld [vmem:[%s7 + $0x84] sm:$0xf]
    %v13490 = vld [vmem:[%s7 + $0x88] sm:$0xf]
    %v13491 = vld [vmem:[%s7 + $0x8c] sm:$0xf]
    %v13492 = vld [vmem:[%s7 + $0x90] sm:$0xf]
    %v13493 = vld [vmem:[%s7 + $0x94] sm:$0xf]
    %v13494 = vld [vmem:[%s7 + $0x98] sm:$0xf]
    %v13495 = vld [vmem:[%s7 + $0x9c] sm:$0xf]
    %v13496 = vld [vmem:[%s7 + $0xa0] sm:$0xf]
    %v13497 = vld [vmem:[%s7 + $0xa4] sm:$0xf]
    %v13498 = vld [vmem:[%s7 + $0xa8] sm:$0xf]
    %v13499 = vld [vmem:[%s7 + $0xac] sm:$0xf]
    %v13500 = vld [vmem:[%s7 + $0xb0] sm:$0xf]
    %v13501 = vld [vmem:[%s7 + $0xb4] sm:$0xf]
    %v13502 = vld [vmem:[%s7 + $0xb8] sm:$0xf]
    %v13503 = vld [vmem:[%s7 + $0xbc] sm:$0xf]
    %v13504 = vld [vmem:[%s7 + $0xc0] sm:$0xf]
    %v13505 = vld [vmem:[%s7 + $0xc4] sm:$0xf]
    %v13506 = vld [vmem:[%s7 + $0xc8] sm:$0xf]
    %v13507 = vld [vmem:[%s7 + $0xcc] sm:$0xf]
    %v13508 = vld [vmem:[%s7 + $0xd0] sm:$0xf]
    %v13509 = vld [vmem:[%s7 + $0xd4] sm:$0xf]
    %v13510 = vld [vmem:[%s7 + $0xd8] sm:$0xf]
    %v13511 = vld [vmem:[%s7 + $0xdc] sm:$0xf]
    %v13512 = vld [vmem:[%s7 + $0xe0] sm:$0xf]
    %v13513 = vld [vmem:[%s7 + $0xe4] sm:$0xf]
    %v13514 = vld [vmem:[%s7 + $0xe8] sm:$0xf]
    %v13515 = vld [vmem:[%s7 + $0xec] sm:$0xf]
    %v13516 = vld [vmem:[%s7 + $0xf0] sm:$0xf]
    %v13517 = vld [vmem:[%s7 + $0xf4] sm:$0xf]
    %v13518 = vld [vmem:[%s7 + $0xf8] sm:$0xf]
    %v13519 = vld [vmem:[%s7 + $0xfc] sm:$0xf]
    %v13520 = vld [vmem:[%s8] sm:$0x1]
    %v13522 = vlaneseq
    %v13523 = vshrl.u32 %v13522, 7
    %v13524 = vsub.s32 0, %v13523
    %v13525 = vrot.slane %v13520, %v13524
    %v13591 = vunpack.c.l.b16 %v13456
    %v13592 = vunpack.c.l.b16 %v13457
    %v13593 = vunpack.c.l.b16 %v13458
    %v13594 = vunpack.c.l.b16 %v13459
    %v13595 = vunpack.c.l.b16 %v13460
    %v13596 = vunpack.c.l.b16 %v13461
    %v13597 = vunpack.c.l.b16 %v13462
    %v13598 = vunpack.c.l.b16 %v13463
    %v13599 = vunpack.c.l.b16 %v13464
    %v13600 = vunpack.c.l.b16 %v13465
    %v13601 = vunpack.c.l.b16 %v13466
    %v13602 = vunpack.c.l.b16 %v13467
    %v13603 = vunpack.c.l.b16 %v13468
    %v13604 = vunpack.c.l.b16 %v13469
    %v13605 = vunpack.c.l.b16 %v13470
    %v13606 = vunpack.c.l.b16 %v13471
    %v13607 = vunpack.c.l.b16 %v13472
    %v13608 = vunpack.c.l.b16 %v13473
    %v13609 = vunpack.c.l.b16 %v13474
    %v13610 = vunpack.c.l.b16 %v13475
    %v13611 = vunpack.c.l.b16 %v13476
    %v13612 = vunpack.c.l.b16 %v13477
    %v13613 = vunpack.c.l.b16 %v13478
    %v13614 = vunpack.c.l.b16 %v13479
    %v13615 = vunpack.c.l.b16 %v13480
    %v13616 = vunpack.c.l.b16 %v13481
    %v13617 = vunpack.c.l.b16 %v13482
    %v13618 = vunpack.c.l.b16 %v13483
    %v13619 = vunpack.c.l.b16 %v13484
    %v13620 = vunpack.c.l.b16 %v13485
    %v13621 = vunpack.c.l.b16 %v13486
    %v13622 = vunpack.c.l.b16 %v13487
    %v13623 = vunpack.c.l.b16 %v13488
    %v13624 = vunpack.c.l.b16 %v13489
    %v13625 = vunpack.c.l.b16 %v13490
    %v13626 = vunpack.c.l.b16 %v13491
    %v13627 = vunpack.c.l.b16 %v13492
    %v13628 = vunpack.c.l.b16 %v13493
    %v13629 = vunpack.c.l.b16 %v13494
    %v13630 = vunpack.c.l.b16 %v13495
    %v13631 = vunpack.c.l.b16 %v13496
    %v13632 = vunpack.c.l.b16 %v13497
    %v13633 = vunpack.c.l.b16 %v13498
    %v13634 = vunpack.c.l.b16 %v13499
    %v13635 = vunpack.c.l.b16 %v13500
    %v13636 = vunpack.c.l.b16 %v13501
    %v13637 = vunpack.c.l.b16 %v13502
    %v13638 = vunpack.c.l.b16 %v13503
    %v13639 = vunpack.c.l.b16 %v13504
    %v13640 = vunpack.c.l.b16 %v13505
    %v13641 = vunpack.c.l.b16 %v13506
    %v13642 = vunpack.c.l.b16 %v13507
    %v13643 = vunpack.c.l.b16 %v13508
    %v13644 = vunpack.c.l.b16 %v13509
    %v13645 = vunpack.c.l.b16 %v13510
    %v13646 = vunpack.c.l.b16 %v13511
    %v13647 = vunpack.c.l.b16 %v13512
    %v13648 = vunpack.c.l.b16 %v13513
    %v13649 = vunpack.c.l.b16 %v13514
    %v13650 = vunpack.c.l.b16 %v13515
    %v13651 = vunpack.c.l.b16 %v13516
    %v13652 = vunpack.c.l.b16 %v13517
    %v13653 = vunpack.c.l.b16 %v13518
    %v13654 = vunpack.c.l.b16 %v13519
    %v13655 = vpack.c.b16 %v13592, %v13591
    %v13656 = vpack.c.b16 %v13594, %v13593
    %v13657 = vpack.c.b16 %v13596, %v13595
    %v13658 = vpack.c.b16 %v13598, %v13597
    %v13659 = vpack.c.b16 %v13600, %v13599
    %v13660 = vpack.c.b16 %v13602, %v13601
    %v13661 = vpack.c.b16 %v13604, %v13603
    %v13662 = vpack.c.b16 %v13606, %v13605
    %v13663 = vpack.c.b16 %v13608, %v13607
    %v13664 = vpack.c.b16 %v13610, %v13609
    %v13665 = vpack.c.b16 %v13612, %v13611
    %v13666 = vpack.c.b16 %v13614, %v13613
    %v13667 = vpack.c.b16 %v13616, %v13615
    %v13668 = vpack.c.b16 %v13618, %v13617
    %v13669 = vpack.c.b16 %v13620, %v13619
    %v13670 = vpack.c.b16 %v13622, %v13621
    %v13671 = vpack.c.b16 %v13624, %v13623
    %v13672 = vpack.c.b16 %v13626, %v13625
    %v13673 = vpack.c.b16 %v13628, %v13627
    %v13674 = vpack.c.b16 %v13630, %v13629
    %v13675 = vpack.c.b16 %v13632, %v13631
    %v13676 = vpack.c.b16 %v13634, %v13633
    %v13677 = vpack.c.b16 %v13636, %v13635
    %v13678 = vpack.c.b16 %v13638, %v13637
    %v13679 = vpack.c.b16 %v13640, %v13639
    %v13680 = vpack.c.b16 %v13642, %v13641
    %v13681 = vpack.c.b16 %v13644, %v13643
    %v13682 = vpack.c.b16 %v13646, %v13645
    %v13683 = vpack.c.b16 %v13648, %v13647
    %v13684 = vpack.c.b16 %v13650, %v13649
    %v13685 = vpack.c.b16 %v13652, %v13651
    %v13686 = vpack.c.b16 %v13654, %v13653
    %13719 = vmatprep.subr.bf16.mxu0 0
    %13720 = vmatpush1.bf16.msra.mxu0 %v13662
    %13721 = vmatprep.subr.bf16.mxu0 0
    %13722 = vmatpush1.bf16.msra.mxu0 %v13661
    %13723 = vmatprep.subr.bf16.mxu0 0
    %13724 = vmatpush1.bf16.msra.mxu0 %v13660
    %13725 = vmatprep.subr.bf16.mxu0 0
    %13726 = vmatpush1.bf16.msra.mxu0 %v13659
    %13727 = vmatprep.subr.bf16.mxu0 0
    %13728 = vmatpush1.bf16.msra.mxu0 %v13658
    %13729 = vmatprep.subr.bf16.mxu0 0
    %13730 = vmatpush1.bf16.msra.mxu0 %v13657
    %13731 = vmatprep.subr.bf16.mxu0 0
    %13732 = vmatpush1.bf16.msra.mxu0 %v13656
    %13733 = vmatprep.subr.bf16.mxu0 0
    %13734 = vmatpush1.bf16.msra.mxu0 %v13655
    %13735 = vmatprep.subr.bf16.mxu0 0
    %13736 = vmatpush2.bf16.msra.mxu0 %v13670
    %13737 = vmatprep.subr.bf16.mxu0 0
    %13738 = vmatpush2.bf16.msra.mxu0 %v13669
    %13739 = vmatprep.subr.bf16.mxu0 0
    %13740 = vmatpush2.bf16.msra.mxu0 %v13668
    %13741 = vmatprep.subr.bf16.mxu0 0
    %13742 = vmatpush2.bf16.msra.mxu0 %v13667
    %13743 = vmatprep.subr.bf16.mxu0 0
    %13744 = vmatpush2.bf16.msra.mxu0 %v13666
    %13745 = vmatprep.subr.bf16.mxu0 0
    %13746 = vmatpush2.bf16.msra.mxu0 %v13665
    %13747 = vmatprep.subr.bf16.mxu0 0
    %13748 = vmatpush2.bf16.msra.mxu0 %v13664
    %13749 = vmatprep.subr.bf16.mxu0 0
    %13750 = vmatpush2.bf16.msra.mxu0 %v13663
    %13751 = vmatprep.mubr.bf16.mxu0 %v13453
    %13752 = vmatmul.mubr.bf16.gmra.mxu0 %v13452
    %v13753 = vpop.f32.mrf.mxu0
    %v13754 = vadd.f32 %v13525, %v13753
    %v13755 = vpop.f32.mrf.mxu0
    %v13756 = vpop.f32.mrf.mxu0
    %v13757 = vpop.f32.mrf.mxu0
    %13758 = vdwg.mxu0
    %13759 = vmatprep.subr.bf16.mxu0 0
    %13760 = vmatpush1.bf16.msra.mxu0 %v13678
    %13761 = vmatprep.subr.bf16.mxu0 0
    %13762 = vmatpush1.bf16.msra.mxu0 %v13677
    %13763 = vmatprep.subr.bf16.mxu0 0
    %13764 = vmatpush1.bf16.msra.mxu0 %v13676
    %13765 = vmatprep.subr.bf16.mxu0 0
    %13766 = vmatpush1.bf16.msra.mxu0 %v13675
    %13767 = vmatprep.subr.bf16.mxu0 0
    %13768 = vmatpush1.bf16.msra.mxu0 %v13674
    %13769 = vmatprep.subr.bf16.mxu0 0
    %13770 = vmatpush1.bf16.msra.mxu0 %v13673
    %13771 = vmatprep.subr.bf16.mxu0 0
    %13772 = vmatpush1.bf16.msra.mxu0 %v13672
    %13773 = vmatprep.subr.bf16.mxu0 0
    %13774 = vmatpush1.bf16.msra.mxu0 %v13671
    %13775 = vmatprep.subr.bf16.mxu0 0
    %13776 = vmatpush2.bf16.msra.mxu0 %v13686
    %13777 = vmatprep.subr.bf16.mxu0 0
    %13778 = vmatpush2.bf16.msra.mxu0 %v13685
    %13779 = vmatprep.subr.bf16.mxu0 0
    %13780 = vmatpush2.bf16.msra.mxu0 %v13684
    %13781 = vmatprep.subr.bf16.mxu0 0
    %13782 = vmatpush2.bf16.msra.mxu0 %v13683
    %13783 = vmatprep.subr.bf16.mxu0 0
    %13784 = vmatpush2.bf16.msra.mxu0 %v13682
    %13785 = vmatprep.subr.bf16.mxu0 0
    %13786 = vmatpush2.bf16.msra.mxu0 %v13681
    %13787 = vmatprep.subr.bf16.mxu0 0
    %13788 = vmatpush2.bf16.msra.mxu0 %v13680
    %13789 = vmatprep.subr.bf16.mxu0 0
    %13790 = vmatpush2.bf16.msra.mxu0 %v13679
    %13791 = vmatprep.mubr.bf16.mxu0 %v13455
    %13792 = vmatmul.mubr.bf16.gmra.mxu0 %v13454
    %v13793 = vpop.f32.mrf.mxu0
    %v13794 = vadd.f32 %v13754, %v13793
    %v13795 = vpop.f32.mrf.mxu0
    %v13796 = vpop.f32.mrf.mxu0
    %v13797 = vpop.f32.mrf.mxu0
    %13798 = vdwg.mxu0
    %v13799 = vlaneseq
    %v13800 = vand.u32 %v13799, 127
    %vm13801 = vcmp.lt.s32.totalorder %v13800, 10
    %v13802 = vsel %vm13801, %v13794, -1e+30
    %vm13803 = vcmask 1041408
    %v13804 = vsel %vm13803, %v13802, -inf
    %13805 = vmax.xlane.f32.xlu0 %v13804
    %v13806 = vpop.xlane.xlu0 %13805
    %v13807 = vsub.f32 %v13802, %v13806
    %v13808 = vmul.f32 %v13807, 1.442695
    %v13809 = vpow.pop %v13808
    %v13810 = vsel %vm13803, %v13809, 0.0
    %13811 = vadd.xlane.f32.xlu0 %v13810
    %v13812 = vpop.xlane.xlu0 %13811
    %v13813 = vlog2.pop %v13812
    %v13814 = vmul.f32 %v13813, 0.6931472
    %v13815 = vsub.f32 %v13807, %v13814
    %13816 = vst [vmem:[#allocation5] sm:$0x3] %v13815
    // Predicated region
    $region38: #{net_forward.1} parent=1 // pred_check
      _
    $region39: #{net_forward.1} parent=1 // pred_check_branch
      %13818 = sbr.rel (0) target = $region41
    $region40: #{net_forward.1} parent=1 // pred_region
      %s13820 = ssub.s32 32, 32
      %13821 = vsyncadd [#allocation6], %s13820
      %s13823 = sshll.u32 [#allocation5], 4
      %s13824 = int_to_ptr.vmem [resolvable:$true] %s13823
      %13826 = dma.vmem_to_hbm [thread:$0]  %s13824, 32, %s9, [#allocation6]
    $region41: #{net_forward.1} parent=1 // pred_fallthru
      _
    // Predicated region
    $region42: #{net_forward.1} parent=1 // pred_check
      _
    $region43: #{net_forward.1} parent=1 // pred_check_branch
      %13828 = sbr.rel (0) target = $region45
    $region44: #{net_forward.1} parent=1 // pred_region
      %13829 = dma.done [#allocation6], 32
    $region45: #{net_forward.1} parent=1 // pred_fallthru
      _
    %13830 = vsyncpa [#allocation6], 1

</llo_original>
